<compile_context>
chip_gen: v7x
topology: tpu7x:2x2x1
jax: 0.10.0
libtpu: 0.0.40
codegen_flags: <defaults>
</compile_context>

<pallas_src>
import math

import numpy as np
import jax
import jax.numpy as jnp
from jax import lax
from jax.experimental import pallas as pl
from jax.experimental.pallas import tpu as pltpu


# degree-8 Taylor is accurate to ~5e-9 (relative) for ||B||_inf <= _THETA;
# per-matrix scaling halves B until its inf-norm is below _THETA, up to
# _MAX_SQUARINGS halvings (covers ||AX||_inf <= _THETA * 2**_MAX_SQUARINGS).
_TAYLOR_DEGREE = 8
_MAX_SQUARINGS = 10
_THETA = 0.5
_INV_FACT = [1.0 / math.factorial(j) for j in range(_TAYLOR_DEGREE + 1)]
# TODO(synk): a dynamic-trip-count squaring loop (chunk-max norm) could skip
# the unconditional _MAX_SQUARINGS rounds when every norm in the chunk is small.


def _bit_reverse_permutation(n):
    """perm[p] = bit-reversal of p (n must be a power of two)."""
    assert n >= 1 and (n & (n - 1)) == 0
    bits = n.bit_length() - 1
    perm = np.zeros(n, dtype=np.int32)
    for i in range(n):
        r, x = 0, i
        for _ in range(bits):
            r = (r << 1) | (x & 1)
            x >>= 1
        perm[i] = r
    return perm


def _make_dev_kernel(Cin, m, Tchunk, Nlane):
    """Kernel over grid (channels, time-chunks)."""
    Bc = Tchunk * Nlane                    # lanes per chunk: (time, sample)
    levels = int(math.log2(Tchunk))

    def bmm(X, Y):
        """Batched matmul with the batch on lanes.
        X, Y: (m, m, B);  out[i, k, b] = sum_j X[i, j, b] * Y[j, k, b]."""
        out = X[:, 0:1, :] * Y[0:1, :, :]
        for j in range(1, m):
            out = out + X[:, j:j + 1, :] * Y[j:j + 1, :, :]
        return out

    def eye_lanes(nlanes):
        ii = lax.broadcasted_iota(jnp.int32, (m, m, nlanes), 0)
        jj = lax.broadcasted_iota(jnp.int32, (m, m, nlanes), 1)
        return (ii == jj).astype(jnp.float32)

    def matrix_exp(A):
        """expm of (m, m, B), batched over lanes.

        Per-lane adaptive scaling-and-squaring: halve each matrix until its
        inf-norm is <= _THETA (at most _MAX_SQUARINGS halvings), apply a
        degree-8 Taylor polynomial in Paterson-Stockmeyer form, then undo the
        scaling with per-lane masked squarings.  A == 0 yields exactly I."""
        nlanes = A.shape[-1]
        eye = eye_lanes(nlanes)

        # per-matrix infinity norm (per lane)
        row_sum = jnp.sum(jnp.abs(A), axis=1, keepdims=True)     # (m, 1, B)
        norm = jnp.max(row_sum, axis=0, keepdims=True)           # (1, 1, B)

        # exact power-of-two scale, no transcendentals
        scale = jnp.ones_like(norm)
        nrm = norm
        need_sq = []
        for _ in range(_MAX_SQUARINGS):
            cond = nrm > _THETA
            scale = jnp.where(cond, scale * 0.5, scale)
            nrm = jnp.where(cond, nrm * 0.5, nrm)
            need_sq.append(cond)

        Bm = A * scale
        c = _INV_FACT
        B2 = bmm(Bm, Bm)
        B3 = bmm(B2, Bm)
        C0 = eye + Bm + c[2] * B2
        C1 = c[3] * eye + c[4] * Bm + c[5] * B2
        C2 = c[6] * eye + c[7] * Bm + c[8] * B2
        P = C0 + bmm(B3, C1 + bmm(B3, C2))

        for cond in need_sq:                                      # masked squarings
            P = jnp.where(cond, bmm(P, P), P)
        return P

    def kernel(dx_ref, a_ref, out_ref, acc_ref):
        t = pl.program_id(1)

        dx = dx_ref[0]                     # (Cin, Bc)    path increments
        a = a_ref[0]                       # (m, m, Cin)  skew weights, this channel

        # Fused projection: AX[i, j, b] = sum_k A_skew[k, c, i, j] * dX[k, b]
        ax = a[:, :, 0:1] * dx[0][None, None, :]
        for k in range(1, Cin):
            ax = ax + a[:, :, k:k + 1] * dx[k][None, None, :]

        # Lie-group increments for every (time, sample) lane of the chunk.
        M = matrix_exp(ax)                 # (m, m, Bc)

        # Ordered product over the chunk's timesteps: dyadic reduction over
        # lanes.  Time is bit-reverse-permuted in the wrapper, so each level
        # multiplies the contiguous first lane half by the second lane half.
        half = Bc
        for _ in range(levels):
            half //= 2
            M = bmm(M[:, :, :half], M[:, :, half:])
        # M: (m, m, Nlane) — ordered product over this chunk, per sample.

        @pl.when(t == 0)
        def _():
            acc_ref[...] = M

        @pl.when(t > 0)
        def _():
            acc_ref[...] = bmm(acc_ref[...], M)

        @pl.when(t == pl.num_programs(1) - 1)
        def _():
            out_ref[0] = acc_ref[...]

    return kernel


def development_layer_forward(x, A_raw, hidden_size, channels, *, max_chunk_lanes=2048):
    """JAX/Pallas forward of development_layer (default config).

    x     : (N, T, input_size) float32
    A_raw : (input_size, channels, hidden_size, hidden_size) float32 raw weights
    returns (N, channels, hidden_size, hidden_size) float32
    """
    N, T, Cin = x.shape
    m = hidden_size
    C = channels

    # param_map = so : strict lower triangle minus its transpose (skew-symmetric).
    tril = jnp.tril(A_raw.astype(jnp.float32), k=-1)
    A_skew = tril - jnp.swapaxes(tril, -1, -2)                # (Cin, C, m, m)
    # kernel layout: (C, m, m, Cin) so each per-k (m, m, 1) slice broadcasts
    # straight across the lane (batch) dim with no in-kernel reshape.
    a_kernel = jnp.transpose(A_skew, (1, 2, 3, 0))            # (C, m, m, Cin)

    Tm = T - 1                                                # include_inital=False
    if Tm <= 0:
        eye = jnp.eye(m, dtype=jnp.float32)
        return jnp.broadcast_to(eye, (N, C, m, m))

    # Power-of-two time chunk sized so the per-chunk lane batch (Tchunk*N) stays
    # around `max_chunk_lanes` -> a few MiB of VMEM working set, safe on the
    # v7x 64 MiB / 32 MiB-scoped budget while keeping per-step overhead amortised.
    t_full = int(pl.next_power_of_2(Tm))
    t_cap = int(pl.next_power_of_2(max(1, max_chunk_lanes // N)))
    Tchunk = max(1, min(t_full, t_cap))
    num_chunks = int(pl.cdiv(Tm, Tchunk))
    Tpad = num_chunks * Tchunk
    Bc = Tchunk * N

    # Path increments, time-major, zero-padded (expm(0) == I exactly), and
    # bit-reverse-permuted within each chunk so the in-kernel dyadic product
    # pairs contiguous lane halves.
    dX = (x[:, 1:, :] - x[:, :-1, :]).astype(jnp.float32)     # (N, Tm, Cin)
    dX_t = jnp.transpose(dX, (1, 0, 2))                       # (Tm, N, Cin)
    dX_t = jnp.pad(dX_t, ((0, Tpad - Tm), (0, 0), (0, 0)))
    dX_t = dX_t.reshape(num_chunks, Tchunk, N, Cin)
    dX_t = dX_t[:, _bit_reverse_permutation(Tchunk)]          # bit-reverse time
    # kernel layout: (num_chunks, Cin, Tchunk*N) — lane dim = (time, sample)
    dx_chunks = jnp.transpose(dX_t, (0, 3, 1, 2)).reshape(num_chunks, Cin, Bc)

    kernel = _make_dev_kernel(Cin, m, Tchunk, N)

    # TODO(synk): return_sequence=True (per-step prefix products) and
    # complexification=True (complex Lie group) paths are not implemented here.
    out = pl.pallas_call(
        kernel,
        out_shape=jax.ShapeDtypeStruct((C, m, m, N), jnp.float32),
        grid_spec=pltpu.PrefetchScalarGridSpec(
            num_scalar_prefetch=0,
            grid=(C, num_chunks),
            in_specs=[
                pl.BlockSpec((1, Cin, Bc), lambda c, t: (t, 0, 0)),
                pl.BlockSpec((1, m, m, Cin), lambda c, t: (c, 0, 0, 0)),
            ],
            out_specs=pl.BlockSpec((1, m, m, N), lambda c, t: (c, 0, 0, 0)),
            scratch_shapes=[pltpu.VMEM((m, m, N), jnp.float32)],
        ),
        compiler_params=pltpu.CompilerParams(
            dimension_semantics=("parallel", "arbitrary"),
        ),
    )(dx_chunks, a_kernel)

    # (C, m, m, N) -> (N, C, m, m); the kernel-side layout keeps the batch on
    # lanes, the tiny final transpose is done host/XLA-side.
    return jnp.transpose(out, (3, 0, 1, 2))


def _reference(x, A_raw, hidden_size, channels):
    """Pure-JAX reference of the same forward pass (for validation)."""
    N, T, Cin = x.shape
    m = hidden_size
    tril = jnp.tril(A_raw, k=-1)
    A_skew = tril - jnp.swapaxes(tril, -1, -2)
    dX = x[:, 1:, :] - x[:, :-1, :]
    AX = jnp.einsum("ntk,kcij->ntcij", dX, A_skew)
    E = jax.scipy.linalg.expm(AX)                             # (N, T-1, C, m, m)
    out = jnp.broadcast_to(jnp.eye(m, dtype=jnp.float32), (N, channels, m, m))
    for t in range(T - 1):
        out = jnp.einsum("ncij,ncjk->ncik", out, E[:, t])
    return out


if __name__ == "__main__":
    key = jax.random.PRNGKey(0)
    N, T, input_size = 2, 8, 4
    hidden_size, channels = 8, 2

    k1, k2 = jax.random.split(key)
    x = jax.random.normal(k1, (N, T, input_size), dtype=jnp.float32)

    # deterministic kaiming-uniform-style init for the raw Lie-algebra weights
    fan_in = channels * hidden_size * hidden_size
    bound = math.sqrt(6.0 / fan_in)
    A_raw = jax.random.uniform(
        k2,
        (input_size, channels, hidden_size, hidden_size),
        dtype=jnp.float32,
        minval=-bound,
        maxval=bound,
    )

    out = jax.block_until_ready(
        development_layer_forward(x, A_raw, hidden_size, channels)
    )
    ref = jax.block_until_ready(_reference(x, A_raw, hidden_size, channels))

    assert out.shape == (N, channels, hidden_size, hidden_size)
    assert bool(jnp.all(jnp.isfinite(out)))
    assert bool(jnp.allclose(out, ref, rtol=1e-3, atol=1e-3))

    print("KERNEL_OK")
</pallas_src>

<mosaic_0001>
module attributes {stable_mosaic.version = 11 : i64} {
  func.func @kernel(%arg0: i32, %arg1: i32, %arg2: memref<1x4x16xf32, #tpu.memory_space<vmem>>, %arg3: memref<1x8x8x4xf32, #tpu.memory_space<vmem>>, %arg4: memref<1x8x8x2xf32, #tpu.memory_space<vmem>>, %arg5: memref<8x8x2xf32, #tpu.memory_space<vmem>>) attributes {dimension_semantics = [#tpu.dimension_semantics<parallel>, #tpu.dimension_semantics<arbitrary>], iteration_bounds = array<i64: 2, 1>, scalar_prefetch = 0 : i64, scratch_operands = 1 : i64, tpu.core_type = #tpu.core_type<tc>, window_params = [{transform_indices = @transform_0, window_bounds = array<i64: 1, 4, 16>}, {transform_indices = @transform_1, window_bounds = array<i64: 1, 8, 8, 4>}, {transform_indices = @transform_2, window_bounds = array<i64: 1, 8, 8, 2>}]} {
    %c0 = arith.constant 0 : index
    %c0_0 = arith.constant 0 : index
    %c0_1 = arith.constant 0 : index
    %0 = vector.load %arg2[%c0, %c0_0, %c0_1] : memref<1x4x16xf32, #tpu.memory_space<vmem>>, vector<1x4x16xf32>
    %1 = vector.shape_cast %0 : vector<1x4x16xf32> to vector<4x16xf32>
    %c0_2 = arith.constant 0 : index
    %c0_3 = arith.constant 0 : index
    %c0_4 = arith.constant 0 : index
    %c0_5 = arith.constant 0 : index
    %2 = vector.load %arg3[%c0_2, %c0_3, %c0_4, %c0_5] : memref<1x8x8x4xf32, #tpu.memory_space<vmem>>, vector<1x8x8x4xf32>
    %3 = vector.shape_cast %2 : vector<1x8x8x4xf32> to vector<8x8x4xf32>
    %4 = vector.extract_strided_slice %3 {offsets = [0, 0, 0], sizes = [8, 8, 1], strides = [1, 1, 1]} : vector<8x8x4xf32> to vector<8x8x1xf32>
    %5 = vector.extract_strided_slice %1 {offsets = [0, 0], sizes = [1, 16], strides = [1, 1]} : vector<4x16xf32> to vector<1x16xf32>
    %6 = vector.shape_cast %5 : vector<1x16xf32> to vector<16xf32>
    %7 = vector.shape_cast %6 : vector<16xf32> to vector<1x1x16xf32>
    %8 = vector.broadcast %4 : vector<8x8x1xf32> to vector<8x8x16xf32>
    %9 = vector.broadcast %7 : vector<1x1x16xf32> to vector<8x8x16xf32>
    %10 = arith.mulf %8, %9 : vector<8x8x16xf32>
    %11 = vector.extract_strided_slice %3 {offsets = [0, 0, 1], sizes = [8, 8, 1], strides = [1, 1, 1]} : vector<8x8x4xf32> to vector<8x8x1xf32>
    %12 = vector.extract_strided_slice %1 {offsets = [1, 0], sizes = [1, 16], strides = [1, 1]} : vector<4x16xf32> to vector<1x16xf32>
    %13 = vector.shape_cast %12 : vector<1x16xf32> to vector<16xf32>
    %14 = vector.shape_cast %13 : vector<16xf32> to vector<1x1x16xf32>
    %15 = vector.broadcast %11 : vector<8x8x1xf32> to vector<8x8x16xf32>
    %16 = vector.broadcast %14 : vector<1x1x16xf32> to vector<8x8x16xf32>
    %17 = arith.mulf %15, %16 : vector<8x8x16xf32>
    %18 = arith.addf %10, %17 : vector<8x8x16xf32>
    %19 = vector.extract_strided_slice %3 {offsets = [0, 0, 2], sizes = [8, 8, 1], strides = [1, 1, 1]} : vector<8x8x4xf32> to vector<8x8x1xf32>
    %20 = vector.extract_strided_slice %1 {offsets = [2, 0], sizes = [1, 16], strides = [1, 1]} : vector<4x16xf32> to vector<1x16xf32>
    %21 = vector.shape_cast %20 : vector<1x16xf32> to vector<16xf32>
    %22 = vector.shape_cast %21 : vector<16xf32> to vector<1x1x16xf32>
    %23 = vector.broadcast %19 : vector<8x8x1xf32> to vector<8x8x16xf32>
    %24 = vector.broadcast %22 : vector<1x1x16xf32> to vector<8x8x16xf32>
    %25 = arith.mulf %23, %24 : vector<8x8x16xf32>
    %26 = arith.addf %18, %25 : vector<8x8x16xf32>
    %27 = vector.extract_strided_slice %3 {offsets = [0, 0, 3], sizes = [8, 8, 1], strides = [1, 1, 1]} : vector<8x8x4xf32> to vector<8x8x1xf32>
    %28 = vector.extract_strided_slice %1 {offsets = [3, 0], sizes = [1, 16], strides = [1, 1]} : vector<4x16xf32> to vector<1x16xf32>
    %29 = vector.shape_cast %28 : vector<1x16xf32> to vector<16xf32>
    %30 = vector.shape_cast %29 : vector<16xf32> to vector<1x1x16xf32>
    %31 = vector.broadcast %27 : vector<8x8x1xf32> to vector<8x8x16xf32>
    %32 = vector.broadcast %30 : vector<1x1x16xf32> to vector<8x8x16xf32>
    %33 = arith.mulf %31, %32 : vector<8x8x16xf32>
    %34 = arith.addf %26, %33 : vector<8x8x16xf32>
    %35 = tpu.iota {dimensions = array<i32: 0>} : vector<8x8x16xi32>
    %36 = tpu.iota {dimensions = array<i32: 1>} : vector<8x8x16xi32>
    %37 = arith.cmpi eq, %35, %36 : vector<8x8x16xi32>
    %38 = arith.extui %37 : vector<8x8x16xi1> to vector<8x8x16xi32>
    %39 = arith.sitofp %38 : vector<8x8x16xi32> to vector<8x8x16xf32>
    %40 = math.absf %34 : vector<8x8x16xf32>
    %cst = arith.constant dense<0.000000e+00> : vector<8x16xf32>
    %41 = vector.multi_reduction <add>, %40, %cst [1] : vector<8x8x16xf32> to vector<8x16xf32>
    %42 = vector.shape_cast %41 : vector<8x16xf32> to vector<8x1x16xf32>
    %cst_6 = arith.constant dense<0xFF800000> : vector<1x16xf32>
    %43 = vector.multi_reduction <maximumf>, %42, %cst_6 [0] : vector<8x1x16xf32> to vector<1x16xf32>
    %44 = vector.shape_cast %43 : vector<1x16xf32> to vector<1x1x16xf32>
    %cst_7 = arith.constant 1.000000e+00 : f32
    %45 = vector.broadcast %cst_7 : f32 to vector<1x1x16xf32>
    %cst_8 = arith.constant 5.000000e-01 : f32
    %46 = vector.broadcast %cst_8 : f32 to vector<1x1x16xf32>
    %47 = arith.cmpf ogt, %44, %46 : vector<1x1x16xf32>
    %cst_9 = arith.constant 5.000000e-01 : f32
    %48 = vector.broadcast %cst_9 : f32 to vector<1x1x16xf32>
    %49 = arith.mulf %45, %48 : vector<1x1x16xf32>
    %50 = arith.select %47, %49, %45 : vector<1x1x16xi1>, vector<1x1x16xf32>
    %cst_10 = arith.constant 5.000000e-01 : f32
    %51 = vector.broadcast %cst_10 : f32 to vector<1x1x16xf32>
    %52 = arith.mulf %44, %51 : vector<1x1x16xf32>
    %53 = arith.select %47, %52, %44 : vector<1x1x16xi1>, vector<1x1x16xf32>
    %cst_11 = arith.constant 5.000000e-01 : f32
    %54 = vector.broadcast %cst_11 : f32 to vector<1x1x16xf32>
    %55 = arith.cmpf ogt, %53, %54 : vector<1x1x16xf32>
    %cst_12 = arith.constant 5.000000e-01 : f32
    %56 = vector.broadcast %cst_12 : f32 to vector<1x1x16xf32>
    %57 = arith.mulf %50, %56 : vector<1x1x16xf32>
    %58 = arith.select %55, %57, %50 : vector<1x1x16xi1>, vector<1x1x16xf32>
    %cst_13 = arith.constant 5.000000e-01 : f32
    %59 = vector.broadcast %cst_13 : f32 to vector<1x1x16xf32>
    %60 = arith.mulf %53, %59 : vector<1x1x16xf32>
    %61 = arith.select %55, %60, %53 : vector<1x1x16xi1>, vector<1x1x16xf32>
    %cst_14 = arith.constant 5.000000e-01 : f32
    %62 = vector.broadcast %cst_14 : f32 to vector<1x1x16xf32>
    %63 = arith.cmpf ogt, %61, %62 : vector<1x1x16xf32>
    %cst_15 = arith.constant 5.000000e-01 : f32
    %64 = vector.broadcast %cst_15 : f32 to vector<1x1x16xf32>
    %65 = arith.mulf %58, %64 : vector<1x1x16xf32>
    %66 = arith.select %63, %65, %58 : vector<1x1x16xi1>, vector<1x1x16xf32>
    %cst_16 = arith.constant 5.000000e-01 : f32
    %67 = vector.broadcast %cst_16 : f32 to vector<1x1x16xf32>
    %68 = arith.mulf %61, %67 : vector<1x1x16xf32>
    %69 = arith.select %63, %68, %61 : vector<1x1x16xi1>, vector<1x1x16xf32>
    %cst_17 = arith.constant 5.000000e-01 : f32
    %70 = vector.broadcast %cst_17 : f32 to vector<1x1x16xf32>
    %71 = arith.cmpf ogt, %69, %70 : vector<1x1x16xf32>
    %cst_18 = arith.constant 5.000000e-01 : f32
    %72 = vector.broadcast %cst_18 : f32 to vector<1x1x16xf32>
    %73 = arith.mulf %66, %72 : vector<1x1x16xf32>
    %74 = arith.select %71, %73, %66 : vector<1x1x16xi1>, vector<1x1x16xf32>
    %cst_19 = arith.constant 5.000000e-01 : f32
    %75 = vector.broadcast %cst_19 : f32 to vector<1x1x16xf32>
    %76 = arith.mulf %69, %75 : vector<1x1x16xf32>
    %77 = arith.select %71, %76, %69 : vector<1x1x16xi1>, vector<1x1x16xf32>
    %cst_20 = arith.constant 5.000000e-01 : f32
    %78 = vector.broadcast %cst_20 : f32 to vector<1x1x16xf32>
    %79 = arith.cmpf ogt, %77, %78 : vector<1x1x16xf32>
    %cst_21 = arith.constant 5.000000e-01 : f32
    %80 = vector.broadcast %cst_21 : f32 to vector<1x1x16xf32>
    %81 = arith.mulf %74, %80 : vector<1x1x16xf32>
    %82 = arith.select %79, %81, %74 : vector<1x1x16xi1>, vector<1x1x16xf32>
    %cst_22 = arith.constant 5.000000e-01 : f32
    %83 = vector.broadcast %cst_22 : f32 to vector<1x1x16xf32>
    %84 = arith.mulf %77, %83 : vector<1x1x16xf32>
    %85 = arith.select %79, %84, %77 : vector<1x1x16xi1>, vector<1x1x16xf32>
    %cst_23 = arith.constant 5.000000e-01 : f32
    %86 = vector.broadcast %cst_23 : f32 to vector<1x1x16xf32>
    %87 = arith.cmpf ogt, %85, %86 : vector<1x1x16xf32>
    %cst_24 = arith.constant 5.000000e-01 : f32
    %88 = vector.broadcast %cst_24 : f32 to vector<1x1x16xf32>
    %89 = arith.mulf %82, %88 : vector<1x1x16xf32>
    %90 = arith.select %87, %89, %82 : vector<1x1x16xi1>, vector<1x1x16xf32>
    %cst_25 = arith.constant 5.000000e-01 : f32
    %91 = vector.broadcast %cst_25 : f32 to vector<1x1x16xf32>
    %92 = arith.mulf %85, %91 : vector<1x1x16xf32>
    %93 = arith.select %87, %92, %85 : vector<1x1x16xi1>, vector<1x1x16xf32>
    %cst_26 = arith.constant 5.000000e-01 : f32
    %94 = vector.broadcast %cst_26 : f32 to vector<1x1x16xf32>
    %95 = arith.cmpf ogt, %93, %94 : vector<1x1x16xf32>
    %cst_27 = arith.constant 5.000000e-01 : f32
    %96 = vector.broadcast %cst_27 : f32 to vector<1x1x16xf32>
    %97 = arith.mulf %90, %96 : vector<1x1x16xf32>
    %98 = arith.select %95, %97, %90 : vector<1x1x16xi1>, vector<1x1x16xf32>
    %cst_28 = arith.constant 5.000000e-01 : f32
    %99 = vector.broadcast %cst_28 : f32 to vector<1x1x16xf32>
    %100 = arith.mulf %93, %99 : vector<1x1x16xf32>
    %101 = arith.select %95, %100, %93 : vector<1x1x16xi1>, vector<1x1x16xf32>
    %cst_29 = arith.constant 5.000000e-01 : f32
    %102 = vector.broadcast %cst_29 : f32 to vector<1x1x16xf32>
    %103 = arith.cmpf ogt, %101, %102 : vector<1x1x16xf32>
    %cst_30 = arith.constant 5.000000e-01 : f32
    %104 = vector.broadcast %cst_30 : f32 to vector<1x1x16xf32>
    %105 = arith.mulf %98, %104 : vector<1x1x16xf32>
    %106 = arith.select %103, %105, %98 : vector<1x1x16xi1>, vector<1x1x16xf32>
    %cst_31 = arith.constant 5.000000e-01 : f32
    %107 = vector.broadcast %cst_31 : f32 to vector<1x1x16xf32>
    %108 = arith.mulf %101, %107 : vector<1x1x16xf32>
    %109 = arith.select %103, %108, %101 : vector<1x1x16xi1>, vector<1x1x16xf32>
    %cst_32 = arith.constant 5.000000e-01 : f32
    %110 = vector.broadcast %cst_32 : f32 to vector<1x1x16xf32>
    %111 = arith.cmpf ogt, %109, %110 : vector<1x1x16xf32>
    %cst_33 = arith.constant 5.000000e-01 : f32
    %112 = vector.broadcast %cst_33 : f32 to vector<1x1x16xf32>
    %113 = arith.mulf %106, %112 : vector<1x1x16xf32>
    %114 = arith.select %111, %113, %106 : vector<1x1x16xi1>, vector<1x1x16xf32>
    %cst_34 = arith.constant 5.000000e-01 : f32
    %115 = vector.broadcast %cst_34 : f32 to vector<1x1x16xf32>
    %116 = arith.mulf %109, %115 : vector<1x1x16xf32>
    %117 = arith.select %111, %116, %109 : vector<1x1x16xi1>, vector<1x1x16xf32>
    %cst_35 = arith.constant 5.000000e-01 : f32
    %118 = vector.broadcast %cst_35 : f32 to vector<1x1x16xf32>
    %119 = arith.cmpf ogt, %117, %118 : vector<1x1x16xf32>
    %cst_36 = arith.constant 5.000000e-01 : f32
    %120 = vector.broadcast %cst_36 : f32 to vector<1x1x16xf32>
    %121 = arith.mulf %114, %120 : vector<1x1x16xf32>
    %122 = arith.select %119, %121, %114 : vector<1x1x16xi1>, vector<1x1x16xf32>
    %123 = vector.broadcast %122 : vector<1x1x16xf32> to vector<8x8x16xf32>
    %124 = arith.mulf %34, %123 : vector<8x8x16xf32>
    %125 = vector.extract_strided_slice %124 {offsets = [0, 0, 0], sizes = [8, 1, 16], strides = [1, 1, 1]} : vector<8x8x16xf32> to vector<8x1x16xf32>
    %126 = vector.extract_strided_slice %124 {offsets = [0, 0, 0], sizes = [1, 8, 16], strides = [1, 1, 1]} : vector<8x8x16xf32> to vector<1x8x16xf32>
    %127 = vector.broadcast %125 : vector<8x1x16xf32> to vector<8x8x16xf32>
    %128 = vector.broadcast %126 : vector<1x8x16xf32> to vector<8x8x16xf32>
    %129 = arith.mulf %127, %128 : vector<8x8x16xf32>
    %130 = vector.extract_strided_slice %124 {offsets = [0, 1, 0], sizes = [8, 1, 16], strides = [1, 1, 1]} : vector<8x8x16xf32> to vector<8x1x16xf32>
    %131 = vector.extract_strided_slice %124 {offsets = [1, 0, 0], sizes = [1, 8, 16], strides = [1, 1, 1]} : vector<8x8x16xf32> to vector<1x8x16xf32>
    %132 = vector.broadcast %130 : vector<8x1x16xf32> to vector<8x8x16xf32>
    %133 = vector.broadcast %131 : vector<1x8x16xf32> to vector<8x8x16xf32>
    %134 = arith.mulf %132, %133 : vector<8x8x16xf32>
    %135 = arith.addf %129, %134 : vector<8x8x16xf32>
    %136 = vector.extract_strided_slice %124 {offsets = [0, 2, 0], sizes = [8, 1, 16], strides = [1, 1, 1]} : vector<8x8x16xf32> to vector<8x1x16xf32>
    %137 = vector.extract_strided_slice %124 {offsets = [2, 0, 0], sizes = [1, 8, 16], strides = [1, 1, 1]} : vector<8x8x16xf32> to vector<1x8x16xf32>
    %138 = vector.broadcast %136 : vector<8x1x16xf32> to vector<8x8x16xf32>
    %139 = vector.broadcast %137 : vector<1x8x16xf32> to vector<8x8x16xf32>
    %140 = arith.mulf %138, %139 : vector<8x8x16xf32>
    %141 = arith.addf %135, %140 : vector<8x8x16xf32>
    %142 = vector.extract_strided_slice %124 {offsets = [0, 3, 0], sizes = [8, 1, 16], strides = [1, 1, 1]} : vector<8x8x16xf32> to vector<8x1x16xf32>
    %143 = vector.extract_strided_slice %124 {offsets = [3, 0, 0], sizes = [1, 8, 16], strides = [1, 1, 1]} : vector<8x8x16xf32> to vector<1x8x16xf32>
    %144 = vector.broadcast %142 : vector<8x1x16xf32> to vector<8x8x16xf32>
    %145 = vector.broadcast %143 : vector<1x8x16xf32> to vector<8x8x16xf32>
    %146 = arith.mulf %144, %145 : vector<8x8x16xf32>
    %147 = arith.addf %141, %146 : vector<8x8x16xf32>
    %148 = vector.extract_strided_slice %124 {offsets = [0, 4, 0], sizes = [8, 1, 16], strides = [1, 1, 1]} : vector<8x8x16xf32> to vector<8x1x16xf32>
    %149 = vector.extract_strided_slice %124 {offsets = [4, 0, 0], sizes = [1, 8, 16], strides = [1, 1, 1]} : vector<8x8x16xf32> to vector<1x8x16xf32>
    %150 = vector.broadcast %148 : vector<8x1x16xf32> to vector<8x8x16xf32>
    %151 = vector.broadcast %149 : vector<1x8x16xf32> to vector<8x8x16xf32>
    %152 = arith.mulf %150, %151 : vector<8x8x16xf32>
    %153 = arith.addf %147, %152 : vector<8x8x16xf32>
    %154 = vector.extract_strided_slice %124 {offsets = [0, 5, 0], sizes = [8, 1, 16], strides = [1, 1, 1]} : vector<8x8x16xf32> to vector<8x1x16xf32>
    %155 = vector.extract_strided_slice %124 {offsets = [5, 0, 0], sizes = [1, 8, 16], strides = [1, 1, 1]} : vector<8x8x16xf32> to vector<1x8x16xf32>
    %156 = vector.broadcast %154 : vector<8x1x16xf32> to vector<8x8x16xf32>
    %157 = vector.broadcast %155 : vector<1x8x16xf32> to vector<8x8x16xf32>
    %158 = arith.mulf %156, %157 : vector<8x8x16xf32>
    %159 = arith.addf %153, %158 : vector<8x8x16xf32>
    %160 = vector.extract_strided_slice %124 {offsets = [0, 6, 0], sizes = [8, 1, 16], strides = [1, 1, 1]} : vector<8x8x16xf32> to vector<8x1x16xf32>
    %161 = vector.extract_strided_slice %124 {offsets = [6, 0, 0], sizes = [1, 8, 16], strides = [1, 1, 1]} : vector<8x8x16xf32> to vector<1x8x16xf32>
    %162 = vector.broadcast %160 : vector<8x1x16xf32> to vector<8x8x16xf32>
    %163 = vector.broadcast %161 : vector<1x8x16xf32> to vector<8x8x16xf32>
    %164 = arith.mulf %162, %163 : vector<8x8x16xf32>
    %165 = arith.addf %159, %164 : vector<8x8x16xf32>
    %166 = vector.extract_strided_slice %124 {offsets = [0, 7, 0], sizes = [8, 1, 16], strides = [1, 1, 1]} : vector<8x8x16xf32> to vector<8x1x16xf32>
    %167 = vector.extract_strided_slice %124 {offsets = [7, 0, 0], sizes = [1, 8, 16], strides = [1, 1, 1]} : vector<8x8x16xf32> to vector<1x8x16xf32>
    %168 = vector.broadcast %166 : vector<8x1x16xf32> to vector<8x8x16xf32>
    %169 = vector.broadcast %167 : vector<1x8x16xf32> to vector<8x8x16xf32>
    %170 = arith.mulf %168, %169 : vector<8x8x16xf32>
    %171 = arith.addf %165, %170 : vector<8x8x16xf32>
    %172 = vector.extract_strided_slice %171 {offsets = [0, 0, 0], sizes = [8, 1, 16], strides = [1, 1, 1]} : vector<8x8x16xf32> to vector<8x1x16xf32>
    %173 = vector.extract_strided_slice %124 {offsets = [0, 0, 0], sizes = [1, 8, 16], strides = [1, 1, 1]} : vector<8x8x16xf32> to vector<1x8x16xf32>
    %174 = vector.broadcast %172 : vector<8x1x16xf32> to vector<8x8x16xf32>
    %175 = vector.broadcast %173 : vector<1x8x16xf32> to vector<8x8x16xf32>
    %176 = arith.mulf %174, %175 : vector<8x8x16xf32>
    %177 = vector.extract_strided_slice %171 {offsets = [0, 1, 0], sizes = [8, 1, 16], strides = [1, 1, 1]} : vector<8x8x16xf32> to vector<8x1x16xf32>
    %178 = vector.extract_strided_slice %124 {offsets = [1, 0, 0], sizes = [1, 8, 16], strides = [1, 1, 1]} : vector<8x8x16xf32> to vector<1x8x16xf32>
    %179 = vector.broadcast %177 : vector<8x1x16xf32> to vector<8x8x16xf32>
    %180 = vector.broadcast %178 : vector<1x8x16xf32> to vector<8x8x16xf32>
    %181 = arith.mulf %179, %180 : vector<8x8x16xf32>
    %182 = arith.addf %176, %181 : vector<8x8x16xf32>
    %183 = vector.extract_strided_slice %171 {offsets = [0, 2, 0], sizes = [8, 1, 16], strides = [1, 1, 1]} : vector<8x8x16xf32> to vector<8x1x16xf32>
    %184 = vector.extract_strided_slice %124 {offsets = [2, 0, 0], sizes = [1, 8, 16], strides = [1, 1, 1]} : vector<8x8x16xf32> to vector<1x8x16xf32>
    %185 = vector.broadcast %183 : vector<8x1x16xf32> to vector<8x8x16xf32>
    %186 = vector.broadcast %184 : vector<1x8x16xf32> to vector<8x8x16xf32>
    %187 = arith.mulf %185, %186 : vector<8x8x16xf32>
    %188 = arith.addf %182, %187 : vector<8x8x16xf32>
    %189 = vector.extract_strided_slice %171 {offsets = [0, 3, 0], sizes = [8, 1, 16], strides = [1, 1, 1]} : vector<8x8x16xf32> to vector<8x1x16xf32>
    %190 = vector.extract_strided_slice %124 {offsets = [3, 0, 0], sizes = [1, 8, 16], strides = [1, 1, 1]} : vector<8x8x16xf32> to vector<1x8x16xf32>
    %191 = vector.broadcast %189 : vector<8x1x16xf32> to vector<8x8x16xf32>
    %192 = vector.broadcast %190 : vector<1x8x16xf32> to vector<8x8x16xf32>
    %193 = arith.mulf %191, %192 : vector<8x8x16xf32>
    %194 = arith.addf %188, %193 : vector<8x8x16xf32>
    %195 = vector.extract_strided_slice %171 {offsets = [0, 4, 0], sizes = [8, 1, 16], strides = [1, 1, 1]} : vector<8x8x16xf32> to vector<8x1x16xf32>
    %196 = vector.extract_strided_slice %124 {offsets = [4, 0, 0], sizes = [1, 8, 16], strides = [1, 1, 1]} : vector<8x8x16xf32> to vector<1x8x16xf32>
    %197 = vector.broadcast %195 : vector<8x1x16xf32> to vector<8x8x16xf32>
    %198 = vector.broadcast %196 : vector<1x8x16xf32> to vector<8x8x16xf32>
    %199 = arith.mulf %197, %198 : vector<8x8x16xf32>
    %200 = arith.addf %194, %199 : vector<8x8x16xf32>
    %201 = vector.extract_strided_slice %171 {offsets = [0, 5, 0], sizes = [8, 1, 16], strides = [1, 1, 1]} : vector<8x8x16xf32> to vector<8x1x16xf32>
    %202 = vector.extract_strided_slice %124 {offsets = [5, 0, 0], sizes = [1, 8, 16], strides = [1, 1, 1]} : vector<8x8x16xf32> to vector<1x8x16xf32>
    %203 = vector.broadcast %201 : vector<8x1x16xf32> to vector<8x8x16xf32>
    %204 = vector.broadcast %202 : vector<1x8x16xf32> to vector<8x8x16xf32>
    %205 = arith.mulf %203, %204 : vector<8x8x16xf32>
    %206 = arith.addf %200, %205 : vector<8x8x16xf32>
    %207 = vector.extract_strided_slice %171 {offsets = [0, 6, 0], sizes = [8, 1, 16], strides = [1, 1, 1]} : vector<8x8x16xf32> to vector<8x1x16xf32>
    %208 = vector.extract_strided_slice %124 {offsets = [6, 0, 0], sizes = [1, 8, 16], strides = [1, 1, 1]} : vector<8x8x16xf32> to vector<1x8x16xf32>
    %209 = vector.broadcast %207 : vector<8x1x16xf32> to vector<8x8x16xf32>
    %210 = vector.broadcast %208 : vector<1x8x16xf32> to vector<8x8x16xf32>
    %211 = arith.mulf %209, %210 : vector<8x8x16xf32>
    %212 = arith.addf %206, %211 : vector<8x8x16xf32>
    %213 = vector.extract_strided_slice %171 {offsets = [0, 7, 0], sizes = [8, 1, 16], strides = [1, 1, 1]} : vector<8x8x16xf32> to vector<8x1x16xf32>
    %214 = vector.extract_strided_slice %124 {offsets = [7, 0, 0], sizes = [1, 8, 16], strides = [1, 1, 1]} : vector<8x8x16xf32> to vector<1x8x16xf32>
    %215 = vector.broadcast %213 : vector<8x1x16xf32> to vector<8x8x16xf32>
    %216 = vector.broadcast %214 : vector<1x8x16xf32> to vector<8x8x16xf32>
    %217 = arith.mulf %215, %216 : vector<8x8x16xf32>
    %218 = arith.addf %212, %217 : vector<8x8x16xf32>
    %219 = arith.addf %39, %124 : vector<8x8x16xf32>
    %cst_37 = arith.constant 5.000000e-01 : f32
    %220 = vector.broadcast %cst_37 : f32 to vector<8x8x16xf32>
    %221 = arith.mulf %220, %171 : vector<8x8x16xf32>
    %222 = arith.addf %219, %221 : vector<8x8x16xf32>
    %cst_38 = arith.constant 0.166666672 : f32
    %223 = vector.broadcast %cst_38 : f32 to vector<8x8x16xf32>
    %224 = arith.mulf %223, %39 : vector<8x8x16xf32>
    %cst_39 = arith.constant 0.0416666679 : f32
    %225 = vector.broadcast %cst_39 : f32 to vector<8x8x16xf32>
    %226 = arith.mulf %225, %124 : vector<8x8x16xf32>
    %227 = arith.addf %224, %226 : vector<8x8x16xf32>
    %cst_40 = arith.constant 0.00833333377 : f32
    %228 = vector.broadcast %cst_40 : f32 to vector<8x8x16xf32>
    %229 = arith.mulf %228, %171 : vector<8x8x16xf32>
    %230 = arith.addf %227, %229 : vector<8x8x16xf32>
    %cst_41 = arith.constant 0.00138888892 : f32
    %231 = vector.broadcast %cst_41 : f32 to vector<8x8x16xf32>
    %232 = arith.mulf %231, %39 : vector<8x8x16xf32>
    %cst_42 = arith.constant 1.98412701E-4 : f32
    %233 = vector.broadcast %cst_42 : f32 to vector<8x8x16xf32>
    %234 = arith.mulf %233, %124 : vector<8x8x16xf32>
    %235 = arith.addf %232, %234 : vector<8x8x16xf32>
    %cst_43 = arith.constant 2.48015876E-5 : f32
    %236 = vector.broadcast %cst_43 : f32 to vector<8x8x16xf32>
    %237 = arith.mulf %236, %171 : vector<8x8x16xf32>
    %238 = arith.addf %235, %237 : vector<8x8x16xf32>
    %239 = vector.extract_strided_slice %218 {offsets = [0, 0, 0], sizes = [8, 1, 16], strides = [1, 1, 1]} : vector<8x8x16xf32> to vector<8x1x16xf32>
    %240 = vector.extract_strided_slice %238 {offsets = [0, 0, 0], sizes = [1, 8, 16], strides = [1, 1, 1]} : vector<8x8x16xf32> to vector<1x8x16xf32>
    %241 = vector.broadcast %239 : vector<8x1x16xf32> to vector<8x8x16xf32>
    %242 = vector.broadcast %240 : vector<1x8x16xf32> to vector<8x8x16xf32>
    %243 = arith.mulf %241, %242 : vector<8x8x16xf32>
    %244 = vector.extract_strided_slice %218 {offsets = [0, 1, 0], sizes = [8, 1, 16], strides = [1, 1, 1]} : vector<8x8x16xf32> to vector<8x1x16xf32>
    %245 = vector.extract_strided_slice %238 {offsets = [1, 0, 0], sizes = [1, 8, 16], strides = [1, 1, 1]} : vector<8x8x16xf32> to vector<1x8x16xf32>
    %246 = vector.broadcast %244 : vector<8x1x16xf32> to vector<8x8x16xf32>
    %247 = vector.broadcast %245 : vector<1x8x16xf32> to vector<8x8x16xf32>
    %248 = arith.mulf %246, %247 : vector<8x8x16xf32>
    %249 = arith.addf %243, %248 : vector<8x8x16xf32>
    %250 = vector.extract_strided_slice %218 {offsets = [0, 2, 0], sizes = [8, 1, 16], strides = [1, 1, 1]} : vector<8x8x16xf32> to vector<8x1x16xf32>
    %251 = vector.extract_strided_slice %238 {offsets = [2, 0, 0], sizes = [1, 8, 16], strides = [1, 1, 1]} : vector<8x8x16xf32> to vector<1x8x16xf32>
    %252 = vector.broadcast %250 : vector<8x1x16xf32> to vector<8x8x16xf32>
    %253 = vector.broadcast %251 : vector<1x8x16xf32> to vector<8x8x16xf32>
    %254 = arith.mulf %252, %253 : vector<8x8x16xf32>
    %255 = arith.addf %249, %254 : vector<8x8x16xf32>
    %256 = vector.extract_strided_slice %218 {offsets = [0, 3, 0], sizes = [8, 1, 16], strides = [1, 1, 1]} : vector<8x8x16xf32> to vector<8x1x16xf32>
    %257 = vector.extract_strided_slice %238 {offsets = [3, 0, 0], sizes = [1, 8, 16], strides = [1, 1, 1]} : vector<8x8x16xf32> to vector<1x8x16xf32>
    %258 = vector.broadcast %256 : vector<8x1x16xf32> to vector<8x8x16xf32>
    %259 = vector.broadcast %257 : vector<1x8x16xf32> to vector<8x8x16xf32>
    %260 = arith.mulf %258, %259 : vector<8x8x16xf32>
    %261 = arith.addf %255, %260 : vector<8x8x16xf32>
    %262 = vector.extract_strided_slice %218 {offsets = [0, 4, 0], sizes = [8, 1, 16], strides = [1, 1, 1]} : vector<8x8x16xf32> to vector<8x1x16xf32>
    %263 = vector.extract_strided_slice %238 {offsets = [4, 0, 0], sizes = [1, 8, 16], strides = [1, 1, 1]} : vector<8x8x16xf32> to vector<1x8x16xf32>
    %264 = vector.broadcast %262 : vector<8x1x16xf32> to vector<8x8x16xf32>
    %265 = vector.broadcast %263 : vector<1x8x16xf32> to vector<8x8x16xf32>
    %266 = arith.mulf %264, %265 : vector<8x8x16xf32>
    %267 = arith.addf %261, %266 : vector<8x8x16xf32>
    %268 = vector.extract_strided_slice %218 {offsets = [0, 5, 0], sizes = [8, 1, 16], strides = [1, 1, 1]} : vector<8x8x16xf32> to vector<8x1x16xf32>
    %269 = vector.extract_strided_slice %238 {offsets = [5, 0, 0], sizes = [1, 8, 16], strides = [1, 1, 1]} : vector<8x8x16xf32> to vector<1x8x16xf32>
    %270 = vector.broadcast %268 : vector<8x1x16xf32> to vector<8x8x16xf32>
    %271 = vector.broadcast %269 : vector<1x8x16xf32> to vector<8x8x16xf32>
    %272 = arith.mulf %270, %271 : vector<8x8x16xf32>
    %273 = arith.addf %267, %272 : vector<8x8x16xf32>
    %274 = vector.extract_strided_slice %218 {offsets = [0, 6, 0], sizes = [8, 1, 16], strides = [1, 1, 1]} : vector<8x8x16xf32> to vector<8x1x16xf32>
    %275 = vector.extract_strided_slice %238 {offsets = [6, 0, 0], sizes = [1, 8, 16], strides = [1, 1, 1]} : vector<8x8x16xf32> to vector<1x8x16xf32>
    %276 = vector.broadcast %274 : vector<8x1x16xf32> to vector<8x8x16xf32>
    %277 = vector.broadcast %275 : vector<1x8x16xf32> to vector<8x8x16xf32>
    %278 = arith.mulf %276, %277 : vector<8x8x16xf32>
    %279 = arith.addf %273, %278 : vector<8x8x16xf32>
    %280 = vector.extract_strided_slice %218 {offsets = [0, 7, 0], sizes = [8, 1, 16], strides = [1, 1, 1]} : vector<8x8x16xf32> to vector<8x1x16xf32>
    %281 = vector.extract_strided_slice %238 {offsets = [7, 0, 0], sizes = [1, 8, 16], strides = [1, 1, 1]} : vector<8x8x16xf32> to vector<1x8x16xf32>
    %282 = vector.broadcast %280 : vector<8x1x16xf32> to vector<8x8x16xf32>
    %283 = vector.broadcast %281 : vector<1x8x16xf32> to vector<8x8x16xf32>
    %284 = arith.mulf %282, %283 : vector<8x8x16xf32>
    %285 = arith.addf %279, %284 : vector<8x8x16xf32>
    %286 = arith.addf %230, %285 : vector<8x8x16xf32>
    %287 = vector.extract_strided_slice %218 {offsets = [0, 0, 0], sizes = [8, 1, 16], strides = [1, 1, 1]} : vector<8x8x16xf32> to vector<8x1x16xf32>
    %288 = vector.extract_strided_slice %286 {offsets = [0, 0, 0], sizes = [1, 8, 16], strides = [1, 1, 1]} : vector<8x8x16xf32> to vector<1x8x16xf32>
    %289 = vector.broadcast %287 : vector<8x1x16xf32> to vector<8x8x16xf32>
    %290 = vector.broadcast %288 : vector<1x8x16xf32> to vector<8x8x16xf32>
    %291 = arith.mulf %289, %290 : vector<8x8x16xf32>
    %292 = vector.extract_strided_slice %218 {offsets = [0, 1, 0], sizes = [8, 1, 16], strides = [1, 1, 1]} : vector<8x8x16xf32> to vector<8x1x16xf32>
    %293 = vector.extract_strided_slice %286 {offsets = [1, 0, 0], sizes = [1, 8, 16], strides = [1, 1, 1]} : vector<8x8x16xf32> to vector<1x8x16xf32>
    %294 = vector.broadcast %292 : vector<8x1x16xf32> to vector<8x8x16xf32>
    %295 = vector.broadcast %293 : vector<1x8x16xf32> to vector<8x8x16xf32>
    %296 = arith.mulf %294, %295 : vector<8x8x16xf32>
    %297 = arith.addf %291, %296 : vector<8x8x16xf32>
    %298 = vector.extract_strided_slice %218 {offsets = [0, 2, 0], sizes = [8, 1, 16], strides = [1, 1, 1]} : vector<8x8x16xf32> to vector<8x1x16xf32>
    %299 = vector.extract_strided_slice %286 {offsets = [2, 0, 0], sizes = [1, 8, 16], strides = [1, 1, 1]} : vector<8x8x16xf32> to vector<1x8x16xf32>
    %300 = vector.broadcast %298 : vector<8x1x16xf32> to vector<8x8x16xf32>
    %301 = vector.broadcast %299 : vector<1x8x16xf32> to vector<8x8x16xf32>
    %302 = arith.mulf %300, %301 : vector<8x8x16xf32>
    %303 = arith.addf %297, %302 : vector<8x8x16xf32>
    %304 = vector.extract_strided_slice %218 {offsets = [0, 3, 0], sizes = [8, 1, 16], strides = [1, 1, 1]} : vector<8x8x16xf32> to vector<8x1x16xf32>
    %305 = vector.extract_strided_slice %286 {offsets = [3, 0, 0], sizes = [1, 8, 16], strides = [1, 1, 1]} : vector<8x8x16xf32> to vector<1x8x16xf32>
    %306 = vector.broadcast %304 : vector<8x1x16xf32> to vector<8x8x16xf32>
    %307 = vector.broadcast %305 : vector<1x8x16xf32> to vector<8x8x16xf32>
    %308 = arith.mulf %306, %307 : vector<8x8x16xf32>
    %309 = arith.addf %303, %308 : vector<8x8x16xf32>
    %310 = vector.extract_strided_slice %218 {offsets = [0, 4, 0], sizes = [8, 1, 16], strides = [1, 1, 1]} : vector<8x8x16xf32> to vector<8x1x16xf32>
    %311 = vector.extract_strided_slice %286 {offsets = [4, 0, 0], sizes = [1, 8, 16], strides = [1, 1, 1]} : vector<8x8x16xf32> to vector<1x8x16xf32>
    %312 = vector.broadcast %310 : vector<8x1x16xf32> to vector<8x8x16xf32>
    %313 = vector.broadcast %311 : vector<1x8x16xf32> to vector<8x8x16xf32>
    %314 = arith.mulf %312, %313 : vector<8x8x16xf32>
    %315 = arith.addf %309, %314 : vector<8x8x16xf32>
    %316 = vector.extract_strided_slice %218 {offsets = [0, 5, 0], sizes = [8, 1, 16], strides = [1, 1, 1]} : vector<8x8x16xf32> to vector<8x1x16xf32>
    %317 = vector.extract_strided_slice %286 {offsets = [5, 0, 0], sizes = [1, 8, 16], strides = [1, 1, 1]} : vector<8x8x16xf32> to vector<1x8x16xf32>
    %318 = vector.broadcast %316 : vector<8x1x16xf32> to vector<8x8x16xf32>
    %319 = vector.broadcast %317 : vector<1x8x16xf32> to vector<8x8x16xf32>
    %320 = arith.mulf %318, %319 : vector<8x8x16xf32>
    %321 = arith.addf %315, %320 : vector<8x8x16xf32>
    %322 = vector.extract_strided_slice %218 {offsets = [0, 6, 0], sizes = [8, 1, 16], strides = [1, 1, 1]} : vector<8x8x16xf32> to vector<8x1x16xf32>
    %323 = vector.extract_strided_slice %286 {offsets = [6, 0, 0], sizes = [1, 8, 16], strides = [1, 1, 1]} : vector<8x8x16xf32> to vector<1x8x16xf32>
    %324 = vector.broadcast %322 : vector<8x1x16xf32> to vector<8x8x16xf32>
    %325 = vector.broadcast %323 : vector<1x8x16xf32> to vector<8x8x16xf32>
    %326 = arith.mulf %324, %325 : vector<8x8x16xf32>
    %327 = arith.addf %321, %326 : vector<8x8x16xf32>
    %328 = vector.extract_strided_slice %218 {offsets = [0, 7, 0], sizes = [8, 1, 16], strides = [1, 1, 1]} : vector<8x8x16xf32> to vector<8x1x16xf32>
    %329 = vector.extract_strided_slice %286 {offsets = [7, 0, 0], sizes = [1, 8, 16], strides = [1, 1, 1]} : vector<8x8x16xf32> to vector<1x8x16xf32>
    %330 = vector.broadcast %328 : vector<8x1x16xf32> to vector<8x8x16xf32>
    %331 = vector.broadcast %329 : vector<1x8x16xf32> to vector<8x8x16xf32>
    %332 = arith.mulf %330, %331 : vector<8x8x16xf32>
    %333 = arith.addf %327, %332 : vector<8x8x16xf32>
    %334 = arith.addf %222, %333 : vector<8x8x16xf32>
    %335 = vector.extract_strided_slice %334 {offsets = [0, 0, 0], sizes = [8, 1, 16], strides = [1, 1, 1]} : vector<8x8x16xf32> to vector<8x1x16xf32>
    %336 = vector.extract_strided_slice %334 {offsets = [0, 0, 0], sizes = [1, 8, 16], strides = [1, 1, 1]} : vector<8x8x16xf32> to vector<1x8x16xf32>
    %337 = vector.broadcast %335 : vector<8x1x16xf32> to vector<8x8x16xf32>
    %338 = vector.broadcast %336 : vector<1x8x16xf32> to vector<8x8x16xf32>
    %339 = arith.mulf %337, %338 : vector<8x8x16xf32>
    %340 = vector.extract_strided_slice %334 {offsets = [0, 1, 0], sizes = [8, 1, 16], strides = [1, 1, 1]} : vector<8x8x16xf32> to vector<8x1x16xf32>
    %341 = vector.extract_strided_slice %334 {offsets = [1, 0, 0], sizes = [1, 8, 16], strides = [1, 1, 1]} : vector<8x8x16xf32> to vector<1x8x16xf32>
    %342 = vector.broadcast %340 : vector<8x1x16xf32> to vector<8x8x16xf32>
    %343 = vector.broadcast %341 : vector<1x8x16xf32> to vector<8x8x16xf32>
    %344 = arith.mulf %342, %343 : vector<8x8x16xf32>
    %345 = arith.addf %339, %344 : vector<8x8x16xf32>
    %346 = vector.extract_strided_slice %334 {offsets = [0, 2, 0], sizes = [8, 1, 16], strides = [1, 1, 1]} : vector<8x8x16xf32> to vector<8x1x16xf32>
    %347 = vector.extract_strided_slice %334 {offsets = [2, 0, 0], sizes = [1, 8, 16], strides = [1, 1, 1]} : vector<8x8x16xf32> to vector<1x8x16xf32>
    %348 = vector.broadcast %346 : vector<8x1x16xf32> to vector<8x8x16xf32>
    %349 = vector.broadcast %347 : vector<1x8x16xf32> to vector<8x8x16xf32>
    %350 = arith.mulf %348, %349 : vector<8x8x16xf32>
    %351 = arith.addf %345, %350 : vector<8x8x16xf32>
    %352 = vector.extract_strided_slice %334 {offsets = [0, 3, 0], sizes = [8, 1, 16], strides = [1, 1, 1]} : vector<8x8x16xf32> to vector<8x1x16xf32>
    %353 = vector.extract_strided_slice %334 {offsets = [3, 0, 0], sizes = [1, 8, 16], strides = [1, 1, 1]} : vector<8x8x16xf32> to vector<1x8x16xf32>
    %354 = vector.broadcast %352 : vector<8x1x16xf32> to vector<8x8x16xf32>
    %355 = vector.broadcast %353 : vector<1x8x16xf32> to vector<8x8x16xf32>
    %356 = arith.mulf %354, %355 : vector<8x8x16xf32>
    %357 = arith.addf %351, %356 : vector<8x8x16xf32>
    %358 = vector.extract_strided_slice %334 {offsets = [0, 4, 0], sizes = [8, 1, 16], strides = [1, 1, 1]} : vector<8x8x16xf32> to vector<8x1x16xf32>
    %359 = vector.extract_strided_slice %334 {offsets = [4, 0, 0], sizes = [1, 8, 16], strides = [1, 1, 1]} : vector<8x8x16xf32> to vector<1x8x16xf32>
    %360 = vector.broadcast %358 : vector<8x1x16xf32> to vector<8x8x16xf32>
    %361 = vector.broadcast %359 : vector<1x8x16xf32> to vector<8x8x16xf32>
    %362 = arith.mulf %360, %361 : vector<8x8x16xf32>
    %363 = arith.addf %357, %362 : vector<8x8x16xf32>
    %364 = vector.extract_strided_slice %334 {offsets = [0, 5, 0], sizes = [8, 1, 16], strides = [1, 1, 1]} : vector<8x8x16xf32> to vector<8x1x16xf32>
    %365 = vector.extract_strided_slice %334 {offsets = [5, 0, 0], sizes = [1, 8, 16], strides = [1, 1, 1]} : vector<8x8x16xf32> to vector<1x8x16xf32>
    %366 = vector.broadcast %364 : vector<8x1x16xf32> to vector<8x8x16xf32>
    %367 = vector.broadcast %365 : vector<1x8x16xf32> to vector<8x8x16xf32>
    %368 = arith.mulf %366, %367 : vector<8x8x16xf32>
    %369 = arith.addf %363, %368 : vector<8x8x16xf32>
    %370 = vector.extract_strided_slice %334 {offsets = [0, 6, 0], sizes = [8, 1, 16], strides = [1, 1, 1]} : vector<8x8x16xf32> to vector<8x1x16xf32>
    %371 = vector.extract_strided_slice %334 {offsets = [6, 0, 0], sizes = [1, 8, 16], strides = [1, 1, 1]} : vector<8x8x16xf32> to vector<1x8x16xf32>
    %372 = vector.broadcast %370 : vector<8x1x16xf32> to vector<8x8x16xf32>
    %373 = vector.broadcast %371 : vector<1x8x16xf32> to vector<8x8x16xf32>
    %374 = arith.mulf %372, %373 : vector<8x8x16xf32>
    %375 = arith.addf %369, %374 : vector<8x8x16xf32>
    %376 = vector.extract_strided_slice %334 {offsets = [0, 7, 0], sizes = [8, 1, 16], strides = [1, 1, 1]} : vector<8x8x16xf32> to vector<8x1x16xf32>
    %377 = vector.extract_strided_slice %334 {offsets = [7, 0, 0], sizes = [1, 8, 16], strides = [1, 1, 1]} : vector<8x8x16xf32> to vector<1x8x16xf32>
    %378 = vector.broadcast %376 : vector<8x1x16xf32> to vector<8x8x16xf32>
    %379 = vector.broadcast %377 : vector<1x8x16xf32> to vector<8x8x16xf32>
    %380 = arith.mulf %378, %379 : vector<8x8x16xf32>
    %381 = arith.addf %375, %380 : vector<8x8x16xf32>
    %382 = vector.shape_cast %47 : vector<1x1x16xi1> to vector<1x1x16xi1>
    %383 = vector.broadcast %382 : vector<1x1x16xi1> to vector<8x8x16xi1>
    %384 = arith.select %383, %381, %334 : vector<8x8x16xi1>, vector<8x8x16xf32>
    %385 = vector.extract_strided_slice %384 {offsets = [0, 0, 0], sizes = [8, 1, 16], strides = [1, 1, 1]} : vector<8x8x16xf32> to vector<8x1x16xf32>
    %386 = vector.extract_strided_slice %384 {offsets = [0, 0, 0], sizes = [1, 8, 16], strides = [1, 1, 1]} : vector<8x8x16xf32> to vector<1x8x16xf32>
    %387 = vector.broadcast %385 : vector<8x1x16xf32> to vector<8x8x16xf32>
    %388 = vector.broadcast %386 : vector<1x8x16xf32> to vector<8x8x16xf32>
    %389 = arith.mulf %387, %388 : vector<8x8x16xf32>
    %390 = vector.extract_strided_slice %384 {offsets = [0, 1, 0], sizes = [8, 1, 16], strides = [1, 1, 1]} : vector<8x8x16xf32> to vector<8x1x16xf32>
    %391 = vector.extract_strided_slice %384 {offsets = [1, 0, 0], sizes = [1, 8, 16], strides = [1, 1, 1]} : vector<8x8x16xf32> to vector<1x8x16xf32>
    %392 = vector.broadcast %390 : vector<8x1x16xf32> to vector<8x8x16xf32>
    %393 = vector.broadcast %391 : vector<1x8x16xf32> to vector<8x8x16xf32>
    %394 = arith.mulf %392, %393 : vector<8x8x16xf32>
    %395 = arith.addf %389, %394 : vector<8x8x16xf32>
    %396 = vector.extract_strided_slice %384 {offsets = [0, 2, 0], sizes = [8, 1, 16], strides = [1, 1, 1]} : vector<8x8x16xf32> to vector<8x1x16xf32>
    %397 = vector.extract_strided_slice %384 {offsets = [2, 0, 0], sizes = [1, 8, 16], strides = [1, 1, 1]} : vector<8x8x16xf32> to vector<1x8x16xf32>
    %398 = vector.broadcast %396 : vector<8x1x16xf32> to vector<8x8x16xf32>
    %399 = vector.broadcast %397 : vector<1x8x16xf32> to vector<8x8x16xf32>
    %400 = arith.mulf %398, %399 : vector<8x8x16xf32>
    %401 = arith.addf %395, %400 : vector<8x8x16xf32>
    %402 = vector.extract_strided_slice %384 {offsets = [0, 3, 0], sizes = [8, 1, 16], strides = [1, 1, 1]} : vector<8x8x16xf32> to vector<8x1x16xf32>
    %403 = vector.extract_strided_slice %384 {offsets = [3, 0, 0], sizes = [1, 8, 16], strides = [1, 1, 1]} : vector<8x8x16xf32> to vector<1x8x16xf32>
    %404 = vector.broadcast %402 : vector<8x1x16xf32> to vector<8x8x16xf32>
    %405 = vector.broadcast %403 : vector<1x8x16xf32> to vector<8x8x16xf32>
    %406 = arith.mulf %404, %405 : vector<8x8x16xf32>
    %407 = arith.addf %401, %406 : vector<8x8x16xf32>
    %408 = vector.extract_strided_slice %384 {offsets = [0, 4, 0], sizes = [8, 1, 16], strides = [1, 1, 1]} : vector<8x8x16xf32> to vector<8x1x16xf32>
    %409 = vector.extract_strided_slice %384 {offsets = [4, 0, 0], sizes = [1, 8, 16], strides = [1, 1, 1]} : vector<8x8x16xf32> to vector<1x8x16xf32>
    %410 = vector.broadcast %408 : vector<8x1x16xf32> to vector<8x8x16xf32>
    %411 = vector.broadcast %409 : vector<1x8x16xf32> to vector<8x8x16xf32>
    %412 = arith.mulf %410, %411 : vector<8x8x16xf32>
    %413 = arith.addf %407, %412 : vector<8x8x16xf32>
    %414 = vector.extract_strided_slice %384 {offsets = [0, 5, 0], sizes = [8, 1, 16], strides = [1, 1, 1]} : vector<8x8x16xf32> to vector<8x1x16xf32>
    %415 = vector.extract_strided_slice %384 {offsets = [5, 0, 0], sizes = [1, 8, 16], strides = [1, 1, 1]} : vector<8x8x16xf32> to vector<1x8x16xf32>
    %416 = vector.broadcast %414 : vector<8x1x16xf32> to vector<8x8x16xf32>
    %417 = vector.broadcast %415 : vector<1x8x16xf32> to vector<8x8x16xf32>
    %418 = arith.mulf %416, %417 : vector<8x8x16xf32>
    %419 = arith.addf %413, %418 : vector<8x8x16xf32>
    %420 = vector.extract_strided_slice %384 {offsets = [0, 6, 0], sizes = [8, 1, 16], strides = [1, 1, 1]} : vector<8x8x16xf32> to vector<8x1x16xf32>
    %421 = vector.extract_strided_slice %384 {offsets = [6, 0, 0], sizes = [1, 8, 16], strides = [1, 1, 1]} : vector<8x8x16xf32> to vector<1x8x16xf32>
    %422 = vector.broadcast %420 : vector<8x1x16xf32> to vector<8x8x16xf32>
    %423 = vector.broadcast %421 : vector<1x8x16xf32> to vector<8x8x16xf32>
    %424 = arith.mulf %422, %423 : vector<8x8x16xf32>
    %425 = arith.addf %419, %424 : vector<8x8x16xf32>
    %426 = vector.extract_strided_slice %384 {offsets = [0, 7, 0], sizes = [8, 1, 16], strides = [1, 1, 1]} : vector<8x8x16xf32> to vector<8x1x16xf32>
    %427 = vector.extract_strided_slice %384 {offsets = [7, 0, 0], sizes = [1, 8, 16], strides = [1, 1, 1]} : vector<8x8x16xf32> to vector<1x8x16xf32>
    %428 = vector.broadcast %426 : vector<8x1x16xf32> to vector<8x8x16xf32>
    %429 = vector.broadcast %427 : vector<1x8x16xf32> to vector<8x8x16xf32>
    %430 = arith.mulf %428, %429 : vector<8x8x16xf32>
    %431 = arith.addf %425, %430 : vector<8x8x16xf32>
    %432 = vector.shape_cast %55 : vector<1x1x16xi1> to vector<1x1x16xi1>
    %433 = vector.broadcast %432 : vector<1x1x16xi1> to vector<8x8x16xi1>
    %434 = arith.select %433, %431, %384 : vector<8x8x16xi1>, vector<8x8x16xf32>
    %435 = vector.extract_strided_slice %434 {offsets = [0, 0, 0], sizes = [8, 1, 16], strides = [1, 1, 1]} : vector<8x8x16xf32> to vector<8x1x16xf32>
    %436 = vector.extract_strided_slice %434 {offsets = [0, 0, 0], sizes = [1, 8, 16], strides = [1, 1, 1]} : vector<8x8x16xf32> to vector<1x8x16xf32>
    %437 = vector.broadcast %435 : vector<8x1x16xf32> to vector<8x8x16xf32>
    %438 = vector.broadcast %436 : vector<1x8x16xf32> to vector<8x8x16xf32>
    %439 = arith.mulf %437, %438 : vector<8x8x16xf32>
    %440 = vector.extract_strided_slice %434 {offsets = [0, 1, 0], sizes = [8, 1, 16], strides = [1, 1, 1]} : vector<8x8x16xf32> to vector<8x1x16xf32>
    %441 = vector.extract_strided_slice %434 {offsets = [1, 0, 0], sizes = [1, 8, 16], strides = [1, 1, 1]} : vector<8x8x16xf32> to vector<1x8x16xf32>
    %442 = vector.broadcast %440 : vector<8x1x16xf32> to vector<8x8x16xf32>
    %443 = vector.broadcast %441 : vector<1x8x16xf32> to vector<8x8x16xf32>
    %444 = arith.mulf %442, %443 : vector<8x8x16xf32>
    %445 = arith.addf %439, %444 : vector<8x8x16xf32>
    %446 = vector.extract_strided_slice %434 {offsets = [0, 2, 0], sizes = [8, 1, 16], strides = [1, 1, 1]} : vector<8x8x16xf32> to vector<8x1x16xf32>
    %447 = vector.extract_strided_slice %434 {offsets = [2, 0, 0], sizes = [1, 8, 16], strides = [1, 1, 1]} : vector<8x8x16xf32> to vector<1x8x16xf32>
    %448 = vector.broadcast %446 : vector<8x1x16xf32> to vector<8x8x16xf32>
    %449 = vector.broadcast %447 : vector<1x8x16xf32> to vector<8x8x16xf32>
    %450 = arith.mulf %448, %449 : vector<8x8x16xf32>
    %451 = arith.addf %445, %450 : vector<8x8x16xf32>
    %452 = vector.extract_strided_slice %434 {offsets = [0, 3, 0], sizes = [8, 1, 16], strides = [1, 1, 1]} : vector<8x8x16xf32> to vector<8x1x16xf32>
    %453 = vector.extract_strided_slice %434 {offsets = [3, 0, 0], sizes = [1, 8, 16], strides = [1, 1, 1]} : vector<8x8x16xf32> to vector<1x8x16xf32>
    %454 = vector.broadcast %452 : vector<8x1x16xf32> to vector<8x8x16xf32>
    %455 = vector.broadcast %453 : vector<1x8x16xf32> to vector<8x8x16xf32>
    %456 = arith.mulf %454, %455 : vector<8x8x16xf32>
    %457 = arith.addf %451, %456 : vector<8x8x16xf32>
    %458 = vector.extract_strided_slice %434 {offsets = [0, 4, 0], sizes = [8, 1, 16], strides = [1, 1, 1]} : vector<8x8x16xf32> to vector<8x1x16xf32>
    %459 = vector.extract_strided_slice %434 {offsets = [4, 0, 0], sizes = [1, 8, 16], strides = [1, 1, 1]} : vector<8x8x16xf32> to vector<1x8x16xf32>
    %460 = vector.broadcast %458 : vector<8x1x16xf32> to vector<8x8x16xf32>
    %461 = vector.broadcast %459 : vector<1x8x16xf32> to vector<8x8x16xf32>
    %462 = arith.mulf %460, %461 : vector<8x8x16xf32>
    %463 = arith.addf %457, %462 : vector<8x8x16xf32>
    %464 = vector.extract_strided_slice %434 {offsets = [0, 5, 0], sizes = [8, 1, 16], strides = [1, 1, 1]} : vector<8x8x16xf32> to vector<8x1x16xf32>
    %465 = vector.extract_strided_slice %434 {offsets = [5, 0, 0], sizes = [1, 8, 16], strides = [1, 1, 1]} : vector<8x8x16xf32> to vector<1x8x16xf32>
    %466 = vector.broadcast %464 : vector<8x1x16xf32> to vector<8x8x16xf32>
    %467 = vector.broadcast %465 : vector<1x8x16xf32> to vector<8x8x16xf32>
    %468 = arith.mulf %466, %467 : vector<8x8x16xf32>
    %469 = arith.addf %463, %468 : vector<8x8x16xf32>
    %470 = vector.extract_strided_slice %434 {offsets = [0, 6, 0], sizes = [8, 1, 16], strides = [1, 1, 1]} : vector<8x8x16xf32> to vector<8x1x16xf32>
    %471 = vector.extract_strided_slice %434 {offsets = [6, 0, 0], sizes = [1, 8, 16], strides = [1, 1, 1]} : vector<8x8x16xf32> to vector<1x8x16xf32>
    %472 = vector.broadcast %470 : vector<8x1x16xf32> to vector<8x8x16xf32>
    %473 = vector.broadcast %471 : vector<1x8x16xf32> to vector<8x8x16xf32>
    %474 = arith.mulf %472, %473 : vector<8x8x16xf32>
    %475 = arith.addf %469, %474 : vector<8x8x16xf32>
    %476 = vector.extract_strided_slice %434 {offsets = [0, 7, 0], sizes = [8, 1, 16], strides = [1, 1, 1]} : vector<8x8x16xf32> to vector<8x1x16xf32>
    %477 = vector.extract_strided_slice %434 {offsets = [7, 0, 0], sizes = [1, 8, 16], strides = [1, 1, 1]} : vector<8x8x16xf32> to vector<1x8x16xf32>
    %478 = vector.broadcast %476 : vector<8x1x16xf32> to vector<8x8x16xf32>
    %479 = vector.broadcast %477 : vector<1x8x16xf32> to vector<8x8x16xf32>
    %480 = arith.mulf %478, %479 : vector<8x8x16xf32>
    %481 = arith.addf %475, %480 : vector<8x8x16xf32>
    %482 = vector.shape_cast %63 : vector<1x1x16xi1> to vector<1x1x16xi1>
    %483 = vector.broadcast %482 : vector<1x1x16xi1> to vector<8x8x16xi1>
    %484 = arith.select %483, %481, %434 : vector<8x8x16xi1>, vector<8x8x16xf32>
    %485 = vector.extract_strided_slice %484 {offsets = [0, 0, 0], sizes = [8, 1, 16], strides = [1, 1, 1]} : vector<8x8x16xf32> to vector<8x1x16xf32>
    %486 = vector.extract_strided_slice %484 {offsets = [0, 0, 0], sizes = [1, 8, 16], strides = [1, 1, 1]} : vector<8x8x16xf32> to vector<1x8x16xf32>
    %487 = vector.broadcast %485 : vector<8x1x16xf32> to vector<8x8x16xf32>
    %488 = vector.broadcast %486 : vector<1x8x16xf32> to vector<8x8x16xf32>
    %489 = arith.mulf %487, %488 : vector<8x8x16xf32>
    %490 = vector.extract_strided_slice %484 {offsets = [0, 1, 0], sizes = [8, 1, 16], strides = [1, 1, 1]} : vector<8x8x16xf32> to vector<8x1x16xf32>
    %491 = vector.extract_strided_slice %484 {offsets = [1, 0, 0], sizes = [1, 8, 16], strides = [1, 1, 1]} : vector<8x8x16xf32> to vector<1x8x16xf32>
    %492 = vector.broadcast %490 : vector<8x1x16xf32> to vector<8x8x16xf32>
    %493 = vector.broadcast %491 : vector<1x8x16xf32> to vector<8x8x16xf32>
    %494 = arith.mulf %492, %493 : vector<8x8x16xf32>
    %495 = arith.addf %489, %494 : vector<8x8x16xf32>
    %496 = vector.extract_strided_slice %484 {offsets = [0, 2, 0], sizes = [8, 1, 16], strides = [1, 1, 1]} : vector<8x8x16xf32> to vector<8x1x16xf32>
    %497 = vector.extract_strided_slice %484 {offsets = [2, 0, 0], sizes = [1, 8, 16], strides = [1, 1, 1]} : vector<8x8x16xf32> to vector<1x8x16xf32>
    %498 = vector.broadcast %496 : vector<8x1x16xf32> to vector<8x8x16xf32>
    %499 = vector.broadcast %497 : vector<1x8x16xf32> to vector<8x8x16xf32>
    %500 = arith.mulf %498, %499 : vector<8x8x16xf32>
    %501 = arith.addf %495, %500 : vector<8x8x16xf32>
    %502 = vector.extract_strided_slice %484 {offsets = [0, 3, 0], sizes = [8, 1, 16], strides = [1, 1, 1]} : vector<8x8x16xf32> to vector<8x1x16xf32>
    %503 = vector.extract_strided_slice %484 {offsets = [3, 0, 0], sizes = [1, 8, 16], strides = [1, 1, 1]} : vector<8x8x16xf32> to vector<1x8x16xf32>
    %504 = vector.broadcast %502 : vector<8x1x16xf32> to vector<8x8x16xf32>
    %505 = vector.broadcast %503 : vector<1x8x16xf32> to vector<8x8x16xf32>
    %506 = arith.mulf %504, %505 : vector<8x8x16xf32>
    %507 = arith.addf %501, %506 : vector<8x8x16xf32>
    %508 = vector.extract_strided_slice %484 {offsets = [0, 4, 0], sizes = [8, 1, 16], strides = [1, 1, 1]} : vector<8x8x16xf32> to vector<8x1x16xf32>
    %509 = vector.extract_strided_slice %484 {offsets = [4, 0, 0], sizes = [1, 8, 16], strides = [1, 1, 1]} : vector<8x8x16xf32> to vector<1x8x16xf32>
    %510 = vector.broadcast %508 : vector<8x1x16xf32> to vector<8x8x16xf32>
    %511 = vector.broadcast %509 : vector<1x8x16xf32> to vector<8x8x16xf32>
    %512 = arith.mulf %510, %511 : vector<8x8x16xf32>
    %513 = arith.addf %507, %512 : vector<8x8x16xf32>
    %514 = vector.extract_strided_slice %484 {offsets = [0, 5, 0], sizes = [8, 1, 16], strides = [1, 1, 1]} : vector<8x8x16xf32> to vector<8x1x16xf32>
    %515 = vector.extract_strided_slice %484 {offsets = [5, 0, 0], sizes = [1, 8, 16], strides = [1, 1, 1]} : vector<8x8x16xf32> to vector<1x8x16xf32>
    %516 = vector.broadcast %514 : vector<8x1x16xf32> to vector<8x8x16xf32>
    %517 = vector.broadcast %515 : vector<1x8x16xf32> to vector<8x8x16xf32>
    %518 = arith.mulf %516, %517 : vector<8x8x16xf32>
    %519 = arith.addf %513, %518 : vector<8x8x16xf32>
    %520 = vector.extract_strided_slice %484 {offsets = [0, 6, 0], sizes = [8, 1, 16], strides = [1, 1, 1]} : vector<8x8x16xf32> to vector<8x1x16xf32>
    %521 = vector.extract_strided_slice %484 {offsets = [6, 0, 0], sizes = [1, 8, 16], strides = [1, 1, 1]} : vector<8x8x16xf32> to vector<1x8x16xf32>
    %522 = vector.broadcast %520 : vector<8x1x16xf32> to vector<8x8x16xf32>
    %523 = vector.broadcast %521 : vector<1x8x16xf32> to vector<8x8x16xf32>
    %524 = arith.mulf %522, %523 : vector<8x8x16xf32>
    %525 = arith.addf %519, %524 : vector<8x8x16xf32>
    %526 = vector.extract_strided_slice %484 {offsets = [0, 7, 0], sizes = [8, 1, 16], strides = [1, 1, 1]} : vector<8x8x16xf32> to vector<8x1x16xf32>
    %527 = vector.extract_strided_slice %484 {offsets = [7, 0, 0], sizes = [1, 8, 16], strides = [1, 1, 1]} : vector<8x8x16xf32> to vector<1x8x16xf32>
    %528 = vector.broadcast %526 : vector<8x1x16xf32> to vector<8x8x16xf32>
    %529 = vector.broadcast %527 : vector<1x8x16xf32> to vector<8x8x16xf32>
    %530 = arith.mulf %528, %529 : vector<8x8x16xf32>
    %531 = arith.addf %525, %530 : vector<8x8x16xf32>
    %532 = vector.shape_cast %71 : vector<1x1x16xi1> to vector<1x1x16xi1>
    %533 = vector.broadcast %532 : vector<1x1x16xi1> to vector<8x8x16xi1>
    %534 = arith.select %533, %531, %484 : vector<8x8x16xi1>, vector<8x8x16xf32>
    %535 = vector.extract_strided_slice %534 {offsets = [0, 0, 0], sizes = [8, 1, 16], strides = [1, 1, 1]} : vector<8x8x16xf32> to vector<8x1x16xf32>
    %536 = vector.extract_strided_slice %534 {offsets = [0, 0, 0], sizes = [1, 8, 16], strides = [1, 1, 1]} : vector<8x8x16xf32> to vector<1x8x16xf32>
    %537 = vector.broadcast %535 : vector<8x1x16xf32> to vector<8x8x16xf32>
    %538 = vector.broadcast %536 : vector<1x8x16xf32> to vector<8x8x16xf32>
    %539 = arith.mulf %537, %538 : vector<8x8x16xf32>
    %540 = vector.extract_strided_slice %534 {offsets = [0, 1, 0], sizes = [8, 1, 16], strides = [1, 1, 1]} : vector<8x8x16xf32> to vector<8x1x16xf32>
    %541 = vector.extract_strided_slice %534 {offsets = [1, 0, 0], sizes = [1, 8, 16], strides = [1, 1, 1]} : vector<8x8x16xf32> to vector<1x8x16xf32>
    %542 = vector.broadcast %540 : vector<8x1x16xf32> to vector<8x8x16xf32>
    %543 = vector.broadcast %541 : vector<1x8x16xf32> to vector<8x8x16xf32>
    %544 = arith.mulf %542, %543 : vector<8x8x16xf32>
    %545 = arith.addf %539, %544 : vector<8x8x16xf32>
    %546 = vector.extract_strided_slice %534 {offsets = [0, 2, 0], sizes = [8, 1, 16], strides = [1, 1, 1]} : vector<8x8x16xf32> to vector<8x1x16xf32>
    %547 = vector.extract_strided_slice %534 {offsets = [2, 0, 0], sizes = [1, 8, 16], strides = [1, 1, 1]} : vector<8x8x16xf32> to vector<1x8x16xf32>
    %548 = vector.broadcast %546 : vector<8x1x16xf32> to vector<8x8x16xf32>
    %549 = vector.broadcast %547 : vector<1x8x16xf32> to vector<8x8x16xf32>
    %550 = arith.mulf %548, %549 : vector<8x8x16xf32>
    %551 = arith.addf %545, %550 : vector<8x8x16xf32>
    %552 = vector.extract_strided_slice %534 {offsets = [0, 3, 0], sizes = [8, 1, 16], strides = [1, 1, 1]} : vector<8x8x16xf32> to vector<8x1x16xf32>
    %553 = vector.extract_strided_slice %534 {offsets = [3, 0, 0], sizes = [1, 8, 16], strides = [1, 1, 1]} : vector<8x8x16xf32> to vector<1x8x16xf32>
    %554 = vector.broadcast %552 : vector<8x1x16xf32> to vector<8x8x16xf32>
    %555 = vector.broadcast %553 : vector<1x8x16xf32> to vector<8x8x16xf32>
    %556 = arith.mulf %554, %555 : vector<8x8x16xf32>
    %557 = arith.addf %551, %556 : vector<8x8x16xf32>
    %558 = vector.extract_strided_slice %534 {offsets = [0, 4, 0], sizes = [8, 1, 16], strides = [1, 1, 1]} : vector<8x8x16xf32> to vector<8x1x16xf32>
    %559 = vector.extract_strided_slice %534 {offsets = [4, 0, 0], sizes = [1, 8, 16], strides = [1, 1, 1]} : vector<8x8x16xf32> to vector<1x8x16xf32>
    %560 = vector.broadcast %558 : vector<8x1x16xf32> to vector<8x8x16xf32>
    %561 = vector.broadcast %559 : vector<1x8x16xf32> to vector<8x8x16xf32>
    %562 = arith.mulf %560, %561 : vector<8x8x16xf32>
    %563 = arith.addf %557, %562 : vector<8x8x16xf32>
    %564 = vector.extract_strided_slice %534 {offsets = [0, 5, 0], sizes = [8, 1, 16], strides = [1, 1, 1]} : vector<8x8x16xf32> to vector<8x1x16xf32>
    %565 = vector.extract_strided_slice %534 {offsets = [5, 0, 0], sizes = [1, 8, 16], strides = [1, 1, 1]} : vector<8x8x16xf32> to vector<1x8x16xf32>
    %566 = vector.broadcast %564 : vector<8x1x16xf32> to vector<8x8x16xf32>
    %567 = vector.broadcast %565 : vector<1x8x16xf32> to vector<8x8x16xf32>
    %568 = arith.mulf %566, %567 : vector<8x8x16xf32>
    %569 = arith.addf %563, %568 : vector<8x8x16xf32>
    %570 = vector.extract_strided_slice %534 {offsets = [0, 6, 0], sizes = [8, 1, 16], strides = [1, 1, 1]} : vector<8x8x16xf32> to vector<8x1x16xf32>
    %571 = vector.extract_strided_slice %534 {offsets = [6, 0, 0], sizes = [1, 8, 16], strides = [1, 1, 1]} : vector<8x8x16xf32> to vector<1x8x16xf32>
    %572 = vector.broadcast %570 : vector<8x1x16xf32> to vector<8x8x16xf32>
    %573 = vector.broadcast %571 : vector<1x8x16xf32> to vector<8x8x16xf32>
    %574 = arith.mulf %572, %573 : vector<8x8x16xf32>
    %575 = arith.addf %569, %574 : vector<8x8x16xf32>
    %576 = vector.extract_strided_slice %534 {offsets = [0, 7, 0], sizes = [8, 1, 16], strides = [1, 1, 1]} : vector<8x8x16xf32> to vector<8x1x16xf32>
    %577 = vector.extract_strided_slice %534 {offsets = [7, 0, 0], sizes = [1, 8, 16], strides = [1, 1, 1]} : vector<8x8x16xf32> to vector<1x8x16xf32>
    %578 = vector.broadcast %576 : vector<8x1x16xf32> to vector<8x8x16xf32>
    %579 = vector.broadcast %577 : vector<1x8x16xf32> to vector<8x8x16xf32>
    %580 = arith.mulf %578, %579 : vector<8x8x16xf32>
    %581 = arith.addf %575, %580 : vector<8x8x16xf32>
    %582 = vector.shape_cast %79 : vector<1x1x16xi1> to vector<1x1x16xi1>
    %583 = vector.broadcast %582 : vector<1x1x16xi1> to vector<8x8x16xi1>
    %584 = arith.select %583, %581, %534 : vector<8x8x16xi1>, vector<8x8x16xf32>
    %585 = vector.extract_strided_slice %584 {offsets = [0, 0, 0], sizes = [8, 1, 16], strides = [1, 1, 1]} : vector<8x8x16xf32> to vector<8x1x16xf32>
    %586 = vector.extract_strided_slice %584 {offsets = [0, 0, 0], sizes = [1, 8, 16], strides = [1, 1, 1]} : vector<8x8x16xf32> to vector<1x8x16xf32>
    %587 = vector.broadcast %585 : vector<8x1x16xf32> to vector<8x8x16xf32>
    %588 = vector.broadcast %586 : vector<1x8x16xf32> to vector<8x8x16xf32>
    %589 = arith.mulf %587, %588 : vector<8x8x16xf32>
    %590 = vector.extract_strided_slice %584 {offsets = [0, 1, 0], sizes = [8, 1, 16], strides = [1, 1, 1]} : vector<8x8x16xf32> to vector<8x1x16xf32>
    %591 = vector.extract_strided_slice %584 {offsets = [1, 0, 0], sizes = [1, 8, 16], strides = [1, 1, 1]} : vector<8x8x16xf32> to vector<1x8x16xf32>
    %592 = vector.broadcast %590 : vector<8x1x16xf32> to vector<8x8x16xf32>
    %593 = vector.broadcast %591 : vector<1x8x16xf32> to vector<8x8x16xf32>
    %594 = arith.mulf %592, %593 : vector<8x8x16xf32>
    %595 = arith.addf %589, %594 : vector<8x8x16xf32>
    %596 = vector.extract_strided_slice %584 {offsets = [0, 2, 0], sizes = [8, 1, 16], strides = [1, 1, 1]} : vector<8x8x16xf32> to vector<8x1x16xf32>
    %597 = vector.extract_strided_slice %584 {offsets = [2, 0, 0], sizes = [1, 8, 16], strides = [1, 1, 1]} : vector<8x8x16xf32> to vector<1x8x16xf32>
    %598 = vector.broadcast %596 : vector<8x1x16xf32> to vector<8x8x16xf32>
    %599 = vector.broadcast %597 : vector<1x8x16xf32> to vector<8x8x16xf32>
    %600 = arith.mulf %598, %599 : vector<8x8x16xf32>
    %601 = arith.addf %595, %600 : vector<8x8x16xf32>
    %602 = vector.extract_strided_slice %584 {offsets = [0, 3, 0], sizes = [8, 1, 16], strides = [1, 1, 1]} : vector<8x8x16xf32> to vector<8x1x16xf32>
    %603 = vector.extract_strided_slice %584 {offsets = [3, 0, 0], sizes = [1, 8, 16], strides = [1, 1, 1]} : vector<8x8x16xf32> to vector<1x8x16xf32>
    %604 = vector.broadcast %602 : vector<8x1x16xf32> to vector<8x8x16xf32>
    %605 = vector.broadcast %603 : vector<1x8x16xf32> to vector<8x8x16xf32>
    %606 = arith.mulf %604, %605 : vector<8x8x16xf32>
    %607 = arith.addf %601, %606 : vector<8x8x16xf32>
    %608 = vector.extract_strided_slice %584 {offsets = [0, 4, 0], sizes = [8, 1, 16], strides = [1, 1, 1]} : vector<8x8x16xf32> to vector<8x1x16xf32>
    %609 = vector.extract_strided_slice %584 {offsets = [4, 0, 0], sizes = [1, 8, 16], strides = [1, 1, 1]} : vector<8x8x16xf32> to vector<1x8x16xf32>
    %610 = vector.broadcast %608 : vector<8x1x16xf32> to vector<8x8x16xf32>
    %611 = vector.broadcast %609 : vector<1x8x16xf32> to vector<8x8x16xf32>
    %612 = arith.mulf %610, %611 : vector<8x8x16xf32>
    %613 = arith.addf %607, %612 : vector<8x8x16xf32>
    %614 = vector.extract_strided_slice %584 {offsets = [0, 5, 0], sizes = [8, 1, 16], strides = [1, 1, 1]} : vector<8x8x16xf32> to vector<8x1x16xf32>
    %615 = vector.extract_strided_slice %584 {offsets = [5, 0, 0], sizes = [1, 8, 16], strides = [1, 1, 1]} : vector<8x8x16xf32> to vector<1x8x16xf32>
    %616 = vector.broadcast %614 : vector<8x1x16xf32> to vector<8x8x16xf32>
    %617 = vector.broadcast %615 : vector<1x8x16xf32> to vector<8x8x16xf32>
    %618 = arith.mulf %616, %617 : vector<8x8x16xf32>
    %619 = arith.addf %613, %618 : vector<8x8x16xf32>
    %620 = vector.extract_strided_slice %584 {offsets = [0, 6, 0], sizes = [8, 1, 16], strides = [1, 1, 1]} : vector<8x8x16xf32> to vector<8x1x16xf32>
    %621 = vector.extract_strided_slice %584 {offsets = [6, 0, 0], sizes = [1, 8, 16], strides = [1, 1, 1]} : vector<8x8x16xf32> to vector<1x8x16xf32>
    %622 = vector.broadcast %620 : vector<8x1x16xf32> to vector<8x8x16xf32>
    %623 = vector.broadcast %621 : vector<1x8x16xf32> to vector<8x8x16xf32>
    %624 = arith.mulf %622, %623 : vector<8x8x16xf32>
    %625 = arith.addf %619, %624 : vector<8x8x16xf32>
    %626 = vector.extract_strided_slice %584 {offsets = [0, 7, 0], sizes = [8, 1, 16], strides = [1, 1, 1]} : vector<8x8x16xf32> to vector<8x1x16xf32>
    %627 = vector.extract_strided_slice %584 {offsets = [7, 0, 0], sizes = [1, 8, 16], strides = [1, 1, 1]} : vector<8x8x16xf32> to vector<1x8x16xf32>
    %628 = vector.broadcast %626 : vector<8x1x16xf32> to vector<8x8x16xf32>
    %629 = vector.broadcast %627 : vector<1x8x16xf32> to vector<8x8x16xf32>
    %630 = arith.mulf %628, %629 : vector<8x8x16xf32>
    %631 = arith.addf %625, %630 : vector<8x8x16xf32>
    %632 = vector.shape_cast %87 : vector<1x1x16xi1> to vector<1x1x16xi1>
    %633 = vector.broadcast %632 : vector<1x1x16xi1> to vector<8x8x16xi1>
    %634 = arith.select %633, %631, %584 : vector<8x8x16xi1>, vector<8x8x16xf32>
    %635 = vector.extract_strided_slice %634 {offsets = [0, 0, 0], sizes = [8, 1, 16], strides = [1, 1, 1]} : vector<8x8x16xf32> to vector<8x1x16xf32>
    %636 = vector.extract_strided_slice %634 {offsets = [0, 0, 0], sizes = [1, 8, 16], strides = [1, 1, 1]} : vector<8x8x16xf32> to vector<1x8x16xf32>
    %637 = vector.broadcast %635 : vector<8x1x16xf32> to vector<8x8x16xf32>
    %638 = vector.broadcast %636 : vector<1x8x16xf32> to vector<8x8x16xf32>
    %639 = arith.mulf %637, %638 : vector<8x8x16xf32>
    %640 = vector.extract_strided_slice %634 {offsets = [0, 1, 0], sizes = [8, 1, 16], strides = [1, 1, 1]} : vector<8x8x16xf32> to vector<8x1x16xf32>
    %641 = vector.extract_strided_slice %634 {offsets = [1, 0, 0], sizes = [1, 8, 16], strides = [1, 1, 1]} : vector<8x8x16xf32> to vector<1x8x16xf32>
    %642 = vector.broadcast %640 : vector<8x1x16xf32> to vector<8x8x16xf32>
    %643 = vector.broadcast %641 : vector<1x8x16xf32> to vector<8x8x16xf32>
    %644 = arith.mulf %642, %643 : vector<8x8x16xf32>
    %645 = arith.addf %639, %644 : vector<8x8x16xf32>
    %646 = vector.extract_strided_slice %634 {offsets = [0, 2, 0], sizes = [8, 1, 16], strides = [1, 1, 1]} : vector<8x8x16xf32> to vector<8x1x16xf32>
    %647 = vector.extract_strided_slice %634 {offsets = [2, 0, 0], sizes = [1, 8, 16], strides = [1, 1, 1]} : vector<8x8x16xf32> to vector<1x8x16xf32>
    %648 = vector.broadcast %646 : vector<8x1x16xf32> to vector<8x8x16xf32>
    %649 = vector.broadcast %647 : vector<1x8x16xf32> to vector<8x8x16xf32>
    %650 = arith.mulf %648, %649 : vector<8x8x16xf32>
    %651 = arith.addf %645, %650 : vector<8x8x16xf32>
    %652 = vector.extract_strided_slice %634 {offsets = [0, 3, 0], sizes = [8, 1, 16], strides = [1, 1, 1]} : vector<8x8x16xf32> to vector<8x1x16xf32>
    %653 = vector.extract_strided_slice %634 {offsets = [3, 0, 0], sizes = [1, 8, 16], strides = [1, 1, 1]} : vector<8x8x16xf32> to vector<1x8x16xf32>
    %654 = vector.broadcast %652 : vector<8x1x16xf32> to vector<8x8x16xf32>
    %655 = vector.broadcast %653 : vector<1x8x16xf32> to vector<8x8x16xf32>
    %656 = arith.mulf %654, %655 : vector<8x8x16xf32>
    %657 = arith.addf %651, %656 : vector<8x8x16xf32>
    %658 = vector.extract_strided_slice %634 {offsets = [0, 4, 0], sizes = [8, 1, 16], strides = [1, 1, 1]} : vector<8x8x16xf32> to vector<8x1x16xf32>
    %659 = vector.extract_strided_slice %634 {offsets = [4, 0, 0], sizes = [1, 8, 16], strides = [1, 1, 1]} : vector<8x8x16xf32> to vector<1x8x16xf32>
    %660 = vector.broadcast %658 : vector<8x1x16xf32> to vector<8x8x16xf32>
    %661 = vector.broadcast %659 : vector<1x8x16xf32> to vector<8x8x16xf32>
    %662 = arith.mulf %660, %661 : vector<8x8x16xf32>
    %663 = arith.addf %657, %662 : vector<8x8x16xf32>
    %664 = vector.extract_strided_slice %634 {offsets = [0, 5, 0], sizes = [8, 1, 16], strides = [1, 1, 1]} : vector<8x8x16xf32> to vector<8x1x16xf32>
    %665 = vector.extract_strided_slice %634 {offsets = [5, 0, 0], sizes = [1, 8, 16], strides = [1, 1, 1]} : vector<8x8x16xf32> to vector<1x8x16xf32>
    %666 = vector.broadcast %664 : vector<8x1x16xf32> to vector<8x8x16xf32>
    %667 = vector.broadcast %665 : vector<1x8x16xf32> to vector<8x8x16xf32>
    %668 = arith.mulf %666, %667 : vector<8x8x16xf32>
    %669 = arith.addf %663, %668 : vector<8x8x16xf32>
    %670 = vector.extract_strided_slice %634 {offsets = [0, 6, 0], sizes = [8, 1, 16], strides = [1, 1, 1]} : vector<8x8x16xf32> to vector<8x1x16xf32>
    %671 = vector.extract_strided_slice %634 {offsets = [6, 0, 0], sizes = [1, 8, 16], strides = [1, 1, 1]} : vector<8x8x16xf32> to vector<1x8x16xf32>
    %672 = vector.broadcast %670 : vector<8x1x16xf32> to vector<8x8x16xf32>
    %673 = vector.broadcast %671 : vector<1x8x16xf32> to vector<8x8x16xf32>
    %674 = arith.mulf %672, %673 : vector<8x8x16xf32>
    %675 = arith.addf %669, %674 : vector<8x8x16xf32>
    %676 = vector.extract_strided_slice %634 {offsets = [0, 7, 0], sizes = [8, 1, 16], strides = [1, 1, 1]} : vector<8x8x16xf32> to vector<8x1x16xf32>
    %677 = vector.extract_strided_slice %634 {offsets = [7, 0, 0], sizes = [1, 8, 16], strides = [1, 1, 1]} : vector<8x8x16xf32> to vector<1x8x16xf32>
    %678 = vector.broadcast %676 : vector<8x1x16xf32> to vector<8x8x16xf32>
    %679 = vector.broadcast %677 : vector<1x8x16xf32> to vector<8x8x16xf32>
    %680 = arith.mulf %678, %679 : vector<8x8x16xf32>
    %681 = arith.addf %675, %680 : vector<8x8x16xf32>
    %682 = vector.shape_cast %95 : vector<1x1x16xi1> to vector<1x1x16xi1>
    %683 = vector.broadcast %682 : vector<1x1x16xi1> to vector<8x8x16xi1>
    %684 = arith.select %683, %681, %634 : vector<8x8x16xi1>, vector<8x8x16xf32>
    %685 = vector.extract_strided_slice %684 {offsets = [0, 0, 0], sizes = [8, 1, 16], strides = [1, 1, 1]} : vector<8x8x16xf32> to vector<8x1x16xf32>
    %686 = vector.extract_strided_slice %684 {offsets = [0, 0, 0], sizes = [1, 8, 16], strides = [1, 1, 1]} : vector<8x8x16xf32> to vector<1x8x16xf32>
    %687 = vector.broadcast %685 : vector<8x1x16xf32> to vector<8x8x16xf32>
    %688 = vector.broadcast %686 : vector<1x8x16xf32> to vector<8x8x16xf32>
    %689 = arith.mulf %687, %688 : vector<8x8x16xf32>
    %690 = vector.extract_strided_slice %684 {offsets = [0, 1, 0], sizes = [8, 1, 16], strides = [1, 1, 1]} : vector<8x8x16xf32> to vector<8x1x16xf32>
    %691 = vector.extract_strided_slice %684 {offsets = [1, 0, 0], sizes = [1, 8, 16], strides = [1, 1, 1]} : vector<8x8x16xf32> to vector<1x8x16xf32>
    %692 = vector.broadcast %690 : vector<8x1x16xf32> to vector<8x8x16xf32>
    %693 = vector.broadcast %691 : vector<1x8x16xf32> to vector<8x8x16xf32>
    %694 = arith.mulf %692, %693 : vector<8x8x16xf32>
    %695 = arith.addf %689, %694 : vector<8x8x16xf32>
    %696 = vector.extract_strided_slice %684 {offsets = [0, 2, 0], sizes = [8, 1, 16], strides = [1, 1, 1]} : vector<8x8x16xf32> to vector<8x1x16xf32>
    %697 = vector.extract_strided_slice %684 {offsets = [2, 0, 0], sizes = [1, 8, 16], strides = [1, 1, 1]} : vector<8x8x16xf32> to vector<1x8x16xf32>
    %698 = vector.broadcast %696 : vector<8x1x16xf32> to vector<8x8x16xf32>
    %699 = vector.broadcast %697 : vector<1x8x16xf32> to vector<8x8x16xf32>
    %700 = arith.mulf %698, %699 : vector<8x8x16xf32>
    %701 = arith.addf %695, %700 : vector<8x8x16xf32>
    %702 = vector.extract_strided_slice %684 {offsets = [0, 3, 0], sizes = [8, 1, 16], strides = [1, 1, 1]} : vector<8x8x16xf32> to vector<8x1x16xf32>
    %703 = vector.extract_strided_slice %684 {offsets = [3, 0, 0], sizes = [1, 8, 16], strides = [1, 1, 1]} : vector<8x8x16xf32> to vector<1x8x16xf32>
    %704 = vector.broadcast %702 : vector<8x1x16xf32> to vector<8x8x16xf32>
    %705 = vector.broadcast %703 : vector<1x8x16xf32> to vector<8x8x16xf32>
    %706 = arith.mulf %704, %705 : vector<8x8x16xf32>
    %707 = arith.addf %701, %706 : vector<8x8x16xf32>
    %708 = vector.extract_strided_slice %684 {offsets = [0, 4, 0], sizes = [8, 1, 16], strides = [1, 1, 1]} : vector<8x8x16xf32> to vector<8x1x16xf32>
    %709 = vector.extract_strided_slice %684 {offsets = [4, 0, 0], sizes = [1, 8, 16], strides = [1, 1, 1]} : vector<8x8x16xf32> to vector<1x8x16xf32>
    %710 = vector.broadcast %708 : vector<8x1x16xf32> to vector<8x8x16xf32>
    %711 = vector.broadcast %709 : vector<1x8x16xf32> to vector<8x8x16xf32>
    %712 = arith.mulf %710, %711 : vector<8x8x16xf32>
    %713 = arith.addf %707, %712 : vector<8x8x16xf32>
    %714 = vector.extract_strided_slice %684 {offsets = [0, 5, 0], sizes = [8, 1, 16], strides = [1, 1, 1]} : vector<8x8x16xf32> to vector<8x1x16xf32>
    %715 = vector.extract_strided_slice %684 {offsets = [5, 0, 0], sizes = [1, 8, 16], strides = [1, 1, 1]} : vector<8x8x16xf32> to vector<1x8x16xf32>
    %716 = vector.broadcast %714 : vector<8x1x16xf32> to vector<8x8x16xf32>
    %717 = vector.broadcast %715 : vector<1x8x16xf32> to vector<8x8x16xf32>
    %718 = arith.mulf %716, %717 : vector<8x8x16xf32>
    %719 = arith.addf %713, %718 : vector<8x8x16xf32>
    %720 = vector.extract_strided_slice %684 {offsets = [0, 6, 0], sizes = [8, 1, 16], strides = [1, 1, 1]} : vector<8x8x16xf32> to vector<8x1x16xf32>
    %721 = vector.extract_strided_slice %684 {offsets = [6, 0, 0], sizes = [1, 8, 16], strides = [1, 1, 1]} : vector<8x8x16xf32> to vector<1x8x16xf32>
    %722 = vector.broadcast %720 : vector<8x1x16xf32> to vector<8x8x16xf32>
    %723 = vector.broadcast %721 : vector<1x8x16xf32> to vector<8x8x16xf32>
    %724 = arith.mulf %722, %723 : vector<8x8x16xf32>
    %725 = arith.addf %719, %724 : vector<8x8x16xf32>
    %726 = vector.extract_strided_slice %684 {offsets = [0, 7, 0], sizes = [8, 1, 16], strides = [1, 1, 1]} : vector<8x8x16xf32> to vector<8x1x16xf32>
    %727 = vector.extract_strided_slice %684 {offsets = [7, 0, 0], sizes = [1, 8, 16], strides = [1, 1, 1]} : vector<8x8x16xf32> to vector<1x8x16xf32>
    %728 = vector.broadcast %726 : vector<8x1x16xf32> to vector<8x8x16xf32>
    %729 = vector.broadcast %727 : vector<1x8x16xf32> to vector<8x8x16xf32>
    %730 = arith.mulf %728, %729 : vector<8x8x16xf32>
    %731 = arith.addf %725, %730 : vector<8x8x16xf32>
    %732 = vector.shape_cast %103 : vector<1x1x16xi1> to vector<1x1x16xi1>
    %733 = vector.broadcast %732 : vector<1x1x16xi1> to vector<8x8x16xi1>
    %734 = arith.select %733, %731, %684 : vector<8x8x16xi1>, vector<8x8x16xf32>
    %735 = vector.extract_strided_slice %734 {offsets = [0, 0, 0], sizes = [8, 1, 16], strides = [1, 1, 1]} : vector<8x8x16xf32> to vector<8x1x16xf32>
    %736 = vector.extract_strided_slice %734 {offsets = [0, 0, 0], sizes = [1, 8, 16], strides = [1, 1, 1]} : vector<8x8x16xf32> to vector<1x8x16xf32>
    %737 = vector.broadcast %735 : vector<8x1x16xf32> to vector<8x8x16xf32>
    %738 = vector.broadcast %736 : vector<1x8x16xf32> to vector<8x8x16xf32>
    %739 = arith.mulf %737, %738 : vector<8x8x16xf32>
    %740 = vector.extract_strided_slice %734 {offsets = [0, 1, 0], sizes = [8, 1, 16], strides = [1, 1, 1]} : vector<8x8x16xf32> to vector<8x1x16xf32>
    %741 = vector.extract_strided_slice %734 {offsets = [1, 0, 0], sizes = [1, 8, 16], strides = [1, 1, 1]} : vector<8x8x16xf32> to vector<1x8x16xf32>
    %742 = vector.broadcast %740 : vector<8x1x16xf32> to vector<8x8x16xf32>
    %743 = vector.broadcast %741 : vector<1x8x16xf32> to vector<8x8x16xf32>
    %744 = arith.mulf %742, %743 : vector<8x8x16xf32>
    %745 = arith.addf %739, %744 : vector<8x8x16xf32>
    %746 = vector.extract_strided_slice %734 {offsets = [0, 2, 0], sizes = [8, 1, 16], strides = [1, 1, 1]} : vector<8x8x16xf32> to vector<8x1x16xf32>
    %747 = vector.extract_strided_slice %734 {offsets = [2, 0, 0], sizes = [1, 8, 16], strides = [1, 1, 1]} : vector<8x8x16xf32> to vector<1x8x16xf32>
    %748 = vector.broadcast %746 : vector<8x1x16xf32> to vector<8x8x16xf32>
    %749 = vector.broadcast %747 : vector<1x8x16xf32> to vector<8x8x16xf32>
    %750 = arith.mulf %748, %749 : vector<8x8x16xf32>
    %751 = arith.addf %745, %750 : vector<8x8x16xf32>
    %752 = vector.extract_strided_slice %734 {offsets = [0, 3, 0], sizes = [8, 1, 16], strides = [1, 1, 1]} : vector<8x8x16xf32> to vector<8x1x16xf32>
    %753 = vector.extract_strided_slice %734 {offsets = [3, 0, 0], sizes = [1, 8, 16], strides = [1, 1, 1]} : vector<8x8x16xf32> to vector<1x8x16xf32>
    %754 = vector.broadcast %752 : vector<8x1x16xf32> to vector<8x8x16xf32>
    %755 = vector.broadcast %753 : vector<1x8x16xf32> to vector<8x8x16xf32>
    %756 = arith.mulf %754, %755 : vector<8x8x16xf32>
    %757 = arith.addf %751, %756 : vector<8x8x16xf32>
    %758 = vector.extract_strided_slice %734 {offsets = [0, 4, 0], sizes = [8, 1, 16], strides = [1, 1, 1]} : vector<8x8x16xf32> to vector<8x1x16xf32>
    %759 = vector.extract_strided_slice %734 {offsets = [4, 0, 0], sizes = [1, 8, 16], strides = [1, 1, 1]} : vector<8x8x16xf32> to vector<1x8x16xf32>
    %760 = vector.broadcast %758 : vector<8x1x16xf32> to vector<8x8x16xf32>
    %761 = vector.broadcast %759 : vector<1x8x16xf32> to vector<8x8x16xf32>
    %762 = arith.mulf %760, %761 : vector<8x8x16xf32>
    %763 = arith.addf %757, %762 : vector<8x8x16xf32>
    %764 = vector.extract_strided_slice %734 {offsets = [0, 5, 0], sizes = [8, 1, 16], strides = [1, 1, 1]} : vector<8x8x16xf32> to vector<8x1x16xf32>
    %765 = vector.extract_strided_slice %734 {offsets = [5, 0, 0], sizes = [1, 8, 16], strides = [1, 1, 1]} : vector<8x8x16xf32> to vector<1x8x16xf32>
    %766 = vector.broadcast %764 : vector<8x1x16xf32> to vector<8x8x16xf32>
    %767 = vector.broadcast %765 : vector<1x8x16xf32> to vector<8x8x16xf32>
    %768 = arith.mulf %766, %767 : vector<8x8x16xf32>
    %769 = arith.addf %763, %768 : vector<8x8x16xf32>
    %770 = vector.extract_strided_slice %734 {offsets = [0, 6, 0], sizes = [8, 1, 16], strides = [1, 1, 1]} : vector<8x8x16xf32> to vector<8x1x16xf32>
    %771 = vector.extract_strided_slice %734 {offsets = [6, 0, 0], sizes = [1, 8, 16], strides = [1, 1, 1]} : vector<8x8x16xf32> to vector<1x8x16xf32>
    %772 = vector.broadcast %770 : vector<8x1x16xf32> to vector<8x8x16xf32>
    %773 = vector.broadcast %771 : vector<1x8x16xf32> to vector<8x8x16xf32>
    %774 = arith.mulf %772, %773 : vector<8x8x16xf32>
    %775 = arith.addf %769, %774 : vector<8x8x16xf32>
    %776 = vector.extract_strided_slice %734 {offsets = [0, 7, 0], sizes = [8, 1, 16], strides = [1, 1, 1]} : vector<8x8x16xf32> to vector<8x1x16xf32>
    %777 = vector.extract_strided_slice %734 {offsets = [7, 0, 0], sizes = [1, 8, 16], strides = [1, 1, 1]} : vector<8x8x16xf32> to vector<1x8x16xf32>
    %778 = vector.broadcast %776 : vector<8x1x16xf32> to vector<8x8x16xf32>
    %779 = vector.broadcast %777 : vector<1x8x16xf32> to vector<8x8x16xf32>
    %780 = arith.mulf %778, %779 : vector<8x8x16xf32>
    %781 = arith.addf %775, %780 : vector<8x8x16xf32>
    %782 = vector.shape_cast %111 : vector<1x1x16xi1> to vector<1x1x16xi1>
    %783 = vector.broadcast %782 : vector<1x1x16xi1> to vector<8x8x16xi1>
    %784 = arith.select %783, %781, %734 : vector<8x8x16xi1>, vector<8x8x16xf32>
    %785 = vector.extract_strided_slice %784 {offsets = [0, 0, 0], sizes = [8, 1, 16], strides = [1, 1, 1]} : vector<8x8x16xf32> to vector<8x1x16xf32>
    %786 = vector.extract_strided_slice %784 {offsets = [0, 0, 0], sizes = [1, 8, 16], strides = [1, 1, 1]} : vector<8x8x16xf32> to vector<1x8x16xf32>
    %787 = vector.broadcast %785 : vector<8x1x16xf32> to vector<8x8x16xf32>
    %788 = vector.broadcast %786 : vector<1x8x16xf32> to vector<8x8x16xf32>
    %789 = arith.mulf %787, %788 : vector<8x8x16xf32>
    %790 = vector.extract_strided_slice %784 {offsets = [0, 1, 0], sizes = [8, 1, 16], strides = [1, 1, 1]} : vector<8x8x16xf32> to vector<8x1x16xf32>
    %791 = vector.extract_strided_slice %784 {offsets = [1, 0, 0], sizes = [1, 8, 16], strides = [1, 1, 1]} : vector<8x8x16xf32> to vector<1x8x16xf32>
    %792 = vector.broadcast %790 : vector<8x1x16xf32> to vector<8x8x16xf32>
    %793 = vector.broadcast %791 : vector<1x8x16xf32> to vector<8x8x16xf32>
    %794 = arith.mulf %792, %793 : vector<8x8x16xf32>
    %795 = arith.addf %789, %794 : vector<8x8x16xf32>
    %796 = vector.extract_strided_slice %784 {offsets = [0, 2, 0], sizes = [8, 1, 16], strides = [1, 1, 1]} : vector<8x8x16xf32> to vector<8x1x16xf32>
    %797 = vector.extract_strided_slice %784 {offsets = [2, 0, 0], sizes = [1, 8, 16], strides = [1, 1, 1]} : vector<8x8x16xf32> to vector<1x8x16xf32>
    %798 = vector.broadcast %796 : vector<8x1x16xf32> to vector<8x8x16xf32>
    %799 = vector.broadcast %797 : vector<1x8x16xf32> to vector<8x8x16xf32>
    %800 = arith.mulf %798, %799 : vector<8x8x16xf32>
    %801 = arith.addf %795, %800 : vector<8x8x16xf32>
    %802 = vector.extract_strided_slice %784 {offsets = [0, 3, 0], sizes = [8, 1, 16], strides = [1, 1, 1]} : vector<8x8x16xf32> to vector<8x1x16xf32>
    %803 = vector.extract_strided_slice %784 {offsets = [3, 0, 0], sizes = [1, 8, 16], strides = [1, 1, 1]} : vector<8x8x16xf32> to vector<1x8x16xf32>
    %804 = vector.broadcast %802 : vector<8x1x16xf32> to vector<8x8x16xf32>
    %805 = vector.broadcast %803 : vector<1x8x16xf32> to vector<8x8x16xf32>
    %806 = arith.mulf %804, %805 : vector<8x8x16xf32>
    %807 = arith.addf %801, %806 : vector<8x8x16xf32>
    %808 = vector.extract_strided_slice %784 {offsets = [0, 4, 0], sizes = [8, 1, 16], strides = [1, 1, 1]} : vector<8x8x16xf32> to vector<8x1x16xf32>
    %809 = vector.extract_strided_slice %784 {offsets = [4, 0, 0], sizes = [1, 8, 16], strides = [1, 1, 1]} : vector<8x8x16xf32> to vector<1x8x16xf32>
    %810 = vector.broadcast %808 : vector<8x1x16xf32> to vector<8x8x16xf32>
    %811 = vector.broadcast %809 : vector<1x8x16xf32> to vector<8x8x16xf32>
    %812 = arith.mulf %810, %811 : vector<8x8x16xf32>
    %813 = arith.addf %807, %812 : vector<8x8x16xf32>
    %814 = vector.extract_strided_slice %784 {offsets = [0, 5, 0], sizes = [8, 1, 16], strides = [1, 1, 1]} : vector<8x8x16xf32> to vector<8x1x16xf32>
    %815 = vector.extract_strided_slice %784 {offsets = [5, 0, 0], sizes = [1, 8, 16], strides = [1, 1, 1]} : vector<8x8x16xf32> to vector<1x8x16xf32>
    %816 = vector.broadcast %814 : vector<8x1x16xf32> to vector<8x8x16xf32>
    %817 = vector.broadcast %815 : vector<1x8x16xf32> to vector<8x8x16xf32>
    %818 = arith.mulf %816, %817 : vector<8x8x16xf32>
    %819 = arith.addf %813, %818 : vector<8x8x16xf32>
    %820 = vector.extract_strided_slice %784 {offsets = [0, 6, 0], sizes = [8, 1, 16], strides = [1, 1, 1]} : vector<8x8x16xf32> to vector<8x1x16xf32>
    %821 = vector.extract_strided_slice %784 {offsets = [6, 0, 0], sizes = [1, 8, 16], strides = [1, 1, 1]} : vector<8x8x16xf32> to vector<1x8x16xf32>
    %822 = vector.broadcast %820 : vector<8x1x16xf32> to vector<8x8x16xf32>
    %823 = vector.broadcast %821 : vector<1x8x16xf32> to vector<8x8x16xf32>
    %824 = arith.mulf %822, %823 : vector<8x8x16xf32>
    %825 = arith.addf %819, %824 : vector<8x8x16xf32>
    %826 = vector.extract_strided_slice %784 {offsets = [0, 7, 0], sizes = [8, 1, 16], strides = [1, 1, 1]} : vector<8x8x16xf32> to vector<8x1x16xf32>
    %827 = vector.extract_strided_slice %784 {offsets = [7, 0, 0], sizes = [1, 8, 16], strides = [1, 1, 1]} : vector<8x8x16xf32> to vector<1x8x16xf32>
    %828 = vector.broadcast %826 : vector<8x1x16xf32> to vector<8x8x16xf32>
    %829 = vector.broadcast %827 : vector<1x8x16xf32> to vector<8x8x16xf32>
    %830 = arith.mulf %828, %829 : vector<8x8x16xf32>
    %831 = arith.addf %825, %830 : vector<8x8x16xf32>
    %832 = vector.shape_cast %119 : vector<1x1x16xi1> to vector<1x1x16xi1>
    %833 = vector.broadcast %832 : vector<1x1x16xi1> to vector<8x8x16xi1>
    %834 = arith.select %833, %831, %784 : vector<8x8x16xi1>, vector<8x8x16xf32>
    %835 = vector.extract_strided_slice %834 {offsets = [0, 0, 0], sizes = [8, 8, 8], strides = [1, 1, 1]} : vector<8x8x16xf32> to vector<8x8x8xf32>
    %836 = vector.extract_strided_slice %834 {offsets = [0, 0, 8], sizes = [8, 8, 8], strides = [1, 1, 1]} : vector<8x8x16xf32> to vector<8x8x8xf32>
    %837 = vector.extract_strided_slice %835 {offsets = [0, 0, 0], sizes = [8, 1, 8], strides = [1, 1, 1]} : vector<8x8x8xf32> to vector<8x1x8xf32>
    %838 = vector.extract_strided_slice %836 {offsets = [0, 0, 0], sizes = [1, 8, 8], strides = [1, 1, 1]} : vector<8x8x8xf32> to vector<1x8x8xf32>
    %839 = vector.broadcast %837 : vector<8x1x8xf32> to vector<8x8x8xf32>
    %840 = vector.broadcast %838 : vector<1x8x8xf32> to vector<8x8x8xf32>
    %841 = arith.mulf %839, %840 : vector<8x8x8xf32>
    %842 = vector.extract_strided_slice %835 {offsets = [0, 1, 0], sizes = [8, 1, 8], strides = [1, 1, 1]} : vector<8x8x8xf32> to vector<8x1x8xf32>
    %843 = vector.extract_strided_slice %836 {offsets = [1, 0, 0], sizes = [1, 8, 8], strides = [1, 1, 1]} : vector<8x8x8xf32> to vector<1x8x8xf32>
    %844 = vector.broadcast %842 : vector<8x1x8xf32> to vector<8x8x8xf32>
    %845 = vector.broadcast %843 : vector<1x8x8xf32> to vector<8x8x8xf32>
    %846 = arith.mulf %844, %845 : vector<8x8x8xf32>
    %847 = arith.addf %841, %846 : vector<8x8x8xf32>
    %848 = vector.extract_strided_slice %835 {offsets = [0, 2, 0], sizes = [8, 1, 8], strides = [1, 1, 1]} : vector<8x8x8xf32> to vector<8x1x8xf32>
    %849 = vector.extract_strided_slice %836 {offsets = [2, 0, 0], sizes = [1, 8, 8], strides = [1, 1, 1]} : vector<8x8x8xf32> to vector<1x8x8xf32>
    %850 = vector.broadcast %848 : vector<8x1x8xf32> to vector<8x8x8xf32>
    %851 = vector.broadcast %849 : vector<1x8x8xf32> to vector<8x8x8xf32>
    %852 = arith.mulf %850, %851 : vector<8x8x8xf32>
    %853 = arith.addf %847, %852 : vector<8x8x8xf32>
    %854 = vector.extract_strided_slice %835 {offsets = [0, 3, 0], sizes = [8, 1, 8], strides = [1, 1, 1]} : vector<8x8x8xf32> to vector<8x1x8xf32>
    %855 = vector.extract_strided_slice %836 {offsets = [3, 0, 0], sizes = [1, 8, 8], strides = [1, 1, 1]} : vector<8x8x8xf32> to vector<1x8x8xf32>
    %856 = vector.broadcast %854 : vector<8x1x8xf32> to vector<8x8x8xf32>
    %857 = vector.broadcast %855 : vector<1x8x8xf32> to vector<8x8x8xf32>
    %858 = arith.mulf %856, %857 : vector<8x8x8xf32>
    %859 = arith.addf %853, %858 : vector<8x8x8xf32>
    %860 = vector.extract_strided_slice %835 {offsets = [0, 4, 0], sizes = [8, 1, 8], strides = [1, 1, 1]} : vector<8x8x8xf32> to vector<8x1x8xf32>
    %861 = vector.extract_strided_slice %836 {offsets = [4, 0, 0], sizes = [1, 8, 8], strides = [1, 1, 1]} : vector<8x8x8xf32> to vector<1x8x8xf32>
    %862 = vector.broadcast %860 : vector<8x1x8xf32> to vector<8x8x8xf32>
    %863 = vector.broadcast %861 : vector<1x8x8xf32> to vector<8x8x8xf32>
    %864 = arith.mulf %862, %863 : vector<8x8x8xf32>
    %865 = arith.addf %859, %864 : vector<8x8x8xf32>
    %866 = vector.extract_strided_slice %835 {offsets = [0, 5, 0], sizes = [8, 1, 8], strides = [1, 1, 1]} : vector<8x8x8xf32> to vector<8x1x8xf32>
    %867 = vector.extract_strided_slice %836 {offsets = [5, 0, 0], sizes = [1, 8, 8], strides = [1, 1, 1]} : vector<8x8x8xf32> to vector<1x8x8xf32>
    %868 = vector.broadcast %866 : vector<8x1x8xf32> to vector<8x8x8xf32>
    %869 = vector.broadcast %867 : vector<1x8x8xf32> to vector<8x8x8xf32>
    %870 = arith.mulf %868, %869 : vector<8x8x8xf32>
    %871 = arith.addf %865, %870 : vector<8x8x8xf32>
    %872 = vector.extract_strided_slice %835 {offsets = [0, 6, 0], sizes = [8, 1, 8], strides = [1, 1, 1]} : vector<8x8x8xf32> to vector<8x1x8xf32>
    %873 = vector.extract_strided_slice %836 {offsets = [6, 0, 0], sizes = [1, 8, 8], strides = [1, 1, 1]} : vector<8x8x8xf32> to vector<1x8x8xf32>
    %874 = vector.broadcast %872 : vector<8x1x8xf32> to vector<8x8x8xf32>
    %875 = vector.broadcast %873 : vector<1x8x8xf32> to vector<8x8x8xf32>
    %876 = arith.mulf %874, %875 : vector<8x8x8xf32>
    %877 = arith.addf %871, %876 : vector<8x8x8xf32>
    %878 = vector.extract_strided_slice %835 {offsets = [0, 7, 0], sizes = [8, 1, 8], strides = [1, 1, 1]} : vector<8x8x8xf32> to vector<8x1x8xf32>
    %879 = vector.extract_strided_slice %836 {offsets = [7, 0, 0], sizes = [1, 8, 8], strides = [1, 1, 1]} : vector<8x8x8xf32> to vector<1x8x8xf32>
    %880 = vector.broadcast %878 : vector<8x1x8xf32> to vector<8x8x8xf32>
    %881 = vector.broadcast %879 : vector<1x8x8xf32> to vector<8x8x8xf32>
    %882 = arith.mulf %880, %881 : vector<8x8x8xf32>
    %883 = arith.addf %877, %882 : vector<8x8x8xf32>
    %884 = vector.extract_strided_slice %883 {offsets = [0, 0, 0], sizes = [8, 8, 4], strides = [1, 1, 1]} : vector<8x8x8xf32> to vector<8x8x4xf32>
    %885 = vector.extract_strided_slice %883 {offsets = [0, 0, 4], sizes = [8, 8, 4], strides = [1, 1, 1]} : vector<8x8x8xf32> to vector<8x8x4xf32>
    %886 = vector.extract_strided_slice %884 {offsets = [0, 0, 0], sizes = [8, 1, 4], strides = [1, 1, 1]} : vector<8x8x4xf32> to vector<8x1x4xf32>
    %887 = vector.extract_strided_slice %885 {offsets = [0, 0, 0], sizes = [1, 8, 4], strides = [1, 1, 1]} : vector<8x8x4xf32> to vector<1x8x4xf32>
    %888 = vector.broadcast %886 : vector<8x1x4xf32> to vector<8x8x4xf32>
    %889 = vector.broadcast %887 : vector<1x8x4xf32> to vector<8x8x4xf32>
    %890 = arith.mulf %888, %889 : vector<8x8x4xf32>
    %891 = vector.extract_strided_slice %884 {offsets = [0, 1, 0], sizes = [8, 1, 4], strides = [1, 1, 1]} : vector<8x8x4xf32> to vector<8x1x4xf32>
    %892 = vector.extract_strided_slice %885 {offsets = [1, 0, 0], sizes = [1, 8, 4], strides = [1, 1, 1]} : vector<8x8x4xf32> to vector<1x8x4xf32>
    %893 = vector.broadcast %891 : vector<8x1x4xf32> to vector<8x8x4xf32>
    %894 = vector.broadcast %892 : vector<1x8x4xf32> to vector<8x8x4xf32>
    %895 = arith.mulf %893, %894 : vector<8x8x4xf32>
    %896 = arith.addf %890, %895 : vector<8x8x4xf32>
    %897 = vector.extract_strided_slice %884 {offsets = [0, 2, 0], sizes = [8, 1, 4], strides = [1, 1, 1]} : vector<8x8x4xf32> to vector<8x1x4xf32>
    %898 = vector.extract_strided_slice %885 {offsets = [2, 0, 0], sizes = [1, 8, 4], strides = [1, 1, 1]} : vector<8x8x4xf32> to vector<1x8x4xf32>
    %899 = vector.broadcast %897 : vector<8x1x4xf32> to vector<8x8x4xf32>
    %900 = vector.broadcast %898 : vector<1x8x4xf32> to vector<8x8x4xf32>
    %901 = arith.mulf %899, %900 : vector<8x8x4xf32>
    %902 = arith.addf %896, %901 : vector<8x8x4xf32>
    %903 = vector.extract_strided_slice %884 {offsets = [0, 3, 0], sizes = [8, 1, 4], strides = [1, 1, 1]} : vector<8x8x4xf32> to vector<8x1x4xf32>
    %904 = vector.extract_strided_slice %885 {offsets = [3, 0, 0], sizes = [1, 8, 4], strides = [1, 1, 1]} : vector<8x8x4xf32> to vector<1x8x4xf32>
    %905 = vector.broadcast %903 : vector<8x1x4xf32> to vector<8x8x4xf32>
    %906 = vector.broadcast %904 : vector<1x8x4xf32> to vector<8x8x4xf32>
    %907 = arith.mulf %905, %906 : vector<8x8x4xf32>
    %908 = arith.addf %902, %907 : vector<8x8x4xf32>
    %909 = vector.extract_strided_slice %884 {offsets = [0, 4, 0], sizes = [8, 1, 4], strides = [1, 1, 1]} : vector<8x8x4xf32> to vector<8x1x4xf32>
    %910 = vector.extract_strided_slice %885 {offsets = [4, 0, 0], sizes = [1, 8, 4], strides = [1, 1, 1]} : vector<8x8x4xf32> to vector<1x8x4xf32>
    %911 = vector.broadcast %909 : vector<8x1x4xf32> to vector<8x8x4xf32>
    %912 = vector.broadcast %910 : vector<1x8x4xf32> to vector<8x8x4xf32>
    %913 = arith.mulf %911, %912 : vector<8x8x4xf32>
    %914 = arith.addf %908, %913 : vector<8x8x4xf32>
    %915 = vector.extract_strided_slice %884 {offsets = [0, 5, 0], sizes = [8, 1, 4], strides = [1, 1, 1]} : vector<8x8x4xf32> to vector<8x1x4xf32>
    %916 = vector.extract_strided_slice %885 {offsets = [5, 0, 0], sizes = [1, 8, 4], strides = [1, 1, 1]} : vector<8x8x4xf32> to vector<1x8x4xf32>
    %917 = vector.broadcast %915 : vector<8x1x4xf32> to vector<8x8x4xf32>
    %918 = vector.broadcast %916 : vector<1x8x4xf32> to vector<8x8x4xf32>
    %919 = arith.mulf %917, %918 : vector<8x8x4xf32>
    %920 = arith.addf %914, %919 : vector<8x8x4xf32>
    %921 = vector.extract_strided_slice %884 {offsets = [0, 6, 0], sizes = [8, 1, 4], strides = [1, 1, 1]} : vector<8x8x4xf32> to vector<8x1x4xf32>
    %922 = vector.extract_strided_slice %885 {offsets = [6, 0, 0], sizes = [1, 8, 4], strides = [1, 1, 1]} : vector<8x8x4xf32> to vector<1x8x4xf32>
    %923 = vector.broadcast %921 : vector<8x1x4xf32> to vector<8x8x4xf32>
    %924 = vector.broadcast %922 : vector<1x8x4xf32> to vector<8x8x4xf32>
    %925 = arith.mulf %923, %924 : vector<8x8x4xf32>
    %926 = arith.addf %920, %925 : vector<8x8x4xf32>
    %927 = vector.extract_strided_slice %884 {offsets = [0, 7, 0], sizes = [8, 1, 4], strides = [1, 1, 1]} : vector<8x8x4xf32> to vector<8x1x4xf32>
    %928 = vector.extract_strided_slice %885 {offsets = [7, 0, 0], sizes = [1, 8, 4], strides = [1, 1, 1]} : vector<8x8x4xf32> to vector<1x8x4xf32>
    %929 = vector.broadcast %927 : vector<8x1x4xf32> to vector<8x8x4xf32>
    %930 = vector.broadcast %928 : vector<1x8x4xf32> to vector<8x8x4xf32>
    %931 = arith.mulf %929, %930 : vector<8x8x4xf32>
    %932 = arith.addf %926, %931 : vector<8x8x4xf32>
    %933 = vector.extract_strided_slice %932 {offsets = [0, 0, 0], sizes = [8, 8, 2], strides = [1, 1, 1]} : vector<8x8x4xf32> to vector<8x8x2xf32>
    %934 = vector.extract_strided_slice %932 {offsets = [0, 0, 2], sizes = [8, 8, 2], strides = [1, 1, 1]} : vector<8x8x4xf32> to vector<8x8x2xf32>
    %935 = vector.extract_strided_slice %933 {offsets = [0, 0, 0], sizes = [8, 1, 2], strides = [1, 1, 1]} : vector<8x8x2xf32> to vector<8x1x2xf32>
    %936 = vector.extract_strided_slice %934 {offsets = [0, 0, 0], sizes = [1, 8, 2], strides = [1, 1, 1]} : vector<8x8x2xf32> to vector<1x8x2xf32>
    %937 = vector.broadcast %935 : vector<8x1x2xf32> to vector<8x8x2xf32>
    %938 = vector.broadcast %936 : vector<1x8x2xf32> to vector<8x8x2xf32>
    %939 = arith.mulf %937, %938 : vector<8x8x2xf32>
    %940 = vector.extract_strided_slice %933 {offsets = [0, 1, 0], sizes = [8, 1, 2], strides = [1, 1, 1]} : vector<8x8x2xf32> to vector<8x1x2xf32>
    %941 = vector.extract_strided_slice %934 {offsets = [1, 0, 0], sizes = [1, 8, 2], strides = [1, 1, 1]} : vector<8x8x2xf32> to vector<1x8x2xf32>
    %942 = vector.broadcast %940 : vector<8x1x2xf32> to vector<8x8x2xf32>
    %943 = vector.broadcast %941 : vector<1x8x2xf32> to vector<8x8x2xf32>
    %944 = arith.mulf %942, %943 : vector<8x8x2xf32>
    %945 = arith.addf %939, %944 : vector<8x8x2xf32>
    %946 = vector.extract_strided_slice %933 {offsets = [0, 2, 0], sizes = [8, 1, 2], strides = [1, 1, 1]} : vector<8x8x2xf32> to vector<8x1x2xf32>
    %947 = vector.extract_strided_slice %934 {offsets = [2, 0, 0], sizes = [1, 8, 2], strides = [1, 1, 1]} : vector<8x8x2xf32> to vector<1x8x2xf32>
    %948 = vector.broadcast %946 : vector<8x1x2xf32> to vector<8x8x2xf32>
    %949 = vector.broadcast %947 : vector<1x8x2xf32> to vector<8x8x2xf32>
    %950 = arith.mulf %948, %949 : vector<8x8x2xf32>
    %951 = arith.addf %945, %950 : vector<8x8x2xf32>
    %952 = vector.extract_strided_slice %933 {offsets = [0, 3, 0], sizes = [8, 1, 2], strides = [1, 1, 1]} : vector<8x8x2xf32> to vector<8x1x2xf32>
    %953 = vector.extract_strided_slice %934 {offsets = [3, 0, 0], sizes = [1, 8, 2], strides = [1, 1, 1]} : vector<8x8x2xf32> to vector<1x8x2xf32>
    %954 = vector.broadcast %952 : vector<8x1x2xf32> to vector<8x8x2xf32>
    %955 = vector.broadcast %953 : vector<1x8x2xf32> to vector<8x8x2xf32>
    %956 = arith.mulf %954, %955 : vector<8x8x2xf32>
    %957 = arith.addf %951, %956 : vector<8x8x2xf32>
    %958 = vector.extract_strided_slice %933 {offsets = [0, 4, 0], sizes = [8, 1, 2], strides = [1, 1, 1]} : vector<8x8x2xf32> to vector<8x1x2xf32>
    %959 = vector.extract_strided_slice %934 {offsets = [4, 0, 0], sizes = [1, 8, 2], strides = [1, 1, 1]} : vector<8x8x2xf32> to vector<1x8x2xf32>
    %960 = vector.broadcast %958 : vector<8x1x2xf32> to vector<8x8x2xf32>
    %961 = vector.broadcast %959 : vector<1x8x2xf32> to vector<8x8x2xf32>
    %962 = arith.mulf %960, %961 : vector<8x8x2xf32>
    %963 = arith.addf %957, %962 : vector<8x8x2xf32>
    %964 = vector.extract_strided_slice %933 {offsets = [0, 5, 0], sizes = [8, 1, 2], strides = [1, 1, 1]} : vector<8x8x2xf32> to vector<8x1x2xf32>
    %965 = vector.extract_strided_slice %934 {offsets = [5, 0, 0], sizes = [1, 8, 2], strides = [1, 1, 1]} : vector<8x8x2xf32> to vector<1x8x2xf32>
    %966 = vector.broadcast %964 : vector<8x1x2xf32> to vector<8x8x2xf32>
    %967 = vector.broadcast %965 : vector<1x8x2xf32> to vector<8x8x2xf32>
    %968 = arith.mulf %966, %967 : vector<8x8x2xf32>
    %969 = arith.addf %963, %968 : vector<8x8x2xf32>
    %970 = vector.extract_strided_slice %933 {offsets = [0, 6, 0], sizes = [8, 1, 2], strides = [1, 1, 1]} : vector<8x8x2xf32> to vector<8x1x2xf32>
    %971 = vector.extract_strided_slice %934 {offsets = [6, 0, 0], sizes = [1, 8, 2], strides = [1, 1, 1]} : vector<8x8x2xf32> to vector<1x8x2xf32>
    %972 = vector.broadcast %970 : vector<8x1x2xf32> to vector<8x8x2xf32>
    %973 = vector.broadcast %971 : vector<1x8x2xf32> to vector<8x8x2xf32>
    %974 = arith.mulf %972, %973 : vector<8x8x2xf32>
    %975 = arith.addf %969, %974 : vector<8x8x2xf32>
    %976 = vector.extract_strided_slice %933 {offsets = [0, 7, 0], sizes = [8, 1, 2], strides = [1, 1, 1]} : vector<8x8x2xf32> to vector<8x1x2xf32>
    %977 = vector.extract_strided_slice %934 {offsets = [7, 0, 0], sizes = [1, 8, 2], strides = [1, 1, 1]} : vector<8x8x2xf32> to vector<1x8x2xf32>
    %978 = vector.broadcast %976 : vector<8x1x2xf32> to vector<8x8x2xf32>
    %979 = vector.broadcast %977 : vector<1x8x2xf32> to vector<8x8x2xf32>
    %980 = arith.mulf %978, %979 : vector<8x8x2xf32>
    %981 = arith.addf %975, %980 : vector<8x8x2xf32>
    %c0_i32 = arith.constant 0 : i32
    %982 = arith.cmpi eq, %arg1, %c0_i32 : i32
    %983 = arith.extui %982 : i1 to i32
    %c0_i32_44 = arith.constant 0 : i32
    %984 = arith.cmpi ne, %983, %c0_i32_44 : i32
    scf.if %984 {
      %c0_49 = arith.constant 0 : index
      %c0_50 = arith.constant 0 : index
      %c0_51 = arith.constant 0 : index
      %991 = vector.load %arg5[%c0_49, %c0_50, %c0_51] : memref<8x8x2xf32, #tpu.memory_space<vmem>>, vector<8x8x2xf32>
      tpu.vector_store %arg5[%c0_49, %c0_50, %c0_51], %981 {strides = array<i32>} : memref<8x8x2xf32, #tpu.memory_space<vmem>>, vector<8x8x2xf32>,
    } else {
    }
    %c0_i32_45 = arith.constant 0 : i32
    %985 = arith.cmpi sgt, %arg1, %c0_i32_45 : i32
    %986 = arith.extui %985 : i1 to i32
    %c0_i32_46 = arith.constant 0 : i32
    %987 = arith.cmpi ne, %986, %c0_i32_46 : i32
    scf.if %987 {
      %c0_49 = arith.constant 0 : index
      %c0_50 = arith.constant 0 : index
      %c0_51 = arith.constant 0 : index
      %991 = vector.load %arg5[%c0_49, %c0_50, %c0_51] : memref<8x8x2xf32, #tpu.memory_space<vmem>>, vector<8x8x2xf32>
      %992 = vector.extract_strided_slice %991 {offsets = [0, 0, 0], sizes = [8, 1, 2], strides = [1, 1, 1]} : vector<8x8x2xf32> to vector<8x1x2xf32>
      %993 = vector.extract_strided_slice %981 {offsets = [0, 0, 0], sizes = [1, 8, 2], strides = [1, 1, 1]} : vector<8x8x2xf32> to vector<1x8x2xf32>
      %994 = vector.broadcast %992 : vector<8x1x2xf32> to vector<8x8x2xf32>
      %995 = vector.broadcast %993 : vector<1x8x2xf32> to vector<8x8x2xf32>
      %996 = arith.mulf %994, %995 : vector<8x8x2xf32>
      %997 = vector.extract_strided_slice %991 {offsets = [0, 1, 0], sizes = [8, 1, 2], strides = [1, 1, 1]} : vector<8x8x2xf32> to vector<8x1x2xf32>
      %998 = vector.extract_strided_slice %981 {offsets = [1, 0, 0], sizes = [1, 8, 2], strides = [1, 1, 1]} : vector<8x8x2xf32> to vector<1x8x2xf32>
      %999 = vector.broadcast %997 : vector<8x1x2xf32> to vector<8x8x2xf32>
      %1000 = vector.broadcast %998 : vector<1x8x2xf32> to vector<8x8x2xf32>
      %1001 = arith.mulf %999, %1000 : vector<8x8x2xf32>
      %1002 = arith.addf %996, %1001 : vector<8x8x2xf32>
      %1003 = vector.extract_strided_slice %991 {offsets = [0, 2, 0], sizes = [8, 1, 2], strides = [1, 1, 1]} : vector<8x8x2xf32> to vector<8x1x2xf32>
      %1004 = vector.extract_strided_slice %981 {offsets = [2, 0, 0], sizes = [1, 8, 2], strides = [1, 1, 1]} : vector<8x8x2xf32> to vector<1x8x2xf32>
      %1005 = vector.broadcast %1003 : vector<8x1x2xf32> to vector<8x8x2xf32>
      %1006 = vector.broadcast %1004 : vector<1x8x2xf32> to vector<8x8x2xf32>
      %1007 = arith.mulf %1005, %1006 : vector<8x8x2xf32>
      %1008 = arith.addf %1002, %1007 : vector<8x8x2xf32>
      %1009 = vector.extract_strided_slice %991 {offsets = [0, 3, 0], sizes = [8, 1, 2], strides = [1, 1, 1]} : vector<8x8x2xf32> to vector<8x1x2xf32>
      %1010 = vector.extract_strided_slice %981 {offsets = [3, 0, 0], sizes = [1, 8, 2], strides = [1, 1, 1]} : vector<8x8x2xf32> to vector<1x8x2xf32>
      %1011 = vector.broadcast %1009 : vector<8x1x2xf32> to vector<8x8x2xf32>
      %1012 = vector.broadcast %1010 : vector<1x8x2xf32> to vector<8x8x2xf32>
      %1013 = arith.mulf %1011, %1012 : vector<8x8x2xf32>
      %1014 = arith.addf %1008, %1013 : vector<8x8x2xf32>
      %1015 = vector.extract_strided_slice %991 {offsets = [0, 4, 0], sizes = [8, 1, 2], strides = [1, 1, 1]} : vector<8x8x2xf32> to vector<8x1x2xf32>
      %1016 = vector.extract_strided_slice %981 {offsets = [4, 0, 0], sizes = [1, 8, 2], strides = [1, 1, 1]} : vector<8x8x2xf32> to vector<1x8x2xf32>
      %1017 = vector.broadcast %1015 : vector<8x1x2xf32> to vector<8x8x2xf32>
      %1018 = vector.broadcast %1016 : vector<1x8x2xf32> to vector<8x8x2xf32>
      %1019 = arith.mulf %1017, %1018 : vector<8x8x2xf32>
      %1020 = arith.addf %1014, %1019 : vector<8x8x2xf32>
      %1021 = vector.extract_strided_slice %991 {offsets = [0, 5, 0], sizes = [8, 1, 2], strides = [1, 1, 1]} : vector<8x8x2xf32> to vector<8x1x2xf32>
      %1022 = vector.extract_strided_slice %981 {offsets = [5, 0, 0], sizes = [1, 8, 2], strides = [1, 1, 1]} : vector<8x8x2xf32> to vector<1x8x2xf32>
      %1023 = vector.broadcast %1021 : vector<8x1x2xf32> to vector<8x8x2xf32>
      %1024 = vector.broadcast %1022 : vector<1x8x2xf32> to vector<8x8x2xf32>
      %1025 = arith.mulf %1023, %1024 : vector<8x8x2xf32>
      %1026 = arith.addf %1020, %1025 : vector<8x8x2xf32>
      %1027 = vector.extract_strided_slice %991 {offsets = [0, 6, 0], sizes = [8, 1, 2], strides = [1, 1, 1]} : vector<8x8x2xf32> to vector<8x1x2xf32>
      %1028 = vector.extract_strided_slice %981 {offsets = [6, 0, 0], sizes = [1, 8, 2], strides = [1, 1, 1]} : vector<8x8x2xf32> to vector<1x8x2xf32>
      %1029 = vector.broadcast %1027 : vector<8x1x2xf32> to vector<8x8x2xf32>
      %1030 = vector.broadcast %1028 : vector<1x8x2xf32> to vector<8x8x2xf32>
      %1031 = arith.mulf %1029, %1030 : vector<8x8x2xf32>
      %1032 = arith.addf %1026, %1031 : vector<8x8x2xf32>
      %1033 = vector.extract_strided_slice %991 {offsets = [0, 7, 0], sizes = [8, 1, 2], strides = [1, 1, 1]} : vector<8x8x2xf32> to vector<8x1x2xf32>
      %1034 = vector.extract_strided_slice %981 {offsets = [7, 0, 0], sizes = [1, 8, 2], strides = [1, 1, 1]} : vector<8x8x2xf32> to vector<1x8x2xf32>
      %1035 = vector.broadcast %1033 : vector<8x1x2xf32> to vector<8x8x2xf32>
      %1036 = vector.broadcast %1034 : vector<1x8x2xf32> to vector<8x8x2xf32>
      %1037 = arith.mulf %1035, %1036 : vector<8x8x2xf32>
      %1038 = arith.addf %1032, %1037 : vector<8x8x2xf32>
      %c0_52 = arith.constant 0 : index
      %c0_53 = arith.constant 0 : index
      %c0_54 = arith.constant 0 : index
      %1039 = vector.load %arg5[%c0_52, %c0_53, %c0_54] : memref<8x8x2xf32, #tpu.memory_space<vmem>>, vector<8x8x2xf32>
      tpu.vector_store %arg5[%c0_52, %c0_53, %c0_54], %1038 {strides = array<i32>} : memref<8x8x2xf32, #tpu.memory_space<vmem>>, vector<8x8x2xf32>,
    } else {
    }
    %c0_i32_47 = arith.constant 0 : i32
    %988 = arith.cmpi eq, %arg1, %c0_i32_47 : i32
    %989 = arith.extui %988 : i1 to i32
    %c0_i32_48 = arith.constant 0 : i32
    %990 = arith.cmpi ne, %989, %c0_i32_48 : i32
    scf.if %990 {
      %c0_49 = arith.constant 0 : index
      %c0_50 = arith.constant 0 : index
      %c0_51 = arith.constant 0 : index
      %991 = vector.load %arg5[%c0_49, %c0_50, %c0_51] : memref<8x8x2xf32, #tpu.memory_space<vmem>>, vector<8x8x2xf32>
      %c0_52 = arith.constant 0 : index
      %c0_53 = arith.constant 0 : index
      %c0_54 = arith.constant 0 : index
      %c0_55 = arith.constant 0 : index
      %992 = vector.load %arg4[%c0_52, %c0_53, %c0_54, %c0_55] : memref<1x8x8x2xf32, #tpu.memory_space<vmem>>, vector<1x8x8x2xf32>
      %993 = vector.shape_cast %992 : vector<1x8x8x2xf32> to vector<8x8x2xf32>
      %994 = vector.shape_cast %991 : vector<8x8x2xf32> to vector<1x8x8x2xf32>
      tpu.vector_store %arg4[%c0_52, %c0_53, %c0_54, %c0_55], %994 {strides = array<i32>} : memref<1x8x8x2xf32, #tpu.memory_space<vmem>>, vector<1x8x8x2xf32>,
    } else {
    }
    return
  }
  func.func @transform_0(%arg0: i32, %arg1: i32) -> (i32, i32, i32) {
    %c0_i32 = arith.constant 0 : i32
    %c0_i32_0 = arith.constant 0 : i32
    %c0_i32_1 = arith.constant 0 : i32
    return %arg1, %c0_i32, %c0_i32_0 : i32, i32, i32
  }
  func.func @transform_1(%arg0: i32, %arg1: i32) -> (i32, i32, i32, i32) {
    %c0_i32 = arith.constant 0 : i32
    %c0_i32_0 = arith.constant 0 : i32
    %c0_i32_1 = arith.constant 0 : i32
    %c0_i32_2 = arith.constant 0 : i32
    return %arg0, %c0_i32, %c0_i32_0, %c0_i32_1 : i32, i32, i32, i32
  }
  func.func @transform_2(%arg0: i32, %arg1: i32) -> (i32, i32, i32, i32) {
    %c0_i32 = arith.constant 0 : i32
    %c0_i32_0 = arith.constant 0 : i32
    %c0_i32_1 = arith.constant 0 : i32
    %c0_i32_2 = arith.constant 0 : i32
    return %arg0, %c0_i32, %c0_i32_0, %c0_i32_1 : i32, i32, i32, i32
  }
}

</mosaic_0001>

<llo_original>
// kernel: tpu_custom_call.1
$region0: #{tpu_custom_call.1}
  #allocation0 [shape = 'u32[]', space=smem, size = 0x4, offset = 0x4, fixed_abs, tag = 'smem constant byte address 0x4 - core index']
  #allocation1 [shape = 'u32[144,128]{1,0:T(1,128)}', space=vmem, size = 0x12000, scoped, tag = 'internal scratch']
  #allocation2 [shape = 'f32[8,8,2]{2,1,0:T(8,128)}', space=vmem, size = 0x8000, scoped, tag = 'scratch operand']
  %s0 = inlined_call_operand.vmem [shape: f32[1,4,16], index: 0, kind: input, shape index: {}]
  %s1 = inlined_call_operand.vmem [shape: f32[2,8,8,4], index: 1, kind: input, shape index: {}]
  %s2 = inlined_call_operand.vmem [shape: f32[2,8,8,2], index: 2, kind: output, shape index: {}]
  %s3 = sld [smem:[#allocation0]]
  $region53: #{tpu_custom_call.1} parent=0
    _
  %s5 = ssub.s32 1, %s3
  %s6 = scalar_select 0, %s5, %s3
  loop: start=0, step=1, limit=4
  $region2: #{tpu_custom_call.1} parent=0 // loop_pre_header
    _
  $region3: #{tpu_custom_call.1} parent=0 // loop_header
    %s8 = sphi 0, %s12
    %p9 = scmp.ge.s32.totalorder %s8, 4
    %s15 = sphi 0, %s27
    %s16 = sphi 0, %s23
    %s17 = sphi 0, %s15
    %s18 = sphi 0, %s16
    %s19 = sphi 0, %s17
    %s20 = sphi 0, %s18
    %s30 = sphi 0, %s32
    %s33 = sphi 0, %s30
    %s34 = sphi 0, %s33
    %s50 = sphi 0, %s34
    %s56 = sphi 0, %s58
    %s59 = sphi 0, %s56
    %s60 = sphi 0, %s59
    %s76 = sphi 0, %s60
    %s82 = sphi 0, %s84
    %s85 = sphi 0, %s82
    %s86 = sphi 0, %s85
    %s102 = sphi 0, %s86
  $region4: #{tpu_custom_call.1} parent=0 // loop_header_branch
    %11 = sbr.rel (%p9) target = $region8
  $region5: #{tpu_custom_call.1} parent=0 // loop_body
    %s13 = ssub.s32 %s8, 1
    %s14 = ssub.s32 %s8, 2
    %s21 = sadd.s32 1, %s16
    %p22 = scmp.ge.s32.totalorder %s21, 1
    %s23 = scalar_select %p22, 0, %s21
    %s24 = sadd.s32 1, %s15
    %s25 = scalar_select %p22, %s24, %s15
    %p26 = scmp.ge.s32.totalorder %s25, 2
    %s27 = scalar_select %p26, 0, %s25
    %s28 = ssub.s32 %s16, %s23
    %p29 = scmp.eq.s32.totalorder %s28, 0
    %s31 = sadd.s32 %s30, 1
    %s32 = scalar_select %p29, %s30, %s31
    %p35 = pneg %p29
    %p36 = scmp.eq.s32.totalorder %s8, 1
    %p37 = por %p35, %p36
    %p38 = scmp.ne.s32.totalorder %s30, %s33
    %p39 = scmp.eq.s32.totalorder %s8, 0
    %p40 = por %p38, %p39
    %p41 = scmp.ne.s32.totalorder %s30, %s33
    %p42 = scmp.eq.s32.totalorder %s13, 1
    %p43 = por %p41, %p42
    %p44 = scmp.ne.s32.totalorder %s33, %s34
    %p45 = scmp.eq.s32.totalorder %s13, 0
    %p46 = por %p44, %p45
    %p47 = scmp.ne.s32.totalorder %s33, %s34
    %p48 = scmp.eq.s32.totalorder %s14, 1
    %p49 = por %p47, %p48
    %p51 = scmp.ne.s32.totalorder %s34, %s50
    %p52 = scmp.eq.s32.totalorder %s14, 0
    %p53 = por %p51, %p52
    %s54 = ssub.s32 %s15, %s27
    %p55 = scmp.eq.s32.totalorder %s54, 0
    %s57 = sadd.s32 %s56, 1
    %s58 = scalar_select %p55, %s56, %s57
    %p61 = pneg %p55
    %p62 = scmp.eq.s32.totalorder %s8, 1
    %p63 = por %p61, %p62
    %p64 = scmp.ne.s32.totalorder %s56, %s59
    %p65 = scmp.eq.s32.totalorder %s8, 0
    %p66 = por %p64, %p65
    %p67 = scmp.ne.s32.totalorder %s56, %s59
    %p68 = scmp.eq.s32.totalorder %s13, 1
    %p69 = por %p67, %p68
    %p70 = scmp.ne.s32.totalorder %s59, %s60
    %p71 = scmp.eq.s32.totalorder %s13, 0
    %p72 = por %p70, %p71
    %p73 = scmp.ne.s32.totalorder %s59, %s60
    %p74 = scmp.eq.s32.totalorder %s14, 1
    %p75 = por %p73, %p74
    %p77 = scmp.ne.s32.totalorder %s60, %s76
    %p78 = scmp.eq.s32.totalorder %s14, 0
    %p79 = por %p77, %p78
    %s80 = ssub.s32 %s15, %s27
    %p81 = scmp.eq.s32.totalorder %s80, 0
    %s83 = sadd.s32 %s82, 1
    %s84 = scalar_select %p81, %s82, %s83
    %p87 = pneg %p81
    %p88 = scmp.eq.s32.totalorder %s8, 1
    %p89 = por %p87, %p88
    %p90 = scmp.ne.s32.totalorder %s82, %s85
    %p91 = scmp.eq.s32.totalorder %s8, 0
    %p92 = por %p90, %p91
    %p93 = scmp.ne.s32.totalorder %s82, %s85
    %p94 = scmp.eq.s32.totalorder %s13, 1
    %p95 = por %p93, %p94
    %p96 = scmp.ne.s32.totalorder %s85, %s86
    %p97 = scmp.eq.s32.totalorder %s13, 0
    %p98 = por %p96, %p97
    %p99 = scmp.ne.s32.totalorder %s85, %s86
    %p100 = scmp.eq.s32.totalorder %s14, 1
    %p101 = por %p99, %p100
    %p103 = scmp.ne.s32.totalorder %s86, %s102
    %p104 = scmp.eq.s32.totalorder %s14, 0
    %p105 = por %p103, %p104
    %p106 = scmp.le.s32.totalorder 1, %s8
    %p107 = scmp.lt.s32.totalorder %s8, 3
    %p108 = pnand %p106, %p107
    %p109 = pneg %p108
    // Predicated region
    $region9: #{tpu_custom_call.1} parent=5 // pred_check
      _
    $region10: #{tpu_custom_call.1} parent=5 // pred_check_branch
      %111 = sbr.rel (%p108) target = $region12
    $region11: #{tpu_custom_call.1} parent=5 // pred_region
      %s112 = ssub.s32 %s8, 1
      // Predicated region
      $region13: #{tpu_custom_call.1} parent=11 // pred_check
        %p113 = pneg %p46
      $region14: #{tpu_custom_call.1} parent=11 // pred_check_branch
        %115 = sbr.rel (%p113) target = $region16
      $region15: #{tpu_custom_call.1} parent=11 // pred_region
        %p116 = scmp.lt.s32.totalorder %s18, 0
        %s117 = scalar_select %p116, %s18, 0
        %s118 = smul.addr %s117, 4
        %s119 = scalar_lea.vmem %s0, %s118
      $region16: #{tpu_custom_call.1} parent=11 // pred_fallthru
        _
    $region12: #{tpu_custom_call.1} parent=5 // pred_fallthru
      _
    %p120 = scmp.lt.s32.totalorder %s8, 2
    // Predicated region
    $region17: #{tpu_custom_call.1} parent=5 // pred_check
      %p121 = pneg %p120
    $region18: #{tpu_custom_call.1} parent=5 // pred_check_branch
      %123 = sbr.rel (%p121) target = $region20
    $region19: #{tpu_custom_call.1} parent=5 // pred_region
      // Predicated region
      $region21: #{tpu_custom_call.1} parent=19 // pred_check
        %p124 = pneg %p66
      $region22: #{tpu_custom_call.1} parent=19 // pred_check_branch
        %126 = sbr.rel (%p124) target = $region24
      $region23: #{tpu_custom_call.1} parent=19 // pred_region
        %p127 = scmp.lt.s32.totalorder %s15, 1
        %s128 = scalar_select %p127, %s15, 1
        %s129 = smul.addr %s128, 8
        %s130 = smul.addr %s129, 8
        %s131 = scalar_lea.vmem %s1, %s130
      $region24: #{tpu_custom_call.1} parent=19 // pred_fallthru
        _
    $region20: #{tpu_custom_call.1} parent=5 // pred_fallthru
      _
    %p132 = scmp.le.s32.totalorder 1, %s8
    %p133 = scmp.lt.s32.totalorder %s8, 3
    %p134 = pnand %p132, %p133
    %p135 = pneg %p134
    // Predicated region
    $region25: #{tpu_custom_call.1} parent=5 // pred_check
      _
    $region26: #{tpu_custom_call.1} parent=5 // pred_check_branch
      %137 = sbr.rel (%p134) target = $region28
    $region27: #{tpu_custom_call.1} parent=5 // pred_region
      %s138 = ssub.s32 %s8, 1
      %p139 = scmp.lt.s32.totalorder %s18, 0
      %s140 = scalar_select %p139, %s18, 0
      %s141 = smul.addr %s140, 4
      %s142 = scalar_lea.vmem %s0, %s141
      %p143 = pneg %p46
      %p144 = pneg %p43
      %p145 = scmp.lt.s32.totalorder %s17, 1
      %s146 = scalar_select %p145, %s17, 1
      %s147 = smul.addr %s146, 8
      %s148 = smul.addr %s147, 8
      %s149 = scalar_lea.vmem %s1, %s148
      %p150 = pneg %p72
      %p151 = pneg %p69
      %p152 = pneg %p98
      %p153 = pneg %p95
      %p154 = scmp.lt.s32.totalorder %s17, 1
      %s155 = scalar_select %p154, %s17, 1
      %s156 = smul.addr %s155, 8
      %s157 = smul.addr %s156, 8
      %s158 = scalar_lea.vmem %s2, %s157
      %p159 = scmp.lt.s32.totalorder %s18, 0
      %s160 = scalar_select %p159, %s18, 0
      %s161 = smul.addr %s160, 4
      %s162 = scalar_lea.vmem %s0, %s161
      %p163 = scmp.lt.s32.totalorder %s17, 1
      %s164 = scalar_select %p163, %s17, 1
      %s165 = smul.addr %s164, 8
      %s166 = smul.addr %s165, 8
      %s167 = scalar_lea.vmem %s1, %s166
      %p168 = scmp.lt.s32.totalorder %s17, 1
      %s169 = scalar_select %p168, %s17, 1
      %s170 = smul.addr %s169, 8
      %s171 = smul.addr %s170, 8
      %s172 = scalar_lea.vmem %s2, %s171
      %v173 = vld [vmem:[%s162] sm:$0xf]
      %v174 = vld [vmem:[%s167] sm:$0xff]
      %v175 = vld [vmem:[%s167 + $0x8] sm:$0xff]
      %v176 = vld [vmem:[%s167 + $0x10] sm:$0xff]
      %v177 = vld [vmem:[%s167 + $0x18] sm:$0xff]
      %v178 = vld [vmem:[%s167 + $0x20] sm:$0xff]
      %v179 = vld [vmem:[%s167 + $0x28] sm:$0xff]
      %v180 = vld [vmem:[%s167 + $0x30] sm:$0xff]
      %v181 = vld [vmem:[%s167 + $0x38] sm:$0xff]
      %183 = vset.pattern.permute.xlu0 0
      %184 = vperm.xlu0 %183, %v174
      %v185 = vpop.permute.xlu0 %184
      %188 = vset.pattern.permute.xlu0 0
      %189 = vperm.xlu0 %188, %v175
      %v190 = vpop.permute.xlu0 %189
      %193 = vset.pattern.permute.xlu0 0
      %194 = vperm.xlu0 %193, %v176
      %v195 = vpop.permute.xlu0 %194
      %198 = vset.pattern.permute.xlu0 0
      %199 = vperm.xlu0 %198, %v177
      %v200 = vpop.permute.xlu0 %199
      %203 = vset.pattern.permute.xlu0 0
      %204 = vperm.xlu0 %203, %v178
      %v205 = vpop.permute.xlu0 %204
      %208 = vset.pattern.permute.xlu0 0
      %209 = vperm.xlu0 %208, %v179
      %v210 = vpop.permute.xlu0 %209
      %213 = vset.pattern.permute.xlu0 0
      %214 = vperm.xlu0 %213, %v180
      %v215 = vpop.permute.xlu0 %214
      %218 = vset.pattern.permute.xlu0 0
      %219 = vperm.xlu0 %218, %v181
      %v220 = vpop.permute.xlu0 %219
      %v222 = vlaneseq
      %v223 = vshrl.u32 %v222, 7
      %v224 = vsub.s32 0, %v223
      %v225 = vrot.slane %v173, %v224
      %v226 = vmul.f32 %v185, %v225
      %v227 = vmul.f32 %v190, %v225
      %v228 = vmul.f32 %v195, %v225
      %v229 = vmul.f32 %v200, %v225
      %v230 = vmul.f32 %v205, %v225
      %v231 = vmul.f32 %v210, %v225
      %v232 = vmul.f32 %v215, %v225
      %v233 = vmul.f32 %v220, %v225
      %234 = vset.pattern.permute.xlu0 1
      %235 = vperm.xlu0 %234, %v174
      %v236 = vpop.permute.xlu0 %235
      %238 = vset.pattern.permute.xlu0 1
      %239 = vperm.xlu0 %238, %v175
      %v240 = vpop.permute.xlu0 %239
      %242 = vset.pattern.permute.xlu0 1
      %243 = vperm.xlu0 %242, %v176
      %v244 = vpop.permute.xlu0 %243
      %246 = vset.pattern.permute.xlu0 1
      %247 = vperm.xlu0 %246, %v177
      %v248 = vpop.permute.xlu0 %247
      %250 = vset.pattern.permute.xlu0 1
      %251 = vperm.xlu0 %250, %v178
      %v252 = vpop.permute.xlu0 %251
      %254 = vset.pattern.permute.xlu0 1
      %255 = vperm.xlu0 %254, %v179
      %v256 = vpop.permute.xlu0 %255
      %258 = vset.pattern.permute.xlu0 1
      %259 = vperm.xlu0 %258, %v180
      %v260 = vpop.permute.xlu0 %259
      %262 = vset.pattern.permute.xlu0 1
      %263 = vperm.xlu0 %262, %v181
      %v264 = vpop.permute.xlu0 %263
      %v266 = vlaneseq
      %v267 = vshrl.u32 %v266, 7
      %v268 = vsub.s32 1, %v267
      %v269 = vrot.slane %v173, %v268
      %v270 = vmul.f32 %v236, %v269
      %v271 = vmul.f32 %v240, %v269
      %v272 = vmul.f32 %v244, %v269
      %v273 = vmul.f32 %v248, %v269
      %v274 = vmul.f32 %v252, %v269
      %v275 = vmul.f32 %v256, %v269
      %v276 = vmul.f32 %v260, %v269
      %v277 = vmul.f32 %v264, %v269
      %v278 = vadd.f32 %v226, %v270
      %v279 = vadd.f32 %v227, %v271
      %v280 = vadd.f32 %v228, %v272
      %v281 = vadd.f32 %v229, %v273
      %v282 = vadd.f32 %v230, %v274
      %v283 = vadd.f32 %v231, %v275
      %v284 = vadd.f32 %v232, %v276
      %v285 = vadd.f32 %v233, %v277
      %286 = vset.pattern.permute.xlu0 2
      %287 = vperm.xlu0 %286, %v174
      %v288 = vpop.permute.xlu0 %287
      %290 = vset.pattern.permute.xlu0 2
      %291 = vperm.xlu0 %290, %v175
      %v292 = vpop.permute.xlu0 %291
      %294 = vset.pattern.permute.xlu0 2
      %295 = vperm.xlu0 %294, %v176
      %v296 = vpop.permute.xlu0 %295
      %298 = vset.pattern.permute.xlu0 2
      %299 = vperm.xlu0 %298, %v177
      %v300 = vpop.permute.xlu0 %299
      %302 = vset.pattern.permute.xlu0 2
      %303 = vperm.xlu0 %302, %v178
      %v304 = vpop.permute.xlu0 %303
      %306 = vset.pattern.permute.xlu0 2
      %307 = vperm.xlu0 %306, %v179
      %v308 = vpop.permute.xlu0 %307
      %310 = vset.pattern.permute.xlu0 2
      %311 = vperm.xlu0 %310, %v180
      %v312 = vpop.permute.xlu0 %311
      %314 = vset.pattern.permute.xlu0 2
      %315 = vperm.xlu0 %314, %v181
      %v316 = vpop.permute.xlu0 %315
      %v318 = vlaneseq
      %v319 = vshrl.u32 %v318, 7
      %v320 = vsub.s32 2, %v319
      %v321 = vrot.slane %v173, %v320
      %v322 = vmul.f32 %v288, %v321
      %v323 = vmul.f32 %v292, %v321
      %v324 = vmul.f32 %v296, %v321
      %v325 = vmul.f32 %v300, %v321
      %v326 = vmul.f32 %v304, %v321
      %v327 = vmul.f32 %v308, %v321
      %v328 = vmul.f32 %v312, %v321
      %v329 = vmul.f32 %v316, %v321
      %v330 = vadd.f32 %v278, %v322
      %v331 = vadd.f32 %v279, %v323
      %v332 = vadd.f32 %v280, %v324
      %v333 = vadd.f32 %v281, %v325
      %v334 = vadd.f32 %v282, %v326
      %v335 = vadd.f32 %v283, %v327
      %v336 = vadd.f32 %v284, %v328
      %v337 = vadd.f32 %v285, %v329
      %338 = vset.pattern.permute.xlu0 3
      %339 = vperm.xlu0 %338, %v174
      %v340 = vpop.permute.xlu0 %339
      %342 = vset.pattern.permute.xlu0 3
      %343 = vperm.xlu0 %342, %v175
      %v344 = vpop.permute.xlu0 %343
      %346 = vset.pattern.permute.xlu0 3
      %347 = vperm.xlu0 %346, %v176
      %v348 = vpop.permute.xlu0 %347
      %350 = vset.pattern.permute.xlu0 3
      %351 = vperm.xlu0 %350, %v177
      %v352 = vpop.permute.xlu0 %351
      %354 = vset.pattern.permute.xlu0 3
      %355 = vperm.xlu0 %354, %v178
      %v356 = vpop.permute.xlu0 %355
      %358 = vset.pattern.permute.xlu0 3
      %359 = vperm.xlu0 %358, %v179
      %v360 = vpop.permute.xlu0 %359
      %362 = vset.pattern.permute.xlu0 3
      %363 = vperm.xlu0 %362, %v180
      %v364 = vpop.permute.xlu0 %363
      %366 = vset.pattern.permute.xlu0 3
      %367 = vperm.xlu0 %366, %v181
      %v368 = vpop.permute.xlu0 %367
      %v370 = vlaneseq
      %v371 = vshrl.u32 %v370, 7
      %v372 = vsub.s32 3, %v371
      %v373 = vrot.slane %v173, %v372
      %v374 = vmul.f32 %v340, %v373
      %v375 = vmul.f32 %v344, %v373
      %v376 = vmul.f32 %v348, %v373
      %v377 = vmul.f32 %v352, %v373
      %v378 = vmul.f32 %v356, %v373
      %v379 = vmul.f32 %v360, %v373
      %v380 = vmul.f32 %v364, %v373
      %v381 = vmul.f32 %v368, %v373
      %v382 = vadd.f32 %v330, %v374
      %v383 = vadd.f32 %v331, %v375
      %v384 = vadd.f32 %v332, %v376
      %v385 = vadd.f32 %v333, %v377
      %v386 = vadd.f32 %v334, %v378
      %v387 = vadd.f32 %v335, %v379
      %v388 = vadd.f32 %v336, %v380
      %v389 = vadd.f32 %v337, %v381
      %v390 = vlaneseq
      %v391 = vshrl.u32 %v390, 7
      %vm392 = vcmp.eq.s32.totalorder %v391, 0
      %vm393 = vcmp.eq.s32.totalorder %v391, 1
      %vm394 = vcmp.eq.s32.totalorder %v391, 2
      %vm395 = vcmp.eq.s32.totalorder %v391, 3
      %vm396 = vcmp.eq.s32.totalorder %v391, 4
      %vm397 = vcmp.eq.s32.totalorder %v391, 5
      %vm398 = vcmp.eq.s32.totalorder %v391, 6
      %vm399 = vcmp.eq.s32.totalorder %v391, 7
      %v400 = vsel %vm392, 1, 0
      %v401 = vsel %vm393, 1, 0
      %v402 = vsel %vm394, 1, 0
      %v403 = vsel %vm395, 1, 0
      %v404 = vsel %vm396, 1, 0
      %v405 = vsel %vm397, 1, 0
      %v406 = vsel %vm398, 1, 0
      %v407 = vsel %vm399, 1, 0
      %v408 = vcvt.s32.f32 %v400
      %v409 = vcvt.s32.f32 %v401
      %v410 = vcvt.s32.f32 %v402
      %v411 = vcvt.s32.f32 %v403
      %v412 = vcvt.s32.f32 %v404
      %v413 = vcvt.s32.f32 %v405
      %v414 = vcvt.s32.f32 %v406
      %v415 = vcvt.s32.f32 %v407
      %v416 = vand.u32 2147483647, %v382
      %v417 = vand.u32 2147483647, %v383
      %v418 = vand.u32 2147483647, %v384
      %v419 = vand.u32 2147483647, %v385
      %v420 = vand.u32 2147483647, %v386
      %v421 = vand.u32 2147483647, %v387
      %v422 = vand.u32 2147483647, %v388
      %v423 = vand.u32 2147483647, %v389
      %vm424 = vcmask 130048
      %v425 = vsel %vm424, %v416, 0.0
      %v426 = vrot.slane %v425, 4
      %v427 = vadd.f32 %v425, %v426
      %v428 = vrot.slane %v427, 2
      %v429 = vadd.f32 %v427, %v428
      %v430 = vrot.slane %v429, 1
      %v431 = vadd.f32 %v429, %v430
      %v432 = vsel %vm424, %v417, 0.0
      %v433 = vrot.slane %v432, 4
      %v434 = vadd.f32 %v432, %v433
      %v435 = vrot.slane %v434, 2
      %v436 = vadd.f32 %v434, %v435
      %v437 = vrot.slane %v436, 1
      %v438 = vadd.f32 %v436, %v437
      %v439 = vsel %vm424, %v418, 0.0
      %v440 = vrot.slane %v439, 4
      %v441 = vadd.f32 %v439, %v440
      %v442 = vrot.slane %v441, 2
      %v443 = vadd.f32 %v441, %v442
      %v444 = vrot.slane %v443, 1
      %v445 = vadd.f32 %v443, %v444
      %v446 = vsel %vm424, %v419, 0.0
      %v447 = vrot.slane %v446, 4
      %v448 = vadd.f32 %v446, %v447
      %v449 = vrot.slane %v448, 2
      %v450 = vadd.f32 %v448, %v449
      %v451 = vrot.slane %v450, 1
      %v452 = vadd.f32 %v450, %v451
      %v453 = vsel %vm424, %v420, 0.0
      %v454 = vrot.slane %v453, 4
      %v455 = vadd.f32 %v453, %v454
      %v456 = vrot.slane %v455, 2
      %v457 = vadd.f32 %v455, %v456
      %v458 = vrot.slane %v457, 1
      %v459 = vadd.f32 %v457, %v458
      %v460 = vsel %vm424, %v421, 0.0
      %v461 = vrot.slane %v460, 4
      %v462 = vadd.f32 %v460, %v461
      %v463 = vrot.slane %v462, 2
      %v464 = vadd.f32 %v462, %v463
      %v465 = vrot.slane %v464, 1
      %v466 = vadd.f32 %v464, %v465
      %v467 = vsel %vm424, %v422, 0.0
      %v468 = vrot.slane %v467, 4
      %v469 = vadd.f32 %v467, %v468
      %v470 = vrot.slane %v469, 2
      %v471 = vadd.f32 %v469, %v470
      %v472 = vrot.slane %v471, 1
      %v473 = vadd.f32 %v471, %v472
      %v474 = vsel %vm424, %v423, 0.0
      %v475 = vrot.slane %v474, 4
      %v476 = vadd.f32 %v474, %v475
      %v477 = vrot.slane %v476, 2
      %v478 = vadd.f32 %v476, %v477
      %v479 = vrot.slane %v478, 1
      %v480 = vadd.f32 %v478, %v479
      %v481 = vsel %vm424, %v431, -inf
      %v482 = vsel %vm424, %v438, -inf
      %v483 = vsel %vm424, %v445, -inf
      %v484 = vsel %vm424, %v452, -inf
      %v485 = vsel %vm424, %v459, -inf
      %v486 = vmax.f32 %v481, %v485
      %v487 = vsel %vm424, %v466, -inf
      %v488 = vmax.f32 %v482, %v487
      %v489 = vsel %vm424, %v473, -inf
      %v490 = vmax.f32 %v483, %v489
      %v491 = vsel %vm424, %v480, -inf
      %v492 = vmax.f32 %v484, %v491
      %v493 = vmax.f32 %v486, %v488
      %v494 = vmax.f32 %v490, %v492
      %v495 = vmax.f32 %v493, %v494
      %vm496 = vcmp.gt.f32.partialorder %v495, 0.5
      %v497 = vsel %vm496, 0.5, 1.0
      %v498 = vmul.f32 %v495, 0.5
      %v499 = vsel %vm496, %v498, %v495
      %vm500 = vcmp.gt.f32.partialorder %v499, 0.5
      %v501 = vmul.f32 %v497, 0.5
      %v502 = vsel %vm500, %v501, %v497
      %v503 = vmul.f32 %v499, 0.5
      %v504 = vsel %vm500, %v503, %v499
      %vm505 = vcmp.gt.f32.partialorder %v504, 0.5
      %v506 = vmul.f32 %v502, 0.5
      %v507 = vsel %vm505, %v506, %v502
      %v508 = vmul.f32 %v504, 0.5
      %v509 = vsel %vm505, %v508, %v504
      %vm510 = vcmp.gt.f32.partialorder %v509, 0.5
      %v511 = vmul.f32 %v507, 0.5
      %v512 = vsel %vm510, %v511, %v507
      %v513 = vmul.f32 %v509, 0.5
      %v514 = vsel %vm510, %v513, %v509
      %vm515 = vcmp.gt.f32.partialorder %v514, 0.5
      %v516 = vmul.f32 %v512, 0.5
      %v517 = vsel %vm515, %v516, %v512
      %v518 = vmul.f32 %v514, 0.5
      %v519 = vsel %vm515, %v518, %v514
      %vm520 = vcmp.gt.f32.partialorder %v519, 0.5
      %v521 = vmul.f32 %v517, 0.5
      %v522 = vsel %vm520, %v521, %v517
      %v523 = vmul.f32 %v519, 0.5
      %v524 = vsel %vm520, %v523, %v519
      %vm525 = vcmp.gt.f32.partialorder %v524, 0.5
      %v526 = vmul.f32 %v522, 0.5
      %v527 = vsel %vm525, %v526, %v522
      %v528 = vmul.f32 %v524, 0.5
      %v529 = vsel %vm525, %v528, %v524
      %vm530 = vcmp.gt.f32.partialorder %v529, 0.5
      %v531 = vmul.f32 %v527, 0.5
      %v532 = vsel %vm530, %v531, %v527
      %v533 = vmul.f32 %v529, 0.5
      %v534 = vsel %vm530, %v533, %v529
      %vm535 = vcmp.gt.f32.partialorder %v534, 0.5
      %v536 = vmul.f32 %v532, 0.5
      %v537 = vsel %vm535, %v536, %v532
      %v538 = vmul.f32 %v534, 0.5
      %v539 = vsel %vm535, %v538, %v534
      %vm540 = vcmp.gt.f32.partialorder %v539, 0.5
      %v541 = vmul.f32 %v537, 0.5
      %v542 = vsel %vm540, %v541, %v537
      %v543 = vmul.f32 %v382, %v542
      %v544 = vmul.f32 %v383, %v542
      %v545 = vmul.f32 %v384, %v542
      %v546 = vmul.f32 %v385, %v542
      %v547 = vmul.f32 %v386, %v542
      %v548 = vmul.f32 %v387, %v542
      %v549 = vmul.f32 %v388, %v542
      %v550 = vmul.f32 %v389, %v542
      %v551 = vlaneseq
      %v552 = vshrl.u32 %v551, 7
      %v553 = vsub.s32 0, %v552
      %v554 = vrot.slane %v543, %v553
      %v555 = vlaneseq
      %v556 = vshrl.u32 %v555, 7
      %v557 = vsub.s32 0, %v556
      %v558 = vrot.slane %v544, %v557
      %v559 = vlaneseq
      %v560 = vshrl.u32 %v559, 7
      %v561 = vsub.s32 0, %v560
      %v562 = vrot.slane %v545, %v561
      %v563 = vlaneseq
      %v564 = vshrl.u32 %v563, 7
      %v565 = vsub.s32 0, %v564
      %v566 = vrot.slane %v546, %v565
      %v567 = vlaneseq
      %v568 = vshrl.u32 %v567, 7
      %v569 = vsub.s32 0, %v568
      %v570 = vrot.slane %v547, %v569
      %v571 = vlaneseq
      %v572 = vshrl.u32 %v571, 7
      %v573 = vsub.s32 0, %v572
      %v574 = vrot.slane %v548, %v573
      %v575 = vlaneseq
      %v576 = vshrl.u32 %v575, 7
      %v577 = vsub.s32 0, %v576
      %v578 = vrot.slane %v549, %v577
      %v579 = vlaneseq
      %v580 = vshrl.u32 %v579, 7
      %v581 = vsub.s32 0, %v580
      %v582 = vrot.slane %v550, %v581
      %v583 = vmul.f32 %v554, %v543
      %v584 = vmul.f32 %v558, %v543
      %v585 = vmul.f32 %v562, %v543
      %v586 = vmul.f32 %v566, %v543
      %v587 = vmul.f32 %v570, %v543
      %v588 = vmul.f32 %v574, %v543
      %v589 = vmul.f32 %v578, %v543
      %v590 = vmul.f32 %v582, %v543
      %v591 = vlaneseq
      %v592 = vshrl.u32 %v591, 7
      %v593 = vsub.s32 1, %v592
      %v594 = vrot.slane %v543, %v593
      %v595 = vlaneseq
      %v596 = vshrl.u32 %v595, 7
      %v597 = vsub.s32 1, %v596
      %v598 = vrot.slane %v544, %v597
      %v599 = vlaneseq
      %v600 = vshrl.u32 %v599, 7
      %v601 = vsub.s32 1, %v600
      %v602 = vrot.slane %v545, %v601
      %v603 = vlaneseq
      %v604 = vshrl.u32 %v603, 7
      %v605 = vsub.s32 1, %v604
      %v606 = vrot.slane %v546, %v605
      %v607 = vlaneseq
      %v608 = vshrl.u32 %v607, 7
      %v609 = vsub.s32 1, %v608
      %v610 = vrot.slane %v547, %v609
      %v611 = vlaneseq
      %v612 = vshrl.u32 %v611, 7
      %v613 = vsub.s32 1, %v612
      %v614 = vrot.slane %v548, %v613
      %v615 = vlaneseq
      %v616 = vshrl.u32 %v615, 7
      %v617 = vsub.s32 1, %v616
      %v618 = vrot.slane %v549, %v617
      %v619 = vlaneseq
      %v620 = vshrl.u32 %v619, 7
      %v621 = vsub.s32 1, %v620
      %v622 = vrot.slane %v550, %v621
      %v623 = vmul.f32 %v594, %v544
      %v624 = vmul.f32 %v598, %v544
      %v625 = vmul.f32 %v602, %v544
      %v626 = vmul.f32 %v606, %v544
      %v627 = vmul.f32 %v610, %v544
      %v628 = vmul.f32 %v614, %v544
      %v629 = vmul.f32 %v618, %v544
      %v630 = vmul.f32 %v622, %v544
      %v631 = vadd.f32 %v583, %v623
      %v632 = vadd.f32 %v584, %v624
      %v633 = vadd.f32 %v585, %v625
      %v634 = vadd.f32 %v586, %v626
      %v635 = vadd.f32 %v587, %v627
      %v636 = vadd.f32 %v588, %v628
      %v637 = vadd.f32 %v589, %v629
      %v638 = vadd.f32 %v590, %v630
      %v639 = vlaneseq
      %v640 = vshrl.u32 %v639, 7
      %v641 = vsub.s32 2, %v640
      %v642 = vrot.slane %v543, %v641
      %v643 = vlaneseq
      %v644 = vshrl.u32 %v643, 7
      %v645 = vsub.s32 2, %v644
      %v646 = vrot.slane %v544, %v645
      %v647 = vlaneseq
      %v648 = vshrl.u32 %v647, 7
      %v649 = vsub.s32 2, %v648
      %v650 = vrot.slane %v545, %v649
      %v651 = vlaneseq
      %v652 = vshrl.u32 %v651, 7
      %v653 = vsub.s32 2, %v652
      %v654 = vrot.slane %v546, %v653
      %v655 = vlaneseq
      %v656 = vshrl.u32 %v655, 7
      %v657 = vsub.s32 2, %v656
      %v658 = vrot.slane %v547, %v657
      %v659 = vlaneseq
      %v660 = vshrl.u32 %v659, 7
      %v661 = vsub.s32 2, %v660
      %v662 = vrot.slane %v548, %v661
      %v663 = vlaneseq
      %v664 = vshrl.u32 %v663, 7
      %v665 = vsub.s32 2, %v664
      %v666 = vrot.slane %v549, %v665
      %v667 = vlaneseq
      %v668 = vshrl.u32 %v667, 7
      %v669 = vsub.s32 2, %v668
      %v670 = vrot.slane %v550, %v669
      %v671 = vmul.f32 %v642, %v545
      %v672 = vmul.f32 %v646, %v545
      %v673 = vmul.f32 %v650, %v545
      %v674 = vmul.f32 %v654, %v545
      %v675 = vmul.f32 %v658, %v545
      %v676 = vmul.f32 %v662, %v545
      %v677 = vmul.f32 %v666, %v545
      %v678 = vmul.f32 %v670, %v545
      %v679 = vadd.f32 %v631, %v671
      %v680 = vadd.f32 %v632, %v672
      %v681 = vadd.f32 %v633, %v673
      %v682 = vadd.f32 %v634, %v674
      %v683 = vadd.f32 %v635, %v675
      %v684 = vadd.f32 %v636, %v676
      %v685 = vadd.f32 %v637, %v677
      %v686 = vadd.f32 %v638, %v678
      %v687 = vlaneseq
      %v688 = vshrl.u32 %v687, 7
      %v689 = vsub.s32 3, %v688
      %v690 = vrot.slane %v543, %v689
      %v691 = vlaneseq
      %v692 = vshrl.u32 %v691, 7
      %v693 = vsub.s32 3, %v692
      %v694 = vrot.slane %v544, %v693
      %v695 = vlaneseq
      %v696 = vshrl.u32 %v695, 7
      %v697 = vsub.s32 3, %v696
      %v698 = vrot.slane %v545, %v697
      %v699 = vlaneseq
      %v700 = vshrl.u32 %v699, 7
      %v701 = vsub.s32 3, %v700
      %v702 = vrot.slane %v546, %v701
      %v703 = vlaneseq
      %v704 = vshrl.u32 %v703, 7
      %v705 = vsub.s32 3, %v704
      %v706 = vrot.slane %v547, %v705
      %v707 = vlaneseq
      %v708 = vshrl.u32 %v707, 7
      %v709 = vsub.s32 3, %v708
      %v710 = vrot.slane %v548, %v709
      %v711 = vlaneseq
      %v712 = vshrl.u32 %v711, 7
      %v713 = vsub.s32 3, %v712
      %v714 = vrot.slane %v549, %v713
      %v715 = vlaneseq
      %v716 = vshrl.u32 %v715, 7
      %v717 = vsub.s32 3, %v716
      %v718 = vrot.slane %v550, %v717
      %v719 = vmul.f32 %v690, %v546
      %v720 = vmul.f32 %v694, %v546
      %v721 = vmul.f32 %v698, %v546
      %v722 = vmul.f32 %v702, %v546
      %v723 = vmul.f32 %v706, %v546
      %v724 = vmul.f32 %v710, %v546
      %v725 = vmul.f32 %v714, %v546
      %v726 = vmul.f32 %v718, %v546
      %v727 = vadd.f32 %v679, %v719
      %v728 = vadd.f32 %v680, %v720
      %v729 = vadd.f32 %v681, %v721
      %v730 = vadd.f32 %v682, %v722
      %v731 = vadd.f32 %v683, %v723
      %v732 = vadd.f32 %v684, %v724
      %v733 = vadd.f32 %v685, %v725
      %v734 = vadd.f32 %v686, %v726
      %v735 = vlaneseq
      %v736 = vshrl.u32 %v735, 7
      %v737 = vsub.s32 4, %v736
      %v738 = vrot.slane %v543, %v737
      %v739 = vlaneseq
      %v740 = vshrl.u32 %v739, 7
      %v741 = vsub.s32 4, %v740
      %v742 = vrot.slane %v544, %v741
      %v743 = vlaneseq
      %v744 = vshrl.u32 %v743, 7
      %v745 = vsub.s32 4, %v744
      %v746 = vrot.slane %v545, %v745
      %v747 = vlaneseq
      %v748 = vshrl.u32 %v747, 7
      %v749 = vsub.s32 4, %v748
      %v750 = vrot.slane %v546, %v749
      %v751 = vlaneseq
      %v752 = vshrl.u32 %v751, 7
      %v753 = vsub.s32 4, %v752
      %v754 = vrot.slane %v547, %v753
      %v755 = vlaneseq
      %v756 = vshrl.u32 %v755, 7
      %v757 = vsub.s32 4, %v756
      %v758 = vrot.slane %v548, %v757
      %v759 = vlaneseq
      %v760 = vshrl.u32 %v759, 7
      %v761 = vsub.s32 4, %v760
      %v762 = vrot.slane %v549, %v761
      %v763 = vlaneseq
      %v764 = vshrl.u32 %v763, 7
      %v765 = vsub.s32 4, %v764
      %v766 = vrot.slane %v550, %v765
      %v767 = vmul.f32 %v738, %v547
      %v768 = vmul.f32 %v742, %v547
      %v769 = vmul.f32 %v746, %v547
      %v770 = vmul.f32 %v750, %v547
      %v771 = vmul.f32 %v754, %v547
      %v772 = vmul.f32 %v758, %v547
      %v773 = vmul.f32 %v762, %v547
      %v774 = vmul.f32 %v766, %v547
      %v775 = vadd.f32 %v727, %v767
      %v776 = vadd.f32 %v728, %v768
      %v777 = vadd.f32 %v729, %v769
      %v778 = vadd.f32 %v730, %v770
      %v779 = vadd.f32 %v731, %v771
      %v780 = vadd.f32 %v732, %v772
      %v781 = vadd.f32 %v733, %v773
      %v782 = vadd.f32 %v734, %v774
      %v783 = vlaneseq
      %v784 = vshrl.u32 %v783, 7
      %v785 = vsub.s32 5, %v784
      %v786 = vrot.slane %v543, %v785
      %v787 = vlaneseq
      %v788 = vshrl.u32 %v787, 7
      %v789 = vsub.s32 5, %v788
      %v790 = vrot.slane %v544, %v789
      %v791 = vlaneseq
      %v792 = vshrl.u32 %v791, 7
      %v793 = vsub.s32 5, %v792
      %v794 = vrot.slane %v545, %v793
      %v795 = vlaneseq
      %v796 = vshrl.u32 %v795, 7
      %v797 = vsub.s32 5, %v796
      %v798 = vrot.slane %v546, %v797
      %v799 = vlaneseq
      %v800 = vshrl.u32 %v799, 7
      %v801 = vsub.s32 5, %v800
      %v802 = vrot.slane %v547, %v801
      %v803 = vlaneseq
      %v804 = vshrl.u32 %v803, 7
      %v805 = vsub.s32 5, %v804
      %v806 = vrot.slane %v548, %v805
      %v807 = vlaneseq
      %v808 = vshrl.u32 %v807, 7
      %v809 = vsub.s32 5, %v808
      %v810 = vrot.slane %v549, %v809
      %v811 = vlaneseq
      %v812 = vshrl.u32 %v811, 7
      %v813 = vsub.s32 5, %v812
      %v814 = vrot.slane %v550, %v813
      %v815 = vmul.f32 %v786, %v548
      %v816 = vmul.f32 %v790, %v548
      %v817 = vmul.f32 %v794, %v548
      %v818 = vmul.f32 %v798, %v548
      %v819 = vmul.f32 %v802, %v548
      %v820 = vmul.f32 %v806, %v548
      %v821 = vmul.f32 %v810, %v548
      %v822 = vmul.f32 %v814, %v548
      %v823 = vadd.f32 %v775, %v815
      %v824 = vadd.f32 %v776, %v816
      %v825 = vadd.f32 %v777, %v817
      %v826 = vadd.f32 %v778, %v818
      %v827 = vadd.f32 %v779, %v819
      %v828 = vadd.f32 %v780, %v820
      %v829 = vadd.f32 %v781, %v821
      %v830 = vadd.f32 %v782, %v822
      %v831 = vlaneseq
      %v832 = vshrl.u32 %v831, 7
      %v833 = vsub.s32 6, %v832
      %v834 = vrot.slane %v543, %v833
      %v835 = vlaneseq
      %v836 = vshrl.u32 %v835, 7
      %v837 = vsub.s32 6, %v836
      %v838 = vrot.slane %v544, %v837
      %v839 = vlaneseq
      %v840 = vshrl.u32 %v839, 7
      %v841 = vsub.s32 6, %v840
      %v842 = vrot.slane %v545, %v841
      %v843 = vlaneseq
      %v844 = vshrl.u32 %v843, 7
      %v845 = vsub.s32 6, %v844
      %v846 = vrot.slane %v546, %v845
      %v847 = vlaneseq
      %v848 = vshrl.u32 %v847, 7
      %v849 = vsub.s32 6, %v848
      %v850 = vrot.slane %v547, %v849
      %v851 = vlaneseq
      %v852 = vshrl.u32 %v851, 7
      %v853 = vsub.s32 6, %v852
      %v854 = vrot.slane %v548, %v853
      %v855 = vlaneseq
      %v856 = vshrl.u32 %v855, 7
      %v857 = vsub.s32 6, %v856
      %v858 = vrot.slane %v549, %v857
      %v859 = vlaneseq
      %v860 = vshrl.u32 %v859, 7
      %v861 = vsub.s32 6, %v860
      %v862 = vrot.slane %v550, %v861
      %v863 = vmul.f32 %v834, %v549
      %v864 = vmul.f32 %v838, %v549
      %v865 = vmul.f32 %v842, %v549
      %v866 = vmul.f32 %v846, %v549
      %v867 = vmul.f32 %v850, %v549
      %v868 = vmul.f32 %v854, %v549
      %v869 = vmul.f32 %v858, %v549
      %v870 = vmul.f32 %v862, %v549
      %v871 = vadd.f32 %v823, %v863
      %v872 = vadd.f32 %v824, %v864
      %v873 = vadd.f32 %v825, %v865
      %v874 = vadd.f32 %v826, %v866
      %v875 = vadd.f32 %v827, %v867
      %v876 = vadd.f32 %v828, %v868
      %v877 = vadd.f32 %v829, %v869
      %v878 = vadd.f32 %v830, %v870
      %v879 = vlaneseq
      %v880 = vshrl.u32 %v879, 7
      %v881 = vsub.s32 7, %v880
      %v882 = vrot.slane %v543, %v881
      %v883 = vlaneseq
      %v884 = vshrl.u32 %v883, 7
      %v885 = vsub.s32 7, %v884
      %v886 = vrot.slane %v544, %v885
      %v887 = vlaneseq
      %v888 = vshrl.u32 %v887, 7
      %v889 = vsub.s32 7, %v888
      %v890 = vrot.slane %v545, %v889
      %v891 = vlaneseq
      %v892 = vshrl.u32 %v891, 7
      %v893 = vsub.s32 7, %v892
      %v894 = vrot.slane %v546, %v893
      %v895 = vlaneseq
      %v896 = vshrl.u32 %v895, 7
      %v897 = vsub.s32 7, %v896
      %v898 = vrot.slane %v547, %v897
      %v899 = vlaneseq
      %v900 = vshrl.u32 %v899, 7
      %v901 = vsub.s32 7, %v900
      %v902 = vrot.slane %v548, %v901
      %v903 = vlaneseq
      %v904 = vshrl.u32 %v903, 7
      %v905 = vsub.s32 7, %v904
      %v906 = vrot.slane %v549, %v905
      %v907 = vlaneseq
      %v908 = vshrl.u32 %v907, 7
      %v909 = vsub.s32 7, %v908
      %v910 = vrot.slane %v550, %v909
      %v911 = vmul.f32 %v882, %v550
      %v912 = vmul.f32 %v886, %v550
      %v913 = vmul.f32 %v890, %v550
      %v914 = vmul.f32 %v894, %v550
      %v915 = vmul.f32 %v898, %v550
      %v916 = vmul.f32 %v902, %v550
      %v917 = vmul.f32 %v906, %v550
      %v918 = vmul.f32 %v910, %v550
      %v919 = vadd.f32 %v871, %v911
      %v920 = vadd.f32 %v872, %v912
      %v921 = vadd.f32 %v873, %v913
      %v922 = vadd.f32 %v874, %v914
      %v923 = vadd.f32 %v875, %v915
      %v924 = vadd.f32 %v876, %v916
      %v925 = vadd.f32 %v877, %v917
      %v926 = vadd.f32 %v878, %v918
      %v927 = vlaneseq
      %v928 = vshrl.u32 %v927, 7
      %v929 = vsub.s32 0, %v928
      %v930 = vrot.slane %v919, %v929
      %v931 = vlaneseq
      %v932 = vshrl.u32 %v931, 7
      %v933 = vsub.s32 0, %v932
      %v934 = vrot.slane %v920, %v933
      %v935 = vlaneseq
      %v936 = vshrl.u32 %v935, 7
      %v937 = vsub.s32 0, %v936
      %v938 = vrot.slane %v921, %v937
      %v939 = vlaneseq
      %v940 = vshrl.u32 %v939, 7
      %v941 = vsub.s32 0, %v940
      %v942 = vrot.slane %v922, %v941
      %v943 = vlaneseq
      %v944 = vshrl.u32 %v943, 7
      %v945 = vsub.s32 0, %v944
      %v946 = vrot.slane %v923, %v945
      %v947 = vlaneseq
      %v948 = vshrl.u32 %v947, 7
      %v949 = vsub.s32 0, %v948
      %v950 = vrot.slane %v924, %v949
      %v951 = vlaneseq
      %v952 = vshrl.u32 %v951, 7
      %v953 = vsub.s32 0, %v952
      %v954 = vrot.slane %v925, %v953
      %v955 = vlaneseq
      %v956 = vshrl.u32 %v955, 7
      %v957 = vsub.s32 0, %v956
      %v958 = vrot.slane %v926, %v957
      %v959 = vmul.f32 %v930, %v543
      %v960 = vmul.f32 %v934, %v543
      %v961 = vmul.f32 %v938, %v543
      %v962 = vmul.f32 %v942, %v543
      %v963 = vmul.f32 %v946, %v543
      %v964 = vmul.f32 %v950, %v543
      %v965 = vmul.f32 %v954, %v543
      %v966 = vmul.f32 %v958, %v543
      %v967 = vlaneseq
      %v968 = vshrl.u32 %v967, 7
      %v969 = vsub.s32 1, %v968
      %v970 = vrot.slane %v919, %v969
      %v971 = vlaneseq
      %v972 = vshrl.u32 %v971, 7
      %v973 = vsub.s32 1, %v972
      %v974 = vrot.slane %v920, %v973
      %v975 = vlaneseq
      %v976 = vshrl.u32 %v975, 7
      %v977 = vsub.s32 1, %v976
      %v978 = vrot.slane %v921, %v977
      %v979 = vlaneseq
      %v980 = vshrl.u32 %v979, 7
      %v981 = vsub.s32 1, %v980
      %v982 = vrot.slane %v922, %v981
      %v983 = vlaneseq
      %v984 = vshrl.u32 %v983, 7
      %v985 = vsub.s32 1, %v984
      %v986 = vrot.slane %v923, %v985
      %v987 = vlaneseq
      %v988 = vshrl.u32 %v987, 7
      %v989 = vsub.s32 1, %v988
      %v990 = vrot.slane %v924, %v989
      %v991 = vlaneseq
      %v992 = vshrl.u32 %v991, 7
      %v993 = vsub.s32 1, %v992
      %v994 = vrot.slane %v925, %v993
      %v995 = vlaneseq
      %v996 = vshrl.u32 %v995, 7
      %v997 = vsub.s32 1, %v996
      %v998 = vrot.slane %v926, %v997
      %v999 = vmul.f32 %v970, %v544
      %v1000 = vmul.f32 %v974, %v544
      %v1001 = vmul.f32 %v978, %v544
      %v1002 = vmul.f32 %v982, %v544
      %v1003 = vmul.f32 %v986, %v544
      %v1004 = vmul.f32 %v990, %v544
      %v1005 = vmul.f32 %v994, %v544
      %v1006 = vmul.f32 %v998, %v544
      %v1007 = vadd.f32 %v959, %v999
      %v1008 = vadd.f32 %v960, %v1000
      %v1009 = vadd.f32 %v961, %v1001
      %v1010 = vadd.f32 %v962, %v1002
      %v1011 = vadd.f32 %v963, %v1003
      %v1012 = vadd.f32 %v964, %v1004
      %v1013 = vadd.f32 %v965, %v1005
      %v1014 = vadd.f32 %v966, %v1006
      %v1015 = vlaneseq
      %v1016 = vshrl.u32 %v1015, 7
      %v1017 = vsub.s32 2, %v1016
      %v1018 = vrot.slane %v919, %v1017
      %v1019 = vlaneseq
      %v1020 = vshrl.u32 %v1019, 7
      %v1021 = vsub.s32 2, %v1020
      %v1022 = vrot.slane %v920, %v1021
      %v1023 = vlaneseq
      %v1024 = vshrl.u32 %v1023, 7
      %v1025 = vsub.s32 2, %v1024
      %v1026 = vrot.slane %v921, %v1025
      %v1027 = vlaneseq
      %v1028 = vshrl.u32 %v1027, 7
      %v1029 = vsub.s32 2, %v1028
      %v1030 = vrot.slane %v922, %v1029
      %v1031 = vlaneseq
      %v1032 = vshrl.u32 %v1031, 7
      %v1033 = vsub.s32 2, %v1032
      %v1034 = vrot.slane %v923, %v1033
      %v1035 = vlaneseq
      %v1036 = vshrl.u32 %v1035, 7
      %v1037 = vsub.s32 2, %v1036
      %v1038 = vrot.slane %v924, %v1037
      %v1039 = vlaneseq
      %v1040 = vshrl.u32 %v1039, 7
      %v1041 = vsub.s32 2, %v1040
      %v1042 = vrot.slane %v925, %v1041
      %v1043 = vlaneseq
      %v1044 = vshrl.u32 %v1043, 7
      %v1045 = vsub.s32 2, %v1044
      %v1046 = vrot.slane %v926, %v1045
      %v1047 = vmul.f32 %v1018, %v545
      %v1048 = vmul.f32 %v1022, %v545
      %v1049 = vmul.f32 %v1026, %v545
      %v1050 = vmul.f32 %v1030, %v545
      %v1051 = vmul.f32 %v1034, %v545
      %v1052 = vmul.f32 %v1038, %v545
      %v1053 = vmul.f32 %v1042, %v545
      %v1054 = vmul.f32 %v1046, %v545
      %v1055 = vadd.f32 %v1007, %v1047
      %v1056 = vadd.f32 %v1008, %v1048
      %v1057 = vadd.f32 %v1009, %v1049
      %v1058 = vadd.f32 %v1010, %v1050
      %v1059 = vadd.f32 %v1011, %v1051
      %v1060 = vadd.f32 %v1012, %v1052
      %v1061 = vadd.f32 %v1013, %v1053
      %v1062 = vadd.f32 %v1014, %v1054
      %v1063 = vlaneseq
      %v1064 = vshrl.u32 %v1063, 7
      %v1065 = vsub.s32 3, %v1064
      %v1066 = vrot.slane %v919, %v1065
      %v1067 = vlaneseq
      %v1068 = vshrl.u32 %v1067, 7
      %v1069 = vsub.s32 3, %v1068
      %v1070 = vrot.slane %v920, %v1069
      %v1071 = vlaneseq
      %v1072 = vshrl.u32 %v1071, 7
      %v1073 = vsub.s32 3, %v1072
      %v1074 = vrot.slane %v921, %v1073
      %v1075 = vlaneseq
      %v1076 = vshrl.u32 %v1075, 7
      %v1077 = vsub.s32 3, %v1076
      %v1078 = vrot.slane %v922, %v1077
      %v1079 = vlaneseq
      %v1080 = vshrl.u32 %v1079, 7
      %v1081 = vsub.s32 3, %v1080
      %v1082 = vrot.slane %v923, %v1081
      %v1083 = vlaneseq
      %v1084 = vshrl.u32 %v1083, 7
      %v1085 = vsub.s32 3, %v1084
      %v1086 = vrot.slane %v924, %v1085
      %v1087 = vlaneseq
      %v1088 = vshrl.u32 %v1087, 7
      %v1089 = vsub.s32 3, %v1088
      %v1090 = vrot.slane %v925, %v1089
      %v1091 = vlaneseq
      %v1092 = vshrl.u32 %v1091, 7
      %v1093 = vsub.s32 3, %v1092
      %v1094 = vrot.slane %v926, %v1093
      %v1095 = vmul.f32 %v1066, %v546
      %v1096 = vmul.f32 %v1070, %v546
      %v1097 = vmul.f32 %v1074, %v546
      %v1098 = vmul.f32 %v1078, %v546
      %v1099 = vmul.f32 %v1082, %v546
      %v1100 = vmul.f32 %v1086, %v546
      %v1101 = vmul.f32 %v1090, %v546
      %v1102 = vmul.f32 %v1094, %v546
      %v1103 = vadd.f32 %v1055, %v1095
      %v1104 = vadd.f32 %v1056, %v1096
      %v1105 = vadd.f32 %v1057, %v1097
      %v1106 = vadd.f32 %v1058, %v1098
      %v1107 = vadd.f32 %v1059, %v1099
      %v1108 = vadd.f32 %v1060, %v1100
      %v1109 = vadd.f32 %v1061, %v1101
      %v1110 = vadd.f32 %v1062, %v1102
      %v1111 = vlaneseq
      %v1112 = vshrl.u32 %v1111, 7
      %v1113 = vsub.s32 4, %v1112
      %v1114 = vrot.slane %v919, %v1113
      %v1115 = vlaneseq
      %v1116 = vshrl.u32 %v1115, 7
      %v1117 = vsub.s32 4, %v1116
      %v1118 = vrot.slane %v920, %v1117
      %v1119 = vlaneseq
      %v1120 = vshrl.u32 %v1119, 7
      %v1121 = vsub.s32 4, %v1120
      %v1122 = vrot.slane %v921, %v1121
      %v1123 = vlaneseq
      %v1124 = vshrl.u32 %v1123, 7
      %v1125 = vsub.s32 4, %v1124
      %v1126 = vrot.slane %v922, %v1125
      %v1127 = vlaneseq
      %v1128 = vshrl.u32 %v1127, 7
      %v1129 = vsub.s32 4, %v1128
      %v1130 = vrot.slane %v923, %v1129
      %v1131 = vlaneseq
      %v1132 = vshrl.u32 %v1131, 7
      %v1133 = vsub.s32 4, %v1132
      %v1134 = vrot.slane %v924, %v1133
      %v1135 = vlaneseq
      %v1136 = vshrl.u32 %v1135, 7
      %v1137 = vsub.s32 4, %v1136
      %v1138 = vrot.slane %v925, %v1137
      %v1139 = vlaneseq
      %v1140 = vshrl.u32 %v1139, 7
      %v1141 = vsub.s32 4, %v1140
      %v1142 = vrot.slane %v926, %v1141
      %v1143 = vmul.f32 %v1114, %v547
      %v1144 = vmul.f32 %v1118, %v547
      %v1145 = vmul.f32 %v1122, %v547
      %v1146 = vmul.f32 %v1126, %v547
      %v1147 = vmul.f32 %v1130, %v547
      %v1148 = vmul.f32 %v1134, %v547
      %v1149 = vmul.f32 %v1138, %v547
      %v1150 = vmul.f32 %v1142, %v547
      %v1151 = vadd.f32 %v1103, %v1143
      %v1152 = vadd.f32 %v1104, %v1144
      %v1153 = vadd.f32 %v1105, %v1145
      %v1154 = vadd.f32 %v1106, %v1146
      %v1155 = vadd.f32 %v1107, %v1147
      %v1156 = vadd.f32 %v1108, %v1148
      %v1157 = vadd.f32 %v1109, %v1149
      %v1158 = vadd.f32 %v1110, %v1150
      %v1159 = vlaneseq
      %v1160 = vshrl.u32 %v1159, 7
      %v1161 = vsub.s32 5, %v1160
      %v1162 = vrot.slane %v919, %v1161
      %v1163 = vlaneseq
      %v1164 = vshrl.u32 %v1163, 7
      %v1165 = vsub.s32 5, %v1164
      %v1166 = vrot.slane %v920, %v1165
      %v1167 = vlaneseq
      %v1168 = vshrl.u32 %v1167, 7
      %v1169 = vsub.s32 5, %v1168
      %v1170 = vrot.slane %v921, %v1169
      %v1171 = vlaneseq
      %v1172 = vshrl.u32 %v1171, 7
      %v1173 = vsub.s32 5, %v1172
      %v1174 = vrot.slane %v922, %v1173
      %v1175 = vlaneseq
      %v1176 = vshrl.u32 %v1175, 7
      %v1177 = vsub.s32 5, %v1176
      %v1178 = vrot.slane %v923, %v1177
      %v1179 = vlaneseq
      %v1180 = vshrl.u32 %v1179, 7
      %v1181 = vsub.s32 5, %v1180
      %v1182 = vrot.slane %v924, %v1181
      %v1183 = vlaneseq
      %v1184 = vshrl.u32 %v1183, 7
      %v1185 = vsub.s32 5, %v1184
      %v1186 = vrot.slane %v925, %v1185
      %v1187 = vlaneseq
      %v1188 = vshrl.u32 %v1187, 7
      %v1189 = vsub.s32 5, %v1188
      %v1190 = vrot.slane %v926, %v1189
      %v1191 = vmul.f32 %v1162, %v548
      %v1192 = vmul.f32 %v1166, %v548
      %v1193 = vmul.f32 %v1170, %v548
      %v1194 = vmul.f32 %v1174, %v548
      %v1195 = vmul.f32 %v1178, %v548
      %v1196 = vmul.f32 %v1182, %v548
      %v1197 = vmul.f32 %v1186, %v548
      %v1198 = vmul.f32 %v1190, %v548
      %v1199 = vadd.f32 %v1151, %v1191
      %v1200 = vadd.f32 %v1152, %v1192
      %v1201 = vadd.f32 %v1153, %v1193
      %v1202 = vadd.f32 %v1154, %v1194
      %v1203 = vadd.f32 %v1155, %v1195
      %v1204 = vadd.f32 %v1156, %v1196
      %v1205 = vadd.f32 %v1157, %v1197
      %v1206 = vadd.f32 %v1158, %v1198
      %v1207 = vlaneseq
      %v1208 = vshrl.u32 %v1207, 7
      %v1209 = vsub.s32 6, %v1208
      %v1210 = vrot.slane %v919, %v1209
      %v1211 = vlaneseq
      %v1212 = vshrl.u32 %v1211, 7
      %v1213 = vsub.s32 6, %v1212
      %v1214 = vrot.slane %v920, %v1213
      %v1215 = vlaneseq
      %v1216 = vshrl.u32 %v1215, 7
      %v1217 = vsub.s32 6, %v1216
      %v1218 = vrot.slane %v921, %v1217
      %v1219 = vlaneseq
      %v1220 = vshrl.u32 %v1219, 7
      %v1221 = vsub.s32 6, %v1220
      %v1222 = vrot.slane %v922, %v1221
      %v1223 = vlaneseq
      %v1224 = vshrl.u32 %v1223, 7
      %v1225 = vsub.s32 6, %v1224
      %v1226 = vrot.slane %v923, %v1225
      %v1227 = vlaneseq
      %v1228 = vshrl.u32 %v1227, 7
      %v1229 = vsub.s32 6, %v1228
      %v1230 = vrot.slane %v924, %v1229
      %v1231 = vlaneseq
      %v1232 = vshrl.u32 %v1231, 7
      %v1233 = vsub.s32 6, %v1232
      %v1234 = vrot.slane %v925, %v1233
      %v1235 = vlaneseq
      %v1236 = vshrl.u32 %v1235, 7
      %v1237 = vsub.s32 6, %v1236
      %v1238 = vrot.slane %v926, %v1237
      %v1239 = vmul.f32 %v1210, %v549
      %v1240 = vmul.f32 %v1214, %v549
      %v1241 = vmul.f32 %v1218, %v549
      %v1242 = vmul.f32 %v1222, %v549
      %v1243 = vmul.f32 %v1226, %v549
      %v1244 = vmul.f32 %v1230, %v549
      %v1245 = vmul.f32 %v1234, %v549
      %v1246 = vmul.f32 %v1238, %v549
      %v1247 = vadd.f32 %v1199, %v1239
      %v1248 = vadd.f32 %v1200, %v1240
      %v1249 = vadd.f32 %v1201, %v1241
      %v1250 = vadd.f32 %v1202, %v1242
      %v1251 = vadd.f32 %v1203, %v1243
      %v1252 = vadd.f32 %v1204, %v1244
      %v1253 = vadd.f32 %v1205, %v1245
      %v1254 = vadd.f32 %v1206, %v1246
      %v1255 = vlaneseq
      %v1256 = vshrl.u32 %v1255, 7
      %v1257 = vsub.s32 7, %v1256
      %v1258 = vrot.slane %v919, %v1257
      %v1259 = vlaneseq
      %v1260 = vshrl.u32 %v1259, 7
      %v1261 = vsub.s32 7, %v1260
      %v1262 = vrot.slane %v920, %v1261
      %v1263 = vlaneseq
      %v1264 = vshrl.u32 %v1263, 7
      %v1265 = vsub.s32 7, %v1264
      %v1266 = vrot.slane %v921, %v1265
      %v1267 = vlaneseq
      %v1268 = vshrl.u32 %v1267, 7
      %v1269 = vsub.s32 7, %v1268
      %v1270 = vrot.slane %v922, %v1269
      %v1271 = vlaneseq
      %v1272 = vshrl.u32 %v1271, 7
      %v1273 = vsub.s32 7, %v1272
      %v1274 = vrot.slane %v923, %v1273
      %v1275 = vlaneseq
      %v1276 = vshrl.u32 %v1275, 7
      %v1277 = vsub.s32 7, %v1276
      %v1278 = vrot.slane %v924, %v1277
      %v1279 = vlaneseq
      %v1280 = vshrl.u32 %v1279, 7
      %v1281 = vsub.s32 7, %v1280
      %v1282 = vrot.slane %v925, %v1281
      %v1283 = vlaneseq
      %v1284 = vshrl.u32 %v1283, 7
      %v1285 = vsub.s32 7, %v1284
      %v1286 = vrot.slane %v926, %v1285
      %v1287 = vmul.f32 %v1258, %v550
      %v1288 = vmul.f32 %v1262, %v550
      %v1289 = vmul.f32 %v1266, %v550
      %v1290 = vmul.f32 %v1270, %v550
      %v1291 = vmul.f32 %v1274, %v550
      %v1292 = vmul.f32 %v1278, %v550
      %v1293 = vmul.f32 %v1282, %v550
      %v1294 = vmul.f32 %v1286, %v550
      %v1295 = vadd.f32 %v1247, %v1287
      %v1296 = vadd.f32 %v1248, %v1288
      %v1297 = vadd.f32 %v1249, %v1289
      %v1298 = vadd.f32 %v1250, %v1290
      %v1299 = vadd.f32 %v1251, %v1291
      %v1300 = vadd.f32 %v1252, %v1292
      %v1301 = vadd.f32 %v1253, %v1293
      %v1302 = vadd.f32 %v1254, %v1294
      %v1303 = vadd.f32 %v408, %v543
      %v1304 = vadd.f32 %v409, %v544
      %v1305 = vadd.f32 %v410, %v545
      %v1306 = vadd.f32 %v411, %v546
      %v1307 = vadd.f32 %v412, %v547
      %v1308 = vadd.f32 %v413, %v548
      %v1309 = vadd.f32 %v414, %v549
      %v1310 = vadd.f32 %v415, %v550
      %v1311 = vmul.f32 %v919, 0.5
      %v1312 = vmul.f32 %v920, 0.5
      %v1313 = vmul.f32 %v921, 0.5
      %v1314 = vmul.f32 %v922, 0.5
      %v1315 = vmul.f32 %v923, 0.5
      %v1316 = vmul.f32 %v924, 0.5
      %v1317 = vmul.f32 %v925, 0.5
      %v1318 = vmul.f32 %v926, 0.5
      %v1319 = vadd.f32 %v1303, %v1311
      %v1320 = vadd.f32 %v1304, %v1312
      %v1321 = vadd.f32 %v1305, %v1313
      %v1322 = vadd.f32 %v1306, %v1314
      %v1323 = vadd.f32 %v1307, %v1315
      %v1324 = vadd.f32 %v1308, %v1316
      %v1325 = vadd.f32 %v1309, %v1317
      %v1326 = vadd.f32 %v1310, %v1318
      %v1327 = vmul.f32 %v408, 0.16666667
      %v1328 = vmul.f32 %v409, 0.16666667
      %v1329 = vmul.f32 %v410, 0.16666667
      %v1330 = vmul.f32 %v411, 0.16666667
      %v1331 = vmul.f32 %v412, 0.16666667
      %v1332 = vmul.f32 %v413, 0.16666667
      %v1333 = vmul.f32 %v414, 0.16666667
      %v1334 = vmul.f32 %v415, 0.16666667
      %v1335 = vmul.f32 %v543, 0.041666668
      %v1336 = vmul.f32 %v544, 0.041666668
      %v1337 = vmul.f32 %v545, 0.041666668
      %v1338 = vmul.f32 %v546, 0.041666668
      %v1339 = vmul.f32 %v547, 0.041666668
      %v1340 = vmul.f32 %v548, 0.041666668
      %v1341 = vmul.f32 %v549, 0.041666668
      %v1342 = vmul.f32 %v550, 0.041666668
      %v1343 = vadd.f32 %v1327, %v1335
      %v1344 = vadd.f32 %v1328, %v1336
      %v1345 = vadd.f32 %v1329, %v1337
      %v1346 = vadd.f32 %v1330, %v1338
      %v1347 = vadd.f32 %v1331, %v1339
      %v1348 = vadd.f32 %v1332, %v1340
      %v1349 = vadd.f32 %v1333, %v1341
      %v1350 = vadd.f32 %v1334, %v1342
      %v1351 = vmul.f32 %v919, 0.008333334
      %v1352 = vmul.f32 %v920, 0.008333334
      %v1353 = vmul.f32 %v921, 0.008333334
      %v1354 = vmul.f32 %v922, 0.008333334
      %v1355 = vmul.f32 %v923, 0.008333334
      %v1356 = vmul.f32 %v924, 0.008333334
      %v1357 = vmul.f32 %v925, 0.008333334
      %v1358 = vmul.f32 %v926, 0.008333334
      %v1359 = vadd.f32 %v1343, %v1351
      %v1360 = vadd.f32 %v1344, %v1352
      %v1361 = vadd.f32 %v1345, %v1353
      %v1362 = vadd.f32 %v1346, %v1354
      %v1363 = vadd.f32 %v1347, %v1355
      %v1364 = vadd.f32 %v1348, %v1356
      %v1365 = vadd.f32 %v1349, %v1357
      %v1366 = vadd.f32 %v1350, %v1358
      %v1367 = vmul.f32 %v408, 0.0013888889
      %v1368 = vmul.f32 %v409, 0.0013888889
      %v1369 = vmul.f32 %v410, 0.0013888889
      %v1370 = vmul.f32 %v411, 0.0013888889
      %v1371 = vmul.f32 %v412, 0.0013888889
      %v1372 = vmul.f32 %v413, 0.0013888889
      %v1373 = vmul.f32 %v414, 0.0013888889
      %v1374 = vmul.f32 %v415, 0.0013888889
      %v1375 = vmul.f32 %v543, 0.0001984127
      %v1376 = vmul.f32 %v544, 0.0001984127
      %v1377 = vmul.f32 %v545, 0.0001984127
      %v1378 = vmul.f32 %v546, 0.0001984127
      %v1379 = vmul.f32 %v547, 0.0001984127
      %v1380 = vmul.f32 %v548, 0.0001984127
      %v1381 = vmul.f32 %v549, 0.0001984127
      %v1382 = vmul.f32 %v550, 0.0001984127
      %v1383 = vadd.f32 %v1367, %v1375
      %v1384 = vadd.f32 %v1368, %v1376
      %v1385 = vadd.f32 %v1369, %v1377
      %v1386 = vadd.f32 %v1370, %v1378
      %v1387 = vadd.f32 %v1371, %v1379
      %v1388 = vadd.f32 %v1372, %v1380
      %v1389 = vadd.f32 %v1373, %v1381
      %v1390 = vadd.f32 %v1374, %v1382
      %v1391 = vmul.f32 %v919, 2.4801588e-05
      %v1392 = vmul.f32 %v920, 2.4801588e-05
      %v1393 = vmul.f32 %v921, 2.4801588e-05
      %v1394 = vmul.f32 %v922, 2.4801588e-05
      %v1395 = vmul.f32 %v923, 2.4801588e-05
      %v1396 = vmul.f32 %v924, 2.4801588e-05
      %v1397 = vmul.f32 %v925, 2.4801588e-05
      %v1398 = vmul.f32 %v926, 2.4801588e-05
      %v1399 = vadd.f32 %v1383, %v1391
      %v1400 = vadd.f32 %v1384, %v1392
      %v1401 = vadd.f32 %v1385, %v1393
      %v1402 = vadd.f32 %v1386, %v1394
      %v1403 = vadd.f32 %v1387, %v1395
      %v1404 = vadd.f32 %v1388, %v1396
      %v1405 = vadd.f32 %v1389, %v1397
      %v1406 = vadd.f32 %v1390, %v1398
      %v1407 = vlaneseq
      %v1408 = vshrl.u32 %v1407, 7
      %v1409 = vsub.s32 0, %v1408
      %v1410 = vrot.slane %v1295, %v1409
      %v1411 = vlaneseq
      %v1412 = vshrl.u32 %v1411, 7
      %v1413 = vsub.s32 0, %v1412
      %v1414 = vrot.slane %v1296, %v1413
      %v1415 = vlaneseq
      %v1416 = vshrl.u32 %v1415, 7
      %v1417 = vsub.s32 0, %v1416
      %v1418 = vrot.slane %v1297, %v1417
      %v1419 = vlaneseq
      %v1420 = vshrl.u32 %v1419, 7
      %v1421 = vsub.s32 0, %v1420
      %v1422 = vrot.slane %v1298, %v1421
      %v1423 = vlaneseq
      %v1424 = vshrl.u32 %v1423, 7
      %v1425 = vsub.s32 0, %v1424
      %v1426 = vrot.slane %v1299, %v1425
      %v1427 = vlaneseq
      %v1428 = vshrl.u32 %v1427, 7
      %v1429 = vsub.s32 0, %v1428
      %v1430 = vrot.slane %v1300, %v1429
      %v1431 = vlaneseq
      %v1432 = vshrl.u32 %v1431, 7
      %v1433 = vsub.s32 0, %v1432
      %v1434 = vrot.slane %v1301, %v1433
      %v1435 = vlaneseq
      %v1436 = vshrl.u32 %v1435, 7
      %v1437 = vsub.s32 0, %v1436
      %v1438 = vrot.slane %v1302, %v1437
      %v1439 = vmul.f32 %v1410, %v1399
      %v1440 = vmul.f32 %v1414, %v1399
      %v1441 = vmul.f32 %v1418, %v1399
      %v1442 = vmul.f32 %v1422, %v1399
      %v1443 = vmul.f32 %v1426, %v1399
      %v1444 = vmul.f32 %v1430, %v1399
      %v1445 = vmul.f32 %v1434, %v1399
      %v1446 = vmul.f32 %v1438, %v1399
      %v1447 = vlaneseq
      %v1448 = vshrl.u32 %v1447, 7
      %v1449 = vsub.s32 1, %v1448
      %v1450 = vrot.slane %v1295, %v1449
      %v1451 = vlaneseq
      %v1452 = vshrl.u32 %v1451, 7
      %v1453 = vsub.s32 1, %v1452
      %v1454 = vrot.slane %v1296, %v1453
      %v1455 = vlaneseq
      %v1456 = vshrl.u32 %v1455, 7
      %v1457 = vsub.s32 1, %v1456
      %v1458 = vrot.slane %v1297, %v1457
      %v1459 = vlaneseq
      %v1460 = vshrl.u32 %v1459, 7
      %v1461 = vsub.s32 1, %v1460
      %v1462 = vrot.slane %v1298, %v1461
      %v1463 = vlaneseq
      %v1464 = vshrl.u32 %v1463, 7
      %v1465 = vsub.s32 1, %v1464
      %v1466 = vrot.slane %v1299, %v1465
      %v1467 = vlaneseq
      %v1468 = vshrl.u32 %v1467, 7
      %v1469 = vsub.s32 1, %v1468
      %v1470 = vrot.slane %v1300, %v1469
      %v1471 = vlaneseq
      %v1472 = vshrl.u32 %v1471, 7
      %v1473 = vsub.s32 1, %v1472
      %v1474 = vrot.slane %v1301, %v1473
      %v1475 = vlaneseq
      %v1476 = vshrl.u32 %v1475, 7
      %v1477 = vsub.s32 1, %v1476
      %v1478 = vrot.slane %v1302, %v1477
      %v1479 = vmul.f32 %v1450, %v1400
      %v1480 = vmul.f32 %v1454, %v1400
      %v1481 = vmul.f32 %v1458, %v1400
      %v1482 = vmul.f32 %v1462, %v1400
      %v1483 = vmul.f32 %v1466, %v1400
      %v1484 = vmul.f32 %v1470, %v1400
      %v1485 = vmul.f32 %v1474, %v1400
      %v1486 = vmul.f32 %v1478, %v1400
      %v1487 = vadd.f32 %v1439, %v1479
      %v1488 = vadd.f32 %v1440, %v1480
      %v1489 = vadd.f32 %v1441, %v1481
      %v1490 = vadd.f32 %v1442, %v1482
      %v1491 = vadd.f32 %v1443, %v1483
      %v1492 = vadd.f32 %v1444, %v1484
      %v1493 = vadd.f32 %v1445, %v1485
      %v1494 = vadd.f32 %v1446, %v1486
      %v1495 = vlaneseq
      %v1496 = vshrl.u32 %v1495, 7
      %v1497 = vsub.s32 2, %v1496
      %v1498 = vrot.slane %v1295, %v1497
      %v1499 = vlaneseq
      %v1500 = vshrl.u32 %v1499, 7
      %v1501 = vsub.s32 2, %v1500
      %v1502 = vrot.slane %v1296, %v1501
      %v1503 = vlaneseq
      %v1504 = vshrl.u32 %v1503, 7
      %v1505 = vsub.s32 2, %v1504
      %v1506 = vrot.slane %v1297, %v1505
      %v1507 = vlaneseq
      %v1508 = vshrl.u32 %v1507, 7
      %v1509 = vsub.s32 2, %v1508
      %v1510 = vrot.slane %v1298, %v1509
      %v1511 = vlaneseq
      %v1512 = vshrl.u32 %v1511, 7
      %v1513 = vsub.s32 2, %v1512
      %v1514 = vrot.slane %v1299, %v1513
      %v1515 = vlaneseq
      %v1516 = vshrl.u32 %v1515, 7
      %v1517 = vsub.s32 2, %v1516
      %v1518 = vrot.slane %v1300, %v1517
      %v1519 = vlaneseq
      %v1520 = vshrl.u32 %v1519, 7
      %v1521 = vsub.s32 2, %v1520
      %v1522 = vrot.slane %v1301, %v1521
      %v1523 = vlaneseq
      %v1524 = vshrl.u32 %v1523, 7
      %v1525 = vsub.s32 2, %v1524
      %v1526 = vrot.slane %v1302, %v1525
      %v1527 = vmul.f32 %v1498, %v1401
      %v1528 = vmul.f32 %v1502, %v1401
      %v1529 = vmul.f32 %v1506, %v1401
      %v1530 = vmul.f32 %v1510, %v1401
      %v1531 = vmul.f32 %v1514, %v1401
      %v1532 = vmul.f32 %v1518, %v1401
      %v1533 = vmul.f32 %v1522, %v1401
      %v1534 = vmul.f32 %v1526, %v1401
      %v1535 = vadd.f32 %v1487, %v1527
      %v1536 = vadd.f32 %v1488, %v1528
      %v1537 = vadd.f32 %v1489, %v1529
      %v1538 = vadd.f32 %v1490, %v1530
      %v1539 = vadd.f32 %v1491, %v1531
      %v1540 = vadd.f32 %v1492, %v1532
      %v1541 = vadd.f32 %v1493, %v1533
      %v1542 = vadd.f32 %v1494, %v1534
      %v1543 = vlaneseq
      %v1544 = vshrl.u32 %v1543, 7
      %v1545 = vsub.s32 3, %v1544
      %v1546 = vrot.slane %v1295, %v1545
      %v1547 = vlaneseq
      %v1548 = vshrl.u32 %v1547, 7
      %v1549 = vsub.s32 3, %v1548
      %v1550 = vrot.slane %v1296, %v1549
      %v1551 = vlaneseq
      %v1552 = vshrl.u32 %v1551, 7
      %v1553 = vsub.s32 3, %v1552
      %v1554 = vrot.slane %v1297, %v1553
      %v1555 = vlaneseq
      %v1556 = vshrl.u32 %v1555, 7
      %v1557 = vsub.s32 3, %v1556
      %v1558 = vrot.slane %v1298, %v1557
      %v1559 = vlaneseq
      %v1560 = vshrl.u32 %v1559, 7
      %v1561 = vsub.s32 3, %v1560
      %v1562 = vrot.slane %v1299, %v1561
      %v1563 = vlaneseq
      %v1564 = vshrl.u32 %v1563, 7
      %v1565 = vsub.s32 3, %v1564
      %v1566 = vrot.slane %v1300, %v1565
      %v1567 = vlaneseq
      %v1568 = vshrl.u32 %v1567, 7
      %v1569 = vsub.s32 3, %v1568
      %v1570 = vrot.slane %v1301, %v1569
      %v1571 = vlaneseq
      %v1572 = vshrl.u32 %v1571, 7
      %v1573 = vsub.s32 3, %v1572
      %v1574 = vrot.slane %v1302, %v1573
      %v1575 = vmul.f32 %v1546, %v1402
      %v1576 = vmul.f32 %v1550, %v1402
      %v1577 = vmul.f32 %v1554, %v1402
      %v1578 = vmul.f32 %v1558, %v1402
      %v1579 = vmul.f32 %v1562, %v1402
      %v1580 = vmul.f32 %v1566, %v1402
      %v1581 = vmul.f32 %v1570, %v1402
      %v1582 = vmul.f32 %v1574, %v1402
      %v1583 = vadd.f32 %v1535, %v1575
      %v1584 = vadd.f32 %v1536, %v1576
      %v1585 = vadd.f32 %v1537, %v1577
      %v1586 = vadd.f32 %v1538, %v1578
      %v1587 = vadd.f32 %v1539, %v1579
      %v1588 = vadd.f32 %v1540, %v1580
      %v1589 = vadd.f32 %v1541, %v1581
      %v1590 = vadd.f32 %v1542, %v1582
      %v1591 = vlaneseq
      %v1592 = vshrl.u32 %v1591, 7
      %v1593 = vsub.s32 4, %v1592
      %v1594 = vrot.slane %v1295, %v1593
      %v1595 = vlaneseq
      %v1596 = vshrl.u32 %v1595, 7
      %v1597 = vsub.s32 4, %v1596
      %v1598 = vrot.slane %v1296, %v1597
      %v1599 = vlaneseq
      %v1600 = vshrl.u32 %v1599, 7
      %v1601 = vsub.s32 4, %v1600
      %v1602 = vrot.slane %v1297, %v1601
      %v1603 = vlaneseq
      %v1604 = vshrl.u32 %v1603, 7
      %v1605 = vsub.s32 4, %v1604
      %v1606 = vrot.slane %v1298, %v1605
      %v1607 = vlaneseq
      %v1608 = vshrl.u32 %v1607, 7
      %v1609 = vsub.s32 4, %v1608
      %v1610 = vrot.slane %v1299, %v1609
      %v1611 = vlaneseq
      %v1612 = vshrl.u32 %v1611, 7
      %v1613 = vsub.s32 4, %v1612
      %v1614 = vrot.slane %v1300, %v1613
      %v1615 = vlaneseq
      %v1616 = vshrl.u32 %v1615, 7
      %v1617 = vsub.s32 4, %v1616
      %v1618 = vrot.slane %v1301, %v1617
      %v1619 = vlaneseq
      %v1620 = vshrl.u32 %v1619, 7
      %v1621 = vsub.s32 4, %v1620
      %v1622 = vrot.slane %v1302, %v1621
      %v1623 = vmul.f32 %v1594, %v1403
      %v1624 = vmul.f32 %v1598, %v1403
      %v1625 = vmul.f32 %v1602, %v1403
      %v1626 = vmul.f32 %v1606, %v1403
      %v1627 = vmul.f32 %v1610, %v1403
      %v1628 = vmul.f32 %v1614, %v1403
      %v1629 = vmul.f32 %v1618, %v1403
      %v1630 = vmul.f32 %v1622, %v1403
      %v1631 = vadd.f32 %v1583, %v1623
      %v1632 = vadd.f32 %v1584, %v1624
      %v1633 = vadd.f32 %v1585, %v1625
      %v1634 = vadd.f32 %v1586, %v1626
      %v1635 = vadd.f32 %v1587, %v1627
      %v1636 = vadd.f32 %v1588, %v1628
      %v1637 = vadd.f32 %v1589, %v1629
      %v1638 = vadd.f32 %v1590, %v1630
      %v1639 = vlaneseq
      %v1640 = vshrl.u32 %v1639, 7
      %v1641 = vsub.s32 5, %v1640
      %v1642 = vrot.slane %v1295, %v1641
      %v1643 = vlaneseq
      %v1644 = vshrl.u32 %v1643, 7
      %v1645 = vsub.s32 5, %v1644
      %v1646 = vrot.slane %v1296, %v1645
      %v1647 = vlaneseq
      %v1648 = vshrl.u32 %v1647, 7
      %v1649 = vsub.s32 5, %v1648
      %v1650 = vrot.slane %v1297, %v1649
      %v1651 = vlaneseq
      %v1652 = vshrl.u32 %v1651, 7
      %v1653 = vsub.s32 5, %v1652
      %v1654 = vrot.slane %v1298, %v1653
      %v1655 = vlaneseq
      %v1656 = vshrl.u32 %v1655, 7
      %v1657 = vsub.s32 5, %v1656
      %v1658 = vrot.slane %v1299, %v1657
      %v1659 = vlaneseq
      %v1660 = vshrl.u32 %v1659, 7
      %v1661 = vsub.s32 5, %v1660
      %v1662 = vrot.slane %v1300, %v1661
      %v1663 = vlaneseq
      %v1664 = vshrl.u32 %v1663, 7
      %v1665 = vsub.s32 5, %v1664
      %v1666 = vrot.slane %v1301, %v1665
      %v1667 = vlaneseq
      %v1668 = vshrl.u32 %v1667, 7
      %v1669 = vsub.s32 5, %v1668
      %v1670 = vrot.slane %v1302, %v1669
      %v1671 = vmul.f32 %v1642, %v1404
      %v1672 = vmul.f32 %v1646, %v1404
      %v1673 = vmul.f32 %v1650, %v1404
      %v1674 = vmul.f32 %v1654, %v1404
      %v1675 = vmul.f32 %v1658, %v1404
      %v1676 = vmul.f32 %v1662, %v1404
      %v1677 = vmul.f32 %v1666, %v1404
      %v1678 = vmul.f32 %v1670, %v1404
      %v1679 = vadd.f32 %v1631, %v1671
      %v1680 = vadd.f32 %v1632, %v1672
      %v1681 = vadd.f32 %v1633, %v1673
      %v1682 = vadd.f32 %v1634, %v1674
      %v1683 = vadd.f32 %v1635, %v1675
      %v1684 = vadd.f32 %v1636, %v1676
      %v1685 = vadd.f32 %v1637, %v1677
      %v1686 = vadd.f32 %v1638, %v1678
      %v1687 = vlaneseq
      %v1688 = vshrl.u32 %v1687, 7
      %v1689 = vsub.s32 6, %v1688
      %v1690 = vrot.slane %v1295, %v1689
      %v1691 = vlaneseq
      %v1692 = vshrl.u32 %v1691, 7
      %v1693 = vsub.s32 6, %v1692
      %v1694 = vrot.slane %v1296, %v1693
      %v1695 = vlaneseq
      %v1696 = vshrl.u32 %v1695, 7
      %v1697 = vsub.s32 6, %v1696
      %v1698 = vrot.slane %v1297, %v1697
      %v1699 = vlaneseq
      %v1700 = vshrl.u32 %v1699, 7
      %v1701 = vsub.s32 6, %v1700
      %v1702 = vrot.slane %v1298, %v1701
      %v1703 = vlaneseq
      %v1704 = vshrl.u32 %v1703, 7
      %v1705 = vsub.s32 6, %v1704
      %v1706 = vrot.slane %v1299, %v1705
      %v1707 = vlaneseq
      %v1708 = vshrl.u32 %v1707, 7
      %v1709 = vsub.s32 6, %v1708
      %v1710 = vrot.slane %v1300, %v1709
      %v1711 = vlaneseq
      %v1712 = vshrl.u32 %v1711, 7
      %v1713 = vsub.s32 6, %v1712
      %v1714 = vrot.slane %v1301, %v1713
      %v1715 = vlaneseq
      %v1716 = vshrl.u32 %v1715, 7
      %v1717 = vsub.s32 6, %v1716
      %v1718 = vrot.slane %v1302, %v1717
      %v1719 = vmul.f32 %v1690, %v1405
      %v1720 = vmul.f32 %v1694, %v1405
      %v1721 = vmul.f32 %v1698, %v1405
      %v1722 = vmul.f32 %v1702, %v1405
      %v1723 = vmul.f32 %v1706, %v1405
      %v1724 = vmul.f32 %v1710, %v1405
      %v1725 = vmul.f32 %v1714, %v1405
      %v1726 = vmul.f32 %v1718, %v1405
      %v1727 = vadd.f32 %v1679, %v1719
      %v1728 = vadd.f32 %v1680, %v1720
      %v1729 = vadd.f32 %v1681, %v1721
      %v1730 = vadd.f32 %v1682, %v1722
      %v1731 = vadd.f32 %v1683, %v1723
      %v1732 = vadd.f32 %v1684, %v1724
      %v1733 = vadd.f32 %v1685, %v1725
      %v1734 = vadd.f32 %v1686, %v1726
      %v1735 = vlaneseq
      %v1736 = vshrl.u32 %v1735, 7
      %v1737 = vsub.s32 7, %v1736
      %v1738 = vrot.slane %v1295, %v1737
      %v1739 = vlaneseq
      %v1740 = vshrl.u32 %v1739, 7
      %v1741 = vsub.s32 7, %v1740
      %v1742 = vrot.slane %v1296, %v1741
      %v1743 = vlaneseq
      %v1744 = vshrl.u32 %v1743, 7
      %v1745 = vsub.s32 7, %v1744
      %v1746 = vrot.slane %v1297, %v1745
      %v1747 = vlaneseq
      %v1748 = vshrl.u32 %v1747, 7
      %v1749 = vsub.s32 7, %v1748
      %v1750 = vrot.slane %v1298, %v1749
      %v1751 = vlaneseq
      %v1752 = vshrl.u32 %v1751, 7
      %v1753 = vsub.s32 7, %v1752
      %v1754 = vrot.slane %v1299, %v1753
      %v1755 = vlaneseq
      %v1756 = vshrl.u32 %v1755, 7
      %v1757 = vsub.s32 7, %v1756
      %v1758 = vrot.slane %v1300, %v1757
      %v1759 = vlaneseq
      %v1760 = vshrl.u32 %v1759, 7
      %v1761 = vsub.s32 7, %v1760
      %v1762 = vrot.slane %v1301, %v1761
      %v1763 = vlaneseq
      %v1764 = vshrl.u32 %v1763, 7
      %v1765 = vsub.s32 7, %v1764
      %v1766 = vrot.slane %v1302, %v1765
      %v1767 = vmul.f32 %v1738, %v1406
      %v1768 = vmul.f32 %v1742, %v1406
      %v1769 = vmul.f32 %v1746, %v1406
      %v1770 = vmul.f32 %v1750, %v1406
      %v1771 = vmul.f32 %v1754, %v1406
      %v1772 = vmul.f32 %v1758, %v1406
      %v1773 = vmul.f32 %v1762, %v1406
      %v1774 = vmul.f32 %v1766, %v1406
      %v1775 = vadd.f32 %v1727, %v1767
      %v1776 = vadd.f32 %v1728, %v1768
      %v1777 = vadd.f32 %v1729, %v1769
      %v1778 = vadd.f32 %v1730, %v1770
      %v1779 = vadd.f32 %v1731, %v1771
      %v1780 = vadd.f32 %v1732, %v1772
      %v1781 = vadd.f32 %v1733, %v1773
      %v1782 = vadd.f32 %v1734, %v1774
      %v1783 = vadd.f32 %v1359, %v1775
      %v1784 = vadd.f32 %v1360, %v1776
      %v1785 = vadd.f32 %v1361, %v1777
      %v1786 = vadd.f32 %v1362, %v1778
      %v1787 = vadd.f32 %v1363, %v1779
      %v1788 = vadd.f32 %v1364, %v1780
      %v1789 = vadd.f32 %v1365, %v1781
      %v1790 = vadd.f32 %v1366, %v1782
      %v1791 = vmul.f32 %v1410, %v1783
      %v1792 = vmul.f32 %v1414, %v1783
      %v1793 = vmul.f32 %v1418, %v1783
      %v1794 = vmul.f32 %v1422, %v1783
      %v1795 = vmul.f32 %v1426, %v1783
      %v1796 = vmul.f32 %v1430, %v1783
      %v1797 = vmul.f32 %v1434, %v1783
      %v1798 = vmul.f32 %v1438, %v1783
      %v1799 = vmul.f32 %v1450, %v1784
      %v1800 = vmul.f32 %v1454, %v1784
      %v1801 = vmul.f32 %v1458, %v1784
      %v1802 = vmul.f32 %v1462, %v1784
      %v1803 = vmul.f32 %v1466, %v1784
      %v1804 = vmul.f32 %v1470, %v1784
      %v1805 = vmul.f32 %v1474, %v1784
      %v1806 = vmul.f32 %v1478, %v1784
      %v1807 = vadd.f32 %v1791, %v1799
      %v1808 = vadd.f32 %v1792, %v1800
      %v1809 = vadd.f32 %v1793, %v1801
      %v1810 = vadd.f32 %v1794, %v1802
      %v1811 = vadd.f32 %v1795, %v1803
      %v1812 = vadd.f32 %v1796, %v1804
      %v1813 = vadd.f32 %v1797, %v1805
      %v1814 = vadd.f32 %v1798, %v1806
      %v1815 = vmul.f32 %v1498, %v1785
      %v1816 = vmul.f32 %v1502, %v1785
      %v1817 = vmul.f32 %v1506, %v1785
      %v1818 = vmul.f32 %v1510, %v1785
      %v1819 = vmul.f32 %v1514, %v1785
      %v1820 = vmul.f32 %v1518, %v1785
      %v1821 = vmul.f32 %v1522, %v1785
      %v1822 = vmul.f32 %v1526, %v1785
      %v1823 = vadd.f32 %v1807, %v1815
      %v1824 = vadd.f32 %v1808, %v1816
      %v1825 = vadd.f32 %v1809, %v1817
      %v1826 = vadd.f32 %v1810, %v1818
      %v1827 = vadd.f32 %v1811, %v1819
      %v1828 = vadd.f32 %v1812, %v1820
      %v1829 = vadd.f32 %v1813, %v1821
      %v1830 = vadd.f32 %v1814, %v1822
      %v1831 = vmul.f32 %v1546, %v1786
      %v1832 = vmul.f32 %v1550, %v1786
      %v1833 = vmul.f32 %v1554, %v1786
      %v1834 = vmul.f32 %v1558, %v1786
      %v1835 = vmul.f32 %v1562, %v1786
      %v1836 = vmul.f32 %v1566, %v1786
      %v1837 = vmul.f32 %v1570, %v1786
      %v1838 = vmul.f32 %v1574, %v1786
      %v1839 = vadd.f32 %v1823, %v1831
      %v1840 = vadd.f32 %v1824, %v1832
      %v1841 = vadd.f32 %v1825, %v1833
      %v1842 = vadd.f32 %v1826, %v1834
      %v1843 = vadd.f32 %v1827, %v1835
      %v1844 = vadd.f32 %v1828, %v1836
      %v1845 = vadd.f32 %v1829, %v1837
      %v1846 = vadd.f32 %v1830, %v1838
      %v1847 = vmul.f32 %v1594, %v1787
      %v1848 = vmul.f32 %v1598, %v1787
      %v1849 = vmul.f32 %v1602, %v1787
      %v1850 = vmul.f32 %v1606, %v1787
      %v1851 = vmul.f32 %v1610, %v1787
      %v1852 = vmul.f32 %v1614, %v1787
      %v1853 = vmul.f32 %v1618, %v1787
      %v1854 = vmul.f32 %v1622, %v1787
      %v1855 = vadd.f32 %v1839, %v1847
      %v1856 = vadd.f32 %v1840, %v1848
      %v1857 = vadd.f32 %v1841, %v1849
      %v1858 = vadd.f32 %v1842, %v1850
      %v1859 = vadd.f32 %v1843, %v1851
      %v1860 = vadd.f32 %v1844, %v1852
      %v1861 = vadd.f32 %v1845, %v1853
      %v1862 = vadd.f32 %v1846, %v1854
      %v1863 = vmul.f32 %v1642, %v1788
      %v1864 = vmul.f32 %v1646, %v1788
      %v1865 = vmul.f32 %v1650, %v1788
      %v1866 = vmul.f32 %v1654, %v1788
      %v1867 = vmul.f32 %v1658, %v1788
      %v1868 = vmul.f32 %v1662, %v1788
      %v1869 = vmul.f32 %v1666, %v1788
      %v1870 = vmul.f32 %v1670, %v1788
      %v1871 = vadd.f32 %v1855, %v1863
      %v1872 = vadd.f32 %v1856, %v1864
      %v1873 = vadd.f32 %v1857, %v1865
      %v1874 = vadd.f32 %v1858, %v1866
      %v1875 = vadd.f32 %v1859, %v1867
      %v1876 = vadd.f32 %v1860, %v1868
      %v1877 = vadd.f32 %v1861, %v1869
      %v1878 = vadd.f32 %v1862, %v1870
      %v1879 = vmul.f32 %v1690, %v1789
      %v1880 = vmul.f32 %v1694, %v1789
      %v1881 = vmul.f32 %v1698, %v1789
      %v1882 = vmul.f32 %v1702, %v1789
      %v1883 = vmul.f32 %v1706, %v1789
      %v1884 = vmul.f32 %v1710, %v1789
      %v1885 = vmul.f32 %v1714, %v1789
      %v1886 = vmul.f32 %v1718, %v1789
      %v1887 = vadd.f32 %v1871, %v1879
      %v1888 = vadd.f32 %v1872, %v1880
      %v1889 = vadd.f32 %v1873, %v1881
      %v1890 = vadd.f32 %v1874, %v1882
      %v1891 = vadd.f32 %v1875, %v1883
      %v1892 = vadd.f32 %v1876, %v1884
      %v1893 = vadd.f32 %v1877, %v1885
      %v1894 = vadd.f32 %v1878, %v1886
      %v1895 = vmul.f32 %v1738, %v1790
      %v1896 = vmul.f32 %v1742, %v1790
      %v1897 = vmul.f32 %v1746, %v1790
      %v1898 = vmul.f32 %v1750, %v1790
      %v1899 = vmul.f32 %v1754, %v1790
      %v1900 = vmul.f32 %v1758, %v1790
      %v1901 = vmul.f32 %v1762, %v1790
      %v1902 = vmul.f32 %v1766, %v1790
      %v1903 = vadd.f32 %v1887, %v1895
      %v1904 = vadd.f32 %v1888, %v1896
      %v1905 = vadd.f32 %v1889, %v1897
      %v1906 = vadd.f32 %v1890, %v1898
      %v1907 = vadd.f32 %v1891, %v1899
      %v1908 = vadd.f32 %v1892, %v1900
      %v1909 = vadd.f32 %v1893, %v1901
      %v1910 = vadd.f32 %v1894, %v1902
      %v1911 = vadd.f32 %v1319, %v1903
      %v1912 = vadd.f32 %v1320, %v1904
      %v1913 = vadd.f32 %v1321, %v1905
      %v1914 = vadd.f32 %v1322, %v1906
      %v1915 = vadd.f32 %v1323, %v1907
      %v1916 = vadd.f32 %v1324, %v1908
      %v1917 = vadd.f32 %v1325, %v1909
      %v1918 = vadd.f32 %v1326, %v1910
      %v1919 = vlaneseq
      %v1920 = vshrl.u32 %v1919, 7
      %v1921 = vsub.s32 0, %v1920
      %v1922 = vrot.slane %v1911, %v1921
      %v1923 = vlaneseq
      %v1924 = vshrl.u32 %v1923, 7
      %v1925 = vsub.s32 0, %v1924
      %v1926 = vrot.slane %v1912, %v1925
      %v1927 = vlaneseq
      %v1928 = vshrl.u32 %v1927, 7
      %v1929 = vsub.s32 0, %v1928
      %v1930 = vrot.slane %v1913, %v1929
      %v1931 = vlaneseq
      %v1932 = vshrl.u32 %v1931, 7
      %v1933 = vsub.s32 0, %v1932
      %v1934 = vrot.slane %v1914, %v1933
      %v1935 = vlaneseq
      %v1936 = vshrl.u32 %v1935, 7
      %v1937 = vsub.s32 0, %v1936
      %v1938 = vrot.slane %v1915, %v1937
      %v1939 = vlaneseq
      %v1940 = vshrl.u32 %v1939, 7
      %v1941 = vsub.s32 0, %v1940
      %v1942 = vrot.slane %v1916, %v1941
      %v1943 = vlaneseq
      %v1944 = vshrl.u32 %v1943, 7
      %v1945 = vsub.s32 0, %v1944
      %v1946 = vrot.slane %v1917, %v1945
      %v1947 = vlaneseq
      %v1948 = vshrl.u32 %v1947, 7
      %v1949 = vsub.s32 0, %v1948
      %v1950 = vrot.slane %v1918, %v1949
      %v1951 = vmul.f32 %v1922, %v1911
      %v1952 = vmul.f32 %v1926, %v1911
      %v1953 = vmul.f32 %v1930, %v1911
      %v1954 = vmul.f32 %v1934, %v1911
      %v1955 = vmul.f32 %v1938, %v1911
      %v1956 = vmul.f32 %v1942, %v1911
      %v1957 = vmul.f32 %v1946, %v1911
      %v1958 = vmul.f32 %v1950, %v1911
      %v1959 = vlaneseq
      %v1960 = vshrl.u32 %v1959, 7
      %v1961 = vsub.s32 1, %v1960
      %v1962 = vrot.slane %v1911, %v1961
      %v1963 = vlaneseq
      %v1964 = vshrl.u32 %v1963, 7
      %v1965 = vsub.s32 1, %v1964
      %v1966 = vrot.slane %v1912, %v1965
      %v1967 = vlaneseq
      %v1968 = vshrl.u32 %v1967, 7
      %v1969 = vsub.s32 1, %v1968
      %v1970 = vrot.slane %v1913, %v1969
      %v1971 = vlaneseq
      %v1972 = vshrl.u32 %v1971, 7
      %v1973 = vsub.s32 1, %v1972
      %v1974 = vrot.slane %v1914, %v1973
      %v1975 = vlaneseq
      %v1976 = vshrl.u32 %v1975, 7
      %v1977 = vsub.s32 1, %v1976
      %v1978 = vrot.slane %v1915, %v1977
      %v1979 = vlaneseq
      %v1980 = vshrl.u32 %v1979, 7
      %v1981 = vsub.s32 1, %v1980
      %v1982 = vrot.slane %v1916, %v1981
      %v1983 = vlaneseq
      %v1984 = vshrl.u32 %v1983, 7
      %v1985 = vsub.s32 1, %v1984
      %v1986 = vrot.slane %v1917, %v1985
      %v1987 = vlaneseq
      %v1988 = vshrl.u32 %v1987, 7
      %v1989 = vsub.s32 1, %v1988
      %v1990 = vrot.slane %v1918, %v1989
      %v1991 = vmul.f32 %v1962, %v1912
      %v1992 = vmul.f32 %v1966, %v1912
      %v1993 = vmul.f32 %v1970, %v1912
      %v1994 = vmul.f32 %v1974, %v1912
      %v1995 = vmul.f32 %v1978, %v1912
      %v1996 = vmul.f32 %v1982, %v1912
      %v1997 = vmul.f32 %v1986, %v1912
      %v1998 = vmul.f32 %v1990, %v1912
      %v1999 = vadd.f32 %v1951, %v1991
      %v2000 = vadd.f32 %v1952, %v1992
      %v2001 = vadd.f32 %v1953, %v1993
      %v2002 = vadd.f32 %v1954, %v1994
      %v2003 = vadd.f32 %v1955, %v1995
      %v2004 = vadd.f32 %v1956, %v1996
      %v2005 = vadd.f32 %v1957, %v1997
      %v2006 = vadd.f32 %v1958, %v1998
      %v2007 = vlaneseq
      %v2008 = vshrl.u32 %v2007, 7
      %v2009 = vsub.s32 2, %v2008
      %v2010 = vrot.slane %v1911, %v2009
      %v2011 = vlaneseq
      %v2012 = vshrl.u32 %v2011, 7
      %v2013 = vsub.s32 2, %v2012
      %v2014 = vrot.slane %v1912, %v2013
      %v2015 = vlaneseq
      %v2016 = vshrl.u32 %v2015, 7
      %v2017 = vsub.s32 2, %v2016
      %v2018 = vrot.slane %v1913, %v2017
      %v2019 = vlaneseq
      %v2020 = vshrl.u32 %v2019, 7
      %v2021 = vsub.s32 2, %v2020
      %v2022 = vrot.slane %v1914, %v2021
      %v2023 = vlaneseq
      %v2024 = vshrl.u32 %v2023, 7
      %v2025 = vsub.s32 2, %v2024
      %v2026 = vrot.slane %v1915, %v2025
      %v2027 = vlaneseq
      %v2028 = vshrl.u32 %v2027, 7
      %v2029 = vsub.s32 2, %v2028
      %v2030 = vrot.slane %v1916, %v2029
      %v2031 = vlaneseq
      %v2032 = vshrl.u32 %v2031, 7
      %v2033 = vsub.s32 2, %v2032
      %v2034 = vrot.slane %v1917, %v2033
      %v2035 = vlaneseq
      %v2036 = vshrl.u32 %v2035, 7
      %v2037 = vsub.s32 2, %v2036
      %v2038 = vrot.slane %v1918, %v2037
      %v2039 = vmul.f32 %v2010, %v1913
      %v2040 = vmul.f32 %v2014, %v1913
      %v2041 = vmul.f32 %v2018, %v1913
      %v2042 = vmul.f32 %v2022, %v1913
      %v2043 = vmul.f32 %v2026, %v1913
      %v2044 = vmul.f32 %v2030, %v1913
      %v2045 = vmul.f32 %v2034, %v1913
      %v2046 = vmul.f32 %v2038, %v1913
      %v2047 = vadd.f32 %v1999, %v2039
      %v2048 = vadd.f32 %v2000, %v2040
      %v2049 = vadd.f32 %v2001, %v2041
      %v2050 = vadd.f32 %v2002, %v2042
      %v2051 = vadd.f32 %v2003, %v2043
      %v2052 = vadd.f32 %v2004, %v2044
      %v2053 = vadd.f32 %v2005, %v2045
      %v2054 = vadd.f32 %v2006, %v2046
      %v2055 = vlaneseq
      %v2056 = vshrl.u32 %v2055, 7
      %v2057 = vsub.s32 3, %v2056
      %v2058 = vrot.slane %v1911, %v2057
      %v2059 = vlaneseq
      %v2060 = vshrl.u32 %v2059, 7
      %v2061 = vsub.s32 3, %v2060
      %v2062 = vrot.slane %v1912, %v2061
      %v2063 = vlaneseq
      %v2064 = vshrl.u32 %v2063, 7
      %v2065 = vsub.s32 3, %v2064
      %v2066 = vrot.slane %v1913, %v2065
      %v2067 = vlaneseq
      %v2068 = vshrl.u32 %v2067, 7
      %v2069 = vsub.s32 3, %v2068
      %v2070 = vrot.slane %v1914, %v2069
      %v2071 = vlaneseq
      %v2072 = vshrl.u32 %v2071, 7
      %v2073 = vsub.s32 3, %v2072
      %v2074 = vrot.slane %v1915, %v2073
      %v2075 = vlaneseq
      %v2076 = vshrl.u32 %v2075, 7
      %v2077 = vsub.s32 3, %v2076
      %v2078 = vrot.slane %v1916, %v2077
      %v2079 = vlaneseq
      %v2080 = vshrl.u32 %v2079, 7
      %v2081 = vsub.s32 3, %v2080
      %v2082 = vrot.slane %v1917, %v2081
      %v2083 = vlaneseq
      %v2084 = vshrl.u32 %v2083, 7
      %v2085 = vsub.s32 3, %v2084
      %v2086 = vrot.slane %v1918, %v2085
      %v2087 = vmul.f32 %v2058, %v1914
      %v2088 = vmul.f32 %v2062, %v1914
      %v2089 = vmul.f32 %v2066, %v1914
      %v2090 = vmul.f32 %v2070, %v1914
      %v2091 = vmul.f32 %v2074, %v1914
      %v2092 = vmul.f32 %v2078, %v1914
      %v2093 = vmul.f32 %v2082, %v1914
      %v2094 = vmul.f32 %v2086, %v1914
      %v2095 = vadd.f32 %v2047, %v2087
      %v2096 = vadd.f32 %v2048, %v2088
      %v2097 = vadd.f32 %v2049, %v2089
      %v2098 = vadd.f32 %v2050, %v2090
      %v2099 = vadd.f32 %v2051, %v2091
      %v2100 = vadd.f32 %v2052, %v2092
      %v2101 = vadd.f32 %v2053, %v2093
      %v2102 = vadd.f32 %v2054, %v2094
      %v2103 = vlaneseq
      %v2104 = vshrl.u32 %v2103, 7
      %v2105 = vsub.s32 4, %v2104
      %v2106 = vrot.slane %v1911, %v2105
      %v2107 = vlaneseq
      %v2108 = vshrl.u32 %v2107, 7
      %v2109 = vsub.s32 4, %v2108
      %v2110 = vrot.slane %v1912, %v2109
      %v2111 = vlaneseq
      %v2112 = vshrl.u32 %v2111, 7
      %v2113 = vsub.s32 4, %v2112
      %v2114 = vrot.slane %v1913, %v2113
      %v2115 = vlaneseq
      %v2116 = vshrl.u32 %v2115, 7
      %v2117 = vsub.s32 4, %v2116
      %v2118 = vrot.slane %v1914, %v2117
      %v2119 = vlaneseq
      %v2120 = vshrl.u32 %v2119, 7
      %v2121 = vsub.s32 4, %v2120
      %v2122 = vrot.slane %v1915, %v2121
      %v2123 = vlaneseq
      %v2124 = vshrl.u32 %v2123, 7
      %v2125 = vsub.s32 4, %v2124
      %v2126 = vrot.slane %v1916, %v2125
      %v2127 = vlaneseq
      %v2128 = vshrl.u32 %v2127, 7
      %v2129 = vsub.s32 4, %v2128
      %v2130 = vrot.slane %v1917, %v2129
      %v2131 = vlaneseq
      %v2132 = vshrl.u32 %v2131, 7
      %v2133 = vsub.s32 4, %v2132
      %v2134 = vrot.slane %v1918, %v2133
      %v2135 = vmul.f32 %v2106, %v1915
      %v2136 = vmul.f32 %v2110, %v1915
      %v2137 = vmul.f32 %v2114, %v1915
      %v2138 = vmul.f32 %v2118, %v1915
      %v2139 = vmul.f32 %v2122, %v1915
      %v2140 = vmul.f32 %v2126, %v1915
      %v2141 = vmul.f32 %v2130, %v1915
      %v2142 = vmul.f32 %v2134, %v1915
      %v2143 = vadd.f32 %v2095, %v2135
      %v2144 = vadd.f32 %v2096, %v2136
      %v2145 = vadd.f32 %v2097, %v2137
      %v2146 = vadd.f32 %v2098, %v2138
      %v2147 = vadd.f32 %v2099, %v2139
      %v2148 = vadd.f32 %v2100, %v2140
      %v2149 = vadd.f32 %v2101, %v2141
      %v2150 = vadd.f32 %v2102, %v2142
      %v2151 = vlaneseq
      %v2152 = vshrl.u32 %v2151, 7
      %v2153 = vsub.s32 5, %v2152
      %v2154 = vrot.slane %v1911, %v2153
      %v2155 = vlaneseq
      %v2156 = vshrl.u32 %v2155, 7
      %v2157 = vsub.s32 5, %v2156
      %v2158 = vrot.slane %v1912, %v2157
      %v2159 = vlaneseq
      %v2160 = vshrl.u32 %v2159, 7
      %v2161 = vsub.s32 5, %v2160
      %v2162 = vrot.slane %v1913, %v2161
      %v2163 = vlaneseq
      %v2164 = vshrl.u32 %v2163, 7
      %v2165 = vsub.s32 5, %v2164
      %v2166 = vrot.slane %v1914, %v2165
      %v2167 = vlaneseq
      %v2168 = vshrl.u32 %v2167, 7
      %v2169 = vsub.s32 5, %v2168
      %v2170 = vrot.slane %v1915, %v2169
      %v2171 = vlaneseq
      %v2172 = vshrl.u32 %v2171, 7
      %v2173 = vsub.s32 5, %v2172
      %v2174 = vrot.slane %v1916, %v2173
      %v2175 = vlaneseq
      %v2176 = vshrl.u32 %v2175, 7
      %v2177 = vsub.s32 5, %v2176
      %v2178 = vrot.slane %v1917, %v2177
      %v2179 = vlaneseq
      %v2180 = vshrl.u32 %v2179, 7
      %v2181 = vsub.s32 5, %v2180
      %v2182 = vrot.slane %v1918, %v2181
      %v2183 = vmul.f32 %v2154, %v1916
      %v2184 = vmul.f32 %v2158, %v1916
      %v2185 = vmul.f32 %v2162, %v1916
      %v2186 = vmul.f32 %v2166, %v1916
      %v2187 = vmul.f32 %v2170, %v1916
      %v2188 = vmul.f32 %v2174, %v1916
      %v2189 = vmul.f32 %v2178, %v1916
      %v2190 = vmul.f32 %v2182, %v1916
      %v2191 = vadd.f32 %v2143, %v2183
      %v2192 = vadd.f32 %v2144, %v2184
      %v2193 = vadd.f32 %v2145, %v2185
      %v2194 = vadd.f32 %v2146, %v2186
      %v2195 = vadd.f32 %v2147, %v2187
      %v2196 = vadd.f32 %v2148, %v2188
      %v2197 = vadd.f32 %v2149, %v2189
      %v2198 = vadd.f32 %v2150, %v2190
      %v2199 = vlaneseq
      %v2200 = vshrl.u32 %v2199, 7
      %v2201 = vsub.s32 6, %v2200
      %v2202 = vrot.slane %v1911, %v2201
      %v2203 = vlaneseq
      %v2204 = vshrl.u32 %v2203, 7
      %v2205 = vsub.s32 6, %v2204
      %v2206 = vrot.slane %v1912, %v2205
      %v2207 = vlaneseq
      %v2208 = vshrl.u32 %v2207, 7
      %v2209 = vsub.s32 6, %v2208
      %v2210 = vrot.slane %v1913, %v2209
      %v2211 = vlaneseq
      %v2212 = vshrl.u32 %v2211, 7
      %v2213 = vsub.s32 6, %v2212
      %v2214 = vrot.slane %v1914, %v2213
      %v2215 = vlaneseq
      %v2216 = vshrl.u32 %v2215, 7
      %v2217 = vsub.s32 6, %v2216
      %v2218 = vrot.slane %v1915, %v2217
      %v2219 = vlaneseq
      %v2220 = vshrl.u32 %v2219, 7
      %v2221 = vsub.s32 6, %v2220
      %v2222 = vrot.slane %v1916, %v2221
      %v2223 = vlaneseq
      %v2224 = vshrl.u32 %v2223, 7
      %v2225 = vsub.s32 6, %v2224
      %v2226 = vrot.slane %v1917, %v2225
      %v2227 = vlaneseq
      %v2228 = vshrl.u32 %v2227, 7
      %v2229 = vsub.s32 6, %v2228
      %v2230 = vrot.slane %v1918, %v2229
      %v2231 = vmul.f32 %v2202, %v1917
      %v2232 = vmul.f32 %v2206, %v1917
      %v2233 = vmul.f32 %v2210, %v1917
      %v2234 = vmul.f32 %v2214, %v1917
      %v2235 = vmul.f32 %v2218, %v1917
      %v2236 = vmul.f32 %v2222, %v1917
      %v2237 = vmul.f32 %v2226, %v1917
      %v2238 = vmul.f32 %v2230, %v1917
      %v2239 = vadd.f32 %v2191, %v2231
      %v2240 = vadd.f32 %v2192, %v2232
      %v2241 = vadd.f32 %v2193, %v2233
      %v2242 = vadd.f32 %v2194, %v2234
      %v2243 = vadd.f32 %v2195, %v2235
      %v2244 = vadd.f32 %v2196, %v2236
      %v2245 = vadd.f32 %v2197, %v2237
      %v2246 = vadd.f32 %v2198, %v2238
      %v2247 = vlaneseq
      %v2248 = vshrl.u32 %v2247, 7
      %v2249 = vsub.s32 7, %v2248
      %v2250 = vrot.slane %v1911, %v2249
      %v2251 = vlaneseq
      %v2252 = vshrl.u32 %v2251, 7
      %v2253 = vsub.s32 7, %v2252
      %v2254 = vrot.slane %v1912, %v2253
      %v2255 = vlaneseq
      %v2256 = vshrl.u32 %v2255, 7
      %v2257 = vsub.s32 7, %v2256
      %v2258 = vrot.slane %v1913, %v2257
      %v2259 = vlaneseq
      %v2260 = vshrl.u32 %v2259, 7
      %v2261 = vsub.s32 7, %v2260
      %v2262 = vrot.slane %v1914, %v2261
      %v2263 = vlaneseq
      %v2264 = vshrl.u32 %v2263, 7
      %v2265 = vsub.s32 7, %v2264
      %v2266 = vrot.slane %v1915, %v2265
      %v2267 = vlaneseq
      %v2268 = vshrl.u32 %v2267, 7
      %v2269 = vsub.s32 7, %v2268
      %v2270 = vrot.slane %v1916, %v2269
      %v2271 = vlaneseq
      %v2272 = vshrl.u32 %v2271, 7
      %v2273 = vsub.s32 7, %v2272
      %v2274 = vrot.slane %v1917, %v2273
      %v2275 = vlaneseq
      %v2276 = vshrl.u32 %v2275, 7
      %v2277 = vsub.s32 7, %v2276
      %v2278 = vrot.slane %v1918, %v2277
      %v2279 = vmul.f32 %v2250, %v1918
      %v2280 = vmul.f32 %v2254, %v1918
      %v2281 = vmul.f32 %v2258, %v1918
      %v2282 = vmul.f32 %v2262, %v1918
      %v2283 = vmul.f32 %v2266, %v1918
      %v2284 = vmul.f32 %v2270, %v1918
      %v2285 = vmul.f32 %v2274, %v1918
      %v2286 = vmul.f32 %v2278, %v1918
      %v2287 = vadd.f32 %v2239, %v2279
      %v2288 = vadd.f32 %v2240, %v2280
      %v2289 = vadd.f32 %v2241, %v2281
      %v2290 = vadd.f32 %v2242, %v2282
      %v2291 = vadd.f32 %v2243, %v2283
      %v2292 = vadd.f32 %v2244, %v2284
      %v2293 = vadd.f32 %v2245, %v2285
      %v2294 = vadd.f32 %v2246, %v2286
      %v2295 = vsel %vm496, 1, 0
      %vm2296 = vcmp.eq.s32.totalorder %v2295, 1
      %v2297 = vsel %vm2296, %v2287, %v1911
      %v2298 = vsel %vm2296, %v2288, %v1912
      %v2299 = vsel %vm2296, %v2289, %v1913
      %v2300 = vsel %vm2296, %v2290, %v1914
      %v2301 = vsel %vm2296, %v2291, %v1915
      %v2302 = vsel %vm2296, %v2292, %v1916
      %v2303 = vsel %vm2296, %v2293, %v1917
      %v2304 = vsel %vm2296, %v2294, %v1918
      %v2305 = vlaneseq
      %v2306 = vshrl.u32 %v2305, 7
      %v2307 = vsub.s32 0, %v2306
      %v2308 = vrot.slane %v2297, %v2307
      %v2309 = vlaneseq
      %v2310 = vshrl.u32 %v2309, 7
      %v2311 = vsub.s32 0, %v2310
      %v2312 = vrot.slane %v2298, %v2311
      %v2313 = vlaneseq
      %v2314 = vshrl.u32 %v2313, 7
      %v2315 = vsub.s32 0, %v2314
      %v2316 = vrot.slane %v2299, %v2315
      %v2317 = vlaneseq
      %v2318 = vshrl.u32 %v2317, 7
      %v2319 = vsub.s32 0, %v2318
      %v2320 = vrot.slane %v2300, %v2319
      %v2321 = vlaneseq
      %v2322 = vshrl.u32 %v2321, 7
      %v2323 = vsub.s32 0, %v2322
      %v2324 = vrot.slane %v2301, %v2323
      %v2325 = vlaneseq
      %v2326 = vshrl.u32 %v2325, 7
      %v2327 = vsub.s32 0, %v2326
      %v2328 = vrot.slane %v2302, %v2327
      %v2329 = vlaneseq
      %v2330 = vshrl.u32 %v2329, 7
      %v2331 = vsub.s32 0, %v2330
      %v2332 = vrot.slane %v2303, %v2331
      %v2333 = vlaneseq
      %v2334 = vshrl.u32 %v2333, 7
      %v2335 = vsub.s32 0, %v2334
      %v2336 = vrot.slane %v2304, %v2335
      %v2337 = vmul.f32 %v2308, %v2297
      %v2338 = vmul.f32 %v2312, %v2297
      %v2339 = vmul.f32 %v2316, %v2297
      %v2340 = vmul.f32 %v2320, %v2297
      %v2341 = vmul.f32 %v2324, %v2297
      %v2342 = vmul.f32 %v2328, %v2297
      %v2343 = vmul.f32 %v2332, %v2297
      %v2344 = vmul.f32 %v2336, %v2297
      %v2345 = vlaneseq
      %v2346 = vshrl.u32 %v2345, 7
      %v2347 = vsub.s32 1, %v2346
      %v2348 = vrot.slane %v2297, %v2347
      %v2349 = vlaneseq
      %v2350 = vshrl.u32 %v2349, 7
      %v2351 = vsub.s32 1, %v2350
      %v2352 = vrot.slane %v2298, %v2351
      %v2353 = vlaneseq
      %v2354 = vshrl.u32 %v2353, 7
      %v2355 = vsub.s32 1, %v2354
      %v2356 = vrot.slane %v2299, %v2355
      %v2357 = vlaneseq
      %v2358 = vshrl.u32 %v2357, 7
      %v2359 = vsub.s32 1, %v2358
      %v2360 = vrot.slane %v2300, %v2359
      %v2361 = vlaneseq
      %v2362 = vshrl.u32 %v2361, 7
      %v2363 = vsub.s32 1, %v2362
      %v2364 = vrot.slane %v2301, %v2363
      %v2365 = vlaneseq
      %v2366 = vshrl.u32 %v2365, 7
      %v2367 = vsub.s32 1, %v2366
      %v2368 = vrot.slane %v2302, %v2367
      %v2369 = vlaneseq
      %v2370 = vshrl.u32 %v2369, 7
      %v2371 = vsub.s32 1, %v2370
      %v2372 = vrot.slane %v2303, %v2371
      %v2373 = vlaneseq
      %v2374 = vshrl.u32 %v2373, 7
      %v2375 = vsub.s32 1, %v2374
      %v2376 = vrot.slane %v2304, %v2375
      %v2377 = vmul.f32 %v2348, %v2298
      %v2378 = vmul.f32 %v2352, %v2298
      %v2379 = vmul.f32 %v2356, %v2298
      %v2380 = vmul.f32 %v2360, %v2298
      %v2381 = vmul.f32 %v2364, %v2298
      %v2382 = vmul.f32 %v2368, %v2298
      %v2383 = vmul.f32 %v2372, %v2298
      %v2384 = vmul.f32 %v2376, %v2298
      %v2385 = vadd.f32 %v2337, %v2377
      %v2386 = vadd.f32 %v2338, %v2378
      %v2387 = vadd.f32 %v2339, %v2379
      %v2388 = vadd.f32 %v2340, %v2380
      %v2389 = vadd.f32 %v2341, %v2381
      %v2390 = vadd.f32 %v2342, %v2382
      %v2391 = vadd.f32 %v2343, %v2383
      %v2392 = vadd.f32 %v2344, %v2384
      %v2393 = vlaneseq
      %v2394 = vshrl.u32 %v2393, 7
      %v2395 = vsub.s32 2, %v2394
      %v2396 = vrot.slane %v2297, %v2395
      %v2397 = vlaneseq
      %v2398 = vshrl.u32 %v2397, 7
      %v2399 = vsub.s32 2, %v2398
      %v2400 = vrot.slane %v2298, %v2399
      %v2401 = vlaneseq
      %v2402 = vshrl.u32 %v2401, 7
      %v2403 = vsub.s32 2, %v2402
      %v2404 = vrot.slane %v2299, %v2403
      %v2405 = vlaneseq
      %v2406 = vshrl.u32 %v2405, 7
      %v2407 = vsub.s32 2, %v2406
      %v2408 = vrot.slane %v2300, %v2407
      %v2409 = vlaneseq
      %v2410 = vshrl.u32 %v2409, 7
      %v2411 = vsub.s32 2, %v2410
      %v2412 = vrot.slane %v2301, %v2411
      %v2413 = vlaneseq
      %v2414 = vshrl.u32 %v2413, 7
      %v2415 = vsub.s32 2, %v2414
      %v2416 = vrot.slane %v2302, %v2415
      %v2417 = vlaneseq
      %v2418 = vshrl.u32 %v2417, 7
      %v2419 = vsub.s32 2, %v2418
      %v2420 = vrot.slane %v2303, %v2419
      %v2421 = vlaneseq
      %v2422 = vshrl.u32 %v2421, 7
      %v2423 = vsub.s32 2, %v2422
      %v2424 = vrot.slane %v2304, %v2423
      %v2425 = vmul.f32 %v2396, %v2299
      %v2426 = vmul.f32 %v2400, %v2299
      %v2427 = vmul.f32 %v2404, %v2299
      %v2428 = vmul.f32 %v2408, %v2299
      %v2429 = vmul.f32 %v2412, %v2299
      %v2430 = vmul.f32 %v2416, %v2299
      %v2431 = vmul.f32 %v2420, %v2299
      %v2432 = vmul.f32 %v2424, %v2299
      %v2433 = vadd.f32 %v2385, %v2425
      %v2434 = vadd.f32 %v2386, %v2426
      %v2435 = vadd.f32 %v2387, %v2427
      %v2436 = vadd.f32 %v2388, %v2428
      %v2437 = vadd.f32 %v2389, %v2429
      %v2438 = vadd.f32 %v2390, %v2430
      %v2439 = vadd.f32 %v2391, %v2431
      %v2440 = vadd.f32 %v2392, %v2432
      %v2441 = vlaneseq
      %v2442 = vshrl.u32 %v2441, 7
      %v2443 = vsub.s32 3, %v2442
      %v2444 = vrot.slane %v2297, %v2443
      %v2445 = vlaneseq
      %v2446 = vshrl.u32 %v2445, 7
      %v2447 = vsub.s32 3, %v2446
      %v2448 = vrot.slane %v2298, %v2447
      %v2449 = vlaneseq
      %v2450 = vshrl.u32 %v2449, 7
      %v2451 = vsub.s32 3, %v2450
      %v2452 = vrot.slane %v2299, %v2451
      %v2453 = vlaneseq
      %v2454 = vshrl.u32 %v2453, 7
      %v2455 = vsub.s32 3, %v2454
      %v2456 = vrot.slane %v2300, %v2455
      %v2457 = vlaneseq
      %v2458 = vshrl.u32 %v2457, 7
      %v2459 = vsub.s32 3, %v2458
      %v2460 = vrot.slane %v2301, %v2459
      %v2461 = vlaneseq
      %v2462 = vshrl.u32 %v2461, 7
      %v2463 = vsub.s32 3, %v2462
      %v2464 = vrot.slane %v2302, %v2463
      %v2465 = vlaneseq
      %v2466 = vshrl.u32 %v2465, 7
      %v2467 = vsub.s32 3, %v2466
      %v2468 = vrot.slane %v2303, %v2467
      %v2469 = vlaneseq
      %v2470 = vshrl.u32 %v2469, 7
      %v2471 = vsub.s32 3, %v2470
      %v2472 = vrot.slane %v2304, %v2471
      %v2473 = vmul.f32 %v2444, %v2300
      %v2474 = vmul.f32 %v2448, %v2300
      %v2475 = vmul.f32 %v2452, %v2300
      %v2476 = vmul.f32 %v2456, %v2300
      %v2477 = vmul.f32 %v2460, %v2300
      %v2478 = vmul.f32 %v2464, %v2300
      %v2479 = vmul.f32 %v2468, %v2300
      %v2480 = vmul.f32 %v2472, %v2300
      %v2481 = vadd.f32 %v2433, %v2473
      %v2482 = vadd.f32 %v2434, %v2474
      %v2483 = vadd.f32 %v2435, %v2475
      %v2484 = vadd.f32 %v2436, %v2476
      %v2485 = vadd.f32 %v2437, %v2477
      %v2486 = vadd.f32 %v2438, %v2478
      %v2487 = vadd.f32 %v2439, %v2479
      %v2488 = vadd.f32 %v2440, %v2480
      %v2489 = vlaneseq
      %v2490 = vshrl.u32 %v2489, 7
      %v2491 = vsub.s32 4, %v2490
      %v2492 = vrot.slane %v2297, %v2491
      %v2493 = vlaneseq
      %v2494 = vshrl.u32 %v2493, 7
      %v2495 = vsub.s32 4, %v2494
      %v2496 = vrot.slane %v2298, %v2495
      %v2497 = vlaneseq
      %v2498 = vshrl.u32 %v2497, 7
      %v2499 = vsub.s32 4, %v2498
      %v2500 = vrot.slane %v2299, %v2499
      %v2501 = vlaneseq
      %v2502 = vshrl.u32 %v2501, 7
      %v2503 = vsub.s32 4, %v2502
      %v2504 = vrot.slane %v2300, %v2503
      %v2505 = vlaneseq
      %v2506 = vshrl.u32 %v2505, 7
      %v2507 = vsub.s32 4, %v2506
      %v2508 = vrot.slane %v2301, %v2507
      %v2509 = vlaneseq
      %v2510 = vshrl.u32 %v2509, 7
      %v2511 = vsub.s32 4, %v2510
      %v2512 = vrot.slane %v2302, %v2511
      %v2513 = vlaneseq
      %v2514 = vshrl.u32 %v2513, 7
      %v2515 = vsub.s32 4, %v2514
      %v2516 = vrot.slane %v2303, %v2515
      %v2517 = vlaneseq
      %v2518 = vshrl.u32 %v2517, 7
      %v2519 = vsub.s32 4, %v2518
      %v2520 = vrot.slane %v2304, %v2519
      %v2521 = vmul.f32 %v2492, %v2301
      %v2522 = vmul.f32 %v2496, %v2301
      %v2523 = vmul.f32 %v2500, %v2301
      %v2524 = vmul.f32 %v2504, %v2301
      %v2525 = vmul.f32 %v2508, %v2301
      %v2526 = vmul.f32 %v2512, %v2301
      %v2527 = vmul.f32 %v2516, %v2301
      %v2528 = vmul.f32 %v2520, %v2301
      %v2529 = vadd.f32 %v2481, %v2521
      %v2530 = vadd.f32 %v2482, %v2522
      %v2531 = vadd.f32 %v2483, %v2523
      %v2532 = vadd.f32 %v2484, %v2524
      %v2533 = vadd.f32 %v2485, %v2525
      %v2534 = vadd.f32 %v2486, %v2526
      %v2535 = vadd.f32 %v2487, %v2527
      %v2536 = vadd.f32 %v2488, %v2528
      %v2537 = vlaneseq
      %v2538 = vshrl.u32 %v2537, 7
      %v2539 = vsub.s32 5, %v2538
      %v2540 = vrot.slane %v2297, %v2539
      %v2541 = vlaneseq
      %v2542 = vshrl.u32 %v2541, 7
      %v2543 = vsub.s32 5, %v2542
      %v2544 = vrot.slane %v2298, %v2543
      %v2545 = vlaneseq
      %v2546 = vshrl.u32 %v2545, 7
      %v2547 = vsub.s32 5, %v2546
      %v2548 = vrot.slane %v2299, %v2547
      %v2549 = vlaneseq
      %v2550 = vshrl.u32 %v2549, 7
      %v2551 = vsub.s32 5, %v2550
      %v2552 = vrot.slane %v2300, %v2551
      %v2553 = vlaneseq
      %v2554 = vshrl.u32 %v2553, 7
      %v2555 = vsub.s32 5, %v2554
      %v2556 = vrot.slane %v2301, %v2555
      %v2557 = vlaneseq
      %v2558 = vshrl.u32 %v2557, 7
      %v2559 = vsub.s32 5, %v2558
      %v2560 = vrot.slane %v2302, %v2559
      %v2561 = vlaneseq
      %v2562 = vshrl.u32 %v2561, 7
      %v2563 = vsub.s32 5, %v2562
      %v2564 = vrot.slane %v2303, %v2563
      %v2565 = vlaneseq
      %v2566 = vshrl.u32 %v2565, 7
      %v2567 = vsub.s32 5, %v2566
      %v2568 = vrot.slane %v2304, %v2567
      %v2569 = vmul.f32 %v2540, %v2302
      %v2570 = vmul.f32 %v2544, %v2302
      %v2571 = vmul.f32 %v2548, %v2302
      %v2572 = vmul.f32 %v2552, %v2302
      %v2573 = vmul.f32 %v2556, %v2302
      %v2574 = vmul.f32 %v2560, %v2302
      %v2575 = vmul.f32 %v2564, %v2302
      %v2576 = vmul.f32 %v2568, %v2302
      %v2577 = vadd.f32 %v2529, %v2569
      %v2578 = vadd.f32 %v2530, %v2570
      %v2579 = vadd.f32 %v2531, %v2571
      %v2580 = vadd.f32 %v2532, %v2572
      %v2581 = vadd.f32 %v2533, %v2573
      %v2582 = vadd.f32 %v2534, %v2574
      %v2583 = vadd.f32 %v2535, %v2575
      %v2584 = vadd.f32 %v2536, %v2576
      %v2585 = vlaneseq
      %v2586 = vshrl.u32 %v2585, 7
      %v2587 = vsub.s32 6, %v2586
      %v2588 = vrot.slane %v2297, %v2587
      %v2589 = vlaneseq
      %v2590 = vshrl.u32 %v2589, 7
      %v2591 = vsub.s32 6, %v2590
      %v2592 = vrot.slane %v2298, %v2591
      %v2593 = vlaneseq
      %v2594 = vshrl.u32 %v2593, 7
      %v2595 = vsub.s32 6, %v2594
      %v2596 = vrot.slane %v2299, %v2595
      %v2597 = vlaneseq
      %v2598 = vshrl.u32 %v2597, 7
      %v2599 = vsub.s32 6, %v2598
      %v2600 = vrot.slane %v2300, %v2599
      %v2601 = vlaneseq
      %v2602 = vshrl.u32 %v2601, 7
      %v2603 = vsub.s32 6, %v2602
      %v2604 = vrot.slane %v2301, %v2603
      %v2605 = vlaneseq
      %v2606 = vshrl.u32 %v2605, 7
      %v2607 = vsub.s32 6, %v2606
      %v2608 = vrot.slane %v2302, %v2607
      %v2609 = vlaneseq
      %v2610 = vshrl.u32 %v2609, 7
      %v2611 = vsub.s32 6, %v2610
      %v2612 = vrot.slane %v2303, %v2611
      %v2613 = vlaneseq
      %v2614 = vshrl.u32 %v2613, 7
      %v2615 = vsub.s32 6, %v2614
      %v2616 = vrot.slane %v2304, %v2615
      %v2617 = vmul.f32 %v2588, %v2303
      %v2618 = vmul.f32 %v2592, %v2303
      %v2619 = vmul.f32 %v2596, %v2303
      %v2620 = vmul.f32 %v2600, %v2303
      %v2621 = vmul.f32 %v2604, %v2303
      %v2622 = vmul.f32 %v2608, %v2303
      %v2623 = vmul.f32 %v2612, %v2303
      %v2624 = vmul.f32 %v2616, %v2303
      %v2625 = vadd.f32 %v2577, %v2617
      %v2626 = vadd.f32 %v2578, %v2618
      %v2627 = vadd.f32 %v2579, %v2619
      %v2628 = vadd.f32 %v2580, %v2620
      %v2629 = vadd.f32 %v2581, %v2621
      %v2630 = vadd.f32 %v2582, %v2622
      %v2631 = vadd.f32 %v2583, %v2623
      %v2632 = vadd.f32 %v2584, %v2624
      %v2633 = vlaneseq
      %v2634 = vshrl.u32 %v2633, 7
      %v2635 = vsub.s32 7, %v2634
      %v2636 = vrot.slane %v2297, %v2635
      %v2637 = vlaneseq
      %v2638 = vshrl.u32 %v2637, 7
      %v2639 = vsub.s32 7, %v2638
      %v2640 = vrot.slane %v2298, %v2639
      %v2641 = vlaneseq
      %v2642 = vshrl.u32 %v2641, 7
      %v2643 = vsub.s32 7, %v2642
      %v2644 = vrot.slane %v2299, %v2643
      %v2645 = vlaneseq
      %v2646 = vshrl.u32 %v2645, 7
      %v2647 = vsub.s32 7, %v2646
      %v2648 = vrot.slane %v2300, %v2647
      %v2649 = vlaneseq
      %v2650 = vshrl.u32 %v2649, 7
      %v2651 = vsub.s32 7, %v2650
      %v2652 = vrot.slane %v2301, %v2651
      %v2653 = vlaneseq
      %v2654 = vshrl.u32 %v2653, 7
      %v2655 = vsub.s32 7, %v2654
      %v2656 = vrot.slane %v2302, %v2655
      %v2657 = vlaneseq
      %v2658 = vshrl.u32 %v2657, 7
      %v2659 = vsub.s32 7, %v2658
      %v2660 = vrot.slane %v2303, %v2659
      %v2661 = vlaneseq
      %v2662 = vshrl.u32 %v2661, 7
      %v2663 = vsub.s32 7, %v2662
      %v2664 = vrot.slane %v2304, %v2663
      %v2665 = vmul.f32 %v2636, %v2304
      %v2666 = vmul.f32 %v2640, %v2304
      %v2667 = vmul.f32 %v2644, %v2304
      %v2668 = vmul.f32 %v2648, %v2304
      %v2669 = vmul.f32 %v2652, %v2304
      %v2670 = vmul.f32 %v2656, %v2304
      %v2671 = vmul.f32 %v2660, %v2304
      %v2672 = vmul.f32 %v2664, %v2304
      %v2673 = vadd.f32 %v2625, %v2665
      %v2674 = vadd.f32 %v2626, %v2666
      %v2675 = vadd.f32 %v2627, %v2667
      %v2676 = vadd.f32 %v2628, %v2668
      %v2677 = vadd.f32 %v2629, %v2669
      %v2678 = vadd.f32 %v2630, %v2670
      %v2679 = vadd.f32 %v2631, %v2671
      %v2680 = vadd.f32 %v2632, %v2672
      %v2681 = vsel %vm500, 1, 0
      %vm2682 = vcmp.eq.s32.totalorder %v2681, 1
      %v2683 = vsel %vm2682, %v2673, %v2297
      %v2684 = vsel %vm2682, %v2674, %v2298
      %v2685 = vsel %vm2682, %v2675, %v2299
      %v2686 = vsel %vm2682, %v2676, %v2300
      %v2687 = vsel %vm2682, %v2677, %v2301
      %v2688 = vsel %vm2682, %v2678, %v2302
      %v2689 = vsel %vm2682, %v2679, %v2303
      %v2690 = vsel %vm2682, %v2680, %v2304
      %v2691 = vlaneseq
      %v2692 = vshrl.u32 %v2691, 7
      %v2693 = vsub.s32 0, %v2692
      %v2694 = vrot.slane %v2683, %v2693
      %v2695 = vlaneseq
      %v2696 = vshrl.u32 %v2695, 7
      %v2697 = vsub.s32 0, %v2696
      %v2698 = vrot.slane %v2684, %v2697
      %v2699 = vlaneseq
      %v2700 = vshrl.u32 %v2699, 7
      %v2701 = vsub.s32 0, %v2700
      %v2702 = vrot.slane %v2685, %v2701
      %v2703 = vlaneseq
      %v2704 = vshrl.u32 %v2703, 7
      %v2705 = vsub.s32 0, %v2704
      %v2706 = vrot.slane %v2686, %v2705
      %v2707 = vlaneseq
      %v2708 = vshrl.u32 %v2707, 7
      %v2709 = vsub.s32 0, %v2708
      %v2710 = vrot.slane %v2687, %v2709
      %v2711 = vlaneseq
      %v2712 = vshrl.u32 %v2711, 7
      %v2713 = vsub.s32 0, %v2712
      %v2714 = vrot.slane %v2688, %v2713
      %v2715 = vlaneseq
      %v2716 = vshrl.u32 %v2715, 7
      %v2717 = vsub.s32 0, %v2716
      %v2718 = vrot.slane %v2689, %v2717
      %v2719 = vlaneseq
      %v2720 = vshrl.u32 %v2719, 7
      %v2721 = vsub.s32 0, %v2720
      %v2722 = vrot.slane %v2690, %v2721
      %v2723 = vmul.f32 %v2694, %v2683
      %v2724 = vmul.f32 %v2698, %v2683
      %v2725 = vmul.f32 %v2702, %v2683
      %v2726 = vmul.f32 %v2706, %v2683
      %v2727 = vmul.f32 %v2710, %v2683
      %v2728 = vmul.f32 %v2714, %v2683
      %v2729 = vmul.f32 %v2718, %v2683
      %v2730 = vmul.f32 %v2722, %v2683
      %v2731 = vlaneseq
      %v2732 = vshrl.u32 %v2731, 7
      %v2733 = vsub.s32 1, %v2732
      %v2734 = vrot.slane %v2683, %v2733
      %v2735 = vlaneseq
      %v2736 = vshrl.u32 %v2735, 7
      %v2737 = vsub.s32 1, %v2736
      %v2738 = vrot.slane %v2684, %v2737
      %v2739 = vlaneseq
      %v2740 = vshrl.u32 %v2739, 7
      %v2741 = vsub.s32 1, %v2740
      %v2742 = vrot.slane %v2685, %v2741
      %v2743 = vlaneseq
      %v2744 = vshrl.u32 %v2743, 7
      %v2745 = vsub.s32 1, %v2744
      %v2746 = vrot.slane %v2686, %v2745
      %v2747 = vlaneseq
      %v2748 = vshrl.u32 %v2747, 7
      %v2749 = vsub.s32 1, %v2748
      %v2750 = vrot.slane %v2687, %v2749
      %v2751 = vlaneseq
      %v2752 = vshrl.u32 %v2751, 7
      %v2753 = vsub.s32 1, %v2752
      %v2754 = vrot.slane %v2688, %v2753
      %v2755 = vlaneseq
      %v2756 = vshrl.u32 %v2755, 7
      %v2757 = vsub.s32 1, %v2756
      %v2758 = vrot.slane %v2689, %v2757
      %v2759 = vlaneseq
      %v2760 = vshrl.u32 %v2759, 7
      %v2761 = vsub.s32 1, %v2760
      %v2762 = vrot.slane %v2690, %v2761
      %v2763 = vmul.f32 %v2734, %v2684
      %v2764 = vmul.f32 %v2738, %v2684
      %v2765 = vmul.f32 %v2742, %v2684
      %v2766 = vmul.f32 %v2746, %v2684
      %v2767 = vmul.f32 %v2750, %v2684
      %v2768 = vmul.f32 %v2754, %v2684
      %v2769 = vmul.f32 %v2758, %v2684
      %v2770 = vmul.f32 %v2762, %v2684
      %v2771 = vadd.f32 %v2723, %v2763
      %v2772 = vadd.f32 %v2724, %v2764
      %v2773 = vadd.f32 %v2725, %v2765
      %v2774 = vadd.f32 %v2726, %v2766
      %v2775 = vadd.f32 %v2727, %v2767
      %v2776 = vadd.f32 %v2728, %v2768
      %v2777 = vadd.f32 %v2729, %v2769
      %v2778 = vadd.f32 %v2730, %v2770
      %v2779 = vlaneseq
      %v2780 = vshrl.u32 %v2779, 7
      %v2781 = vsub.s32 2, %v2780
      %v2782 = vrot.slane %v2683, %v2781
      %v2783 = vlaneseq
      %v2784 = vshrl.u32 %v2783, 7
      %v2785 = vsub.s32 2, %v2784
      %v2786 = vrot.slane %v2684, %v2785
      %v2787 = vlaneseq
      %v2788 = vshrl.u32 %v2787, 7
      %v2789 = vsub.s32 2, %v2788
      %v2790 = vrot.slane %v2685, %v2789
      %v2791 = vlaneseq
      %v2792 = vshrl.u32 %v2791, 7
      %v2793 = vsub.s32 2, %v2792
      %v2794 = vrot.slane %v2686, %v2793
      %v2795 = vlaneseq
      %v2796 = vshrl.u32 %v2795, 7
      %v2797 = vsub.s32 2, %v2796
      %v2798 = vrot.slane %v2687, %v2797
      %v2799 = vlaneseq
      %v2800 = vshrl.u32 %v2799, 7
      %v2801 = vsub.s32 2, %v2800
      %v2802 = vrot.slane %v2688, %v2801
      %v2803 = vlaneseq
      %v2804 = vshrl.u32 %v2803, 7
      %v2805 = vsub.s32 2, %v2804
      %v2806 = vrot.slane %v2689, %v2805
      %v2807 = vlaneseq
      %v2808 = vshrl.u32 %v2807, 7
      %v2809 = vsub.s32 2, %v2808
      %v2810 = vrot.slane %v2690, %v2809
      %v2811 = vmul.f32 %v2782, %v2685
      %v2812 = vmul.f32 %v2786, %v2685
      %v2813 = vmul.f32 %v2790, %v2685
      %v2814 = vmul.f32 %v2794, %v2685
      %v2815 = vmul.f32 %v2798, %v2685
      %v2816 = vmul.f32 %v2802, %v2685
      %v2817 = vmul.f32 %v2806, %v2685
      %v2818 = vmul.f32 %v2810, %v2685
      %v2819 = vadd.f32 %v2771, %v2811
      %v2820 = vadd.f32 %v2772, %v2812
      %v2821 = vadd.f32 %v2773, %v2813
      %v2822 = vadd.f32 %v2774, %v2814
      %v2823 = vadd.f32 %v2775, %v2815
      %v2824 = vadd.f32 %v2776, %v2816
      %v2825 = vadd.f32 %v2777, %v2817
      %v2826 = vadd.f32 %v2778, %v2818
      %v2827 = vlaneseq
      %v2828 = vshrl.u32 %v2827, 7
      %v2829 = vsub.s32 3, %v2828
      %v2830 = vrot.slane %v2683, %v2829
      %v2831 = vlaneseq
      %v2832 = vshrl.u32 %v2831, 7
      %v2833 = vsub.s32 3, %v2832
      %v2834 = vrot.slane %v2684, %v2833
      %v2835 = vlaneseq
      %v2836 = vshrl.u32 %v2835, 7
      %v2837 = vsub.s32 3, %v2836
      %v2838 = vrot.slane %v2685, %v2837
      %v2839 = vlaneseq
      %v2840 = vshrl.u32 %v2839, 7
      %v2841 = vsub.s32 3, %v2840
      %v2842 = vrot.slane %v2686, %v2841
      %v2843 = vlaneseq
      %v2844 = vshrl.u32 %v2843, 7
      %v2845 = vsub.s32 3, %v2844
      %v2846 = vrot.slane %v2687, %v2845
      %v2847 = vlaneseq
      %v2848 = vshrl.u32 %v2847, 7
      %v2849 = vsub.s32 3, %v2848
      %v2850 = vrot.slane %v2688, %v2849
      %v2851 = vlaneseq
      %v2852 = vshrl.u32 %v2851, 7
      %v2853 = vsub.s32 3, %v2852
      %v2854 = vrot.slane %v2689, %v2853
      %v2855 = vlaneseq
      %v2856 = vshrl.u32 %v2855, 7
      %v2857 = vsub.s32 3, %v2856
      %v2858 = vrot.slane %v2690, %v2857
      %v2859 = vmul.f32 %v2830, %v2686
      %v2860 = vmul.f32 %v2834, %v2686
      %v2861 = vmul.f32 %v2838, %v2686
      %v2862 = vmul.f32 %v2842, %v2686
      %v2863 = vmul.f32 %v2846, %v2686
      %v2864 = vmul.f32 %v2850, %v2686
      %v2865 = vmul.f32 %v2854, %v2686
      %v2866 = vmul.f32 %v2858, %v2686
      %v2867 = vadd.f32 %v2819, %v2859
      %v2868 = vadd.f32 %v2820, %v2860
      %v2869 = vadd.f32 %v2821, %v2861
      %v2870 = vadd.f32 %v2822, %v2862
      %v2871 = vadd.f32 %v2823, %v2863
      %v2872 = vadd.f32 %v2824, %v2864
      %v2873 = vadd.f32 %v2825, %v2865
      %v2874 = vadd.f32 %v2826, %v2866
      %v2875 = vlaneseq
      %v2876 = vshrl.u32 %v2875, 7
      %v2877 = vsub.s32 4, %v2876
      %v2878 = vrot.slane %v2683, %v2877
      %v2879 = vlaneseq
      %v2880 = vshrl.u32 %v2879, 7
      %v2881 = vsub.s32 4, %v2880
      %v2882 = vrot.slane %v2684, %v2881
      %v2883 = vlaneseq
      %v2884 = vshrl.u32 %v2883, 7
      %v2885 = vsub.s32 4, %v2884
      %v2886 = vrot.slane %v2685, %v2885
      %v2887 = vlaneseq
      %v2888 = vshrl.u32 %v2887, 7
      %v2889 = vsub.s32 4, %v2888
      %v2890 = vrot.slane %v2686, %v2889
      %v2891 = vlaneseq
      %v2892 = vshrl.u32 %v2891, 7
      %v2893 = vsub.s32 4, %v2892
      %v2894 = vrot.slane %v2687, %v2893
      %v2895 = vlaneseq
      %v2896 = vshrl.u32 %v2895, 7
      %v2897 = vsub.s32 4, %v2896
      %v2898 = vrot.slane %v2688, %v2897
      %v2899 = vlaneseq
      %v2900 = vshrl.u32 %v2899, 7
      %v2901 = vsub.s32 4, %v2900
      %v2902 = vrot.slane %v2689, %v2901
      %v2903 = vlaneseq
      %v2904 = vshrl.u32 %v2903, 7
      %v2905 = vsub.s32 4, %v2904
      %v2906 = vrot.slane %v2690, %v2905
      %v2907 = vmul.f32 %v2878, %v2687
      %v2908 = vmul.f32 %v2882, %v2687
      %v2909 = vmul.f32 %v2886, %v2687
      %v2910 = vmul.f32 %v2890, %v2687
      %v2911 = vmul.f32 %v2894, %v2687
      %v2912 = vmul.f32 %v2898, %v2687
      %v2913 = vmul.f32 %v2902, %v2687
      %v2914 = vmul.f32 %v2906, %v2687
      %v2915 = vadd.f32 %v2867, %v2907
      %v2916 = vadd.f32 %v2868, %v2908
      %v2917 = vadd.f32 %v2869, %v2909
      %v2918 = vadd.f32 %v2870, %v2910
      %v2919 = vadd.f32 %v2871, %v2911
      %v2920 = vadd.f32 %v2872, %v2912
      %v2921 = vadd.f32 %v2873, %v2913
      %v2922 = vadd.f32 %v2874, %v2914
      %v2923 = vlaneseq
      %v2924 = vshrl.u32 %v2923, 7
      %v2925 = vsub.s32 5, %v2924
      %v2926 = vrot.slane %v2683, %v2925
      %v2927 = vlaneseq
      %v2928 = vshrl.u32 %v2927, 7
      %v2929 = vsub.s32 5, %v2928
      %v2930 = vrot.slane %v2684, %v2929
      %v2931 = vlaneseq
      %v2932 = vshrl.u32 %v2931, 7
      %v2933 = vsub.s32 5, %v2932
      %v2934 = vrot.slane %v2685, %v2933
      %v2935 = vlaneseq
      %v2936 = vshrl.u32 %v2935, 7
      %v2937 = vsub.s32 5, %v2936
      %v2938 = vrot.slane %v2686, %v2937
      %v2939 = vlaneseq
      %v2940 = vshrl.u32 %v2939, 7
      %v2941 = vsub.s32 5, %v2940
      %v2942 = vrot.slane %v2687, %v2941
      %v2943 = vlaneseq
      %v2944 = vshrl.u32 %v2943, 7
      %v2945 = vsub.s32 5, %v2944
      %v2946 = vrot.slane %v2688, %v2945
      %v2947 = vlaneseq
      %v2948 = vshrl.u32 %v2947, 7
      %v2949 = vsub.s32 5, %v2948
      %v2950 = vrot.slane %v2689, %v2949
      %v2951 = vlaneseq
      %v2952 = vshrl.u32 %v2951, 7
      %v2953 = vsub.s32 5, %v2952
      %v2954 = vrot.slane %v2690, %v2953
      %v2955 = vmul.f32 %v2926, %v2688
      %v2956 = vmul.f32 %v2930, %v2688
      %v2957 = vmul.f32 %v2934, %v2688
      %v2958 = vmul.f32 %v2938, %v2688
      %v2959 = vmul.f32 %v2942, %v2688
      %v2960 = vmul.f32 %v2946, %v2688
      %v2961 = vmul.f32 %v2950, %v2688
      %v2962 = vmul.f32 %v2954, %v2688
      %v2963 = vadd.f32 %v2915, %v2955
      %v2964 = vadd.f32 %v2916, %v2956
      %v2965 = vadd.f32 %v2917, %v2957
      %v2966 = vadd.f32 %v2918, %v2958
      %v2967 = vadd.f32 %v2919, %v2959
      %v2968 = vadd.f32 %v2920, %v2960
      %v2969 = vadd.f32 %v2921, %v2961
      %v2970 = vadd.f32 %v2922, %v2962
      %v2971 = vlaneseq
      %v2972 = vshrl.u32 %v2971, 7
      %v2973 = vsub.s32 6, %v2972
      %v2974 = vrot.slane %v2683, %v2973
      %v2975 = vlaneseq
      %v2976 = vshrl.u32 %v2975, 7
      %v2977 = vsub.s32 6, %v2976
      %v2978 = vrot.slane %v2684, %v2977
      %v2979 = vlaneseq
      %v2980 = vshrl.u32 %v2979, 7
      %v2981 = vsub.s32 6, %v2980
      %v2982 = vrot.slane %v2685, %v2981
      %v2983 = vlaneseq
      %v2984 = vshrl.u32 %v2983, 7
      %v2985 = vsub.s32 6, %v2984
      %v2986 = vrot.slane %v2686, %v2985
      %v2987 = vlaneseq
      %v2988 = vshrl.u32 %v2987, 7
      %v2989 = vsub.s32 6, %v2988
      %v2990 = vrot.slane %v2687, %v2989
      %v2991 = vlaneseq
      %v2992 = vshrl.u32 %v2991, 7
      %v2993 = vsub.s32 6, %v2992
      %v2994 = vrot.slane %v2688, %v2993
      %v2995 = vlaneseq
      %v2996 = vshrl.u32 %v2995, 7
      %v2997 = vsub.s32 6, %v2996
      %v2998 = vrot.slane %v2689, %v2997
      %v2999 = vlaneseq
      %v3000 = vshrl.u32 %v2999, 7
      %v3001 = vsub.s32 6, %v3000
      %v3002 = vrot.slane %v2690, %v3001
      %v3003 = vmul.f32 %v2974, %v2689
      %v3004 = vmul.f32 %v2978, %v2689
      %v3005 = vmul.f32 %v2982, %v2689
      %v3006 = vmul.f32 %v2986, %v2689
      %v3007 = vmul.f32 %v2990, %v2689
      %v3008 = vmul.f32 %v2994, %v2689
      %v3009 = vmul.f32 %v2998, %v2689
      %v3010 = vmul.f32 %v3002, %v2689
      %v3011 = vadd.f32 %v2963, %v3003
      %v3012 = vadd.f32 %v2964, %v3004
      %v3013 = vadd.f32 %v2965, %v3005
      %v3014 = vadd.f32 %v2966, %v3006
      %v3015 = vadd.f32 %v2967, %v3007
      %v3016 = vadd.f32 %v2968, %v3008
      %v3017 = vadd.f32 %v2969, %v3009
      %v3018 = vadd.f32 %v2970, %v3010
      %v3019 = vlaneseq
      %v3020 = vshrl.u32 %v3019, 7
      %v3021 = vsub.s32 7, %v3020
      %v3022 = vrot.slane %v2683, %v3021
      %v3023 = vlaneseq
      %v3024 = vshrl.u32 %v3023, 7
      %v3025 = vsub.s32 7, %v3024
      %v3026 = vrot.slane %v2684, %v3025
      %v3027 = vlaneseq
      %v3028 = vshrl.u32 %v3027, 7
      %v3029 = vsub.s32 7, %v3028
      %v3030 = vrot.slane %v2685, %v3029
      %v3031 = vlaneseq
      %v3032 = vshrl.u32 %v3031, 7
      %v3033 = vsub.s32 7, %v3032
      %v3034 = vrot.slane %v2686, %v3033
      %v3035 = vlaneseq
      %v3036 = vshrl.u32 %v3035, 7
      %v3037 = vsub.s32 7, %v3036
      %v3038 = vrot.slane %v2687, %v3037
      %v3039 = vlaneseq
      %v3040 = vshrl.u32 %v3039, 7
      %v3041 = vsub.s32 7, %v3040
      %v3042 = vrot.slane %v2688, %v3041
      %v3043 = vlaneseq
      %v3044 = vshrl.u32 %v3043, 7
      %v3045 = vsub.s32 7, %v3044
      %v3046 = vrot.slane %v2689, %v3045
      %v3047 = vlaneseq
      %v3048 = vshrl.u32 %v3047, 7
      %v3049 = vsub.s32 7, %v3048
      %v3050 = vrot.slane %v2690, %v3049
      %v3051 = vmul.f32 %v3022, %v2690
      %v3052 = vmul.f32 %v3026, %v2690
      %v3053 = vmul.f32 %v3030, %v2690
      %v3054 = vmul.f32 %v3034, %v2690
      %v3055 = vmul.f32 %v3038, %v2690
      %v3056 = vmul.f32 %v3042, %v2690
      %v3057 = vmul.f32 %v3046, %v2690
      %v3058 = vmul.f32 %v3050, %v2690
      %v3059 = vadd.f32 %v3011, %v3051
      %v3060 = vadd.f32 %v3012, %v3052
      %v3061 = vadd.f32 %v3013, %v3053
      %v3062 = vadd.f32 %v3014, %v3054
      %v3063 = vadd.f32 %v3015, %v3055
      %v3064 = vadd.f32 %v3016, %v3056
      %v3065 = vadd.f32 %v3017, %v3057
      %v3066 = vadd.f32 %v3018, %v3058
      %v3067 = vsel %vm505, 1, 0
      %vm3068 = vcmp.eq.s32.totalorder %v3067, 1
      %v3069 = vsel %vm3068, %v3059, %v2683
      %v3070 = vsel %vm3068, %v3060, %v2684
      %v3071 = vsel %vm3068, %v3061, %v2685
      %v3072 = vsel %vm3068, %v3062, %v2686
      %v3073 = vsel %vm3068, %v3063, %v2687
      %v3074 = vsel %vm3068, %v3064, %v2688
      %v3075 = vsel %vm3068, %v3065, %v2689
      %v3076 = vsel %vm3068, %v3066, %v2690
      %v3077 = vlaneseq
      %v3078 = vshrl.u32 %v3077, 7
      %v3079 = vsub.s32 0, %v3078
      %v3080 = vrot.slane %v3069, %v3079
      %v3081 = vlaneseq
      %v3082 = vshrl.u32 %v3081, 7
      %v3083 = vsub.s32 0, %v3082
      %v3084 = vrot.slane %v3070, %v3083
      %v3085 = vlaneseq
      %v3086 = vshrl.u32 %v3085, 7
      %v3087 = vsub.s32 0, %v3086
      %v3088 = vrot.slane %v3071, %v3087
      %v3089 = vlaneseq
      %v3090 = vshrl.u32 %v3089, 7
      %v3091 = vsub.s32 0, %v3090
      %v3092 = vrot.slane %v3072, %v3091
      %v3093 = vlaneseq
      %v3094 = vshrl.u32 %v3093, 7
      %v3095 = vsub.s32 0, %v3094
      %v3096 = vrot.slane %v3073, %v3095
      %v3097 = vlaneseq
      %v3098 = vshrl.u32 %v3097, 7
      %v3099 = vsub.s32 0, %v3098
      %v3100 = vrot.slane %v3074, %v3099
      %v3101 = vlaneseq
      %v3102 = vshrl.u32 %v3101, 7
      %v3103 = vsub.s32 0, %v3102
      %v3104 = vrot.slane %v3075, %v3103
      %v3105 = vlaneseq
      %v3106 = vshrl.u32 %v3105, 7
      %v3107 = vsub.s32 0, %v3106
      %v3108 = vrot.slane %v3076, %v3107
      %v3109 = vmul.f32 %v3080, %v3069
      %v3110 = vmul.f32 %v3084, %v3069
      %v3111 = vmul.f32 %v3088, %v3069
      %v3112 = vmul.f32 %v3092, %v3069
      %v3113 = vmul.f32 %v3096, %v3069
      %v3114 = vmul.f32 %v3100, %v3069
      %v3115 = vmul.f32 %v3104, %v3069
      %v3116 = vmul.f32 %v3108, %v3069
      %v3117 = vlaneseq
      %v3118 = vshrl.u32 %v3117, 7
      %v3119 = vsub.s32 1, %v3118
      %v3120 = vrot.slane %v3069, %v3119
      %v3121 = vlaneseq
      %v3122 = vshrl.u32 %v3121, 7
      %v3123 = vsub.s32 1, %v3122
      %v3124 = vrot.slane %v3070, %v3123
      %v3125 = vlaneseq
      %v3126 = vshrl.u32 %v3125, 7
      %v3127 = vsub.s32 1, %v3126
      %v3128 = vrot.slane %v3071, %v3127
      %v3129 = vlaneseq
      %v3130 = vshrl.u32 %v3129, 7
      %v3131 = vsub.s32 1, %v3130
      %v3132 = vrot.slane %v3072, %v3131
      %v3133 = vlaneseq
      %v3134 = vshrl.u32 %v3133, 7
      %v3135 = vsub.s32 1, %v3134
      %v3136 = vrot.slane %v3073, %v3135
      %v3137 = vlaneseq
      %v3138 = vshrl.u32 %v3137, 7
      %v3139 = vsub.s32 1, %v3138
      %v3140 = vrot.slane %v3074, %v3139
      %v3141 = vlaneseq
      %v3142 = vshrl.u32 %v3141, 7
      %v3143 = vsub.s32 1, %v3142
      %v3144 = vrot.slane %v3075, %v3143
      %v3145 = vlaneseq
      %v3146 = vshrl.u32 %v3145, 7
      %v3147 = vsub.s32 1, %v3146
      %v3148 = vrot.slane %v3076, %v3147
      %v3149 = vmul.f32 %v3120, %v3070
      %v3150 = vmul.f32 %v3124, %v3070
      %v3151 = vmul.f32 %v3128, %v3070
      %v3152 = vmul.f32 %v3132, %v3070
      %v3153 = vmul.f32 %v3136, %v3070
      %v3154 = vmul.f32 %v3140, %v3070
      %v3155 = vmul.f32 %v3144, %v3070
      %v3156 = vmul.f32 %v3148, %v3070
      %v3157 = vadd.f32 %v3109, %v3149
      %v3158 = vadd.f32 %v3110, %v3150
      %v3159 = vadd.f32 %v3111, %v3151
      %v3160 = vadd.f32 %v3112, %v3152
      %v3161 = vadd.f32 %v3113, %v3153
      %v3162 = vadd.f32 %v3114, %v3154
      %v3163 = vadd.f32 %v3115, %v3155
      %v3164 = vadd.f32 %v3116, %v3156
      %v3165 = vlaneseq
      %v3166 = vshrl.u32 %v3165, 7
      %v3167 = vsub.s32 2, %v3166
      %v3168 = vrot.slane %v3069, %v3167
      %v3169 = vlaneseq
      %v3170 = vshrl.u32 %v3169, 7
      %v3171 = vsub.s32 2, %v3170
      %v3172 = vrot.slane %v3070, %v3171
      %v3173 = vlaneseq
      %v3174 = vshrl.u32 %v3173, 7
      %v3175 = vsub.s32 2, %v3174
      %v3176 = vrot.slane %v3071, %v3175
      %v3177 = vlaneseq
      %v3178 = vshrl.u32 %v3177, 7
      %v3179 = vsub.s32 2, %v3178
      %v3180 = vrot.slane %v3072, %v3179
      %v3181 = vlaneseq
      %v3182 = vshrl.u32 %v3181, 7
      %v3183 = vsub.s32 2, %v3182
      %v3184 = vrot.slane %v3073, %v3183
      %v3185 = vlaneseq
      %v3186 = vshrl.u32 %v3185, 7
      %v3187 = vsub.s32 2, %v3186
      %v3188 = vrot.slane %v3074, %v3187
      %v3189 = vlaneseq
      %v3190 = vshrl.u32 %v3189, 7
      %v3191 = vsub.s32 2, %v3190
      %v3192 = vrot.slane %v3075, %v3191
      %v3193 = vlaneseq
      %v3194 = vshrl.u32 %v3193, 7
      %v3195 = vsub.s32 2, %v3194
      %v3196 = vrot.slane %v3076, %v3195
      %v3197 = vmul.f32 %v3168, %v3071
      %v3198 = vmul.f32 %v3172, %v3071
      %v3199 = vmul.f32 %v3176, %v3071
      %v3200 = vmul.f32 %v3180, %v3071
      %v3201 = vmul.f32 %v3184, %v3071
      %v3202 = vmul.f32 %v3188, %v3071
      %v3203 = vmul.f32 %v3192, %v3071
      %v3204 = vmul.f32 %v3196, %v3071
      %v3205 = vadd.f32 %v3157, %v3197
      %v3206 = vadd.f32 %v3158, %v3198
      %v3207 = vadd.f32 %v3159, %v3199
      %v3208 = vadd.f32 %v3160, %v3200
      %v3209 = vadd.f32 %v3161, %v3201
      %v3210 = vadd.f32 %v3162, %v3202
      %v3211 = vadd.f32 %v3163, %v3203
      %v3212 = vadd.f32 %v3164, %v3204
      %v3213 = vlaneseq
      %v3214 = vshrl.u32 %v3213, 7
      %v3215 = vsub.s32 3, %v3214
      %v3216 = vrot.slane %v3069, %v3215
      %v3217 = vlaneseq
      %v3218 = vshrl.u32 %v3217, 7
      %v3219 = vsub.s32 3, %v3218
      %v3220 = vrot.slane %v3070, %v3219
      %v3221 = vlaneseq
      %v3222 = vshrl.u32 %v3221, 7
      %v3223 = vsub.s32 3, %v3222
      %v3224 = vrot.slane %v3071, %v3223
      %v3225 = vlaneseq
      %v3226 = vshrl.u32 %v3225, 7
      %v3227 = vsub.s32 3, %v3226
      %v3228 = vrot.slane %v3072, %v3227
      %v3229 = vlaneseq
      %v3230 = vshrl.u32 %v3229, 7
      %v3231 = vsub.s32 3, %v3230
      %v3232 = vrot.slane %v3073, %v3231
      %v3233 = vlaneseq
      %v3234 = vshrl.u32 %v3233, 7
      %v3235 = vsub.s32 3, %v3234
      %v3236 = vrot.slane %v3074, %v3235
      %v3237 = vlaneseq
      %v3238 = vshrl.u32 %v3237, 7
      %v3239 = vsub.s32 3, %v3238
      %v3240 = vrot.slane %v3075, %v3239
      %v3241 = vlaneseq
      %v3242 = vshrl.u32 %v3241, 7
      %v3243 = vsub.s32 3, %v3242
      %v3244 = vrot.slane %v3076, %v3243
      %v3245 = vmul.f32 %v3216, %v3072
      %v3246 = vmul.f32 %v3220, %v3072
      %v3247 = vmul.f32 %v3224, %v3072
      %v3248 = vmul.f32 %v3228, %v3072
      %v3249 = vmul.f32 %v3232, %v3072
      %v3250 = vmul.f32 %v3236, %v3072
      %v3251 = vmul.f32 %v3240, %v3072
      %v3252 = vmul.f32 %v3244, %v3072
      %v3253 = vadd.f32 %v3205, %v3245
      %v3254 = vadd.f32 %v3206, %v3246
      %v3255 = vadd.f32 %v3207, %v3247
      %v3256 = vadd.f32 %v3208, %v3248
      %v3257 = vadd.f32 %v3209, %v3249
      %v3258 = vadd.f32 %v3210, %v3250
      %v3259 = vadd.f32 %v3211, %v3251
      %v3260 = vadd.f32 %v3212, %v3252
      %v3261 = vlaneseq
      %v3262 = vshrl.u32 %v3261, 7
      %v3263 = vsub.s32 4, %v3262
      %v3264 = vrot.slane %v3069, %v3263
      %v3265 = vlaneseq
      %v3266 = vshrl.u32 %v3265, 7
      %v3267 = vsub.s32 4, %v3266
      %v3268 = vrot.slane %v3070, %v3267
      %v3269 = vlaneseq
      %v3270 = vshrl.u32 %v3269, 7
      %v3271 = vsub.s32 4, %v3270
      %v3272 = vrot.slane %v3071, %v3271
      %v3273 = vlaneseq
      %v3274 = vshrl.u32 %v3273, 7
      %v3275 = vsub.s32 4, %v3274
      %v3276 = vrot.slane %v3072, %v3275
      %v3277 = vlaneseq
      %v3278 = vshrl.u32 %v3277, 7
      %v3279 = vsub.s32 4, %v3278
      %v3280 = vrot.slane %v3073, %v3279
      %v3281 = vlaneseq
      %v3282 = vshrl.u32 %v3281, 7
      %v3283 = vsub.s32 4, %v3282
      %v3284 = vrot.slane %v3074, %v3283
      %v3285 = vlaneseq
      %v3286 = vshrl.u32 %v3285, 7
      %v3287 = vsub.s32 4, %v3286
      %v3288 = vrot.slane %v3075, %v3287
      %v3289 = vlaneseq
      %v3290 = vshrl.u32 %v3289, 7
      %v3291 = vsub.s32 4, %v3290
      %v3292 = vrot.slane %v3076, %v3291
      %v3293 = vmul.f32 %v3264, %v3073
      %v3294 = vmul.f32 %v3268, %v3073
      %v3295 = vmul.f32 %v3272, %v3073
      %v3296 = vmul.f32 %v3276, %v3073
      %v3297 = vmul.f32 %v3280, %v3073
      %v3298 = vmul.f32 %v3284, %v3073
      %v3299 = vmul.f32 %v3288, %v3073
      %v3300 = vmul.f32 %v3292, %v3073
      %v3301 = vadd.f32 %v3253, %v3293
      %v3302 = vadd.f32 %v3254, %v3294
      %v3303 = vadd.f32 %v3255, %v3295
      %v3304 = vadd.f32 %v3256, %v3296
      %v3305 = vadd.f32 %v3257, %v3297
      %v3306 = vadd.f32 %v3258, %v3298
      %v3307 = vadd.f32 %v3259, %v3299
      %v3308 = vadd.f32 %v3260, %v3300
      %v3309 = vlaneseq
      %v3310 = vshrl.u32 %v3309, 7
      %v3311 = vsub.s32 5, %v3310
      %v3312 = vrot.slane %v3069, %v3311
      %v3313 = vlaneseq
      %v3314 = vshrl.u32 %v3313, 7
      %v3315 = vsub.s32 5, %v3314
      %v3316 = vrot.slane %v3070, %v3315
      %v3317 = vlaneseq
      %v3318 = vshrl.u32 %v3317, 7
      %v3319 = vsub.s32 5, %v3318
      %v3320 = vrot.slane %v3071, %v3319
      %v3321 = vlaneseq
      %v3322 = vshrl.u32 %v3321, 7
      %v3323 = vsub.s32 5, %v3322
      %v3324 = vrot.slane %v3072, %v3323
      %v3325 = vlaneseq
      %v3326 = vshrl.u32 %v3325, 7
      %v3327 = vsub.s32 5, %v3326
      %v3328 = vrot.slane %v3073, %v3327
      %v3329 = vlaneseq
      %v3330 = vshrl.u32 %v3329, 7
      %v3331 = vsub.s32 5, %v3330
      %v3332 = vrot.slane %v3074, %v3331
      %v3333 = vlaneseq
      %v3334 = vshrl.u32 %v3333, 7
      %v3335 = vsub.s32 5, %v3334
      %v3336 = vrot.slane %v3075, %v3335
      %v3337 = vlaneseq
      %v3338 = vshrl.u32 %v3337, 7
      %v3339 = vsub.s32 5, %v3338
      %v3340 = vrot.slane %v3076, %v3339
      %v3341 = vmul.f32 %v3312, %v3074
      %v3342 = vmul.f32 %v3316, %v3074
      %v3343 = vmul.f32 %v3320, %v3074
      %v3344 = vmul.f32 %v3324, %v3074
      %v3345 = vmul.f32 %v3328, %v3074
      %v3346 = vmul.f32 %v3332, %v3074
      %v3347 = vmul.f32 %v3336, %v3074
      %v3348 = vmul.f32 %v3340, %v3074
      %v3349 = vadd.f32 %v3301, %v3341
      %v3350 = vadd.f32 %v3302, %v3342
      %v3351 = vadd.f32 %v3303, %v3343
      %v3352 = vadd.f32 %v3304, %v3344
      %v3353 = vadd.f32 %v3305, %v3345
      %v3354 = vadd.f32 %v3306, %v3346
      %v3355 = vadd.f32 %v3307, %v3347
      %v3356 = vadd.f32 %v3308, %v3348
      %v3357 = vlaneseq
      %v3358 = vshrl.u32 %v3357, 7
      %v3359 = vsub.s32 6, %v3358
      %v3360 = vrot.slane %v3069, %v3359
      %v3361 = vlaneseq
      %v3362 = vshrl.u32 %v3361, 7
      %v3363 = vsub.s32 6, %v3362
      %v3364 = vrot.slane %v3070, %v3363
      %v3365 = vlaneseq
      %v3366 = vshrl.u32 %v3365, 7
      %v3367 = vsub.s32 6, %v3366
      %v3368 = vrot.slane %v3071, %v3367
      %v3369 = vlaneseq
      %v3370 = vshrl.u32 %v3369, 7
      %v3371 = vsub.s32 6, %v3370
      %v3372 = vrot.slane %v3072, %v3371
      %v3373 = vlaneseq
      %v3374 = vshrl.u32 %v3373, 7
      %v3375 = vsub.s32 6, %v3374
      %v3376 = vrot.slane %v3073, %v3375
      %v3377 = vlaneseq
      %v3378 = vshrl.u32 %v3377, 7
      %v3379 = vsub.s32 6, %v3378
      %v3380 = vrot.slane %v3074, %v3379
      %v3381 = vlaneseq
      %v3382 = vshrl.u32 %v3381, 7
      %v3383 = vsub.s32 6, %v3382
      %v3384 = vrot.slane %v3075, %v3383
      %v3385 = vlaneseq
      %v3386 = vshrl.u32 %v3385, 7
      %v3387 = vsub.s32 6, %v3386
      %v3388 = vrot.slane %v3076, %v3387
      %v3389 = vmul.f32 %v3360, %v3075
      %v3390 = vmul.f32 %v3364, %v3075
      %v3391 = vmul.f32 %v3368, %v3075
      %v3392 = vmul.f32 %v3372, %v3075
      %v3393 = vmul.f32 %v3376, %v3075
      %v3394 = vmul.f32 %v3380, %v3075
      %v3395 = vmul.f32 %v3384, %v3075
      %v3396 = vmul.f32 %v3388, %v3075
      %v3397 = vadd.f32 %v3349, %v3389
      %v3398 = vadd.f32 %v3350, %v3390
      %v3399 = vadd.f32 %v3351, %v3391
      %v3400 = vadd.f32 %v3352, %v3392
      %v3401 = vadd.f32 %v3353, %v3393
      %v3402 = vadd.f32 %v3354, %v3394
      %v3403 = vadd.f32 %v3355, %v3395
      %v3404 = vadd.f32 %v3356, %v3396
      %v3405 = vlaneseq
      %v3406 = vshrl.u32 %v3405, 7
      %v3407 = vsub.s32 7, %v3406
      %v3408 = vrot.slane %v3069, %v3407
      %v3409 = vlaneseq
      %v3410 = vshrl.u32 %v3409, 7
      %v3411 = vsub.s32 7, %v3410
      %v3412 = vrot.slane %v3070, %v3411
      %v3413 = vlaneseq
      %v3414 = vshrl.u32 %v3413, 7
      %v3415 = vsub.s32 7, %v3414
      %v3416 = vrot.slane %v3071, %v3415
      %v3417 = vlaneseq
      %v3418 = vshrl.u32 %v3417, 7
      %v3419 = vsub.s32 7, %v3418
      %v3420 = vrot.slane %v3072, %v3419
      %v3421 = vlaneseq
      %v3422 = vshrl.u32 %v3421, 7
      %v3423 = vsub.s32 7, %v3422
      %v3424 = vrot.slane %v3073, %v3423
      %v3425 = vlaneseq
      %v3426 = vshrl.u32 %v3425, 7
      %v3427 = vsub.s32 7, %v3426
      %v3428 = vrot.slane %v3074, %v3427
      %v3429 = vlaneseq
      %v3430 = vshrl.u32 %v3429, 7
      %v3431 = vsub.s32 7, %v3430
      %v3432 = vrot.slane %v3075, %v3431
      %v3433 = vlaneseq
      %v3434 = vshrl.u32 %v3433, 7
      %v3435 = vsub.s32 7, %v3434
      %v3436 = vrot.slane %v3076, %v3435
      %v3437 = vmul.f32 %v3408, %v3076
      %v3438 = vmul.f32 %v3412, %v3076
      %v3439 = vmul.f32 %v3416, %v3076
      %v3440 = vmul.f32 %v3420, %v3076
      %v3441 = vmul.f32 %v3424, %v3076
      %v3442 = vmul.f32 %v3428, %v3076
      %v3443 = vmul.f32 %v3432, %v3076
      %v3444 = vmul.f32 %v3436, %v3076
      %v3445 = vadd.f32 %v3397, %v3437
      %v3446 = vadd.f32 %v3398, %v3438
      %v3447 = vadd.f32 %v3399, %v3439
      %v3448 = vadd.f32 %v3400, %v3440
      %v3449 = vadd.f32 %v3401, %v3441
      %v3450 = vadd.f32 %v3402, %v3442
      %v3451 = vadd.f32 %v3403, %v3443
      %v3452 = vadd.f32 %v3404, %v3444
      %v3453 = vsel %vm510, 1, 0
      %vm3454 = vcmp.eq.s32.totalorder %v3453, 1
      %v3455 = vsel %vm3454, %v3445, %v3069
      %v3456 = vsel %vm3454, %v3446, %v3070
      %v3457 = vsel %vm3454, %v3447, %v3071
      %v3458 = vsel %vm3454, %v3448, %v3072
      %v3459 = vsel %vm3454, %v3449, %v3073
      %v3460 = vsel %vm3454, %v3450, %v3074
      %v3461 = vsel %vm3454, %v3451, %v3075
      %v3462 = vsel %vm3454, %v3452, %v3076
      %v3463 = vlaneseq
      %v3464 = vshrl.u32 %v3463, 7
      %v3465 = vsub.s32 0, %v3464
      %v3466 = vrot.slane %v3455, %v3465
      %v3467 = vlaneseq
      %v3468 = vshrl.u32 %v3467, 7
      %v3469 = vsub.s32 0, %v3468
      %v3470 = vrot.slane %v3456, %v3469
      %v3471 = vlaneseq
      %v3472 = vshrl.u32 %v3471, 7
      %v3473 = vsub.s32 0, %v3472
      %v3474 = vrot.slane %v3457, %v3473
      %v3475 = vlaneseq
      %v3476 = vshrl.u32 %v3475, 7
      %v3477 = vsub.s32 0, %v3476
      %v3478 = vrot.slane %v3458, %v3477
      %v3479 = vlaneseq
      %v3480 = vshrl.u32 %v3479, 7
      %v3481 = vsub.s32 0, %v3480
      %v3482 = vrot.slane %v3459, %v3481
      %v3483 = vlaneseq
      %v3484 = vshrl.u32 %v3483, 7
      %v3485 = vsub.s32 0, %v3484
      %v3486 = vrot.slane %v3460, %v3485
      %v3487 = vlaneseq
      %v3488 = vshrl.u32 %v3487, 7
      %v3489 = vsub.s32 0, %v3488
      %v3490 = vrot.slane %v3461, %v3489
      %v3491 = vlaneseq
      %v3492 = vshrl.u32 %v3491, 7
      %v3493 = vsub.s32 0, %v3492
      %v3494 = vrot.slane %v3462, %v3493
      %v3495 = vmul.f32 %v3466, %v3455
      %v3496 = vmul.f32 %v3470, %v3455
      %v3497 = vmul.f32 %v3474, %v3455
      %v3498 = vmul.f32 %v3478, %v3455
      %v3499 = vmul.f32 %v3482, %v3455
      %v3500 = vmul.f32 %v3486, %v3455
      %v3501 = vmul.f32 %v3490, %v3455
      %v3502 = vmul.f32 %v3494, %v3455
      %v3503 = vlaneseq
      %v3504 = vshrl.u32 %v3503, 7
      %v3505 = vsub.s32 1, %v3504
      %v3506 = vrot.slane %v3455, %v3505
      %v3507 = vlaneseq
      %v3508 = vshrl.u32 %v3507, 7
      %v3509 = vsub.s32 1, %v3508
      %v3510 = vrot.slane %v3456, %v3509
      %v3511 = vlaneseq
      %v3512 = vshrl.u32 %v3511, 7
      %v3513 = vsub.s32 1, %v3512
      %v3514 = vrot.slane %v3457, %v3513
      %v3515 = vlaneseq
      %v3516 = vshrl.u32 %v3515, 7
      %v3517 = vsub.s32 1, %v3516
      %v3518 = vrot.slane %v3458, %v3517
      %v3519 = vlaneseq
      %v3520 = vshrl.u32 %v3519, 7
      %v3521 = vsub.s32 1, %v3520
      %v3522 = vrot.slane %v3459, %v3521
      %v3523 = vlaneseq
      %v3524 = vshrl.u32 %v3523, 7
      %v3525 = vsub.s32 1, %v3524
      %v3526 = vrot.slane %v3460, %v3525
      %v3527 = vlaneseq
      %v3528 = vshrl.u32 %v3527, 7
      %v3529 = vsub.s32 1, %v3528
      %v3530 = vrot.slane %v3461, %v3529
      %v3531 = vlaneseq
      %v3532 = vshrl.u32 %v3531, 7
      %v3533 = vsub.s32 1, %v3532
      %v3534 = vrot.slane %v3462, %v3533
      %v3535 = vmul.f32 %v3506, %v3456
      %v3536 = vmul.f32 %v3510, %v3456
      %v3537 = vmul.f32 %v3514, %v3456
      %v3538 = vmul.f32 %v3518, %v3456
      %v3539 = vmul.f32 %v3522, %v3456
      %v3540 = vmul.f32 %v3526, %v3456
      %v3541 = vmul.f32 %v3530, %v3456
      %v3542 = vmul.f32 %v3534, %v3456
      %v3543 = vadd.f32 %v3495, %v3535
      %v3544 = vadd.f32 %v3496, %v3536
      %v3545 = vadd.f32 %v3497, %v3537
      %v3546 = vadd.f32 %v3498, %v3538
      %v3547 = vadd.f32 %v3499, %v3539
      %v3548 = vadd.f32 %v3500, %v3540
      %v3549 = vadd.f32 %v3501, %v3541
      %v3550 = vadd.f32 %v3502, %v3542
      %v3551 = vlaneseq
      %v3552 = vshrl.u32 %v3551, 7
      %v3553 = vsub.s32 2, %v3552
      %v3554 = vrot.slane %v3455, %v3553
      %v3555 = vlaneseq
      %v3556 = vshrl.u32 %v3555, 7
      %v3557 = vsub.s32 2, %v3556
      %v3558 = vrot.slane %v3456, %v3557
      %v3559 = vlaneseq
      %v3560 = vshrl.u32 %v3559, 7
      %v3561 = vsub.s32 2, %v3560
      %v3562 = vrot.slane %v3457, %v3561
      %v3563 = vlaneseq
      %v3564 = vshrl.u32 %v3563, 7
      %v3565 = vsub.s32 2, %v3564
      %v3566 = vrot.slane %v3458, %v3565
      %v3567 = vlaneseq
      %v3568 = vshrl.u32 %v3567, 7
      %v3569 = vsub.s32 2, %v3568
      %v3570 = vrot.slane %v3459, %v3569
      %v3571 = vlaneseq
      %v3572 = vshrl.u32 %v3571, 7
      %v3573 = vsub.s32 2, %v3572
      %v3574 = vrot.slane %v3460, %v3573
      %v3575 = vlaneseq
      %v3576 = vshrl.u32 %v3575, 7
      %v3577 = vsub.s32 2, %v3576
      %v3578 = vrot.slane %v3461, %v3577
      %v3579 = vlaneseq
      %v3580 = vshrl.u32 %v3579, 7
      %v3581 = vsub.s32 2, %v3580
      %v3582 = vrot.slane %v3462, %v3581
      %v3583 = vmul.f32 %v3554, %v3457
      %v3584 = vmul.f32 %v3558, %v3457
      %v3585 = vmul.f32 %v3562, %v3457
      %v3586 = vmul.f32 %v3566, %v3457
      %v3587 = vmul.f32 %v3570, %v3457
      %v3588 = vmul.f32 %v3574, %v3457
      %v3589 = vmul.f32 %v3578, %v3457
      %v3590 = vmul.f32 %v3582, %v3457
      %v3591 = vadd.f32 %v3543, %v3583
      %v3592 = vadd.f32 %v3544, %v3584
      %v3593 = vadd.f32 %v3545, %v3585
      %v3594 = vadd.f32 %v3546, %v3586
      %v3595 = vadd.f32 %v3547, %v3587
      %v3596 = vadd.f32 %v3548, %v3588
      %v3597 = vadd.f32 %v3549, %v3589
      %v3598 = vadd.f32 %v3550, %v3590
      %v3599 = vlaneseq
      %v3600 = vshrl.u32 %v3599, 7
      %v3601 = vsub.s32 3, %v3600
      %v3602 = vrot.slane %v3455, %v3601
      %v3603 = vlaneseq
      %v3604 = vshrl.u32 %v3603, 7
      %v3605 = vsub.s32 3, %v3604
      %v3606 = vrot.slane %v3456, %v3605
      %v3607 = vlaneseq
      %v3608 = vshrl.u32 %v3607, 7
      %v3609 = vsub.s32 3, %v3608
      %v3610 = vrot.slane %v3457, %v3609
      %v3611 = vlaneseq
      %v3612 = vshrl.u32 %v3611, 7
      %v3613 = vsub.s32 3, %v3612
      %v3614 = vrot.slane %v3458, %v3613
      %v3615 = vlaneseq
      %v3616 = vshrl.u32 %v3615, 7
      %v3617 = vsub.s32 3, %v3616
      %v3618 = vrot.slane %v3459, %v3617
      %v3619 = vlaneseq
      %v3620 = vshrl.u32 %v3619, 7
      %v3621 = vsub.s32 3, %v3620
      %v3622 = vrot.slane %v3460, %v3621
      %v3623 = vlaneseq
      %v3624 = vshrl.u32 %v3623, 7
      %v3625 = vsub.s32 3, %v3624
      %v3626 = vrot.slane %v3461, %v3625
      %v3627 = vlaneseq
      %v3628 = vshrl.u32 %v3627, 7
      %v3629 = vsub.s32 3, %v3628
      %v3630 = vrot.slane %v3462, %v3629
      %v3631 = vmul.f32 %v3602, %v3458
      %v3632 = vmul.f32 %v3606, %v3458
      %v3633 = vmul.f32 %v3610, %v3458
      %v3634 = vmul.f32 %v3614, %v3458
      %v3635 = vmul.f32 %v3618, %v3458
      %v3636 = vmul.f32 %v3622, %v3458
      %v3637 = vmul.f32 %v3626, %v3458
      %v3638 = vmul.f32 %v3630, %v3458
      %v3639 = vadd.f32 %v3591, %v3631
      %v3640 = vadd.f32 %v3592, %v3632
      %v3641 = vadd.f32 %v3593, %v3633
      %v3642 = vadd.f32 %v3594, %v3634
      %v3643 = vadd.f32 %v3595, %v3635
      %v3644 = vadd.f32 %v3596, %v3636
      %v3645 = vadd.f32 %v3597, %v3637
      %v3646 = vadd.f32 %v3598, %v3638
      %v3647 = vlaneseq
      %v3648 = vshrl.u32 %v3647, 7
      %v3649 = vsub.s32 4, %v3648
      %v3650 = vrot.slane %v3455, %v3649
      %v3651 = vlaneseq
      %v3652 = vshrl.u32 %v3651, 7
      %v3653 = vsub.s32 4, %v3652
      %v3654 = vrot.slane %v3456, %v3653
      %v3655 = vlaneseq
      %v3656 = vshrl.u32 %v3655, 7
      %v3657 = vsub.s32 4, %v3656
      %v3658 = vrot.slane %v3457, %v3657
      %v3659 = vlaneseq
      %v3660 = vshrl.u32 %v3659, 7
      %v3661 = vsub.s32 4, %v3660
      %v3662 = vrot.slane %v3458, %v3661
      %v3663 = vlaneseq
      %v3664 = vshrl.u32 %v3663, 7
      %v3665 = vsub.s32 4, %v3664
      %v3666 = vrot.slane %v3459, %v3665
      %v3667 = vlaneseq
      %v3668 = vshrl.u32 %v3667, 7
      %v3669 = vsub.s32 4, %v3668
      %v3670 = vrot.slane %v3460, %v3669
      %v3671 = vlaneseq
      %v3672 = vshrl.u32 %v3671, 7
      %v3673 = vsub.s32 4, %v3672
      %v3674 = vrot.slane %v3461, %v3673
      %v3675 = vlaneseq
      %v3676 = vshrl.u32 %v3675, 7
      %v3677 = vsub.s32 4, %v3676
      %v3678 = vrot.slane %v3462, %v3677
      %v3679 = vmul.f32 %v3650, %v3459
      %v3680 = vmul.f32 %v3654, %v3459
      %v3681 = vmul.f32 %v3658, %v3459
      %v3682 = vmul.f32 %v3662, %v3459
      %v3683 = vmul.f32 %v3666, %v3459
      %v3684 = vmul.f32 %v3670, %v3459
      %v3685 = vmul.f32 %v3674, %v3459
      %v3686 = vmul.f32 %v3678, %v3459
      %v3687 = vadd.f32 %v3639, %v3679
      %v3688 = vadd.f32 %v3640, %v3680
      %v3689 = vadd.f32 %v3641, %v3681
      %v3690 = vadd.f32 %v3642, %v3682
      %v3691 = vadd.f32 %v3643, %v3683
      %v3692 = vadd.f32 %v3644, %v3684
      %v3693 = vadd.f32 %v3645, %v3685
      %v3694 = vadd.f32 %v3646, %v3686
      %v3695 = vlaneseq
      %v3696 = vshrl.u32 %v3695, 7
      %v3697 = vsub.s32 5, %v3696
      %v3698 = vrot.slane %v3455, %v3697
      %v3699 = vlaneseq
      %v3700 = vshrl.u32 %v3699, 7
      %v3701 = vsub.s32 5, %v3700
      %v3702 = vrot.slane %v3456, %v3701
      %v3703 = vlaneseq
      %v3704 = vshrl.u32 %v3703, 7
      %v3705 = vsub.s32 5, %v3704
      %v3706 = vrot.slane %v3457, %v3705
      %v3707 = vlaneseq
      %v3708 = vshrl.u32 %v3707, 7
      %v3709 = vsub.s32 5, %v3708
      %v3710 = vrot.slane %v3458, %v3709
      %v3711 = vlaneseq
      %v3712 = vshrl.u32 %v3711, 7
      %v3713 = vsub.s32 5, %v3712
      %v3714 = vrot.slane %v3459, %v3713
      %v3715 = vlaneseq
      %v3716 = vshrl.u32 %v3715, 7
      %v3717 = vsub.s32 5, %v3716
      %v3718 = vrot.slane %v3460, %v3717
      %v3719 = vlaneseq
      %v3720 = vshrl.u32 %v3719, 7
      %v3721 = vsub.s32 5, %v3720
      %v3722 = vrot.slane %v3461, %v3721
      %v3723 = vlaneseq
      %v3724 = vshrl.u32 %v3723, 7
      %v3725 = vsub.s32 5, %v3724
      %v3726 = vrot.slane %v3462, %v3725
      %v3727 = vmul.f32 %v3698, %v3460
      %v3728 = vmul.f32 %v3702, %v3460
      %v3729 = vmul.f32 %v3706, %v3460
      %v3730 = vmul.f32 %v3710, %v3460
      %v3731 = vmul.f32 %v3714, %v3460
      %v3732 = vmul.f32 %v3718, %v3460
      %v3733 = vmul.f32 %v3722, %v3460
      %v3734 = vmul.f32 %v3726, %v3460
      %v3735 = vadd.f32 %v3687, %v3727
      %v3736 = vadd.f32 %v3688, %v3728
      %v3737 = vadd.f32 %v3689, %v3729
      %v3738 = vadd.f32 %v3690, %v3730
      %v3739 = vadd.f32 %v3691, %v3731
      %v3740 = vadd.f32 %v3692, %v3732
      %v3741 = vadd.f32 %v3693, %v3733
      %v3742 = vadd.f32 %v3694, %v3734
      %v3743 = vlaneseq
      %v3744 = vshrl.u32 %v3743, 7
      %v3745 = vsub.s32 6, %v3744
      %v3746 = vrot.slane %v3455, %v3745
      %v3747 = vlaneseq
      %v3748 = vshrl.u32 %v3747, 7
      %v3749 = vsub.s32 6, %v3748
      %v3750 = vrot.slane %v3456, %v3749
      %v3751 = vlaneseq
      %v3752 = vshrl.u32 %v3751, 7
      %v3753 = vsub.s32 6, %v3752
      %v3754 = vrot.slane %v3457, %v3753
      %v3755 = vlaneseq
      %v3756 = vshrl.u32 %v3755, 7
      %v3757 = vsub.s32 6, %v3756
      %v3758 = vrot.slane %v3458, %v3757
      %v3759 = vlaneseq
      %v3760 = vshrl.u32 %v3759, 7
      %v3761 = vsub.s32 6, %v3760
      %v3762 = vrot.slane %v3459, %v3761
      %v3763 = vlaneseq
      %v3764 = vshrl.u32 %v3763, 7
      %v3765 = vsub.s32 6, %v3764
      %v3766 = vrot.slane %v3460, %v3765
      %v3767 = vlaneseq
      %v3768 = vshrl.u32 %v3767, 7
      %v3769 = vsub.s32 6, %v3768
      %v3770 = vrot.slane %v3461, %v3769
      %v3771 = vlaneseq
      %v3772 = vshrl.u32 %v3771, 7
      %v3773 = vsub.s32 6, %v3772
      %v3774 = vrot.slane %v3462, %v3773
      %v3775 = vmul.f32 %v3746, %v3461
      %v3776 = vmul.f32 %v3750, %v3461
      %v3777 = vmul.f32 %v3754, %v3461
      %v3778 = vmul.f32 %v3758, %v3461
      %v3779 = vmul.f32 %v3762, %v3461
      %v3780 = vmul.f32 %v3766, %v3461
      %v3781 = vmul.f32 %v3770, %v3461
      %v3782 = vmul.f32 %v3774, %v3461
      %v3783 = vadd.f32 %v3735, %v3775
      %v3784 = vadd.f32 %v3736, %v3776
      %v3785 = vadd.f32 %v3737, %v3777
      %v3786 = vadd.f32 %v3738, %v3778
      %v3787 = vadd.f32 %v3739, %v3779
      %v3788 = vadd.f32 %v3740, %v3780
      %v3789 = vadd.f32 %v3741, %v3781
      %v3790 = vadd.f32 %v3742, %v3782
      %v3791 = vlaneseq
      %v3792 = vshrl.u32 %v3791, 7
      %v3793 = vsub.s32 7, %v3792
      %v3794 = vrot.slane %v3455, %v3793
      %v3795 = vlaneseq
      %v3796 = vshrl.u32 %v3795, 7
      %v3797 = vsub.s32 7, %v3796
      %v3798 = vrot.slane %v3456, %v3797
      %v3799 = vlaneseq
      %v3800 = vshrl.u32 %v3799, 7
      %v3801 = vsub.s32 7, %v3800
      %v3802 = vrot.slane %v3457, %v3801
      %v3803 = vlaneseq
      %v3804 = vshrl.u32 %v3803, 7
      %v3805 = vsub.s32 7, %v3804
      %v3806 = vrot.slane %v3458, %v3805
      %v3807 = vlaneseq
      %v3808 = vshrl.u32 %v3807, 7
      %v3809 = vsub.s32 7, %v3808
      %v3810 = vrot.slane %v3459, %v3809
      %v3811 = vlaneseq
      %v3812 = vshrl.u32 %v3811, 7
      %v3813 = vsub.s32 7, %v3812
      %v3814 = vrot.slane %v3460, %v3813
      %v3815 = vlaneseq
      %v3816 = vshrl.u32 %v3815, 7
      %v3817 = vsub.s32 7, %v3816
      %v3818 = vrot.slane %v3461, %v3817
      %v3819 = vlaneseq
      %v3820 = vshrl.u32 %v3819, 7
      %v3821 = vsub.s32 7, %v3820
      %v3822 = vrot.slane %v3462, %v3821
      %v3823 = vmul.f32 %v3794, %v3462
      %v3824 = vmul.f32 %v3798, %v3462
      %v3825 = vmul.f32 %v3802, %v3462
      %v3826 = vmul.f32 %v3806, %v3462
      %v3827 = vmul.f32 %v3810, %v3462
      %v3828 = vmul.f32 %v3814, %v3462
      %v3829 = vmul.f32 %v3818, %v3462
      %v3830 = vmul.f32 %v3822, %v3462
      %v3831 = vadd.f32 %v3783, %v3823
      %v3832 = vadd.f32 %v3784, %v3824
      %v3833 = vadd.f32 %v3785, %v3825
      %v3834 = vadd.f32 %v3786, %v3826
      %v3835 = vadd.f32 %v3787, %v3827
      %v3836 = vadd.f32 %v3788, %v3828
      %v3837 = vadd.f32 %v3789, %v3829
      %v3838 = vadd.f32 %v3790, %v3830
      %v3839 = vsel %vm515, 1, 0
      %vm3840 = vcmp.eq.s32.totalorder %v3839, 1
      %v3841 = vsel %vm3840, %v3831, %v3455
      %v3842 = vsel %vm3840, %v3832, %v3456
      %v3843 = vsel %vm3840, %v3833, %v3457
      %v3844 = vsel %vm3840, %v3834, %v3458
      %v3845 = vsel %vm3840, %v3835, %v3459
      %v3846 = vsel %vm3840, %v3836, %v3460
      %v3847 = vsel %vm3840, %v3837, %v3461
      %v3848 = vsel %vm3840, %v3838, %v3462
      %v3849 = vlaneseq
      %v3850 = vshrl.u32 %v3849, 7
      %v3851 = vsub.s32 0, %v3850
      %v3852 = vrot.slane %v3841, %v3851
      %v3853 = vlaneseq
      %v3854 = vshrl.u32 %v3853, 7
      %v3855 = vsub.s32 0, %v3854
      %v3856 = vrot.slane %v3842, %v3855
      %v3857 = vlaneseq
      %v3858 = vshrl.u32 %v3857, 7
      %v3859 = vsub.s32 0, %v3858
      %v3860 = vrot.slane %v3843, %v3859
      %v3861 = vlaneseq
      %v3862 = vshrl.u32 %v3861, 7
      %v3863 = vsub.s32 0, %v3862
      %v3864 = vrot.slane %v3844, %v3863
      %v3865 = vlaneseq
      %v3866 = vshrl.u32 %v3865, 7
      %v3867 = vsub.s32 0, %v3866
      %v3868 = vrot.slane %v3845, %v3867
      %v3869 = vlaneseq
      %v3870 = vshrl.u32 %v3869, 7
      %v3871 = vsub.s32 0, %v3870
      %v3872 = vrot.slane %v3846, %v3871
      %v3873 = vlaneseq
      %v3874 = vshrl.u32 %v3873, 7
      %v3875 = vsub.s32 0, %v3874
      %v3876 = vrot.slane %v3847, %v3875
      %v3877 = vlaneseq
      %v3878 = vshrl.u32 %v3877, 7
      %v3879 = vsub.s32 0, %v3878
      %v3880 = vrot.slane %v3848, %v3879
      %v3881 = vmul.f32 %v3852, %v3841
      %v3882 = vmul.f32 %v3856, %v3841
      %v3883 = vmul.f32 %v3860, %v3841
      %v3884 = vmul.f32 %v3864, %v3841
      %v3885 = vmul.f32 %v3868, %v3841
      %v3886 = vmul.f32 %v3872, %v3841
      %v3887 = vmul.f32 %v3876, %v3841
      %v3888 = vmul.f32 %v3880, %v3841
      %v3889 = vlaneseq
      %v3890 = vshrl.u32 %v3889, 7
      %v3891 = vsub.s32 1, %v3890
      %v3892 = vrot.slane %v3841, %v3891
      %v3893 = vlaneseq
      %v3894 = vshrl.u32 %v3893, 7
      %v3895 = vsub.s32 1, %v3894
      %v3896 = vrot.slane %v3842, %v3895
      %v3897 = vlaneseq
      %v3898 = vshrl.u32 %v3897, 7
      %v3899 = vsub.s32 1, %v3898
      %v3900 = vrot.slane %v3843, %v3899
      %v3901 = vlaneseq
      %v3902 = vshrl.u32 %v3901, 7
      %v3903 = vsub.s32 1, %v3902
      %v3904 = vrot.slane %v3844, %v3903
      %v3905 = vlaneseq
      %v3906 = vshrl.u32 %v3905, 7
      %v3907 = vsub.s32 1, %v3906
      %v3908 = vrot.slane %v3845, %v3907
      %v3909 = vlaneseq
      %v3910 = vshrl.u32 %v3909, 7
      %v3911 = vsub.s32 1, %v3910
      %v3912 = vrot.slane %v3846, %v3911
      %v3913 = vlaneseq
      %v3914 = vshrl.u32 %v3913, 7
      %v3915 = vsub.s32 1, %v3914
      %v3916 = vrot.slane %v3847, %v3915
      %v3917 = vlaneseq
      %v3918 = vshrl.u32 %v3917, 7
      %v3919 = vsub.s32 1, %v3918
      %v3920 = vrot.slane %v3848, %v3919
      %v3921 = vmul.f32 %v3892, %v3842
      %v3922 = vmul.f32 %v3896, %v3842
      %v3923 = vmul.f32 %v3900, %v3842
      %v3924 = vmul.f32 %v3904, %v3842
      %v3925 = vmul.f32 %v3908, %v3842
      %v3926 = vmul.f32 %v3912, %v3842
      %v3927 = vmul.f32 %v3916, %v3842
      %v3928 = vmul.f32 %v3920, %v3842
      %v3929 = vadd.f32 %v3881, %v3921
      %v3930 = vadd.f32 %v3882, %v3922
      %v3931 = vadd.f32 %v3883, %v3923
      %v3932 = vadd.f32 %v3884, %v3924
      %v3933 = vadd.f32 %v3885, %v3925
      %v3934 = vadd.f32 %v3886, %v3926
      %v3935 = vadd.f32 %v3887, %v3927
      %v3936 = vadd.f32 %v3888, %v3928
      %v3937 = vlaneseq
      %v3938 = vshrl.u32 %v3937, 7
      %v3939 = vsub.s32 2, %v3938
      %v3940 = vrot.slane %v3841, %v3939
      %v3941 = vlaneseq
      %v3942 = vshrl.u32 %v3941, 7
      %v3943 = vsub.s32 2, %v3942
      %v3944 = vrot.slane %v3842, %v3943
      %v3945 = vlaneseq
      %v3946 = vshrl.u32 %v3945, 7
      %v3947 = vsub.s32 2, %v3946
      %v3948 = vrot.slane %v3843, %v3947
      %v3949 = vlaneseq
      %v3950 = vshrl.u32 %v3949, 7
      %v3951 = vsub.s32 2, %v3950
      %v3952 = vrot.slane %v3844, %v3951
      %v3953 = vlaneseq
      %v3954 = vshrl.u32 %v3953, 7
      %v3955 = vsub.s32 2, %v3954
      %v3956 = vrot.slane %v3845, %v3955
      %v3957 = vlaneseq
      %v3958 = vshrl.u32 %v3957, 7
      %v3959 = vsub.s32 2, %v3958
      %v3960 = vrot.slane %v3846, %v3959
      %v3961 = vlaneseq
      %v3962 = vshrl.u32 %v3961, 7
      %v3963 = vsub.s32 2, %v3962
      %v3964 = vrot.slane %v3847, %v3963
      %v3965 = vlaneseq
      %v3966 = vshrl.u32 %v3965, 7
      %v3967 = vsub.s32 2, %v3966
      %v3968 = vrot.slane %v3848, %v3967
      %v3969 = vmul.f32 %v3940, %v3843
      %v3970 = vmul.f32 %v3944, %v3843
      %v3971 = vmul.f32 %v3948, %v3843
      %v3972 = vmul.f32 %v3952, %v3843
      %v3973 = vmul.f32 %v3956, %v3843
      %v3974 = vmul.f32 %v3960, %v3843
      %v3975 = vmul.f32 %v3964, %v3843
      %v3976 = vmul.f32 %v3968, %v3843
      %v3977 = vadd.f32 %v3929, %v3969
      %v3978 = vadd.f32 %v3930, %v3970
      %v3979 = vadd.f32 %v3931, %v3971
      %v3980 = vadd.f32 %v3932, %v3972
      %v3981 = vadd.f32 %v3933, %v3973
      %v3982 = vadd.f32 %v3934, %v3974
      %v3983 = vadd.f32 %v3935, %v3975
      %v3984 = vadd.f32 %v3936, %v3976
      %v3985 = vlaneseq
      %v3986 = vshrl.u32 %v3985, 7
      %v3987 = vsub.s32 3, %v3986
      %v3988 = vrot.slane %v3841, %v3987
      %v3989 = vlaneseq
      %v3990 = vshrl.u32 %v3989, 7
      %v3991 = vsub.s32 3, %v3990
      %v3992 = vrot.slane %v3842, %v3991
      %v3993 = vlaneseq
      %v3994 = vshrl.u32 %v3993, 7
      %v3995 = vsub.s32 3, %v3994
      %v3996 = vrot.slane %v3843, %v3995
      %v3997 = vlaneseq
      %v3998 = vshrl.u32 %v3997, 7
      %v3999 = vsub.s32 3, %v3998
      %v4000 = vrot.slane %v3844, %v3999
      %v4001 = vlaneseq
      %v4002 = vshrl.u32 %v4001, 7
      %v4003 = vsub.s32 3, %v4002
      %v4004 = vrot.slane %v3845, %v4003
      %v4005 = vlaneseq
      %v4006 = vshrl.u32 %v4005, 7
      %v4007 = vsub.s32 3, %v4006
      %v4008 = vrot.slane %v3846, %v4007
      %v4009 = vlaneseq
      %v4010 = vshrl.u32 %v4009, 7
      %v4011 = vsub.s32 3, %v4010
      %v4012 = vrot.slane %v3847, %v4011
      %v4013 = vlaneseq
      %v4014 = vshrl.u32 %v4013, 7
      %v4015 = vsub.s32 3, %v4014
      %v4016 = vrot.slane %v3848, %v4015
      %v4017 = vmul.f32 %v3988, %v3844
      %v4018 = vmul.f32 %v3992, %v3844
      %v4019 = vmul.f32 %v3996, %v3844
      %v4020 = vmul.f32 %v4000, %v3844
      %v4021 = vmul.f32 %v4004, %v3844
      %v4022 = vmul.f32 %v4008, %v3844
      %v4023 = vmul.f32 %v4012, %v3844
      %v4024 = vmul.f32 %v4016, %v3844
      %v4025 = vadd.f32 %v3977, %v4017
      %v4026 = vadd.f32 %v3978, %v4018
      %v4027 = vadd.f32 %v3979, %v4019
      %v4028 = vadd.f32 %v3980, %v4020
      %v4029 = vadd.f32 %v3981, %v4021
      %v4030 = vadd.f32 %v3982, %v4022
      %v4031 = vadd.f32 %v3983, %v4023
      %v4032 = vadd.f32 %v3984, %v4024
      %v4033 = vlaneseq
      %v4034 = vshrl.u32 %v4033, 7
      %v4035 = vsub.s32 4, %v4034
      %v4036 = vrot.slane %v3841, %v4035
      %v4037 = vlaneseq
      %v4038 = vshrl.u32 %v4037, 7
      %v4039 = vsub.s32 4, %v4038
      %v4040 = vrot.slane %v3842, %v4039
      %v4041 = vlaneseq
      %v4042 = vshrl.u32 %v4041, 7
      %v4043 = vsub.s32 4, %v4042
      %v4044 = vrot.slane %v3843, %v4043
      %v4045 = vlaneseq
      %v4046 = vshrl.u32 %v4045, 7
      %v4047 = vsub.s32 4, %v4046
      %v4048 = vrot.slane %v3844, %v4047
      %v4049 = vlaneseq
      %v4050 = vshrl.u32 %v4049, 7
      %v4051 = vsub.s32 4, %v4050
      %v4052 = vrot.slane %v3845, %v4051
      %v4053 = vlaneseq
      %v4054 = vshrl.u32 %v4053, 7
      %v4055 = vsub.s32 4, %v4054
      %v4056 = vrot.slane %v3846, %v4055
      %v4057 = vlaneseq
      %v4058 = vshrl.u32 %v4057, 7
      %v4059 = vsub.s32 4, %v4058
      %v4060 = vrot.slane %v3847, %v4059
      %v4061 = vlaneseq
      %v4062 = vshrl.u32 %v4061, 7
      %v4063 = vsub.s32 4, %v4062
      %v4064 = vrot.slane %v3848, %v4063
      %v4065 = vmul.f32 %v4036, %v3845
      %v4066 = vmul.f32 %v4040, %v3845
      %v4067 = vmul.f32 %v4044, %v3845
      %v4068 = vmul.f32 %v4048, %v3845
      %v4069 = vmul.f32 %v4052, %v3845
      %v4070 = vmul.f32 %v4056, %v3845
      %v4071 = vmul.f32 %v4060, %v3845
      %v4072 = vmul.f32 %v4064, %v3845
      %v4073 = vadd.f32 %v4025, %v4065
      %v4074 = vadd.f32 %v4026, %v4066
      %v4075 = vadd.f32 %v4027, %v4067
      %v4076 = vadd.f32 %v4028, %v4068
      %v4077 = vadd.f32 %v4029, %v4069
      %v4078 = vadd.f32 %v4030, %v4070
      %v4079 = vadd.f32 %v4031, %v4071
      %v4080 = vadd.f32 %v4032, %v4072
      %v4081 = vlaneseq
      %v4082 = vshrl.u32 %v4081, 7
      %v4083 = vsub.s32 5, %v4082
      %v4084 = vrot.slane %v3841, %v4083
      %v4085 = vlaneseq
      %v4086 = vshrl.u32 %v4085, 7
      %v4087 = vsub.s32 5, %v4086
      %v4088 = vrot.slane %v3842, %v4087
      %v4089 = vlaneseq
      %v4090 = vshrl.u32 %v4089, 7
      %v4091 = vsub.s32 5, %v4090
      %v4092 = vrot.slane %v3843, %v4091
      %v4093 = vlaneseq
      %v4094 = vshrl.u32 %v4093, 7
      %v4095 = vsub.s32 5, %v4094
      %v4096 = vrot.slane %v3844, %v4095
      %v4097 = vlaneseq
      %v4098 = vshrl.u32 %v4097, 7
      %v4099 = vsub.s32 5, %v4098
      %v4100 = vrot.slane %v3845, %v4099
      %v4101 = vlaneseq
      %v4102 = vshrl.u32 %v4101, 7
      %v4103 = vsub.s32 5, %v4102
      %v4104 = vrot.slane %v3846, %v4103
      %v4105 = vlaneseq
      %v4106 = vshrl.u32 %v4105, 7
      %v4107 = vsub.s32 5, %v4106
      %v4108 = vrot.slane %v3847, %v4107
      %v4109 = vlaneseq
      %v4110 = vshrl.u32 %v4109, 7
      %v4111 = vsub.s32 5, %v4110
      %v4112 = vrot.slane %v3848, %v4111
      %v4113 = vmul.f32 %v4084, %v3846
      %v4114 = vmul.f32 %v4088, %v3846
      %v4115 = vmul.f32 %v4092, %v3846
      %v4116 = vmul.f32 %v4096, %v3846
      %v4117 = vmul.f32 %v4100, %v3846
      %v4118 = vmul.f32 %v4104, %v3846
      %v4119 = vmul.f32 %v4108, %v3846
      %v4120 = vmul.f32 %v4112, %v3846
      %v4121 = vadd.f32 %v4073, %v4113
      %v4122 = vadd.f32 %v4074, %v4114
      %v4123 = vadd.f32 %v4075, %v4115
      %v4124 = vadd.f32 %v4076, %v4116
      %v4125 = vadd.f32 %v4077, %v4117
      %v4126 = vadd.f32 %v4078, %v4118
      %v4127 = vadd.f32 %v4079, %v4119
      %v4128 = vadd.f32 %v4080, %v4120
      %v4129 = vlaneseq
      %v4130 = vshrl.u32 %v4129, 7
      %v4131 = vsub.s32 6, %v4130
      %v4132 = vrot.slane %v3841, %v4131
      %v4133 = vlaneseq
      %v4134 = vshrl.u32 %v4133, 7
      %v4135 = vsub.s32 6, %v4134
      %v4136 = vrot.slane %v3842, %v4135
      %v4137 = vlaneseq
      %v4138 = vshrl.u32 %v4137, 7
      %v4139 = vsub.s32 6, %v4138
      %v4140 = vrot.slane %v3843, %v4139
      %v4141 = vlaneseq
      %v4142 = vshrl.u32 %v4141, 7
      %v4143 = vsub.s32 6, %v4142
      %v4144 = vrot.slane %v3844, %v4143
      %v4145 = vlaneseq
      %v4146 = vshrl.u32 %v4145, 7
      %v4147 = vsub.s32 6, %v4146
      %v4148 = vrot.slane %v3845, %v4147
      %v4149 = vlaneseq
      %v4150 = vshrl.u32 %v4149, 7
      %v4151 = vsub.s32 6, %v4150
      %v4152 = vrot.slane %v3846, %v4151
      %v4153 = vlaneseq
      %v4154 = vshrl.u32 %v4153, 7
      %v4155 = vsub.s32 6, %v4154
      %v4156 = vrot.slane %v3847, %v4155
      %v4157 = vlaneseq
      %v4158 = vshrl.u32 %v4157, 7
      %v4159 = vsub.s32 6, %v4158
      %v4160 = vrot.slane %v3848, %v4159
      %v4161 = vmul.f32 %v4132, %v3847
      %v4162 = vmul.f32 %v4136, %v3847
      %v4163 = vmul.f32 %v4140, %v3847
      %v4164 = vmul.f32 %v4144, %v3847
      %v4165 = vmul.f32 %v4148, %v3847
      %v4166 = vmul.f32 %v4152, %v3847
      %v4167 = vmul.f32 %v4156, %v3847
      %v4168 = vmul.f32 %v4160, %v3847
      %v4169 = vadd.f32 %v4121, %v4161
      %v4170 = vadd.f32 %v4122, %v4162
      %v4171 = vadd.f32 %v4123, %v4163
      %v4172 = vadd.f32 %v4124, %v4164
      %v4173 = vadd.f32 %v4125, %v4165
      %v4174 = vadd.f32 %v4126, %v4166
      %v4175 = vadd.f32 %v4127, %v4167
      %v4176 = vadd.f32 %v4128, %v4168
      %v4177 = vlaneseq
      %v4178 = vshrl.u32 %v4177, 7
      %v4179 = vsub.s32 7, %v4178
      %v4180 = vrot.slane %v3841, %v4179
      %v4181 = vlaneseq
      %v4182 = vshrl.u32 %v4181, 7
      %v4183 = vsub.s32 7, %v4182
      %v4184 = vrot.slane %v3842, %v4183
      %v4185 = vlaneseq
      %v4186 = vshrl.u32 %v4185, 7
      %v4187 = vsub.s32 7, %v4186
      %v4188 = vrot.slane %v3843, %v4187
      %v4189 = vlaneseq
      %v4190 = vshrl.u32 %v4189, 7
      %v4191 = vsub.s32 7, %v4190
      %v4192 = vrot.slane %v3844, %v4191
      %v4193 = vlaneseq
      %v4194 = vshrl.u32 %v4193, 7
      %v4195 = vsub.s32 7, %v4194
      %v4196 = vrot.slane %v3845, %v4195
      %v4197 = vlaneseq
      %v4198 = vshrl.u32 %v4197, 7
      %v4199 = vsub.s32 7, %v4198
      %v4200 = vrot.slane %v3846, %v4199
      %v4201 = vlaneseq
      %v4202 = vshrl.u32 %v4201, 7
      %v4203 = vsub.s32 7, %v4202
      %v4204 = vrot.slane %v3847, %v4203
      %v4205 = vlaneseq
      %v4206 = vshrl.u32 %v4205, 7
      %v4207 = vsub.s32 7, %v4206
      %v4208 = vrot.slane %v3848, %v4207
      %v4209 = vmul.f32 %v4180, %v3848
      %v4210 = vmul.f32 %v4184, %v3848
      %v4211 = vmul.f32 %v4188, %v3848
      %v4212 = vmul.f32 %v4192, %v3848
      %v4213 = vmul.f32 %v4196, %v3848
      %v4214 = vmul.f32 %v4200, %v3848
      %v4215 = vmul.f32 %v4204, %v3848
      %v4216 = vmul.f32 %v4208, %v3848
      %v4217 = vadd.f32 %v4169, %v4209
      %v4218 = vadd.f32 %v4170, %v4210
      %v4219 = vadd.f32 %v4171, %v4211
      %v4220 = vadd.f32 %v4172, %v4212
      %v4221 = vadd.f32 %v4173, %v4213
      %v4222 = vadd.f32 %v4174, %v4214
      %v4223 = vadd.f32 %v4175, %v4215
      %v4224 = vadd.f32 %v4176, %v4216
      %v4225 = vsel %vm520, 1, 0
      %vm4226 = vcmp.eq.s32.totalorder %v4225, 1
      %v4227 = vsel %vm4226, %v4217, %v3841
      %v4228 = vsel %vm4226, %v4218, %v3842
      %v4229 = vsel %vm4226, %v4219, %v3843
      %v4230 = vsel %vm4226, %v4220, %v3844
      %v4231 = vsel %vm4226, %v4221, %v3845
      %v4232 = vsel %vm4226, %v4222, %v3846
      %v4233 = vsel %vm4226, %v4223, %v3847
      %v4234 = vsel %vm4226, %v4224, %v3848
      %v4235 = vlaneseq
      %v4236 = vshrl.u32 %v4235, 7
      %v4237 = vsub.s32 0, %v4236
      %v4238 = vrot.slane %v4227, %v4237
      %v4239 = vlaneseq
      %v4240 = vshrl.u32 %v4239, 7
      %v4241 = vsub.s32 0, %v4240
      %v4242 = vrot.slane %v4228, %v4241
      %v4243 = vlaneseq
      %v4244 = vshrl.u32 %v4243, 7
      %v4245 = vsub.s32 0, %v4244
      %v4246 = vrot.slane %v4229, %v4245
      %v4247 = vlaneseq
      %v4248 = vshrl.u32 %v4247, 7
      %v4249 = vsub.s32 0, %v4248
      %v4250 = vrot.slane %v4230, %v4249
      %v4251 = vlaneseq
      %v4252 = vshrl.u32 %v4251, 7
      %v4253 = vsub.s32 0, %v4252
      %v4254 = vrot.slane %v4231, %v4253
      %v4255 = vlaneseq
      %v4256 = vshrl.u32 %v4255, 7
      %v4257 = vsub.s32 0, %v4256
      %v4258 = vrot.slane %v4232, %v4257
      %v4259 = vlaneseq
      %v4260 = vshrl.u32 %v4259, 7
      %v4261 = vsub.s32 0, %v4260
      %v4262 = vrot.slane %v4233, %v4261
      %v4263 = vlaneseq
      %v4264 = vshrl.u32 %v4263, 7
      %v4265 = vsub.s32 0, %v4264
      %v4266 = vrot.slane %v4234, %v4265
      %v4267 = vmul.f32 %v4238, %v4227
      %v4268 = vmul.f32 %v4242, %v4227
      %v4269 = vmul.f32 %v4246, %v4227
      %v4270 = vmul.f32 %v4250, %v4227
      %v4271 = vmul.f32 %v4254, %v4227
      %v4272 = vmul.f32 %v4258, %v4227
      %v4273 = vmul.f32 %v4262, %v4227
      %v4274 = vmul.f32 %v4266, %v4227
      %v4275 = vlaneseq
      %v4276 = vshrl.u32 %v4275, 7
      %v4277 = vsub.s32 1, %v4276
      %v4278 = vrot.slane %v4227, %v4277
      %v4279 = vlaneseq
      %v4280 = vshrl.u32 %v4279, 7
      %v4281 = vsub.s32 1, %v4280
      %v4282 = vrot.slane %v4228, %v4281
      %v4283 = vlaneseq
      %v4284 = vshrl.u32 %v4283, 7
      %v4285 = vsub.s32 1, %v4284
      %v4286 = vrot.slane %v4229, %v4285
      %v4287 = vlaneseq
      %v4288 = vshrl.u32 %v4287, 7
      %v4289 = vsub.s32 1, %v4288
      %v4290 = vrot.slane %v4230, %v4289
      %v4291 = vlaneseq
      %v4292 = vshrl.u32 %v4291, 7
      %v4293 = vsub.s32 1, %v4292
      %v4294 = vrot.slane %v4231, %v4293
      %v4295 = vlaneseq
      %v4296 = vshrl.u32 %v4295, 7
      %v4297 = vsub.s32 1, %v4296
      %v4298 = vrot.slane %v4232, %v4297
      %v4299 = vlaneseq
      %v4300 = vshrl.u32 %v4299, 7
      %v4301 = vsub.s32 1, %v4300
      %v4302 = vrot.slane %v4233, %v4301
      %v4303 = vlaneseq
      %v4304 = vshrl.u32 %v4303, 7
      %v4305 = vsub.s32 1, %v4304
      %v4306 = vrot.slane %v4234, %v4305
      %v4307 = vmul.f32 %v4278, %v4228
      %v4308 = vmul.f32 %v4282, %v4228
      %v4309 = vmul.f32 %v4286, %v4228
      %v4310 = vmul.f32 %v4290, %v4228
      %v4311 = vmul.f32 %v4294, %v4228
      %v4312 = vmul.f32 %v4298, %v4228
      %v4313 = vmul.f32 %v4302, %v4228
      %v4314 = vmul.f32 %v4306, %v4228
      %v4315 = vadd.f32 %v4267, %v4307
      %v4316 = vadd.f32 %v4268, %v4308
      %v4317 = vadd.f32 %v4269, %v4309
      %v4318 = vadd.f32 %v4270, %v4310
      %v4319 = vadd.f32 %v4271, %v4311
      %v4320 = vadd.f32 %v4272, %v4312
      %v4321 = vadd.f32 %v4273, %v4313
      %v4322 = vadd.f32 %v4274, %v4314
      %v4323 = vlaneseq
      %v4324 = vshrl.u32 %v4323, 7
      %v4325 = vsub.s32 2, %v4324
      %v4326 = vrot.slane %v4227, %v4325
      %v4327 = vlaneseq
      %v4328 = vshrl.u32 %v4327, 7
      %v4329 = vsub.s32 2, %v4328
      %v4330 = vrot.slane %v4228, %v4329
      %v4331 = vlaneseq
      %v4332 = vshrl.u32 %v4331, 7
      %v4333 = vsub.s32 2, %v4332
      %v4334 = vrot.slane %v4229, %v4333
      %v4335 = vlaneseq
      %v4336 = vshrl.u32 %v4335, 7
      %v4337 = vsub.s32 2, %v4336
      %v4338 = vrot.slane %v4230, %v4337
      %v4339 = vlaneseq
      %v4340 = vshrl.u32 %v4339, 7
      %v4341 = vsub.s32 2, %v4340
      %v4342 = vrot.slane %v4231, %v4341
      %v4343 = vlaneseq
      %v4344 = vshrl.u32 %v4343, 7
      %v4345 = vsub.s32 2, %v4344
      %v4346 = vrot.slane %v4232, %v4345
      %v4347 = vlaneseq
      %v4348 = vshrl.u32 %v4347, 7
      %v4349 = vsub.s32 2, %v4348
      %v4350 = vrot.slane %v4233, %v4349
      %v4351 = vlaneseq
      %v4352 = vshrl.u32 %v4351, 7
      %v4353 = vsub.s32 2, %v4352
      %v4354 = vrot.slane %v4234, %v4353
      %v4355 = vmul.f32 %v4326, %v4229
      %v4356 = vmul.f32 %v4330, %v4229
      %v4357 = vmul.f32 %v4334, %v4229
      %v4358 = vmul.f32 %v4338, %v4229
      %v4359 = vmul.f32 %v4342, %v4229
      %v4360 = vmul.f32 %v4346, %v4229
      %v4361 = vmul.f32 %v4350, %v4229
      %v4362 = vmul.f32 %v4354, %v4229
      %v4363 = vadd.f32 %v4315, %v4355
      %v4364 = vadd.f32 %v4316, %v4356
      %v4365 = vadd.f32 %v4317, %v4357
      %v4366 = vadd.f32 %v4318, %v4358
      %v4367 = vadd.f32 %v4319, %v4359
      %v4368 = vadd.f32 %v4320, %v4360
      %v4369 = vadd.f32 %v4321, %v4361
      %v4370 = vadd.f32 %v4322, %v4362
      %v4371 = vlaneseq
      %v4372 = vshrl.u32 %v4371, 7
      %v4373 = vsub.s32 3, %v4372
      %v4374 = vrot.slane %v4227, %v4373
      %v4375 = vlaneseq
      %v4376 = vshrl.u32 %v4375, 7
      %v4377 = vsub.s32 3, %v4376
      %v4378 = vrot.slane %v4228, %v4377
      %v4379 = vlaneseq
      %v4380 = vshrl.u32 %v4379, 7
      %v4381 = vsub.s32 3, %v4380
      %v4382 = vrot.slane %v4229, %v4381
      %v4383 = vlaneseq
      %v4384 = vshrl.u32 %v4383, 7
      %v4385 = vsub.s32 3, %v4384
      %v4386 = vrot.slane %v4230, %v4385
      %v4387 = vlaneseq
      %v4388 = vshrl.u32 %v4387, 7
      %v4389 = vsub.s32 3, %v4388
      %v4390 = vrot.slane %v4231, %v4389
      %v4391 = vlaneseq
      %v4392 = vshrl.u32 %v4391, 7
      %v4393 = vsub.s32 3, %v4392
      %v4394 = vrot.slane %v4232, %v4393
      %v4395 = vlaneseq
      %v4396 = vshrl.u32 %v4395, 7
      %v4397 = vsub.s32 3, %v4396
      %v4398 = vrot.slane %v4233, %v4397
      %v4399 = vlaneseq
      %v4400 = vshrl.u32 %v4399, 7
      %v4401 = vsub.s32 3, %v4400
      %v4402 = vrot.slane %v4234, %v4401
      %v4403 = vmul.f32 %v4374, %v4230
      %v4404 = vmul.f32 %v4378, %v4230
      %v4405 = vmul.f32 %v4382, %v4230
      %v4406 = vmul.f32 %v4386, %v4230
      %v4407 = vmul.f32 %v4390, %v4230
      %v4408 = vmul.f32 %v4394, %v4230
      %v4409 = vmul.f32 %v4398, %v4230
      %v4410 = vmul.f32 %v4402, %v4230
      %v4411 = vadd.f32 %v4363, %v4403
      %v4412 = vadd.f32 %v4364, %v4404
      %v4413 = vadd.f32 %v4365, %v4405
      %v4414 = vadd.f32 %v4366, %v4406
      %v4415 = vadd.f32 %v4367, %v4407
      %v4416 = vadd.f32 %v4368, %v4408
      %v4417 = vadd.f32 %v4369, %v4409
      %v4418 = vadd.f32 %v4370, %v4410
      %v4419 = vlaneseq
      %v4420 = vshrl.u32 %v4419, 7
      %v4421 = vsub.s32 4, %v4420
      %v4422 = vrot.slane %v4227, %v4421
      %v4423 = vlaneseq
      %v4424 = vshrl.u32 %v4423, 7
      %v4425 = vsub.s32 4, %v4424
      %v4426 = vrot.slane %v4228, %v4425
      %v4427 = vlaneseq
      %v4428 = vshrl.u32 %v4427, 7
      %v4429 = vsub.s32 4, %v4428
      %v4430 = vrot.slane %v4229, %v4429
      %v4431 = vlaneseq
      %v4432 = vshrl.u32 %v4431, 7
      %v4433 = vsub.s32 4, %v4432
      %v4434 = vrot.slane %v4230, %v4433
      %v4435 = vlaneseq
      %v4436 = vshrl.u32 %v4435, 7
      %v4437 = vsub.s32 4, %v4436
      %v4438 = vrot.slane %v4231, %v4437
      %v4439 = vlaneseq
      %v4440 = vshrl.u32 %v4439, 7
      %v4441 = vsub.s32 4, %v4440
      %v4442 = vrot.slane %v4232, %v4441
      %v4443 = vlaneseq
      %v4444 = vshrl.u32 %v4443, 7
      %v4445 = vsub.s32 4, %v4444
      %v4446 = vrot.slane %v4233, %v4445
      %v4447 = vlaneseq
      %v4448 = vshrl.u32 %v4447, 7
      %v4449 = vsub.s32 4, %v4448
      %v4450 = vrot.slane %v4234, %v4449
      %v4451 = vmul.f32 %v4422, %v4231
      %v4452 = vmul.f32 %v4426, %v4231
      %v4453 = vmul.f32 %v4430, %v4231
      %v4454 = vmul.f32 %v4434, %v4231
      %v4455 = vmul.f32 %v4438, %v4231
      %v4456 = vmul.f32 %v4442, %v4231
      %v4457 = vmul.f32 %v4446, %v4231
      %v4458 = vmul.f32 %v4450, %v4231
      %v4459 = vadd.f32 %v4411, %v4451
      %v4460 = vadd.f32 %v4412, %v4452
      %v4461 = vadd.f32 %v4413, %v4453
      %v4462 = vadd.f32 %v4414, %v4454
      %v4463 = vadd.f32 %v4415, %v4455
      %v4464 = vadd.f32 %v4416, %v4456
      %v4465 = vadd.f32 %v4417, %v4457
      %v4466 = vadd.f32 %v4418, %v4458
      %v4467 = vlaneseq
      %v4468 = vshrl.u32 %v4467, 7
      %v4469 = vsub.s32 5, %v4468
      %v4470 = vrot.slane %v4227, %v4469
      %v4471 = vlaneseq
      %v4472 = vshrl.u32 %v4471, 7
      %v4473 = vsub.s32 5, %v4472
      %v4474 = vrot.slane %v4228, %v4473
      %v4475 = vlaneseq
      %v4476 = vshrl.u32 %v4475, 7
      %v4477 = vsub.s32 5, %v4476
      %v4478 = vrot.slane %v4229, %v4477
      %v4479 = vlaneseq
      %v4480 = vshrl.u32 %v4479, 7
      %v4481 = vsub.s32 5, %v4480
      %v4482 = vrot.slane %v4230, %v4481
      %v4483 = vlaneseq
      %v4484 = vshrl.u32 %v4483, 7
      %v4485 = vsub.s32 5, %v4484
      %v4486 = vrot.slane %v4231, %v4485
      %v4487 = vlaneseq
      %v4488 = vshrl.u32 %v4487, 7
      %v4489 = vsub.s32 5, %v4488
      %v4490 = vrot.slane %v4232, %v4489
      %v4491 = vlaneseq
      %v4492 = vshrl.u32 %v4491, 7
      %v4493 = vsub.s32 5, %v4492
      %v4494 = vrot.slane %v4233, %v4493
      %v4495 = vlaneseq
      %v4496 = vshrl.u32 %v4495, 7
      %v4497 = vsub.s32 5, %v4496
      %v4498 = vrot.slane %v4234, %v4497
      %v4499 = vmul.f32 %v4470, %v4232
      %v4500 = vmul.f32 %v4474, %v4232
      %v4501 = vmul.f32 %v4478, %v4232
      %v4502 = vmul.f32 %v4482, %v4232
      %v4503 = vmul.f32 %v4486, %v4232
      %v4504 = vmul.f32 %v4490, %v4232
      %v4505 = vmul.f32 %v4494, %v4232
      %v4506 = vmul.f32 %v4498, %v4232
      %v4507 = vadd.f32 %v4459, %v4499
      %v4508 = vadd.f32 %v4460, %v4500
      %v4509 = vadd.f32 %v4461, %v4501
      %v4510 = vadd.f32 %v4462, %v4502
      %v4511 = vadd.f32 %v4463, %v4503
      %v4512 = vadd.f32 %v4464, %v4504
      %v4513 = vadd.f32 %v4465, %v4505
      %v4514 = vadd.f32 %v4466, %v4506
      %v4515 = vlaneseq
      %v4516 = vshrl.u32 %v4515, 7
      %v4517 = vsub.s32 6, %v4516
      %v4518 = vrot.slane %v4227, %v4517
      %v4519 = vlaneseq
      %v4520 = vshrl.u32 %v4519, 7
      %v4521 = vsub.s32 6, %v4520
      %v4522 = vrot.slane %v4228, %v4521
      %v4523 = vlaneseq
      %v4524 = vshrl.u32 %v4523, 7
      %v4525 = vsub.s32 6, %v4524
      %v4526 = vrot.slane %v4229, %v4525
      %v4527 = vlaneseq
      %v4528 = vshrl.u32 %v4527, 7
      %v4529 = vsub.s32 6, %v4528
      %v4530 = vrot.slane %v4230, %v4529
      %v4531 = vlaneseq
      %v4532 = vshrl.u32 %v4531, 7
      %v4533 = vsub.s32 6, %v4532
      %v4534 = vrot.slane %v4231, %v4533
      %v4535 = vlaneseq
      %v4536 = vshrl.u32 %v4535, 7
      %v4537 = vsub.s32 6, %v4536
      %v4538 = vrot.slane %v4232, %v4537
      %v4539 = vlaneseq
      %v4540 = vshrl.u32 %v4539, 7
      %v4541 = vsub.s32 6, %v4540
      %v4542 = vrot.slane %v4233, %v4541
      %v4543 = vlaneseq
      %v4544 = vshrl.u32 %v4543, 7
      %v4545 = vsub.s32 6, %v4544
      %v4546 = vrot.slane %v4234, %v4545
      %v4547 = vmul.f32 %v4518, %v4233
      %v4548 = vmul.f32 %v4522, %v4233
      %v4549 = vmul.f32 %v4526, %v4233
      %v4550 = vmul.f32 %v4530, %v4233
      %v4551 = vmul.f32 %v4534, %v4233
      %v4552 = vmul.f32 %v4538, %v4233
      %v4553 = vmul.f32 %v4542, %v4233
      %v4554 = vmul.f32 %v4546, %v4233
      %v4555 = vadd.f32 %v4507, %v4547
      %v4556 = vadd.f32 %v4508, %v4548
      %v4557 = vadd.f32 %v4509, %v4549
      %v4558 = vadd.f32 %v4510, %v4550
      %v4559 = vadd.f32 %v4511, %v4551
      %v4560 = vadd.f32 %v4512, %v4552
      %v4561 = vadd.f32 %v4513, %v4553
      %v4562 = vadd.f32 %v4514, %v4554
      %v4563 = vlaneseq
      %v4564 = vshrl.u32 %v4563, 7
      %v4565 = vsub.s32 7, %v4564
      %v4566 = vrot.slane %v4227, %v4565
      %v4567 = vlaneseq
      %v4568 = vshrl.u32 %v4567, 7
      %v4569 = vsub.s32 7, %v4568
      %v4570 = vrot.slane %v4228, %v4569
      %v4571 = vlaneseq
      %v4572 = vshrl.u32 %v4571, 7
      %v4573 = vsub.s32 7, %v4572
      %v4574 = vrot.slane %v4229, %v4573
      %v4575 = vlaneseq
      %v4576 = vshrl.u32 %v4575, 7
      %v4577 = vsub.s32 7, %v4576
      %v4578 = vrot.slane %v4230, %v4577
      %v4579 = vlaneseq
      %v4580 = vshrl.u32 %v4579, 7
      %v4581 = vsub.s32 7, %v4580
      %v4582 = vrot.slane %v4231, %v4581
      %v4583 = vlaneseq
      %v4584 = vshrl.u32 %v4583, 7
      %v4585 = vsub.s32 7, %v4584
      %v4586 = vrot.slane %v4232, %v4585
      %v4587 = vlaneseq
      %v4588 = vshrl.u32 %v4587, 7
      %v4589 = vsub.s32 7, %v4588
      %v4590 = vrot.slane %v4233, %v4589
      %v4591 = vlaneseq
      %v4592 = vshrl.u32 %v4591, 7
      %v4593 = vsub.s32 7, %v4592
      %v4594 = vrot.slane %v4234, %v4593
      %v4595 = vmul.f32 %v4566, %v4234
      %v4596 = vmul.f32 %v4570, %v4234
      %v4597 = vmul.f32 %v4574, %v4234
      %v4598 = vmul.f32 %v4578, %v4234
      %v4599 = vmul.f32 %v4582, %v4234
      %v4600 = vmul.f32 %v4586, %v4234
      %v4601 = vmul.f32 %v4590, %v4234
      %v4602 = vmul.f32 %v4594, %v4234
      %v4603 = vadd.f32 %v4555, %v4595
      %v4604 = vadd.f32 %v4556, %v4596
      %v4605 = vadd.f32 %v4557, %v4597
      %v4606 = vadd.f32 %v4558, %v4598
      %v4607 = vadd.f32 %v4559, %v4599
      %v4608 = vadd.f32 %v4560, %v4600
      %v4609 = vadd.f32 %v4561, %v4601
      %v4610 = vadd.f32 %v4562, %v4602
      %v4611 = vsel %vm525, 1, 0
      %vm4612 = vcmp.eq.s32.totalorder %v4611, 1
      %v4613 = vsel %vm4612, %v4603, %v4227
      %v4614 = vsel %vm4612, %v4604, %v4228
      %v4615 = vsel %vm4612, %v4605, %v4229
      %v4616 = vsel %vm4612, %v4606, %v4230
      %v4617 = vsel %vm4612, %v4607, %v4231
      %v4618 = vsel %vm4612, %v4608, %v4232
      %v4619 = vsel %vm4612, %v4609, %v4233
      %v4620 = vsel %vm4612, %v4610, %v4234
      %v4621 = vlaneseq
      %v4622 = vshrl.u32 %v4621, 7
      %v4623 = vsub.s32 0, %v4622
      %v4624 = vrot.slane %v4613, %v4623
      %v4625 = vlaneseq
      %v4626 = vshrl.u32 %v4625, 7
      %v4627 = vsub.s32 0, %v4626
      %v4628 = vrot.slane %v4614, %v4627
      %v4629 = vlaneseq
      %v4630 = vshrl.u32 %v4629, 7
      %v4631 = vsub.s32 0, %v4630
      %v4632 = vrot.slane %v4615, %v4631
      %v4633 = vlaneseq
      %v4634 = vshrl.u32 %v4633, 7
      %v4635 = vsub.s32 0, %v4634
      %v4636 = vrot.slane %v4616, %v4635
      %v4637 = vlaneseq
      %v4638 = vshrl.u32 %v4637, 7
      %v4639 = vsub.s32 0, %v4638
      %v4640 = vrot.slane %v4617, %v4639
      %v4641 = vlaneseq
      %v4642 = vshrl.u32 %v4641, 7
      %v4643 = vsub.s32 0, %v4642
      %v4644 = vrot.slane %v4618, %v4643
      %v4645 = vlaneseq
      %v4646 = vshrl.u32 %v4645, 7
      %v4647 = vsub.s32 0, %v4646
      %v4648 = vrot.slane %v4619, %v4647
      %v4649 = vlaneseq
      %v4650 = vshrl.u32 %v4649, 7
      %v4651 = vsub.s32 0, %v4650
      %v4652 = vrot.slane %v4620, %v4651
      %v4653 = vmul.f32 %v4624, %v4613
      %v4654 = vmul.f32 %v4628, %v4613
      %v4655 = vmul.f32 %v4632, %v4613
      %v4656 = vmul.f32 %v4636, %v4613
      %v4657 = vmul.f32 %v4640, %v4613
      %v4658 = vmul.f32 %v4644, %v4613
      %v4659 = vmul.f32 %v4648, %v4613
      %v4660 = vmul.f32 %v4652, %v4613
      %v4661 = vlaneseq
      %v4662 = vshrl.u32 %v4661, 7
      %v4663 = vsub.s32 1, %v4662
      %v4664 = vrot.slane %v4613, %v4663
      %v4665 = vlaneseq
      %v4666 = vshrl.u32 %v4665, 7
      %v4667 = vsub.s32 1, %v4666
      %v4668 = vrot.slane %v4614, %v4667
      %v4669 = vlaneseq
      %v4670 = vshrl.u32 %v4669, 7
      %v4671 = vsub.s32 1, %v4670
      %v4672 = vrot.slane %v4615, %v4671
      %v4673 = vlaneseq
      %v4674 = vshrl.u32 %v4673, 7
      %v4675 = vsub.s32 1, %v4674
      %v4676 = vrot.slane %v4616, %v4675
      %v4677 = vlaneseq
      %v4678 = vshrl.u32 %v4677, 7
      %v4679 = vsub.s32 1, %v4678
      %v4680 = vrot.slane %v4617, %v4679
      %v4681 = vlaneseq
      %v4682 = vshrl.u32 %v4681, 7
      %v4683 = vsub.s32 1, %v4682
      %v4684 = vrot.slane %v4618, %v4683
      %v4685 = vlaneseq
      %v4686 = vshrl.u32 %v4685, 7
      %v4687 = vsub.s32 1, %v4686
      %v4688 = vrot.slane %v4619, %v4687
      %v4689 = vlaneseq
      %v4690 = vshrl.u32 %v4689, 7
      %v4691 = vsub.s32 1, %v4690
      %v4692 = vrot.slane %v4620, %v4691
      %v4693 = vmul.f32 %v4664, %v4614
      %v4694 = vmul.f32 %v4668, %v4614
      %v4695 = vmul.f32 %v4672, %v4614
      %v4696 = vmul.f32 %v4676, %v4614
      %v4697 = vmul.f32 %v4680, %v4614
      %v4698 = vmul.f32 %v4684, %v4614
      %v4699 = vmul.f32 %v4688, %v4614
      %v4700 = vmul.f32 %v4692, %v4614
      %v4701 = vadd.f32 %v4653, %v4693
      %v4702 = vadd.f32 %v4654, %v4694
      %v4703 = vadd.f32 %v4655, %v4695
      %v4704 = vadd.f32 %v4656, %v4696
      %v4705 = vadd.f32 %v4657, %v4697
      %v4706 = vadd.f32 %v4658, %v4698
      %v4707 = vadd.f32 %v4659, %v4699
      %v4708 = vadd.f32 %v4660, %v4700
      %v4709 = vlaneseq
      %v4710 = vshrl.u32 %v4709, 7
      %v4711 = vsub.s32 2, %v4710
      %v4712 = vrot.slane %v4613, %v4711
      %v4713 = vlaneseq
      %v4714 = vshrl.u32 %v4713, 7
      %v4715 = vsub.s32 2, %v4714
      %v4716 = vrot.slane %v4614, %v4715
      %v4717 = vlaneseq
      %v4718 = vshrl.u32 %v4717, 7
      %v4719 = vsub.s32 2, %v4718
      %v4720 = vrot.slane %v4615, %v4719
      %v4721 = vlaneseq
      %v4722 = vshrl.u32 %v4721, 7
      %v4723 = vsub.s32 2, %v4722
      %v4724 = vrot.slane %v4616, %v4723
      %v4725 = vlaneseq
      %v4726 = vshrl.u32 %v4725, 7
      %v4727 = vsub.s32 2, %v4726
      %v4728 = vrot.slane %v4617, %v4727
      %v4729 = vlaneseq
      %v4730 = vshrl.u32 %v4729, 7
      %v4731 = vsub.s32 2, %v4730
      %v4732 = vrot.slane %v4618, %v4731
      %v4733 = vlaneseq
      %v4734 = vshrl.u32 %v4733, 7
      %v4735 = vsub.s32 2, %v4734
      %v4736 = vrot.slane %v4619, %v4735
      %v4737 = vlaneseq
      %v4738 = vshrl.u32 %v4737, 7
      %v4739 = vsub.s32 2, %v4738
      %v4740 = vrot.slane %v4620, %v4739
      %v4741 = vmul.f32 %v4712, %v4615
      %v4742 = vmul.f32 %v4716, %v4615
      %v4743 = vmul.f32 %v4720, %v4615
      %v4744 = vmul.f32 %v4724, %v4615
      %v4745 = vmul.f32 %v4728, %v4615
      %v4746 = vmul.f32 %v4732, %v4615
      %v4747 = vmul.f32 %v4736, %v4615
      %v4748 = vmul.f32 %v4740, %v4615
      %v4749 = vadd.f32 %v4701, %v4741
      %v4750 = vadd.f32 %v4702, %v4742
      %v4751 = vadd.f32 %v4703, %v4743
      %v4752 = vadd.f32 %v4704, %v4744
      %v4753 = vadd.f32 %v4705, %v4745
      %v4754 = vadd.f32 %v4706, %v4746
      %v4755 = vadd.f32 %v4707, %v4747
      %v4756 = vadd.f32 %v4708, %v4748
      %v4757 = vlaneseq
      %v4758 = vshrl.u32 %v4757, 7
      %v4759 = vsub.s32 3, %v4758
      %v4760 = vrot.slane %v4613, %v4759
      %v4761 = vlaneseq
      %v4762 = vshrl.u32 %v4761, 7
      %v4763 = vsub.s32 3, %v4762
      %v4764 = vrot.slane %v4614, %v4763
      %v4765 = vlaneseq
      %v4766 = vshrl.u32 %v4765, 7
      %v4767 = vsub.s32 3, %v4766
      %v4768 = vrot.slane %v4615, %v4767
      %v4769 = vlaneseq
      %v4770 = vshrl.u32 %v4769, 7
      %v4771 = vsub.s32 3, %v4770
      %v4772 = vrot.slane %v4616, %v4771
      %v4773 = vlaneseq
      %v4774 = vshrl.u32 %v4773, 7
      %v4775 = vsub.s32 3, %v4774
      %v4776 = vrot.slane %v4617, %v4775
      %v4777 = vlaneseq
      %v4778 = vshrl.u32 %v4777, 7
      %v4779 = vsub.s32 3, %v4778
      %v4780 = vrot.slane %v4618, %v4779
      %v4781 = vlaneseq
      %v4782 = vshrl.u32 %v4781, 7
      %v4783 = vsub.s32 3, %v4782
      %v4784 = vrot.slane %v4619, %v4783
      %v4785 = vlaneseq
      %v4786 = vshrl.u32 %v4785, 7
      %v4787 = vsub.s32 3, %v4786
      %v4788 = vrot.slane %v4620, %v4787
      %v4789 = vmul.f32 %v4760, %v4616
      %v4790 = vmul.f32 %v4764, %v4616
      %v4791 = vmul.f32 %v4768, %v4616
      %v4792 = vmul.f32 %v4772, %v4616
      %v4793 = vmul.f32 %v4776, %v4616
      %v4794 = vmul.f32 %v4780, %v4616
      %v4795 = vmul.f32 %v4784, %v4616
      %v4796 = vmul.f32 %v4788, %v4616
      %v4797 = vadd.f32 %v4749, %v4789
      %v4798 = vadd.f32 %v4750, %v4790
      %v4799 = vadd.f32 %v4751, %v4791
      %v4800 = vadd.f32 %v4752, %v4792
      %v4801 = vadd.f32 %v4753, %v4793
      %v4802 = vadd.f32 %v4754, %v4794
      %v4803 = vadd.f32 %v4755, %v4795
      %v4804 = vadd.f32 %v4756, %v4796
      %v4805 = vlaneseq
      %v4806 = vshrl.u32 %v4805, 7
      %v4807 = vsub.s32 4, %v4806
      %v4808 = vrot.slane %v4613, %v4807
      %v4809 = vlaneseq
      %v4810 = vshrl.u32 %v4809, 7
      %v4811 = vsub.s32 4, %v4810
      %v4812 = vrot.slane %v4614, %v4811
      %v4813 = vlaneseq
      %v4814 = vshrl.u32 %v4813, 7
      %v4815 = vsub.s32 4, %v4814
      %v4816 = vrot.slane %v4615, %v4815
      %v4817 = vlaneseq
      %v4818 = vshrl.u32 %v4817, 7
      %v4819 = vsub.s32 4, %v4818
      %v4820 = vrot.slane %v4616, %v4819
      %v4821 = vlaneseq
      %v4822 = vshrl.u32 %v4821, 7
      %v4823 = vsub.s32 4, %v4822
      %v4824 = vrot.slane %v4617, %v4823
      %v4825 = vlaneseq
      %v4826 = vshrl.u32 %v4825, 7
      %v4827 = vsub.s32 4, %v4826
      %v4828 = vrot.slane %v4618, %v4827
      %v4829 = vlaneseq
      %v4830 = vshrl.u32 %v4829, 7
      %v4831 = vsub.s32 4, %v4830
      %v4832 = vrot.slane %v4619, %v4831
      %v4833 = vlaneseq
      %v4834 = vshrl.u32 %v4833, 7
      %v4835 = vsub.s32 4, %v4834
      %v4836 = vrot.slane %v4620, %v4835
      %v4837 = vmul.f32 %v4808, %v4617
      %v4838 = vmul.f32 %v4812, %v4617
      %v4839 = vmul.f32 %v4816, %v4617
      %v4840 = vmul.f32 %v4820, %v4617
      %v4841 = vmul.f32 %v4824, %v4617
      %v4842 = vmul.f32 %v4828, %v4617
      %v4843 = vmul.f32 %v4832, %v4617
      %v4844 = vmul.f32 %v4836, %v4617
      %v4845 = vadd.f32 %v4797, %v4837
      %v4846 = vadd.f32 %v4798, %v4838
      %v4847 = vadd.f32 %v4799, %v4839
      %v4848 = vadd.f32 %v4800, %v4840
      %v4849 = vadd.f32 %v4801, %v4841
      %v4850 = vadd.f32 %v4802, %v4842
      %v4851 = vadd.f32 %v4803, %v4843
      %v4852 = vadd.f32 %v4804, %v4844
      %v4853 = vlaneseq
      %v4854 = vshrl.u32 %v4853, 7
      %v4855 = vsub.s32 5, %v4854
      %v4856 = vrot.slane %v4613, %v4855
      %v4857 = vlaneseq
      %v4858 = vshrl.u32 %v4857, 7
      %v4859 = vsub.s32 5, %v4858
      %v4860 = vrot.slane %v4614, %v4859
      %v4861 = vlaneseq
      %v4862 = vshrl.u32 %v4861, 7
      %v4863 = vsub.s32 5, %v4862
      %v4864 = vrot.slane %v4615, %v4863
      %v4865 = vlaneseq
      %v4866 = vshrl.u32 %v4865, 7
      %v4867 = vsub.s32 5, %v4866
      %v4868 = vrot.slane %v4616, %v4867
      %v4869 = vlaneseq
      %v4870 = vshrl.u32 %v4869, 7
      %v4871 = vsub.s32 5, %v4870
      %v4872 = vrot.slane %v4617, %v4871
      %v4873 = vlaneseq
      %v4874 = vshrl.u32 %v4873, 7
      %v4875 = vsub.s32 5, %v4874
      %v4876 = vrot.slane %v4618, %v4875
      %v4877 = vlaneseq
      %v4878 = vshrl.u32 %v4877, 7
      %v4879 = vsub.s32 5, %v4878
      %v4880 = vrot.slane %v4619, %v4879
      %v4881 = vlaneseq
      %v4882 = vshrl.u32 %v4881, 7
      %v4883 = vsub.s32 5, %v4882
      %v4884 = vrot.slane %v4620, %v4883
      %v4885 = vmul.f32 %v4856, %v4618
      %v4886 = vmul.f32 %v4860, %v4618
      %v4887 = vmul.f32 %v4864, %v4618
      %v4888 = vmul.f32 %v4868, %v4618
      %v4889 = vmul.f32 %v4872, %v4618
      %v4890 = vmul.f32 %v4876, %v4618
      %v4891 = vmul.f32 %v4880, %v4618
      %v4892 = vmul.f32 %v4884, %v4618
      %v4893 = vadd.f32 %v4845, %v4885
      %v4894 = vadd.f32 %v4846, %v4886
      %v4895 = vadd.f32 %v4847, %v4887
      %v4896 = vadd.f32 %v4848, %v4888
      %v4897 = vadd.f32 %v4849, %v4889
      %v4898 = vadd.f32 %v4850, %v4890
      %v4899 = vadd.f32 %v4851, %v4891
      %v4900 = vadd.f32 %v4852, %v4892
      %v4901 = vlaneseq
      %v4902 = vshrl.u32 %v4901, 7
      %v4903 = vsub.s32 6, %v4902
      %v4904 = vrot.slane %v4613, %v4903
      %v4905 = vlaneseq
      %v4906 = vshrl.u32 %v4905, 7
      %v4907 = vsub.s32 6, %v4906
      %v4908 = vrot.slane %v4614, %v4907
      %v4909 = vlaneseq
      %v4910 = vshrl.u32 %v4909, 7
      %v4911 = vsub.s32 6, %v4910
      %v4912 = vrot.slane %v4615, %v4911
      %v4913 = vlaneseq
      %v4914 = vshrl.u32 %v4913, 7
      %v4915 = vsub.s32 6, %v4914
      %v4916 = vrot.slane %v4616, %v4915
      %v4917 = vlaneseq
      %v4918 = vshrl.u32 %v4917, 7
      %v4919 = vsub.s32 6, %v4918
      %v4920 = vrot.slane %v4617, %v4919
      %v4921 = vlaneseq
      %v4922 = vshrl.u32 %v4921, 7
      %v4923 = vsub.s32 6, %v4922
      %v4924 = vrot.slane %v4618, %v4923
      %v4925 = vlaneseq
      %v4926 = vshrl.u32 %v4925, 7
      %v4927 = vsub.s32 6, %v4926
      %v4928 = vrot.slane %v4619, %v4927
      %v4929 = vlaneseq
      %v4930 = vshrl.u32 %v4929, 7
      %v4931 = vsub.s32 6, %v4930
      %v4932 = vrot.slane %v4620, %v4931
      %v4933 = vmul.f32 %v4904, %v4619
      %v4934 = vmul.f32 %v4908, %v4619
      %v4935 = vmul.f32 %v4912, %v4619
      %v4936 = vmul.f32 %v4916, %v4619
      %v4937 = vmul.f32 %v4920, %v4619
      %v4938 = vmul.f32 %v4924, %v4619
      %v4939 = vmul.f32 %v4928, %v4619
      %v4940 = vmul.f32 %v4932, %v4619
      %v4941 = vadd.f32 %v4893, %v4933
      %v4942 = vadd.f32 %v4894, %v4934
      %v4943 = vadd.f32 %v4895, %v4935
      %v4944 = vadd.f32 %v4896, %v4936
      %v4945 = vadd.f32 %v4897, %v4937
      %v4946 = vadd.f32 %v4898, %v4938
      %v4947 = vadd.f32 %v4899, %v4939
      %v4948 = vadd.f32 %v4900, %v4940
      %v4949 = vlaneseq
      %v4950 = vshrl.u32 %v4949, 7
      %v4951 = vsub.s32 7, %v4950
      %v4952 = vrot.slane %v4613, %v4951
      %v4953 = vlaneseq
      %v4954 = vshrl.u32 %v4953, 7
      %v4955 = vsub.s32 7, %v4954
      %v4956 = vrot.slane %v4614, %v4955
      %v4957 = vlaneseq
      %v4958 = vshrl.u32 %v4957, 7
      %v4959 = vsub.s32 7, %v4958
      %v4960 = vrot.slane %v4615, %v4959
      %v4961 = vlaneseq
      %v4962 = vshrl.u32 %v4961, 7
      %v4963 = vsub.s32 7, %v4962
      %v4964 = vrot.slane %v4616, %v4963
      %v4965 = vlaneseq
      %v4966 = vshrl.u32 %v4965, 7
      %v4967 = vsub.s32 7, %v4966
      %v4968 = vrot.slane %v4617, %v4967
      %v4969 = vlaneseq
      %v4970 = vshrl.u32 %v4969, 7
      %v4971 = vsub.s32 7, %v4970
      %v4972 = vrot.slane %v4618, %v4971
      %v4973 = vlaneseq
      %v4974 = vshrl.u32 %v4973, 7
      %v4975 = vsub.s32 7, %v4974
      %v4976 = vrot.slane %v4619, %v4975
      %v4977 = vlaneseq
      %v4978 = vshrl.u32 %v4977, 7
      %v4979 = vsub.s32 7, %v4978
      %v4980 = vrot.slane %v4620, %v4979
      %v4981 = vmul.f32 %v4952, %v4620
      %v4982 = vmul.f32 %v4956, %v4620
      %v4983 = vmul.f32 %v4960, %v4620
      %v4984 = vmul.f32 %v4964, %v4620
      %v4985 = vmul.f32 %v4968, %v4620
      %v4986 = vmul.f32 %v4972, %v4620
      %v4987 = vmul.f32 %v4976, %v4620
      %v4988 = vmul.f32 %v4980, %v4620
      %v4989 = vadd.f32 %v4941, %v4981
      %v4990 = vadd.f32 %v4942, %v4982
      %v4991 = vadd.f32 %v4943, %v4983
      %v4992 = vadd.f32 %v4944, %v4984
      %v4993 = vadd.f32 %v4945, %v4985
      %v4994 = vadd.f32 %v4946, %v4986
      %v4995 = vadd.f32 %v4947, %v4987
      %v4996 = vadd.f32 %v4948, %v4988
      %v4997 = vsel %vm530, 1, 0
      %vm4998 = vcmp.eq.s32.totalorder %v4997, 1
      %v4999 = vsel %vm4998, %v4989, %v4613
      %v5000 = vsel %vm4998, %v4990, %v4614
      %v5001 = vsel %vm4998, %v4991, %v4615
      %v5002 = vsel %vm4998, %v4992, %v4616
      %v5003 = vsel %vm4998, %v4993, %v4617
      %v5004 = vsel %vm4998, %v4994, %v4618
      %v5005 = vsel %vm4998, %v4995, %v4619
      %v5006 = vsel %vm4998, %v4996, %v4620
      %v5007 = vlaneseq
      %v5008 = vshrl.u32 %v5007, 7
      %v5009 = vsub.s32 0, %v5008
      %v5010 = vrot.slane %v4999, %v5009
      %v5011 = vlaneseq
      %v5012 = vshrl.u32 %v5011, 7
      %v5013 = vsub.s32 0, %v5012
      %v5014 = vrot.slane %v5000, %v5013
      %v5015 = vlaneseq
      %v5016 = vshrl.u32 %v5015, 7
      %v5017 = vsub.s32 0, %v5016
      %v5018 = vrot.slane %v5001, %v5017
      %v5019 = vlaneseq
      %v5020 = vshrl.u32 %v5019, 7
      %v5021 = vsub.s32 0, %v5020
      %v5022 = vrot.slane %v5002, %v5021
      %v5023 = vlaneseq
      %v5024 = vshrl.u32 %v5023, 7
      %v5025 = vsub.s32 0, %v5024
      %v5026 = vrot.slane %v5003, %v5025
      %v5027 = vlaneseq
      %v5028 = vshrl.u32 %v5027, 7
      %v5029 = vsub.s32 0, %v5028
      %v5030 = vrot.slane %v5004, %v5029
      %v5031 = vlaneseq
      %v5032 = vshrl.u32 %v5031, 7
      %v5033 = vsub.s32 0, %v5032
      %v5034 = vrot.slane %v5005, %v5033
      %v5035 = vlaneseq
      %v5036 = vshrl.u32 %v5035, 7
      %v5037 = vsub.s32 0, %v5036
      %v5038 = vrot.slane %v5006, %v5037
      %v5039 = vmul.f32 %v5010, %v4999
      %v5040 = vmul.f32 %v5014, %v4999
      %v5041 = vmul.f32 %v5018, %v4999
      %v5042 = vmul.f32 %v5022, %v4999
      %v5043 = vmul.f32 %v5026, %v4999
      %v5044 = vmul.f32 %v5030, %v4999
      %v5045 = vmul.f32 %v5034, %v4999
      %v5046 = vmul.f32 %v5038, %v4999
      %v5047 = vlaneseq
      %v5048 = vshrl.u32 %v5047, 7
      %v5049 = vsub.s32 1, %v5048
      %v5050 = vrot.slane %v4999, %v5049
      %v5051 = vlaneseq
      %v5052 = vshrl.u32 %v5051, 7
      %v5053 = vsub.s32 1, %v5052
      %v5054 = vrot.slane %v5000, %v5053
      %v5055 = vlaneseq
      %v5056 = vshrl.u32 %v5055, 7
      %v5057 = vsub.s32 1, %v5056
      %v5058 = vrot.slane %v5001, %v5057
      %v5059 = vlaneseq
      %v5060 = vshrl.u32 %v5059, 7
      %v5061 = vsub.s32 1, %v5060
      %v5062 = vrot.slane %v5002, %v5061
      %v5063 = vlaneseq
      %v5064 = vshrl.u32 %v5063, 7
      %v5065 = vsub.s32 1, %v5064
      %v5066 = vrot.slane %v5003, %v5065
      %v5067 = vlaneseq
      %v5068 = vshrl.u32 %v5067, 7
      %v5069 = vsub.s32 1, %v5068
      %v5070 = vrot.slane %v5004, %v5069
      %v5071 = vlaneseq
      %v5072 = vshrl.u32 %v5071, 7
      %v5073 = vsub.s32 1, %v5072
      %v5074 = vrot.slane %v5005, %v5073
      %v5075 = vlaneseq
      %v5076 = vshrl.u32 %v5075, 7
      %v5077 = vsub.s32 1, %v5076
      %v5078 = vrot.slane %v5006, %v5077
      %v5079 = vmul.f32 %v5050, %v5000
      %v5080 = vmul.f32 %v5054, %v5000
      %v5081 = vmul.f32 %v5058, %v5000
      %v5082 = vmul.f32 %v5062, %v5000
      %v5083 = vmul.f32 %v5066, %v5000
      %v5084 = vmul.f32 %v5070, %v5000
      %v5085 = vmul.f32 %v5074, %v5000
      %v5086 = vmul.f32 %v5078, %v5000
      %v5087 = vadd.f32 %v5039, %v5079
      %v5088 = vadd.f32 %v5040, %v5080
      %v5089 = vadd.f32 %v5041, %v5081
      %v5090 = vadd.f32 %v5042, %v5082
      %v5091 = vadd.f32 %v5043, %v5083
      %v5092 = vadd.f32 %v5044, %v5084
      %v5093 = vadd.f32 %v5045, %v5085
      %v5094 = vadd.f32 %v5046, %v5086
      %v5095 = vlaneseq
      %v5096 = vshrl.u32 %v5095, 7
      %v5097 = vsub.s32 2, %v5096
      %v5098 = vrot.slane %v4999, %v5097
      %v5099 = vlaneseq
      %v5100 = vshrl.u32 %v5099, 7
      %v5101 = vsub.s32 2, %v5100
      %v5102 = vrot.slane %v5000, %v5101
      %v5103 = vlaneseq
      %v5104 = vshrl.u32 %v5103, 7
      %v5105 = vsub.s32 2, %v5104
      %v5106 = vrot.slane %v5001, %v5105
      %v5107 = vlaneseq
      %v5108 = vshrl.u32 %v5107, 7
      %v5109 = vsub.s32 2, %v5108
      %v5110 = vrot.slane %v5002, %v5109
      %v5111 = vlaneseq
      %v5112 = vshrl.u32 %v5111, 7
      %v5113 = vsub.s32 2, %v5112
      %v5114 = vrot.slane %v5003, %v5113
      %v5115 = vlaneseq
      %v5116 = vshrl.u32 %v5115, 7
      %v5117 = vsub.s32 2, %v5116
      %v5118 = vrot.slane %v5004, %v5117
      %v5119 = vlaneseq
      %v5120 = vshrl.u32 %v5119, 7
      %v5121 = vsub.s32 2, %v5120
      %v5122 = vrot.slane %v5005, %v5121
      %v5123 = vlaneseq
      %v5124 = vshrl.u32 %v5123, 7
      %v5125 = vsub.s32 2, %v5124
      %v5126 = vrot.slane %v5006, %v5125
      %v5127 = vmul.f32 %v5098, %v5001
      %v5128 = vmul.f32 %v5102, %v5001
      %v5129 = vmul.f32 %v5106, %v5001
      %v5130 = vmul.f32 %v5110, %v5001
      %v5131 = vmul.f32 %v5114, %v5001
      %v5132 = vmul.f32 %v5118, %v5001
      %v5133 = vmul.f32 %v5122, %v5001
      %v5134 = vmul.f32 %v5126, %v5001
      %v5135 = vadd.f32 %v5087, %v5127
      %v5136 = vadd.f32 %v5088, %v5128
      %v5137 = vadd.f32 %v5089, %v5129
      %v5138 = vadd.f32 %v5090, %v5130
      %v5139 = vadd.f32 %v5091, %v5131
      %v5140 = vadd.f32 %v5092, %v5132
      %v5141 = vadd.f32 %v5093, %v5133
      %v5142 = vadd.f32 %v5094, %v5134
      %v5143 = vlaneseq
      %v5144 = vshrl.u32 %v5143, 7
      %v5145 = vsub.s32 3, %v5144
      %v5146 = vrot.slane %v4999, %v5145
      %v5147 = vlaneseq
      %v5148 = vshrl.u32 %v5147, 7
      %v5149 = vsub.s32 3, %v5148
      %v5150 = vrot.slane %v5000, %v5149
      %v5151 = vlaneseq
      %v5152 = vshrl.u32 %v5151, 7
      %v5153 = vsub.s32 3, %v5152
      %v5154 = vrot.slane %v5001, %v5153
      %v5155 = vlaneseq
      %v5156 = vshrl.u32 %v5155, 7
      %v5157 = vsub.s32 3, %v5156
      %v5158 = vrot.slane %v5002, %v5157
      %v5159 = vlaneseq
      %v5160 = vshrl.u32 %v5159, 7
      %v5161 = vsub.s32 3, %v5160
      %v5162 = vrot.slane %v5003, %v5161
      %v5163 = vlaneseq
      %v5164 = vshrl.u32 %v5163, 7
      %v5165 = vsub.s32 3, %v5164
      %v5166 = vrot.slane %v5004, %v5165
      %v5167 = vlaneseq
      %v5168 = vshrl.u32 %v5167, 7
      %v5169 = vsub.s32 3, %v5168
      %v5170 = vrot.slane %v5005, %v5169
      %v5171 = vlaneseq
      %v5172 = vshrl.u32 %v5171, 7
      %v5173 = vsub.s32 3, %v5172
      %v5174 = vrot.slane %v5006, %v5173
      %v5175 = vmul.f32 %v5146, %v5002
      %v5176 = vmul.f32 %v5150, %v5002
      %v5177 = vmul.f32 %v5154, %v5002
      %v5178 = vmul.f32 %v5158, %v5002
      %v5179 = vmul.f32 %v5162, %v5002
      %v5180 = vmul.f32 %v5166, %v5002
      %v5181 = vmul.f32 %v5170, %v5002
      %v5182 = vmul.f32 %v5174, %v5002
      %v5183 = vadd.f32 %v5135, %v5175
      %v5184 = vadd.f32 %v5136, %v5176
      %v5185 = vadd.f32 %v5137, %v5177
      %v5186 = vadd.f32 %v5138, %v5178
      %v5187 = vadd.f32 %v5139, %v5179
      %v5188 = vadd.f32 %v5140, %v5180
      %v5189 = vadd.f32 %v5141, %v5181
      %v5190 = vadd.f32 %v5142, %v5182
      %v5191 = vlaneseq
      %v5192 = vshrl.u32 %v5191, 7
      %v5193 = vsub.s32 4, %v5192
      %v5194 = vrot.slane %v4999, %v5193
      %v5195 = vlaneseq
      %v5196 = vshrl.u32 %v5195, 7
      %v5197 = vsub.s32 4, %v5196
      %v5198 = vrot.slane %v5000, %v5197
      %v5199 = vlaneseq
      %v5200 = vshrl.u32 %v5199, 7
      %v5201 = vsub.s32 4, %v5200
      %v5202 = vrot.slane %v5001, %v5201
      %v5203 = vlaneseq
      %v5204 = vshrl.u32 %v5203, 7
      %v5205 = vsub.s32 4, %v5204
      %v5206 = vrot.slane %v5002, %v5205
      %v5207 = vlaneseq
      %v5208 = vshrl.u32 %v5207, 7
      %v5209 = vsub.s32 4, %v5208
      %v5210 = vrot.slane %v5003, %v5209
      %v5211 = vlaneseq
      %v5212 = vshrl.u32 %v5211, 7
      %v5213 = vsub.s32 4, %v5212
      %v5214 = vrot.slane %v5004, %v5213
      %v5215 = vlaneseq
      %v5216 = vshrl.u32 %v5215, 7
      %v5217 = vsub.s32 4, %v5216
      %v5218 = vrot.slane %v5005, %v5217
      %v5219 = vlaneseq
      %v5220 = vshrl.u32 %v5219, 7
      %v5221 = vsub.s32 4, %v5220
      %v5222 = vrot.slane %v5006, %v5221
      %v5223 = vmul.f32 %v5194, %v5003
      %v5224 = vmul.f32 %v5198, %v5003
      %v5225 = vmul.f32 %v5202, %v5003
      %v5226 = vmul.f32 %v5206, %v5003
      %v5227 = vmul.f32 %v5210, %v5003
      %v5228 = vmul.f32 %v5214, %v5003
      %v5229 = vmul.f32 %v5218, %v5003
      %v5230 = vmul.f32 %v5222, %v5003
      %v5231 = vadd.f32 %v5183, %v5223
      %v5232 = vadd.f32 %v5184, %v5224
      %v5233 = vadd.f32 %v5185, %v5225
      %v5234 = vadd.f32 %v5186, %v5226
      %v5235 = vadd.f32 %v5187, %v5227
      %v5236 = vadd.f32 %v5188, %v5228
      %v5237 = vadd.f32 %v5189, %v5229
      %v5238 = vadd.f32 %v5190, %v5230
      %v5239 = vlaneseq
      %v5240 = vshrl.u32 %v5239, 7
      %v5241 = vsub.s32 5, %v5240
      %v5242 = vrot.slane %v4999, %v5241
      %v5243 = vlaneseq
      %v5244 = vshrl.u32 %v5243, 7
      %v5245 = vsub.s32 5, %v5244
      %v5246 = vrot.slane %v5000, %v5245
      %v5247 = vlaneseq
      %v5248 = vshrl.u32 %v5247, 7
      %v5249 = vsub.s32 5, %v5248
      %v5250 = vrot.slane %v5001, %v5249
      %v5251 = vlaneseq
      %v5252 = vshrl.u32 %v5251, 7
      %v5253 = vsub.s32 5, %v5252
      %v5254 = vrot.slane %v5002, %v5253
      %v5255 = vlaneseq
      %v5256 = vshrl.u32 %v5255, 7
      %v5257 = vsub.s32 5, %v5256
      %v5258 = vrot.slane %v5003, %v5257
      %v5259 = vlaneseq
      %v5260 = vshrl.u32 %v5259, 7
      %v5261 = vsub.s32 5, %v5260
      %v5262 = vrot.slane %v5004, %v5261
      %v5263 = vlaneseq
      %v5264 = vshrl.u32 %v5263, 7
      %v5265 = vsub.s32 5, %v5264
      %v5266 = vrot.slane %v5005, %v5265
      %v5267 = vlaneseq
      %v5268 = vshrl.u32 %v5267, 7
      %v5269 = vsub.s32 5, %v5268
      %v5270 = vrot.slane %v5006, %v5269
      %v5271 = vmul.f32 %v5242, %v5004
      %v5272 = vmul.f32 %v5246, %v5004
      %v5273 = vmul.f32 %v5250, %v5004
      %v5274 = vmul.f32 %v5254, %v5004
      %v5275 = vmul.f32 %v5258, %v5004
      %v5276 = vmul.f32 %v5262, %v5004
      %v5277 = vmul.f32 %v5266, %v5004
      %v5278 = vmul.f32 %v5270, %v5004
      %v5279 = vadd.f32 %v5231, %v5271
      %v5280 = vadd.f32 %v5232, %v5272
      %v5281 = vadd.f32 %v5233, %v5273
      %v5282 = vadd.f32 %v5234, %v5274
      %v5283 = vadd.f32 %v5235, %v5275
      %v5284 = vadd.f32 %v5236, %v5276
      %v5285 = vadd.f32 %v5237, %v5277
      %v5286 = vadd.f32 %v5238, %v5278
      %v5287 = vlaneseq
      %v5288 = vshrl.u32 %v5287, 7
      %v5289 = vsub.s32 6, %v5288
      %v5290 = vrot.slane %v4999, %v5289
      %v5291 = vlaneseq
      %v5292 = vshrl.u32 %v5291, 7
      %v5293 = vsub.s32 6, %v5292
      %v5294 = vrot.slane %v5000, %v5293
      %v5295 = vlaneseq
      %v5296 = vshrl.u32 %v5295, 7
      %v5297 = vsub.s32 6, %v5296
      %v5298 = vrot.slane %v5001, %v5297
      %v5299 = vlaneseq
      %v5300 = vshrl.u32 %v5299, 7
      %v5301 = vsub.s32 6, %v5300
      %v5302 = vrot.slane %v5002, %v5301
      %v5303 = vlaneseq
      %v5304 = vshrl.u32 %v5303, 7
      %v5305 = vsub.s32 6, %v5304
      %v5306 = vrot.slane %v5003, %v5305
      %v5307 = vlaneseq
      %v5308 = vshrl.u32 %v5307, 7
      %v5309 = vsub.s32 6, %v5308
      %v5310 = vrot.slane %v5004, %v5309
      %v5311 = vlaneseq
      %v5312 = vshrl.u32 %v5311, 7
      %v5313 = vsub.s32 6, %v5312
      %v5314 = vrot.slane %v5005, %v5313
      %v5315 = vlaneseq
      %v5316 = vshrl.u32 %v5315, 7
      %v5317 = vsub.s32 6, %v5316
      %v5318 = vrot.slane %v5006, %v5317
      %v5319 = vmul.f32 %v5290, %v5005
      %v5320 = vmul.f32 %v5294, %v5005
      %v5321 = vmul.f32 %v5298, %v5005
      %v5322 = vmul.f32 %v5302, %v5005
      %v5323 = vmul.f32 %v5306, %v5005
      %v5324 = vmul.f32 %v5310, %v5005
      %v5325 = vmul.f32 %v5314, %v5005
      %v5326 = vmul.f32 %v5318, %v5005
      %v5327 = vadd.f32 %v5279, %v5319
      %v5328 = vadd.f32 %v5280, %v5320
      %v5329 = vadd.f32 %v5281, %v5321
      %v5330 = vadd.f32 %v5282, %v5322
      %v5331 = vadd.f32 %v5283, %v5323
      %v5332 = vadd.f32 %v5284, %v5324
      %v5333 = vadd.f32 %v5285, %v5325
      %v5334 = vadd.f32 %v5286, %v5326
      %v5335 = vlaneseq
      %v5336 = vshrl.u32 %v5335, 7
      %v5337 = vsub.s32 7, %v5336
      %v5338 = vrot.slane %v4999, %v5337
      %v5339 = vlaneseq
      %v5340 = vshrl.u32 %v5339, 7
      %v5341 = vsub.s32 7, %v5340
      %v5342 = vrot.slane %v5000, %v5341
      %v5343 = vlaneseq
      %v5344 = vshrl.u32 %v5343, 7
      %v5345 = vsub.s32 7, %v5344
      %v5346 = vrot.slane %v5001, %v5345
      %v5347 = vlaneseq
      %v5348 = vshrl.u32 %v5347, 7
      %v5349 = vsub.s32 7, %v5348
      %v5350 = vrot.slane %v5002, %v5349
      %v5351 = vlaneseq
      %v5352 = vshrl.u32 %v5351, 7
      %v5353 = vsub.s32 7, %v5352
      %v5354 = vrot.slane %v5003, %v5353
      %v5355 = vlaneseq
      %v5356 = vshrl.u32 %v5355, 7
      %v5357 = vsub.s32 7, %v5356
      %v5358 = vrot.slane %v5004, %v5357
      %v5359 = vlaneseq
      %v5360 = vshrl.u32 %v5359, 7
      %v5361 = vsub.s32 7, %v5360
      %v5362 = vrot.slane %v5005, %v5361
      %v5363 = vlaneseq
      %v5364 = vshrl.u32 %v5363, 7
      %v5365 = vsub.s32 7, %v5364
      %v5366 = vrot.slane %v5006, %v5365
      %v5367 = vmul.f32 %v5338, %v5006
      %v5368 = vmul.f32 %v5342, %v5006
      %v5369 = vmul.f32 %v5346, %v5006
      %v5370 = vmul.f32 %v5350, %v5006
      %v5371 = vmul.f32 %v5354, %v5006
      %v5372 = vmul.f32 %v5358, %v5006
      %v5373 = vmul.f32 %v5362, %v5006
      %v5374 = vmul.f32 %v5366, %v5006
      %v5375 = vadd.f32 %v5327, %v5367
      %v5376 = vadd.f32 %v5328, %v5368
      %v5377 = vadd.f32 %v5329, %v5369
      %v5378 = vadd.f32 %v5330, %v5370
      %v5379 = vadd.f32 %v5331, %v5371
      %v5380 = vadd.f32 %v5332, %v5372
      %v5381 = vadd.f32 %v5333, %v5373
      %v5382 = vadd.f32 %v5334, %v5374
      %v5383 = vsel %vm535, 1, 0
      %vm5384 = vcmp.eq.s32.totalorder %v5383, 1
      %v5385 = vsel %vm5384, %v5375, %v4999
      %v5386 = vsel %vm5384, %v5376, %v5000
      %v5387 = vsel %vm5384, %v5377, %v5001
      %v5388 = vsel %vm5384, %v5378, %v5002
      %v5389 = vsel %vm5384, %v5379, %v5003
      %v5390 = vsel %vm5384, %v5380, %v5004
      %v5391 = vsel %vm5384, %v5381, %v5005
      %v5392 = vsel %vm5384, %v5382, %v5006
      %v5393 = vlaneseq
      %v5394 = vshrl.u32 %v5393, 7
      %v5395 = vsub.s32 0, %v5394
      %v5396 = vrot.slane %v5385, %v5395
      %v5397 = vlaneseq
      %v5398 = vshrl.u32 %v5397, 7
      %v5399 = vsub.s32 0, %v5398
      %v5400 = vrot.slane %v5386, %v5399
      %v5401 = vlaneseq
      %v5402 = vshrl.u32 %v5401, 7
      %v5403 = vsub.s32 0, %v5402
      %v5404 = vrot.slane %v5387, %v5403
      %v5405 = vlaneseq
      %v5406 = vshrl.u32 %v5405, 7
      %v5407 = vsub.s32 0, %v5406
      %v5408 = vrot.slane %v5388, %v5407
      %v5409 = vlaneseq
      %v5410 = vshrl.u32 %v5409, 7
      %v5411 = vsub.s32 0, %v5410
      %v5412 = vrot.slane %v5389, %v5411
      %v5413 = vlaneseq
      %v5414 = vshrl.u32 %v5413, 7
      %v5415 = vsub.s32 0, %v5414
      %v5416 = vrot.slane %v5390, %v5415
      %v5417 = vlaneseq
      %v5418 = vshrl.u32 %v5417, 7
      %v5419 = vsub.s32 0, %v5418
      %v5420 = vrot.slane %v5391, %v5419
      %v5421 = vlaneseq
      %v5422 = vshrl.u32 %v5421, 7
      %v5423 = vsub.s32 0, %v5422
      %v5424 = vrot.slane %v5392, %v5423
      %v5425 = vmul.f32 %v5396, %v5385
      %v5426 = vmul.f32 %v5400, %v5385
      %v5427 = vmul.f32 %v5404, %v5385
      %v5428 = vmul.f32 %v5408, %v5385
      %v5429 = vmul.f32 %v5412, %v5385
      %v5430 = vmul.f32 %v5416, %v5385
      %v5431 = vmul.f32 %v5420, %v5385
      %v5432 = vmul.f32 %v5424, %v5385
      %v5433 = vlaneseq
      %v5434 = vshrl.u32 %v5433, 7
      %v5435 = vsub.s32 1, %v5434
      %v5436 = vrot.slane %v5385, %v5435
      %v5437 = vlaneseq
      %v5438 = vshrl.u32 %v5437, 7
      %v5439 = vsub.s32 1, %v5438
      %v5440 = vrot.slane %v5386, %v5439
      %v5441 = vlaneseq
      %v5442 = vshrl.u32 %v5441, 7
      %v5443 = vsub.s32 1, %v5442
      %v5444 = vrot.slane %v5387, %v5443
      %v5445 = vlaneseq
      %v5446 = vshrl.u32 %v5445, 7
      %v5447 = vsub.s32 1, %v5446
      %v5448 = vrot.slane %v5388, %v5447
      %v5449 = vlaneseq
      %v5450 = vshrl.u32 %v5449, 7
      %v5451 = vsub.s32 1, %v5450
      %v5452 = vrot.slane %v5389, %v5451
      %v5453 = vlaneseq
      %v5454 = vshrl.u32 %v5453, 7
      %v5455 = vsub.s32 1, %v5454
      %v5456 = vrot.slane %v5390, %v5455
      %v5457 = vlaneseq
      %v5458 = vshrl.u32 %v5457, 7
      %v5459 = vsub.s32 1, %v5458
      %v5460 = vrot.slane %v5391, %v5459
      %v5461 = vlaneseq
      %v5462 = vshrl.u32 %v5461, 7
      %v5463 = vsub.s32 1, %v5462
      %v5464 = vrot.slane %v5392, %v5463
      %v5465 = vmul.f32 %v5436, %v5386
      %v5466 = vmul.f32 %v5440, %v5386
      %v5467 = vmul.f32 %v5444, %v5386
      %v5468 = vmul.f32 %v5448, %v5386
      %v5469 = vmul.f32 %v5452, %v5386
      %v5470 = vmul.f32 %v5456, %v5386
      %v5471 = vmul.f32 %v5460, %v5386
      %v5472 = vmul.f32 %v5464, %v5386
      %v5473 = vadd.f32 %v5425, %v5465
      %v5474 = vadd.f32 %v5426, %v5466
      %v5475 = vadd.f32 %v5427, %v5467
      %v5476 = vadd.f32 %v5428, %v5468
      %v5477 = vadd.f32 %v5429, %v5469
      %v5478 = vadd.f32 %v5430, %v5470
      %v5479 = vadd.f32 %v5431, %v5471
      %v5480 = vadd.f32 %v5432, %v5472
      %v5481 = vlaneseq
      %v5482 = vshrl.u32 %v5481, 7
      %v5483 = vsub.s32 2, %v5482
      %v5484 = vrot.slane %v5385, %v5483
      %v5485 = vlaneseq
      %v5486 = vshrl.u32 %v5485, 7
      %v5487 = vsub.s32 2, %v5486
      %v5488 = vrot.slane %v5386, %v5487
      %v5489 = vlaneseq
      %v5490 = vshrl.u32 %v5489, 7
      %v5491 = vsub.s32 2, %v5490
      %v5492 = vrot.slane %v5387, %v5491
      %v5493 = vlaneseq
      %v5494 = vshrl.u32 %v5493, 7
      %v5495 = vsub.s32 2, %v5494
      %v5496 = vrot.slane %v5388, %v5495
      %v5497 = vlaneseq
      %v5498 = vshrl.u32 %v5497, 7
      %v5499 = vsub.s32 2, %v5498
      %v5500 = vrot.slane %v5389, %v5499
      %v5501 = vlaneseq
      %v5502 = vshrl.u32 %v5501, 7
      %v5503 = vsub.s32 2, %v5502
      %v5504 = vrot.slane %v5390, %v5503
      %v5505 = vlaneseq
      %v5506 = vshrl.u32 %v5505, 7
      %v5507 = vsub.s32 2, %v5506
      %v5508 = vrot.slane %v5391, %v5507
      %v5509 = vlaneseq
      %v5510 = vshrl.u32 %v5509, 7
      %v5511 = vsub.s32 2, %v5510
      %v5512 = vrot.slane %v5392, %v5511
      %v5513 = vmul.f32 %v5484, %v5387
      %v5514 = vmul.f32 %v5488, %v5387
      %v5515 = vmul.f32 %v5492, %v5387
      %v5516 = vmul.f32 %v5496, %v5387
      %v5517 = vmul.f32 %v5500, %v5387
      %v5518 = vmul.f32 %v5504, %v5387
      %v5519 = vmul.f32 %v5508, %v5387
      %v5520 = vmul.f32 %v5512, %v5387
      %v5521 = vadd.f32 %v5473, %v5513
      %v5522 = vadd.f32 %v5474, %v5514
      %v5523 = vadd.f32 %v5475, %v5515
      %v5524 = vadd.f32 %v5476, %v5516
      %v5525 = vadd.f32 %v5477, %v5517
      %v5526 = vadd.f32 %v5478, %v5518
      %v5527 = vadd.f32 %v5479, %v5519
      %v5528 = vadd.f32 %v5480, %v5520
      %v5529 = vlaneseq
      %v5530 = vshrl.u32 %v5529, 7
      %v5531 = vsub.s32 3, %v5530
      %v5532 = vrot.slane %v5385, %v5531
      %v5533 = vlaneseq
      %v5534 = vshrl.u32 %v5533, 7
      %v5535 = vsub.s32 3, %v5534
      %v5536 = vrot.slane %v5386, %v5535
      %v5537 = vlaneseq
      %v5538 = vshrl.u32 %v5537, 7
      %v5539 = vsub.s32 3, %v5538
      %v5540 = vrot.slane %v5387, %v5539
      %v5541 = vlaneseq
      %v5542 = vshrl.u32 %v5541, 7
      %v5543 = vsub.s32 3, %v5542
      %v5544 = vrot.slane %v5388, %v5543
      %v5545 = vlaneseq
      %v5546 = vshrl.u32 %v5545, 7
      %v5547 = vsub.s32 3, %v5546
      %v5548 = vrot.slane %v5389, %v5547
      %v5549 = vlaneseq
      %v5550 = vshrl.u32 %v5549, 7
      %v5551 = vsub.s32 3, %v5550
      %v5552 = vrot.slane %v5390, %v5551
      %v5553 = vlaneseq
      %v5554 = vshrl.u32 %v5553, 7
      %v5555 = vsub.s32 3, %v5554
      %v5556 = vrot.slane %v5391, %v5555
      %v5557 = vlaneseq
      %v5558 = vshrl.u32 %v5557, 7
      %v5559 = vsub.s32 3, %v5558
      %v5560 = vrot.slane %v5392, %v5559
      %v5561 = vmul.f32 %v5532, %v5388
      %v5562 = vmul.f32 %v5536, %v5388
      %v5563 = vmul.f32 %v5540, %v5388
      %v5564 = vmul.f32 %v5544, %v5388
      %v5565 = vmul.f32 %v5548, %v5388
      %v5566 = vmul.f32 %v5552, %v5388
      %v5567 = vmul.f32 %v5556, %v5388
      %v5568 = vmul.f32 %v5560, %v5388
      %v5569 = vadd.f32 %v5521, %v5561
      %v5570 = vadd.f32 %v5522, %v5562
      %v5571 = vadd.f32 %v5523, %v5563
      %v5572 = vadd.f32 %v5524, %v5564
      %v5573 = vadd.f32 %v5525, %v5565
      %v5574 = vadd.f32 %v5526, %v5566
      %v5575 = vadd.f32 %v5527, %v5567
      %v5576 = vadd.f32 %v5528, %v5568
      %v5577 = vlaneseq
      %v5578 = vshrl.u32 %v5577, 7
      %v5579 = vsub.s32 4, %v5578
      %v5580 = vrot.slane %v5385, %v5579
      %v5581 = vlaneseq
      %v5582 = vshrl.u32 %v5581, 7
      %v5583 = vsub.s32 4, %v5582
      %v5584 = vrot.slane %v5386, %v5583
      %v5585 = vlaneseq
      %v5586 = vshrl.u32 %v5585, 7
      %v5587 = vsub.s32 4, %v5586
      %v5588 = vrot.slane %v5387, %v5587
      %v5589 = vlaneseq
      %v5590 = vshrl.u32 %v5589, 7
      %v5591 = vsub.s32 4, %v5590
      %v5592 = vrot.slane %v5388, %v5591
      %v5593 = vlaneseq
      %v5594 = vshrl.u32 %v5593, 7
      %v5595 = vsub.s32 4, %v5594
      %v5596 = vrot.slane %v5389, %v5595
      %v5597 = vlaneseq
      %v5598 = vshrl.u32 %v5597, 7
      %v5599 = vsub.s32 4, %v5598
      %v5600 = vrot.slane %v5390, %v5599
      %v5601 = vlaneseq
      %v5602 = vshrl.u32 %v5601, 7
      %v5603 = vsub.s32 4, %v5602
      %v5604 = vrot.slane %v5391, %v5603
      %v5605 = vlaneseq
      %v5606 = vshrl.u32 %v5605, 7
      %v5607 = vsub.s32 4, %v5606
      %v5608 = vrot.slane %v5392, %v5607
      %v5609 = vmul.f32 %v5580, %v5389
      %v5610 = vmul.f32 %v5584, %v5389
      %v5611 = vmul.f32 %v5588, %v5389
      %v5612 = vmul.f32 %v5592, %v5389
      %v5613 = vmul.f32 %v5596, %v5389
      %v5614 = vmul.f32 %v5600, %v5389
      %v5615 = vmul.f32 %v5604, %v5389
      %v5616 = vmul.f32 %v5608, %v5389
      %v5617 = vadd.f32 %v5569, %v5609
      %v5618 = vadd.f32 %v5570, %v5610
      %v5619 = vadd.f32 %v5571, %v5611
      %v5620 = vadd.f32 %v5572, %v5612
      %v5621 = vadd.f32 %v5573, %v5613
      %v5622 = vadd.f32 %v5574, %v5614
      %v5623 = vadd.f32 %v5575, %v5615
      %v5624 = vadd.f32 %v5576, %v5616
      %v5625 = vlaneseq
      %v5626 = vshrl.u32 %v5625, 7
      %v5627 = vsub.s32 5, %v5626
      %v5628 = vrot.slane %v5385, %v5627
      %v5629 = vlaneseq
      %v5630 = vshrl.u32 %v5629, 7
      %v5631 = vsub.s32 5, %v5630
      %v5632 = vrot.slane %v5386, %v5631
      %v5633 = vlaneseq
      %v5634 = vshrl.u32 %v5633, 7
      %v5635 = vsub.s32 5, %v5634
      %v5636 = vrot.slane %v5387, %v5635
      %v5637 = vlaneseq
      %v5638 = vshrl.u32 %v5637, 7
      %v5639 = vsub.s32 5, %v5638
      %v5640 = vrot.slane %v5388, %v5639
      %v5641 = vlaneseq
      %v5642 = vshrl.u32 %v5641, 7
      %v5643 = vsub.s32 5, %v5642
      %v5644 = vrot.slane %v5389, %v5643
      %v5645 = vlaneseq
      %v5646 = vshrl.u32 %v5645, 7
      %v5647 = vsub.s32 5, %v5646
      %v5648 = vrot.slane %v5390, %v5647
      %v5649 = vlaneseq
      %v5650 = vshrl.u32 %v5649, 7
      %v5651 = vsub.s32 5, %v5650
      %v5652 = vrot.slane %v5391, %v5651
      %v5653 = vlaneseq
      %v5654 = vshrl.u32 %v5653, 7
      %v5655 = vsub.s32 5, %v5654
      %v5656 = vrot.slane %v5392, %v5655
      %v5657 = vmul.f32 %v5628, %v5390
      %v5658 = vmul.f32 %v5632, %v5390
      %v5659 = vmul.f32 %v5636, %v5390
      %v5660 = vmul.f32 %v5640, %v5390
      %v5661 = vmul.f32 %v5644, %v5390
      %v5662 = vmul.f32 %v5648, %v5390
      %v5663 = vmul.f32 %v5652, %v5390
      %v5664 = vmul.f32 %v5656, %v5390
      %v5665 = vadd.f32 %v5617, %v5657
      %v5666 = vadd.f32 %v5618, %v5658
      %v5667 = vadd.f32 %v5619, %v5659
      %v5668 = vadd.f32 %v5620, %v5660
      %v5669 = vadd.f32 %v5621, %v5661
      %v5670 = vadd.f32 %v5622, %v5662
      %v5671 = vadd.f32 %v5623, %v5663
      %v5672 = vadd.f32 %v5624, %v5664
      %v5673 = vlaneseq
      %v5674 = vshrl.u32 %v5673, 7
      %v5675 = vsub.s32 6, %v5674
      %v5676 = vrot.slane %v5385, %v5675
      %v5677 = vlaneseq
      %v5678 = vshrl.u32 %v5677, 7
      %v5679 = vsub.s32 6, %v5678
      %v5680 = vrot.slane %v5386, %v5679
      %v5681 = vlaneseq
      %v5682 = vshrl.u32 %v5681, 7
      %v5683 = vsub.s32 6, %v5682
      %v5684 = vrot.slane %v5387, %v5683
      %v5685 = vlaneseq
      %v5686 = vshrl.u32 %v5685, 7
      %v5687 = vsub.s32 6, %v5686
      %v5688 = vrot.slane %v5388, %v5687
      %v5689 = vlaneseq
      %v5690 = vshrl.u32 %v5689, 7
      %v5691 = vsub.s32 6, %v5690
      %v5692 = vrot.slane %v5389, %v5691
      %v5693 = vlaneseq
      %v5694 = vshrl.u32 %v5693, 7
      %v5695 = vsub.s32 6, %v5694
      %v5696 = vrot.slane %v5390, %v5695
      %v5697 = vlaneseq
      %v5698 = vshrl.u32 %v5697, 7
      %v5699 = vsub.s32 6, %v5698
      %v5700 = vrot.slane %v5391, %v5699
      %v5701 = vlaneseq
      %v5702 = vshrl.u32 %v5701, 7
      %v5703 = vsub.s32 6, %v5702
      %v5704 = vrot.slane %v5392, %v5703
      %v5705 = vmul.f32 %v5676, %v5391
      %v5706 = vmul.f32 %v5680, %v5391
      %v5707 = vmul.f32 %v5684, %v5391
      %v5708 = vmul.f32 %v5688, %v5391
      %v5709 = vmul.f32 %v5692, %v5391
      %v5710 = vmul.f32 %v5696, %v5391
      %v5711 = vmul.f32 %v5700, %v5391
      %v5712 = vmul.f32 %v5704, %v5391
      %v5713 = vadd.f32 %v5665, %v5705
      %v5714 = vadd.f32 %v5666, %v5706
      %v5715 = vadd.f32 %v5667, %v5707
      %v5716 = vadd.f32 %v5668, %v5708
      %v5717 = vadd.f32 %v5669, %v5709
      %v5718 = vadd.f32 %v5670, %v5710
      %v5719 = vadd.f32 %v5671, %v5711
      %v5720 = vadd.f32 %v5672, %v5712
      %v5721 = vlaneseq
      %v5722 = vshrl.u32 %v5721, 7
      %v5723 = vsub.s32 7, %v5722
      %v5724 = vrot.slane %v5385, %v5723
      %v5725 = vlaneseq
      %v5726 = vshrl.u32 %v5725, 7
      %v5727 = vsub.s32 7, %v5726
      %v5728 = vrot.slane %v5386, %v5727
      %v5729 = vlaneseq
      %v5730 = vshrl.u32 %v5729, 7
      %v5731 = vsub.s32 7, %v5730
      %v5732 = vrot.slane %v5387, %v5731
      %v5733 = vlaneseq
      %v5734 = vshrl.u32 %v5733, 7
      %v5735 = vsub.s32 7, %v5734
      %v5736 = vrot.slane %v5388, %v5735
      %v5737 = vlaneseq
      %v5738 = vshrl.u32 %v5737, 7
      %v5739 = vsub.s32 7, %v5738
      %v5740 = vrot.slane %v5389, %v5739
      %v5741 = vlaneseq
      %v5742 = vshrl.u32 %v5741, 7
      %v5743 = vsub.s32 7, %v5742
      %v5744 = vrot.slane %v5390, %v5743
      %v5745 = vlaneseq
      %v5746 = vshrl.u32 %v5745, 7
      %v5747 = vsub.s32 7, %v5746
      %v5748 = vrot.slane %v5391, %v5747
      %v5749 = vlaneseq
      %v5750 = vshrl.u32 %v5749, 7
      %v5751 = vsub.s32 7, %v5750
      %v5752 = vrot.slane %v5392, %v5751
      %v5753 = vmul.f32 %v5724, %v5392
      %v5754 = vmul.f32 %v5728, %v5392
      %v5755 = vmul.f32 %v5732, %v5392
      %v5756 = vmul.f32 %v5736, %v5392
      %v5757 = vmul.f32 %v5740, %v5392
      %v5758 = vmul.f32 %v5744, %v5392
      %v5759 = vmul.f32 %v5748, %v5392
      %v5760 = vmul.f32 %v5752, %v5392
      %v5761 = vadd.f32 %v5713, %v5753
      %v5762 = vadd.f32 %v5714, %v5754
      %v5763 = vadd.f32 %v5715, %v5755
      %v5764 = vadd.f32 %v5716, %v5756
      %v5765 = vadd.f32 %v5717, %v5757
      %v5766 = vadd.f32 %v5718, %v5758
      %v5767 = vadd.f32 %v5719, %v5759
      %v5768 = vadd.f32 %v5720, %v5760
      %v5769 = vsel %vm540, 1, 0
      %vm5770 = vcmp.eq.s32.totalorder %v5769, 1
      %v5771 = vsel %vm5770, %v5761, %v5385
      %v5772 = vsel %vm5770, %v5762, %v5386
      %v5773 = vsel %vm5770, %v5763, %v5387
      %v5774 = vsel %vm5770, %v5764, %v5388
      %v5775 = vsel %vm5770, %v5765, %v5389
      %v5776 = vsel %vm5770, %v5766, %v5390
      %v5777 = vsel %vm5770, %v5767, %v5391
      %v5778 = vsel %vm5770, %v5768, %v5392
      %v5779 = vlaneseq
      %v5780 = vshrl.u32 %v5779, 7
      %v5781 = vsub.s32 0, %v5780
      %v5782 = vrot.slane %v5771, %v5781
      %v5783 = vlaneseq
      %v5784 = vshrl.u32 %v5783, 7
      %v5785 = vsub.s32 0, %v5784
      %v5786 = vrot.slane %v5772, %v5785
      %v5787 = vlaneseq
      %v5788 = vshrl.u32 %v5787, 7
      %v5789 = vsub.s32 0, %v5788
      %v5790 = vrot.slane %v5773, %v5789
      %v5791 = vlaneseq
      %v5792 = vshrl.u32 %v5791, 7
      %v5793 = vsub.s32 0, %v5792
      %v5794 = vrot.slane %v5774, %v5793
      %v5795 = vlaneseq
      %v5796 = vshrl.u32 %v5795, 7
      %v5797 = vsub.s32 0, %v5796
      %v5798 = vrot.slane %v5775, %v5797
      %v5799 = vlaneseq
      %v5800 = vshrl.u32 %v5799, 7
      %v5801 = vsub.s32 0, %v5800
      %v5802 = vrot.slane %v5776, %v5801
      %v5803 = vlaneseq
      %v5804 = vshrl.u32 %v5803, 7
      %v5805 = vsub.s32 0, %v5804
      %v5806 = vrot.slane %v5777, %v5805
      %v5807 = vlaneseq
      %v5808 = vshrl.u32 %v5807, 7
      %v5809 = vsub.s32 0, %v5808
      %v5810 = vrot.slane %v5778, %v5809
      %5812 = vrot.lane.b32.xlu0 %v5771, 120
      %v5813 = vpop.permute.xlu0 %5812
      %v5815 = vmul.f32 %v5782, %v5813
      %v5816 = vmul.f32 %v5786, %v5813
      %v5817 = vmul.f32 %v5790, %v5813
      %v5818 = vmul.f32 %v5794, %v5813
      %v5819 = vmul.f32 %v5798, %v5813
      %v5820 = vmul.f32 %v5802, %v5813
      %v5821 = vmul.f32 %v5806, %v5813
      %v5822 = vmul.f32 %v5810, %v5813
      %v5823 = vlaneseq
      %v5824 = vshrl.u32 %v5823, 7
      %v5825 = vsub.s32 1, %v5824
      %v5826 = vrot.slane %v5771, %v5825
      %v5827 = vlaneseq
      %v5828 = vshrl.u32 %v5827, 7
      %v5829 = vsub.s32 1, %v5828
      %v5830 = vrot.slane %v5772, %v5829
      %v5831 = vlaneseq
      %v5832 = vshrl.u32 %v5831, 7
      %v5833 = vsub.s32 1, %v5832
      %v5834 = vrot.slane %v5773, %v5833
      %v5835 = vlaneseq
      %v5836 = vshrl.u32 %v5835, 7
      %v5837 = vsub.s32 1, %v5836
      %v5838 = vrot.slane %v5774, %v5837
      %v5839 = vlaneseq
      %v5840 = vshrl.u32 %v5839, 7
      %v5841 = vsub.s32 1, %v5840
      %v5842 = vrot.slane %v5775, %v5841
      %v5843 = vlaneseq
      %v5844 = vshrl.u32 %v5843, 7
      %v5845 = vsub.s32 1, %v5844
      %v5846 = vrot.slane %v5776, %v5845
      %v5847 = vlaneseq
      %v5848 = vshrl.u32 %v5847, 7
      %v5849 = vsub.s32 1, %v5848
      %v5850 = vrot.slane %v5777, %v5849
      %v5851 = vlaneseq
      %v5852 = vshrl.u32 %v5851, 7
      %v5853 = vsub.s32 1, %v5852
      %v5854 = vrot.slane %v5778, %v5853
      %5856 = vrot.lane.b32.xlu0 %v5772, 120
      %v5857 = vpop.permute.xlu0 %5856
      %v5859 = vmul.f32 %v5826, %v5857
      %v5860 = vmul.f32 %v5830, %v5857
      %v5861 = vmul.f32 %v5834, %v5857
      %v5862 = vmul.f32 %v5838, %v5857
      %v5863 = vmul.f32 %v5842, %v5857
      %v5864 = vmul.f32 %v5846, %v5857
      %v5865 = vmul.f32 %v5850, %v5857
      %v5866 = vmul.f32 %v5854, %v5857
      %v5867 = vadd.f32 %v5815, %v5859
      %v5868 = vadd.f32 %v5816, %v5860
      %v5869 = vadd.f32 %v5817, %v5861
      %v5870 = vadd.f32 %v5818, %v5862
      %v5871 = vadd.f32 %v5819, %v5863
      %v5872 = vadd.f32 %v5820, %v5864
      %v5873 = vadd.f32 %v5821, %v5865
      %v5874 = vadd.f32 %v5822, %v5866
      %v5875 = vlaneseq
      %v5876 = vshrl.u32 %v5875, 7
      %v5877 = vsub.s32 2, %v5876
      %v5878 = vrot.slane %v5771, %v5877
      %v5879 = vlaneseq
      %v5880 = vshrl.u32 %v5879, 7
      %v5881 = vsub.s32 2, %v5880
      %v5882 = vrot.slane %v5772, %v5881
      %v5883 = vlaneseq
      %v5884 = vshrl.u32 %v5883, 7
      %v5885 = vsub.s32 2, %v5884
      %v5886 = vrot.slane %v5773, %v5885
      %v5887 = vlaneseq
      %v5888 = vshrl.u32 %v5887, 7
      %v5889 = vsub.s32 2, %v5888
      %v5890 = vrot.slane %v5774, %v5889
      %v5891 = vlaneseq
      %v5892 = vshrl.u32 %v5891, 7
      %v5893 = vsub.s32 2, %v5892
      %v5894 = vrot.slane %v5775, %v5893
      %v5895 = vlaneseq
      %v5896 = vshrl.u32 %v5895, 7
      %v5897 = vsub.s32 2, %v5896
      %v5898 = vrot.slane %v5776, %v5897
      %v5899 = vlaneseq
      %v5900 = vshrl.u32 %v5899, 7
      %v5901 = vsub.s32 2, %v5900
      %v5902 = vrot.slane %v5777, %v5901
      %v5903 = vlaneseq
      %v5904 = vshrl.u32 %v5903, 7
      %v5905 = vsub.s32 2, %v5904
      %v5906 = vrot.slane %v5778, %v5905
      %5908 = vrot.lane.b32.xlu0 %v5773, 120
      %v5909 = vpop.permute.xlu0 %5908
      %v5911 = vmul.f32 %v5878, %v5909
      %v5912 = vmul.f32 %v5882, %v5909
      %v5913 = vmul.f32 %v5886, %v5909
      %v5914 = vmul.f32 %v5890, %v5909
      %v5915 = vmul.f32 %v5894, %v5909
      %v5916 = vmul.f32 %v5898, %v5909
      %v5917 = vmul.f32 %v5902, %v5909
      %v5918 = vmul.f32 %v5906, %v5909
      %v5919 = vadd.f32 %v5867, %v5911
      %v5920 = vadd.f32 %v5868, %v5912
      %v5921 = vadd.f32 %v5869, %v5913
      %v5922 = vadd.f32 %v5870, %v5914
      %v5923 = vadd.f32 %v5871, %v5915
      %v5924 = vadd.f32 %v5872, %v5916
      %v5925 = vadd.f32 %v5873, %v5917
      %v5926 = vadd.f32 %v5874, %v5918
      %v5927 = vlaneseq
      %v5928 = vshrl.u32 %v5927, 7
      %v5929 = vsub.s32 3, %v5928
      %v5930 = vrot.slane %v5771, %v5929
      %v5931 = vlaneseq
      %v5932 = vshrl.u32 %v5931, 7
      %v5933 = vsub.s32 3, %v5932
      %v5934 = vrot.slane %v5772, %v5933
      %v5935 = vlaneseq
      %v5936 = vshrl.u32 %v5935, 7
      %v5937 = vsub.s32 3, %v5936
      %v5938 = vrot.slane %v5773, %v5937
      %v5939 = vlaneseq
      %v5940 = vshrl.u32 %v5939, 7
      %v5941 = vsub.s32 3, %v5940
      %v5942 = vrot.slane %v5774, %v5941
      %v5943 = vlaneseq
      %v5944 = vshrl.u32 %v5943, 7
      %v5945 = vsub.s32 3, %v5944
      %v5946 = vrot.slane %v5775, %v5945
      %v5947 = vlaneseq
      %v5948 = vshrl.u32 %v5947, 7
      %v5949 = vsub.s32 3, %v5948
      %v5950 = vrot.slane %v5776, %v5949
      %v5951 = vlaneseq
      %v5952 = vshrl.u32 %v5951, 7
      %v5953 = vsub.s32 3, %v5952
      %v5954 = vrot.slane %v5777, %v5953
      %v5955 = vlaneseq
      %v5956 = vshrl.u32 %v5955, 7
      %v5957 = vsub.s32 3, %v5956
      %v5958 = vrot.slane %v5778, %v5957
      %5960 = vrot.lane.b32.xlu0 %v5774, 120
      %v5961 = vpop.permute.xlu0 %5960
      %v5963 = vmul.f32 %v5930, %v5961
      %v5964 = vmul.f32 %v5934, %v5961
      %v5965 = vmul.f32 %v5938, %v5961
      %v5966 = vmul.f32 %v5942, %v5961
      %v5967 = vmul.f32 %v5946, %v5961
      %v5968 = vmul.f32 %v5950, %v5961
      %v5969 = vmul.f32 %v5954, %v5961
      %v5970 = vmul.f32 %v5958, %v5961
      %v5971 = vadd.f32 %v5919, %v5963
      %v5972 = vadd.f32 %v5920, %v5964
      %v5973 = vadd.f32 %v5921, %v5965
      %v5974 = vadd.f32 %v5922, %v5966
      %v5975 = vadd.f32 %v5923, %v5967
      %v5976 = vadd.f32 %v5924, %v5968
      %v5977 = vadd.f32 %v5925, %v5969
      %v5978 = vadd.f32 %v5926, %v5970
      %v5979 = vlaneseq
      %v5980 = vshrl.u32 %v5979, 7
      %v5981 = vsub.s32 4, %v5980
      %v5982 = vrot.slane %v5771, %v5981
      %v5983 = vlaneseq
      %v5984 = vshrl.u32 %v5983, 7
      %v5985 = vsub.s32 4, %v5984
      %v5986 = vrot.slane %v5772, %v5985
      %v5987 = vlaneseq
      %v5988 = vshrl.u32 %v5987, 7
      %v5989 = vsub.s32 4, %v5988
      %v5990 = vrot.slane %v5773, %v5989
      %v5991 = vlaneseq
      %v5992 = vshrl.u32 %v5991, 7
      %v5993 = vsub.s32 4, %v5992
      %v5994 = vrot.slane %v5774, %v5993
      %v5995 = vlaneseq
      %v5996 = vshrl.u32 %v5995, 7
      %v5997 = vsub.s32 4, %v5996
      %v5998 = vrot.slane %v5775, %v5997
      %v5999 = vlaneseq
      %v6000 = vshrl.u32 %v5999, 7
      %v6001 = vsub.s32 4, %v6000
      %v6002 = vrot.slane %v5776, %v6001
      %v6003 = vlaneseq
      %v6004 = vshrl.u32 %v6003, 7
      %v6005 = vsub.s32 4, %v6004
      %v6006 = vrot.slane %v5777, %v6005
      %v6007 = vlaneseq
      %v6008 = vshrl.u32 %v6007, 7
      %v6009 = vsub.s32 4, %v6008
      %v6010 = vrot.slane %v5778, %v6009
      %6012 = vrot.lane.b32.xlu0 %v5775, 120
      %v6013 = vpop.permute.xlu0 %6012
      %v6015 = vmul.f32 %v5982, %v6013
      %v6016 = vmul.f32 %v5986, %v6013
      %v6017 = vmul.f32 %v5990, %v6013
      %v6018 = vmul.f32 %v5994, %v6013
      %v6019 = vmul.f32 %v5998, %v6013
      %v6020 = vmul.f32 %v6002, %v6013
      %v6021 = vmul.f32 %v6006, %v6013
      %v6022 = vmul.f32 %v6010, %v6013
      %v6023 = vadd.f32 %v5971, %v6015
      %v6024 = vadd.f32 %v5972, %v6016
      %v6025 = vadd.f32 %v5973, %v6017
      %v6026 = vadd.f32 %v5974, %v6018
      %v6027 = vadd.f32 %v5975, %v6019
      %v6028 = vadd.f32 %v5976, %v6020
      %v6029 = vadd.f32 %v5977, %v6021
      %v6030 = vadd.f32 %v5978, %v6022
      %v6031 = vlaneseq
      %v6032 = vshrl.u32 %v6031, 7
      %v6033 = vsub.s32 5, %v6032
      %v6034 = vrot.slane %v5771, %v6033
      %v6035 = vlaneseq
      %v6036 = vshrl.u32 %v6035, 7
      %v6037 = vsub.s32 5, %v6036
      %v6038 = vrot.slane %v5772, %v6037
      %v6039 = vlaneseq
      %v6040 = vshrl.u32 %v6039, 7
      %v6041 = vsub.s32 5, %v6040
      %v6042 = vrot.slane %v5773, %v6041
      %v6043 = vlaneseq
      %v6044 = vshrl.u32 %v6043, 7
      %v6045 = vsub.s32 5, %v6044
      %v6046 = vrot.slane %v5774, %v6045
      %v6047 = vlaneseq
      %v6048 = vshrl.u32 %v6047, 7
      %v6049 = vsub.s32 5, %v6048
      %v6050 = vrot.slane %v5775, %v6049
      %v6051 = vlaneseq
      %v6052 = vshrl.u32 %v6051, 7
      %v6053 = vsub.s32 5, %v6052
      %v6054 = vrot.slane %v5776, %v6053
      %v6055 = vlaneseq
      %v6056 = vshrl.u32 %v6055, 7
      %v6057 = vsub.s32 5, %v6056
      %v6058 = vrot.slane %v5777, %v6057
      %v6059 = vlaneseq
      %v6060 = vshrl.u32 %v6059, 7
      %v6061 = vsub.s32 5, %v6060
      %v6062 = vrot.slane %v5778, %v6061
      %6064 = vrot.lane.b32.xlu0 %v5776, 120
      %v6065 = vpop.permute.xlu0 %6064
      %v6067 = vmul.f32 %v6034, %v6065
      %v6068 = vmul.f32 %v6038, %v6065
      %v6069 = vmul.f32 %v6042, %v6065
      %v6070 = vmul.f32 %v6046, %v6065
      %v6071 = vmul.f32 %v6050, %v6065
      %v6072 = vmul.f32 %v6054, %v6065
      %v6073 = vmul.f32 %v6058, %v6065
      %v6074 = vmul.f32 %v6062, %v6065
      %v6075 = vadd.f32 %v6023, %v6067
      %v6076 = vadd.f32 %v6024, %v6068
      %v6077 = vadd.f32 %v6025, %v6069
      %v6078 = vadd.f32 %v6026, %v6070
      %v6079 = vadd.f32 %v6027, %v6071
      %v6080 = vadd.f32 %v6028, %v6072
      %v6081 = vadd.f32 %v6029, %v6073
      %v6082 = vadd.f32 %v6030, %v6074
      %v6083 = vlaneseq
      %v6084 = vshrl.u32 %v6083, 7
      %v6085 = vsub.s32 6, %v6084
      %v6086 = vrot.slane %v5771, %v6085
      %v6087 = vlaneseq
      %v6088 = vshrl.u32 %v6087, 7
      %v6089 = vsub.s32 6, %v6088
      %v6090 = vrot.slane %v5772, %v6089
      %v6091 = vlaneseq
      %v6092 = vshrl.u32 %v6091, 7
      %v6093 = vsub.s32 6, %v6092
      %v6094 = vrot.slane %v5773, %v6093
      %v6095 = vlaneseq
      %v6096 = vshrl.u32 %v6095, 7
      %v6097 = vsub.s32 6, %v6096
      %v6098 = vrot.slane %v5774, %v6097
      %v6099 = vlaneseq
      %v6100 = vshrl.u32 %v6099, 7
      %v6101 = vsub.s32 6, %v6100
      %v6102 = vrot.slane %v5775, %v6101
      %v6103 = vlaneseq
      %v6104 = vshrl.u32 %v6103, 7
      %v6105 = vsub.s32 6, %v6104
      %v6106 = vrot.slane %v5776, %v6105
      %v6107 = vlaneseq
      %v6108 = vshrl.u32 %v6107, 7
      %v6109 = vsub.s32 6, %v6108
      %v6110 = vrot.slane %v5777, %v6109
      %v6111 = vlaneseq
      %v6112 = vshrl.u32 %v6111, 7
      %v6113 = vsub.s32 6, %v6112
      %v6114 = vrot.slane %v5778, %v6113
      %6116 = vrot.lane.b32.xlu0 %v5777, 120
      %v6117 = vpop.permute.xlu0 %6116
      %v6119 = vmul.f32 %v6086, %v6117
      %v6120 = vmul.f32 %v6090, %v6117
      %v6121 = vmul.f32 %v6094, %v6117
      %v6122 = vmul.f32 %v6098, %v6117
      %v6123 = vmul.f32 %v6102, %v6117
      %v6124 = vmul.f32 %v6106, %v6117
      %v6125 = vmul.f32 %v6110, %v6117
      %v6126 = vmul.f32 %v6114, %v6117
      %v6127 = vadd.f32 %v6075, %v6119
      %v6128 = vadd.f32 %v6076, %v6120
      %v6129 = vadd.f32 %v6077, %v6121
      %v6130 = vadd.f32 %v6078, %v6122
      %v6131 = vadd.f32 %v6079, %v6123
      %v6132 = vadd.f32 %v6080, %v6124
      %v6133 = vadd.f32 %v6081, %v6125
      %v6134 = vadd.f32 %v6082, %v6126
      %v6135 = vlaneseq
      %v6136 = vshrl.u32 %v6135, 7
      %v6137 = vsub.s32 7, %v6136
      %v6138 = vrot.slane %v5771, %v6137
      %v6139 = vlaneseq
      %v6140 = vshrl.u32 %v6139, 7
      %v6141 = vsub.s32 7, %v6140
      %v6142 = vrot.slane %v5772, %v6141
      %v6143 = vlaneseq
      %v6144 = vshrl.u32 %v6143, 7
      %v6145 = vsub.s32 7, %v6144
      %v6146 = vrot.slane %v5773, %v6145
      %v6147 = vlaneseq
      %v6148 = vshrl.u32 %v6147, 7
      %v6149 = vsub.s32 7, %v6148
      %v6150 = vrot.slane %v5774, %v6149
      %v6151 = vlaneseq
      %v6152 = vshrl.u32 %v6151, 7
      %v6153 = vsub.s32 7, %v6152
      %v6154 = vrot.slane %v5775, %v6153
      %v6155 = vlaneseq
      %v6156 = vshrl.u32 %v6155, 7
      %v6157 = vsub.s32 7, %v6156
      %v6158 = vrot.slane %v5776, %v6157
      %v6159 = vlaneseq
      %v6160 = vshrl.u32 %v6159, 7
      %v6161 = vsub.s32 7, %v6160
      %v6162 = vrot.slane %v5777, %v6161
      %v6163 = vlaneseq
      %v6164 = vshrl.u32 %v6163, 7
      %v6165 = vsub.s32 7, %v6164
      %v6166 = vrot.slane %v5778, %v6165
      %6168 = vrot.lane.b32.xlu0 %v5778, 120
      %v6169 = vpop.permute.xlu0 %6168
      %v6171 = vmul.f32 %v6138, %v6169
      %v6172 = vmul.f32 %v6142, %v6169
      %v6173 = vmul.f32 %v6146, %v6169
      %v6174 = vmul.f32 %v6150, %v6169
      %v6175 = vmul.f32 %v6154, %v6169
      %v6176 = vmul.f32 %v6158, %v6169
      %v6177 = vmul.f32 %v6162, %v6169
      %v6178 = vmul.f32 %v6166, %v6169
      %v6179 = vadd.f32 %v6127, %v6171
      %v6180 = vadd.f32 %v6128, %v6172
      %v6181 = vadd.f32 %v6129, %v6173
      %v6182 = vadd.f32 %v6130, %v6174
      %v6183 = vadd.f32 %v6131, %v6175
      %v6184 = vadd.f32 %v6132, %v6176
      %v6185 = vadd.f32 %v6133, %v6177
      %v6186 = vadd.f32 %v6134, %v6178
      %v6187 = vlaneseq
      %v6188 = vshrl.u32 %v6187, 7
      %v6189 = vsub.s32 0, %v6188
      %v6190 = vrot.slane %v6179, %v6189
      %v6191 = vlaneseq
      %v6192 = vshrl.u32 %v6191, 7
      %v6193 = vsub.s32 0, %v6192
      %v6194 = vrot.slane %v6180, %v6193
      %v6195 = vlaneseq
      %v6196 = vshrl.u32 %v6195, 7
      %v6197 = vsub.s32 0, %v6196
      %v6198 = vrot.slane %v6181, %v6197
      %v6199 = vlaneseq
      %v6200 = vshrl.u32 %v6199, 7
      %v6201 = vsub.s32 0, %v6200
      %v6202 = vrot.slane %v6182, %v6201
      %v6203 = vlaneseq
      %v6204 = vshrl.u32 %v6203, 7
      %v6205 = vsub.s32 0, %v6204
      %v6206 = vrot.slane %v6183, %v6205
      %v6207 = vlaneseq
      %v6208 = vshrl.u32 %v6207, 7
      %v6209 = vsub.s32 0, %v6208
      %v6210 = vrot.slane %v6184, %v6209
      %v6211 = vlaneseq
      %v6212 = vshrl.u32 %v6211, 7
      %v6213 = vsub.s32 0, %v6212
      %v6214 = vrot.slane %v6185, %v6213
      %v6215 = vlaneseq
      %v6216 = vshrl.u32 %v6215, 7
      %v6217 = vsub.s32 0, %v6216
      %v6218 = vrot.slane %v6186, %v6217
      %6220 = vrot.lane.b32.xlu0 %v6179, 124
      %v6221 = vpop.permute.xlu0 %6220
      %v6223 = vmul.f32 %v6190, %v6221
      %v6224 = vmul.f32 %v6194, %v6221
      %v6225 = vmul.f32 %v6198, %v6221
      %v6226 = vmul.f32 %v6202, %v6221
      %v6227 = vmul.f32 %v6206, %v6221
      %v6228 = vmul.f32 %v6210, %v6221
      %v6229 = vmul.f32 %v6214, %v6221
      %v6230 = vmul.f32 %v6218, %v6221
      %v6231 = vlaneseq
      %v6232 = vshrl.u32 %v6231, 7
      %v6233 = vsub.s32 1, %v6232
      %v6234 = vrot.slane %v6179, %v6233
      %v6235 = vlaneseq
      %v6236 = vshrl.u32 %v6235, 7
      %v6237 = vsub.s32 1, %v6236
      %v6238 = vrot.slane %v6180, %v6237
      %v6239 = vlaneseq
      %v6240 = vshrl.u32 %v6239, 7
      %v6241 = vsub.s32 1, %v6240
      %v6242 = vrot.slane %v6181, %v6241
      %v6243 = vlaneseq
      %v6244 = vshrl.u32 %v6243, 7
      %v6245 = vsub.s32 1, %v6244
      %v6246 = vrot.slane %v6182, %v6245
      %v6247 = vlaneseq
      %v6248 = vshrl.u32 %v6247, 7
      %v6249 = vsub.s32 1, %v6248
      %v6250 = vrot.slane %v6183, %v6249
      %v6251 = vlaneseq
      %v6252 = vshrl.u32 %v6251, 7
      %v6253 = vsub.s32 1, %v6252
      %v6254 = vrot.slane %v6184, %v6253
      %v6255 = vlaneseq
      %v6256 = vshrl.u32 %v6255, 7
      %v6257 = vsub.s32 1, %v6256
      %v6258 = vrot.slane %v6185, %v6257
      %v6259 = vlaneseq
      %v6260 = vshrl.u32 %v6259, 7
      %v6261 = vsub.s32 1, %v6260
      %v6262 = vrot.slane %v6186, %v6261
      %6264 = vrot.lane.b32.xlu0 %v6180, 124
      %v6265 = vpop.permute.xlu0 %6264
      %v6267 = vmul.f32 %v6234, %v6265
      %v6268 = vmul.f32 %v6238, %v6265
      %v6269 = vmul.f32 %v6242, %v6265
      %v6270 = vmul.f32 %v6246, %v6265
      %v6271 = vmul.f32 %v6250, %v6265
      %v6272 = vmul.f32 %v6254, %v6265
      %v6273 = vmul.f32 %v6258, %v6265
      %v6274 = vmul.f32 %v6262, %v6265
      %v6275 = vadd.f32 %v6223, %v6267
      %v6276 = vadd.f32 %v6224, %v6268
      %v6277 = vadd.f32 %v6225, %v6269
      %v6278 = vadd.f32 %v6226, %v6270
      %v6279 = vadd.f32 %v6227, %v6271
      %v6280 = vadd.f32 %v6228, %v6272
      %v6281 = vadd.f32 %v6229, %v6273
      %v6282 = vadd.f32 %v6230, %v6274
      %v6283 = vlaneseq
      %v6284 = vshrl.u32 %v6283, 7
      %v6285 = vsub.s32 2, %v6284
      %v6286 = vrot.slane %v6179, %v6285
      %v6287 = vlaneseq
      %v6288 = vshrl.u32 %v6287, 7
      %v6289 = vsub.s32 2, %v6288
      %v6290 = vrot.slane %v6180, %v6289
      %v6291 = vlaneseq
      %v6292 = vshrl.u32 %v6291, 7
      %v6293 = vsub.s32 2, %v6292
      %v6294 = vrot.slane %v6181, %v6293
      %v6295 = vlaneseq
      %v6296 = vshrl.u32 %v6295, 7
      %v6297 = vsub.s32 2, %v6296
      %v6298 = vrot.slane %v6182, %v6297
      %v6299 = vlaneseq
      %v6300 = vshrl.u32 %v6299, 7
      %v6301 = vsub.s32 2, %v6300
      %v6302 = vrot.slane %v6183, %v6301
      %v6303 = vlaneseq
      %v6304 = vshrl.u32 %v6303, 7
      %v6305 = vsub.s32 2, %v6304
      %v6306 = vrot.slane %v6184, %v6305
      %v6307 = vlaneseq
      %v6308 = vshrl.u32 %v6307, 7
      %v6309 = vsub.s32 2, %v6308
      %v6310 = vrot.slane %v6185, %v6309
      %v6311 = vlaneseq
      %v6312 = vshrl.u32 %v6311, 7
      %v6313 = vsub.s32 2, %v6312
      %v6314 = vrot.slane %v6186, %v6313
      %6316 = vrot.lane.b32.xlu0 %v6181, 124
      %v6317 = vpop.permute.xlu0 %6316
      %v6319 = vmul.f32 %v6286, %v6317
      %v6320 = vmul.f32 %v6290, %v6317
      %v6321 = vmul.f32 %v6294, %v6317
      %v6322 = vmul.f32 %v6298, %v6317
      %v6323 = vmul.f32 %v6302, %v6317
      %v6324 = vmul.f32 %v6306, %v6317
      %v6325 = vmul.f32 %v6310, %v6317
      %v6326 = vmul.f32 %v6314, %v6317
      %v6327 = vadd.f32 %v6275, %v6319
      %v6328 = vadd.f32 %v6276, %v6320
      %v6329 = vadd.f32 %v6277, %v6321
      %v6330 = vadd.f32 %v6278, %v6322
      %v6331 = vadd.f32 %v6279, %v6323
      %v6332 = vadd.f32 %v6280, %v6324
      %v6333 = vadd.f32 %v6281, %v6325
      %v6334 = vadd.f32 %v6282, %v6326
      %v6335 = vlaneseq
      %v6336 = vshrl.u32 %v6335, 7
      %v6337 = vsub.s32 3, %v6336
      %v6338 = vrot.slane %v6179, %v6337
      %v6339 = vlaneseq
      %v6340 = vshrl.u32 %v6339, 7
      %v6341 = vsub.s32 3, %v6340
      %v6342 = vrot.slane %v6180, %v6341
      %v6343 = vlaneseq
      %v6344 = vshrl.u32 %v6343, 7
      %v6345 = vsub.s32 3, %v6344
      %v6346 = vrot.slane %v6181, %v6345
      %v6347 = vlaneseq
      %v6348 = vshrl.u32 %v6347, 7
      %v6349 = vsub.s32 3, %v6348
      %v6350 = vrot.slane %v6182, %v6349
      %v6351 = vlaneseq
      %v6352 = vshrl.u32 %v6351, 7
      %v6353 = vsub.s32 3, %v6352
      %v6354 = vrot.slane %v6183, %v6353
      %v6355 = vlaneseq
      %v6356 = vshrl.u32 %v6355, 7
      %v6357 = vsub.s32 3, %v6356
      %v6358 = vrot.slane %v6184, %v6357
      %v6359 = vlaneseq
      %v6360 = vshrl.u32 %v6359, 7
      %v6361 = vsub.s32 3, %v6360
      %v6362 = vrot.slane %v6185, %v6361
      %v6363 = vlaneseq
      %v6364 = vshrl.u32 %v6363, 7
      %v6365 = vsub.s32 3, %v6364
      %v6366 = vrot.slane %v6186, %v6365
      %6368 = vrot.lane.b32.xlu0 %v6182, 124
      %v6369 = vpop.permute.xlu0 %6368
      %v6371 = vmul.f32 %v6338, %v6369
      %v6372 = vmul.f32 %v6342, %v6369
      %v6373 = vmul.f32 %v6346, %v6369
      %v6374 = vmul.f32 %v6350, %v6369
      %v6375 = vmul.f32 %v6354, %v6369
      %v6376 = vmul.f32 %v6358, %v6369
      %v6377 = vmul.f32 %v6362, %v6369
      %v6378 = vmul.f32 %v6366, %v6369
      %v6379 = vadd.f32 %v6327, %v6371
      %v6380 = vadd.f32 %v6328, %v6372
      %v6381 = vadd.f32 %v6329, %v6373
      %v6382 = vadd.f32 %v6330, %v6374
      %v6383 = vadd.f32 %v6331, %v6375
      %v6384 = vadd.f32 %v6332, %v6376
      %v6385 = vadd.f32 %v6333, %v6377
      %v6386 = vadd.f32 %v6334, %v6378
      %v6387 = vlaneseq
      %v6388 = vshrl.u32 %v6387, 7
      %v6389 = vsub.s32 4, %v6388
      %v6390 = vrot.slane %v6179, %v6389
      %v6391 = vlaneseq
      %v6392 = vshrl.u32 %v6391, 7
      %v6393 = vsub.s32 4, %v6392
      %v6394 = vrot.slane %v6180, %v6393
      %v6395 = vlaneseq
      %v6396 = vshrl.u32 %v6395, 7
      %v6397 = vsub.s32 4, %v6396
      %v6398 = vrot.slane %v6181, %v6397
      %v6399 = vlaneseq
      %v6400 = vshrl.u32 %v6399, 7
      %v6401 = vsub.s32 4, %v6400
      %v6402 = vrot.slane %v6182, %v6401
      %v6403 = vlaneseq
      %v6404 = vshrl.u32 %v6403, 7
      %v6405 = vsub.s32 4, %v6404
      %v6406 = vrot.slane %v6183, %v6405
      %v6407 = vlaneseq
      %v6408 = vshrl.u32 %v6407, 7
      %v6409 = vsub.s32 4, %v6408
      %v6410 = vrot.slane %v6184, %v6409
      %v6411 = vlaneseq
      %v6412 = vshrl.u32 %v6411, 7
      %v6413 = vsub.s32 4, %v6412
      %v6414 = vrot.slane %v6185, %v6413
      %v6415 = vlaneseq
      %v6416 = vshrl.u32 %v6415, 7
      %v6417 = vsub.s32 4, %v6416
      %v6418 = vrot.slane %v6186, %v6417
      %6420 = vrot.lane.b32.xlu0 %v6183, 124
      %v6421 = vpop.permute.xlu0 %6420
      %v6423 = vmul.f32 %v6390, %v6421
      %v6424 = vmul.f32 %v6394, %v6421
      %v6425 = vmul.f32 %v6398, %v6421
      %v6426 = vmul.f32 %v6402, %v6421
      %v6427 = vmul.f32 %v6406, %v6421
      %v6428 = vmul.f32 %v6410, %v6421
      %v6429 = vmul.f32 %v6414, %v6421
      %v6430 = vmul.f32 %v6418, %v6421
      %v6431 = vadd.f32 %v6379, %v6423
      %v6432 = vadd.f32 %v6380, %v6424
      %v6433 = vadd.f32 %v6381, %v6425
      %v6434 = vadd.f32 %v6382, %v6426
      %v6435 = vadd.f32 %v6383, %v6427
      %v6436 = vadd.f32 %v6384, %v6428
      %v6437 = vadd.f32 %v6385, %v6429
      %v6438 = vadd.f32 %v6386, %v6430
      %v6439 = vlaneseq
      %v6440 = vshrl.u32 %v6439, 7
      %v6441 = vsub.s32 5, %v6440
      %v6442 = vrot.slane %v6179, %v6441
      %v6443 = vlaneseq
      %v6444 = vshrl.u32 %v6443, 7
      %v6445 = vsub.s32 5, %v6444
      %v6446 = vrot.slane %v6180, %v6445
      %v6447 = vlaneseq
      %v6448 = vshrl.u32 %v6447, 7
      %v6449 = vsub.s32 5, %v6448
      %v6450 = vrot.slane %v6181, %v6449
      %v6451 = vlaneseq
      %v6452 = vshrl.u32 %v6451, 7
      %v6453 = vsub.s32 5, %v6452
      %v6454 = vrot.slane %v6182, %v6453
      %v6455 = vlaneseq
      %v6456 = vshrl.u32 %v6455, 7
      %v6457 = vsub.s32 5, %v6456
      %v6458 = vrot.slane %v6183, %v6457
      %v6459 = vlaneseq
      %v6460 = vshrl.u32 %v6459, 7
      %v6461 = vsub.s32 5, %v6460
      %v6462 = vrot.slane %v6184, %v6461
      %v6463 = vlaneseq
      %v6464 = vshrl.u32 %v6463, 7
      %v6465 = vsub.s32 5, %v6464
      %v6466 = vrot.slane %v6185, %v6465
      %v6467 = vlaneseq
      %v6468 = vshrl.u32 %v6467, 7
      %v6469 = vsub.s32 5, %v6468
      %v6470 = vrot.slane %v6186, %v6469
      %6472 = vrot.lane.b32.xlu0 %v6184, 124
      %v6473 = vpop.permute.xlu0 %6472
      %v6475 = vmul.f32 %v6442, %v6473
      %v6476 = vmul.f32 %v6446, %v6473
      %v6477 = vmul.f32 %v6450, %v6473
      %v6478 = vmul.f32 %v6454, %v6473
      %v6479 = vmul.f32 %v6458, %v6473
      %v6480 = vmul.f32 %v6462, %v6473
      %v6481 = vmul.f32 %v6466, %v6473
      %v6482 = vmul.f32 %v6470, %v6473
      %v6483 = vadd.f32 %v6431, %v6475
      %v6484 = vadd.f32 %v6432, %v6476
      %v6485 = vadd.f32 %v6433, %v6477
      %v6486 = vadd.f32 %v6434, %v6478
      %v6487 = vadd.f32 %v6435, %v6479
      %v6488 = vadd.f32 %v6436, %v6480
      %v6489 = vadd.f32 %v6437, %v6481
      %v6490 = vadd.f32 %v6438, %v6482
      %v6491 = vlaneseq
      %v6492 = vshrl.u32 %v6491, 7
      %v6493 = vsub.s32 6, %v6492
      %v6494 = vrot.slane %v6179, %v6493
      %v6495 = vlaneseq
      %v6496 = vshrl.u32 %v6495, 7
      %v6497 = vsub.s32 6, %v6496
      %v6498 = vrot.slane %v6180, %v6497
      %v6499 = vlaneseq
      %v6500 = vshrl.u32 %v6499, 7
      %v6501 = vsub.s32 6, %v6500
      %v6502 = vrot.slane %v6181, %v6501
      %v6503 = vlaneseq
      %v6504 = vshrl.u32 %v6503, 7
      %v6505 = vsub.s32 6, %v6504
      %v6506 = vrot.slane %v6182, %v6505
      %v6507 = vlaneseq
      %v6508 = vshrl.u32 %v6507, 7
      %v6509 = vsub.s32 6, %v6508
      %v6510 = vrot.slane %v6183, %v6509
      %v6511 = vlaneseq
      %v6512 = vshrl.u32 %v6511, 7
      %v6513 = vsub.s32 6, %v6512
      %v6514 = vrot.slane %v6184, %v6513
      %v6515 = vlaneseq
      %v6516 = vshrl.u32 %v6515, 7
      %v6517 = vsub.s32 6, %v6516
      %v6518 = vrot.slane %v6185, %v6517
      %v6519 = vlaneseq
      %v6520 = vshrl.u32 %v6519, 7
      %v6521 = vsub.s32 6, %v6520
      %v6522 = vrot.slane %v6186, %v6521
      %6524 = vrot.lane.b32.xlu0 %v6185, 124
      %v6525 = vpop.permute.xlu0 %6524
      %v6527 = vmul.f32 %v6494, %v6525
      %v6528 = vmul.f32 %v6498, %v6525
      %v6529 = vmul.f32 %v6502, %v6525
      %v6530 = vmul.f32 %v6506, %v6525
      %v6531 = vmul.f32 %v6510, %v6525
      %v6532 = vmul.f32 %v6514, %v6525
      %v6533 = vmul.f32 %v6518, %v6525
      %v6534 = vmul.f32 %v6522, %v6525
      %v6535 = vadd.f32 %v6483, %v6527
      %v6536 = vadd.f32 %v6484, %v6528
      %v6537 = vadd.f32 %v6485, %v6529
      %v6538 = vadd.f32 %v6486, %v6530
      %v6539 = vadd.f32 %v6487, %v6531
      %v6540 = vadd.f32 %v6488, %v6532
      %v6541 = vadd.f32 %v6489, %v6533
      %v6542 = vadd.f32 %v6490, %v6534
      %v6543 = vlaneseq
      %v6544 = vshrl.u32 %v6543, 7
      %v6545 = vsub.s32 7, %v6544
      %v6546 = vrot.slane %v6179, %v6545
      %v6547 = vlaneseq
      %v6548 = vshrl.u32 %v6547, 7
      %v6549 = vsub.s32 7, %v6548
      %v6550 = vrot.slane %v6180, %v6549
      %v6551 = vlaneseq
      %v6552 = vshrl.u32 %v6551, 7
      %v6553 = vsub.s32 7, %v6552
      %v6554 = vrot.slane %v6181, %v6553
      %v6555 = vlaneseq
      %v6556 = vshrl.u32 %v6555, 7
      %v6557 = vsub.s32 7, %v6556
      %v6558 = vrot.slane %v6182, %v6557
      %v6559 = vlaneseq
      %v6560 = vshrl.u32 %v6559, 7
      %v6561 = vsub.s32 7, %v6560
      %v6562 = vrot.slane %v6183, %v6561
      %v6563 = vlaneseq
      %v6564 = vshrl.u32 %v6563, 7
      %v6565 = vsub.s32 7, %v6564
      %v6566 = vrot.slane %v6184, %v6565
      %v6567 = vlaneseq
      %v6568 = vshrl.u32 %v6567, 7
      %v6569 = vsub.s32 7, %v6568
      %v6570 = vrot.slane %v6185, %v6569
      %v6571 = vlaneseq
      %v6572 = vshrl.u32 %v6571, 7
      %v6573 = vsub.s32 7, %v6572
      %v6574 = vrot.slane %v6186, %v6573
      %6576 = vrot.lane.b32.xlu0 %v6186, 124
      %v6577 = vpop.permute.xlu0 %6576
      %v6579 = vmul.f32 %v6546, %v6577
      %v6580 = vmul.f32 %v6550, %v6577
      %v6581 = vmul.f32 %v6554, %v6577
      %v6582 = vmul.f32 %v6558, %v6577
      %v6583 = vmul.f32 %v6562, %v6577
      %v6584 = vmul.f32 %v6566, %v6577
      %v6585 = vmul.f32 %v6570, %v6577
      %v6586 = vmul.f32 %v6574, %v6577
      %v6587 = vadd.f32 %v6535, %v6579
      %v6588 = vadd.f32 %v6536, %v6580
      %v6589 = vadd.f32 %v6537, %v6581
      %v6590 = vadd.f32 %v6538, %v6582
      %v6591 = vadd.f32 %v6539, %v6583
      %v6592 = vadd.f32 %v6540, %v6584
      %v6593 = vadd.f32 %v6541, %v6585
      %v6594 = vadd.f32 %v6542, %v6586
      %v6595 = vlaneseq
      %v6596 = vshrl.u32 %v6595, 7
      %v6597 = vsub.s32 0, %v6596
      %v6598 = vrot.slane %v6587, %v6597
      %v6599 = vlaneseq
      %v6600 = vshrl.u32 %v6599, 7
      %v6601 = vsub.s32 0, %v6600
      %v6602 = vrot.slane %v6588, %v6601
      %v6603 = vlaneseq
      %v6604 = vshrl.u32 %v6603, 7
      %v6605 = vsub.s32 0, %v6604
      %v6606 = vrot.slane %v6589, %v6605
      %v6607 = vlaneseq
      %v6608 = vshrl.u32 %v6607, 7
      %v6609 = vsub.s32 0, %v6608
      %v6610 = vrot.slane %v6590, %v6609
      %v6611 = vlaneseq
      %v6612 = vshrl.u32 %v6611, 7
      %v6613 = vsub.s32 0, %v6612
      %v6614 = vrot.slane %v6591, %v6613
      %v6615 = vlaneseq
      %v6616 = vshrl.u32 %v6615, 7
      %v6617 = vsub.s32 0, %v6616
      %v6618 = vrot.slane %v6592, %v6617
      %v6619 = vlaneseq
      %v6620 = vshrl.u32 %v6619, 7
      %v6621 = vsub.s32 0, %v6620
      %v6622 = vrot.slane %v6593, %v6621
      %v6623 = vlaneseq
      %v6624 = vshrl.u32 %v6623, 7
      %v6625 = vsub.s32 0, %v6624
      %v6626 = vrot.slane %v6594, %v6625
      %6628 = vrot.lane.b32.xlu0 %v6587, 126
      %v6629 = vpop.permute.xlu0 %6628
      %v6631 = vmul.f32 %v6598, %v6629
      %v6632 = vmul.f32 %v6602, %v6629
      %v6633 = vmul.f32 %v6606, %v6629
      %v6634 = vmul.f32 %v6610, %v6629
      %v6635 = vmul.f32 %v6614, %v6629
      %v6636 = vmul.f32 %v6618, %v6629
      %v6637 = vmul.f32 %v6622, %v6629
      %v6638 = vmul.f32 %v6626, %v6629
      %v6639 = vlaneseq
      %v6640 = vshrl.u32 %v6639, 7
      %v6641 = vsub.s32 1, %v6640
      %v6642 = vrot.slane %v6587, %v6641
      %v6643 = vlaneseq
      %v6644 = vshrl.u32 %v6643, 7
      %v6645 = vsub.s32 1, %v6644
      %v6646 = vrot.slane %v6588, %v6645
      %v6647 = vlaneseq
      %v6648 = vshrl.u32 %v6647, 7
      %v6649 = vsub.s32 1, %v6648
      %v6650 = vrot.slane %v6589, %v6649
      %v6651 = vlaneseq
      %v6652 = vshrl.u32 %v6651, 7
      %v6653 = vsub.s32 1, %v6652
      %v6654 = vrot.slane %v6590, %v6653
      %v6655 = vlaneseq
      %v6656 = vshrl.u32 %v6655, 7
      %v6657 = vsub.s32 1, %v6656
      %v6658 = vrot.slane %v6591, %v6657
      %v6659 = vlaneseq
      %v6660 = vshrl.u32 %v6659, 7
      %v6661 = vsub.s32 1, %v6660
      %v6662 = vrot.slane %v6592, %v6661
      %v6663 = vlaneseq
      %v6664 = vshrl.u32 %v6663, 7
      %v6665 = vsub.s32 1, %v6664
      %v6666 = vrot.slane %v6593, %v6665
      %v6667 = vlaneseq
      %v6668 = vshrl.u32 %v6667, 7
      %v6669 = vsub.s32 1, %v6668
      %v6670 = vrot.slane %v6594, %v6669
      %6672 = vrot.lane.b32.xlu0 %v6588, 126
      %v6673 = vpop.permute.xlu0 %6672
      %v6675 = vmul.f32 %v6642, %v6673
      %v6676 = vmul.f32 %v6646, %v6673
      %v6677 = vmul.f32 %v6650, %v6673
      %v6678 = vmul.f32 %v6654, %v6673
      %v6679 = vmul.f32 %v6658, %v6673
      %v6680 = vmul.f32 %v6662, %v6673
      %v6681 = vmul.f32 %v6666, %v6673
      %v6682 = vmul.f32 %v6670, %v6673
      %v6683 = vadd.f32 %v6631, %v6675
      %v6684 = vadd.f32 %v6632, %v6676
      %v6685 = vadd.f32 %v6633, %v6677
      %v6686 = vadd.f32 %v6634, %v6678
      %v6687 = vadd.f32 %v6635, %v6679
      %v6688 = vadd.f32 %v6636, %v6680
      %v6689 = vadd.f32 %v6637, %v6681
      %v6690 = vadd.f32 %v6638, %v6682
      %v6691 = vlaneseq
      %v6692 = vshrl.u32 %v6691, 7
      %v6693 = vsub.s32 2, %v6692
      %v6694 = vrot.slane %v6587, %v6693
      %v6695 = vlaneseq
      %v6696 = vshrl.u32 %v6695, 7
      %v6697 = vsub.s32 2, %v6696
      %v6698 = vrot.slane %v6588, %v6697
      %v6699 = vlaneseq
      %v6700 = vshrl.u32 %v6699, 7
      %v6701 = vsub.s32 2, %v6700
      %v6702 = vrot.slane %v6589, %v6701
      %v6703 = vlaneseq
      %v6704 = vshrl.u32 %v6703, 7
      %v6705 = vsub.s32 2, %v6704
      %v6706 = vrot.slane %v6590, %v6705
      %v6707 = vlaneseq
      %v6708 = vshrl.u32 %v6707, 7
      %v6709 = vsub.s32 2, %v6708
      %v6710 = vrot.slane %v6591, %v6709
      %v6711 = vlaneseq
      %v6712 = vshrl.u32 %v6711, 7
      %v6713 = vsub.s32 2, %v6712
      %v6714 = vrot.slane %v6592, %v6713
      %v6715 = vlaneseq
      %v6716 = vshrl.u32 %v6715, 7
      %v6717 = vsub.s32 2, %v6716
      %v6718 = vrot.slane %v6593, %v6717
      %v6719 = vlaneseq
      %v6720 = vshrl.u32 %v6719, 7
      %v6721 = vsub.s32 2, %v6720
      %v6722 = vrot.slane %v6594, %v6721
      %6724 = vrot.lane.b32.xlu0 %v6589, 126
      %v6725 = vpop.permute.xlu0 %6724
      %v6727 = vmul.f32 %v6694, %v6725
      %v6728 = vmul.f32 %v6698, %v6725
      %v6729 = vmul.f32 %v6702, %v6725
      %v6730 = vmul.f32 %v6706, %v6725
      %v6731 = vmul.f32 %v6710, %v6725
      %v6732 = vmul.f32 %v6714, %v6725
      %v6733 = vmul.f32 %v6718, %v6725
      %v6734 = vmul.f32 %v6722, %v6725
      %v6735 = vadd.f32 %v6683, %v6727
      %v6736 = vadd.f32 %v6684, %v6728
      %v6737 = vadd.f32 %v6685, %v6729
      %v6738 = vadd.f32 %v6686, %v6730
      %v6739 = vadd.f32 %v6687, %v6731
      %v6740 = vadd.f32 %v6688, %v6732
      %v6741 = vadd.f32 %v6689, %v6733
      %v6742 = vadd.f32 %v6690, %v6734
      %v6743 = vlaneseq
      %v6744 = vshrl.u32 %v6743, 7
      %v6745 = vsub.s32 3, %v6744
      %v6746 = vrot.slane %v6587, %v6745
      %v6747 = vlaneseq
      %v6748 = vshrl.u32 %v6747, 7
      %v6749 = vsub.s32 3, %v6748
      %v6750 = vrot.slane %v6588, %v6749
      %v6751 = vlaneseq
      %v6752 = vshrl.u32 %v6751, 7
      %v6753 = vsub.s32 3, %v6752
      %v6754 = vrot.slane %v6589, %v6753
      %v6755 = vlaneseq
      %v6756 = vshrl.u32 %v6755, 7
      %v6757 = vsub.s32 3, %v6756
      %v6758 = vrot.slane %v6590, %v6757
      %v6759 = vlaneseq
      %v6760 = vshrl.u32 %v6759, 7
      %v6761 = vsub.s32 3, %v6760
      %v6762 = vrot.slane %v6591, %v6761
      %v6763 = vlaneseq
      %v6764 = vshrl.u32 %v6763, 7
      %v6765 = vsub.s32 3, %v6764
      %v6766 = vrot.slane %v6592, %v6765
      %v6767 = vlaneseq
      %v6768 = vshrl.u32 %v6767, 7
      %v6769 = vsub.s32 3, %v6768
      %v6770 = vrot.slane %v6593, %v6769
      %v6771 = vlaneseq
      %v6772 = vshrl.u32 %v6771, 7
      %v6773 = vsub.s32 3, %v6772
      %v6774 = vrot.slane %v6594, %v6773
      %6776 = vrot.lane.b32.xlu0 %v6590, 126
      %v6777 = vpop.permute.xlu0 %6776
      %v6779 = vmul.f32 %v6746, %v6777
      %v6780 = vmul.f32 %v6750, %v6777
      %v6781 = vmul.f32 %v6754, %v6777
      %v6782 = vmul.f32 %v6758, %v6777
      %v6783 = vmul.f32 %v6762, %v6777
      %v6784 = vmul.f32 %v6766, %v6777
      %v6785 = vmul.f32 %v6770, %v6777
      %v6786 = vmul.f32 %v6774, %v6777
      %v6787 = vadd.f32 %v6735, %v6779
      %v6788 = vadd.f32 %v6736, %v6780
      %v6789 = vadd.f32 %v6737, %v6781
      %v6790 = vadd.f32 %v6738, %v6782
      %v6791 = vadd.f32 %v6739, %v6783
      %v6792 = vadd.f32 %v6740, %v6784
      %v6793 = vadd.f32 %v6741, %v6785
      %v6794 = vadd.f32 %v6742, %v6786
      %v6795 = vlaneseq
      %v6796 = vshrl.u32 %v6795, 7
      %v6797 = vsub.s32 4, %v6796
      %v6798 = vrot.slane %v6587, %v6797
      %v6799 = vlaneseq
      %v6800 = vshrl.u32 %v6799, 7
      %v6801 = vsub.s32 4, %v6800
      %v6802 = vrot.slane %v6588, %v6801
      %v6803 = vlaneseq
      %v6804 = vshrl.u32 %v6803, 7
      %v6805 = vsub.s32 4, %v6804
      %v6806 = vrot.slane %v6589, %v6805
      %v6807 = vlaneseq
      %v6808 = vshrl.u32 %v6807, 7
      %v6809 = vsub.s32 4, %v6808
      %v6810 = vrot.slane %v6590, %v6809
      %v6811 = vlaneseq
      %v6812 = vshrl.u32 %v6811, 7
      %v6813 = vsub.s32 4, %v6812
      %v6814 = vrot.slane %v6591, %v6813
      %v6815 = vlaneseq
      %v6816 = vshrl.u32 %v6815, 7
      %v6817 = vsub.s32 4, %v6816
      %v6818 = vrot.slane %v6592, %v6817
      %v6819 = vlaneseq
      %v6820 = vshrl.u32 %v6819, 7
      %v6821 = vsub.s32 4, %v6820
      %v6822 = vrot.slane %v6593, %v6821
      %v6823 = vlaneseq
      %v6824 = vshrl.u32 %v6823, 7
      %v6825 = vsub.s32 4, %v6824
      %v6826 = vrot.slane %v6594, %v6825
      %6828 = vrot.lane.b32.xlu0 %v6591, 126
      %v6829 = vpop.permute.xlu0 %6828
      %v6831 = vmul.f32 %v6798, %v6829
      %v6832 = vmul.f32 %v6802, %v6829
      %v6833 = vmul.f32 %v6806, %v6829
      %v6834 = vmul.f32 %v6810, %v6829
      %v6835 = vmul.f32 %v6814, %v6829
      %v6836 = vmul.f32 %v6818, %v6829
      %v6837 = vmul.f32 %v6822, %v6829
      %v6838 = vmul.f32 %v6826, %v6829
      %v6839 = vadd.f32 %v6787, %v6831
      %v6840 = vadd.f32 %v6788, %v6832
      %v6841 = vadd.f32 %v6789, %v6833
      %v6842 = vadd.f32 %v6790, %v6834
      %v6843 = vadd.f32 %v6791, %v6835
      %v6844 = vadd.f32 %v6792, %v6836
      %v6845 = vadd.f32 %v6793, %v6837
      %v6846 = vadd.f32 %v6794, %v6838
      %v6847 = vlaneseq
      %v6848 = vshrl.u32 %v6847, 7
      %v6849 = vsub.s32 5, %v6848
      %v6850 = vrot.slane %v6587, %v6849
      %v6851 = vlaneseq
      %v6852 = vshrl.u32 %v6851, 7
      %v6853 = vsub.s32 5, %v6852
      %v6854 = vrot.slane %v6588, %v6853
      %v6855 = vlaneseq
      %v6856 = vshrl.u32 %v6855, 7
      %v6857 = vsub.s32 5, %v6856
      %v6858 = vrot.slane %v6589, %v6857
      %v6859 = vlaneseq
      %v6860 = vshrl.u32 %v6859, 7
      %v6861 = vsub.s32 5, %v6860
      %v6862 = vrot.slane %v6590, %v6861
      %v6863 = vlaneseq
      %v6864 = vshrl.u32 %v6863, 7
      %v6865 = vsub.s32 5, %v6864
      %v6866 = vrot.slane %v6591, %v6865
      %v6867 = vlaneseq
      %v6868 = vshrl.u32 %v6867, 7
      %v6869 = vsub.s32 5, %v6868
      %v6870 = vrot.slane %v6592, %v6869
      %v6871 = vlaneseq
      %v6872 = vshrl.u32 %v6871, 7
      %v6873 = vsub.s32 5, %v6872
      %v6874 = vrot.slane %v6593, %v6873
      %v6875 = vlaneseq
      %v6876 = vshrl.u32 %v6875, 7
      %v6877 = vsub.s32 5, %v6876
      %v6878 = vrot.slane %v6594, %v6877
      %6880 = vrot.lane.b32.xlu0 %v6592, 126
      %v6881 = vpop.permute.xlu0 %6880
      %v6883 = vmul.f32 %v6850, %v6881
      %v6884 = vmul.f32 %v6854, %v6881
      %v6885 = vmul.f32 %v6858, %v6881
      %v6886 = vmul.f32 %v6862, %v6881
      %v6887 = vmul.f32 %v6866, %v6881
      %v6888 = vmul.f32 %v6870, %v6881
      %v6889 = vmul.f32 %v6874, %v6881
      %v6890 = vmul.f32 %v6878, %v6881
      %v6891 = vadd.f32 %v6839, %v6883
      %v6892 = vadd.f32 %v6840, %v6884
      %v6893 = vadd.f32 %v6841, %v6885
      %v6894 = vadd.f32 %v6842, %v6886
      %v6895 = vadd.f32 %v6843, %v6887
      %v6896 = vadd.f32 %v6844, %v6888
      %v6897 = vadd.f32 %v6845, %v6889
      %v6898 = vadd.f32 %v6846, %v6890
      %v6899 = vlaneseq
      %v6900 = vshrl.u32 %v6899, 7
      %v6901 = vsub.s32 6, %v6900
      %v6902 = vrot.slane %v6587, %v6901
      %v6903 = vlaneseq
      %v6904 = vshrl.u32 %v6903, 7
      %v6905 = vsub.s32 6, %v6904
      %v6906 = vrot.slane %v6588, %v6905
      %v6907 = vlaneseq
      %v6908 = vshrl.u32 %v6907, 7
      %v6909 = vsub.s32 6, %v6908
      %v6910 = vrot.slane %v6589, %v6909
      %v6911 = vlaneseq
      %v6912 = vshrl.u32 %v6911, 7
      %v6913 = vsub.s32 6, %v6912
      %v6914 = vrot.slane %v6590, %v6913
      %v6915 = vlaneseq
      %v6916 = vshrl.u32 %v6915, 7
      %v6917 = vsub.s32 6, %v6916
      %v6918 = vrot.slane %v6591, %v6917
      %v6919 = vlaneseq
      %v6920 = vshrl.u32 %v6919, 7
      %v6921 = vsub.s32 6, %v6920
      %v6922 = vrot.slane %v6592, %v6921
      %v6923 = vlaneseq
      %v6924 = vshrl.u32 %v6923, 7
      %v6925 = vsub.s32 6, %v6924
      %v6926 = vrot.slane %v6593, %v6925
      %v6927 = vlaneseq
      %v6928 = vshrl.u32 %v6927, 7
      %v6929 = vsub.s32 6, %v6928
      %v6930 = vrot.slane %v6594, %v6929
      %6932 = vrot.lane.b32.xlu0 %v6593, 126
      %v6933 = vpop.permute.xlu0 %6932
      %v6935 = vmul.f32 %v6902, %v6933
      %v6936 = vmul.f32 %v6906, %v6933
      %v6937 = vmul.f32 %v6910, %v6933
      %v6938 = vmul.f32 %v6914, %v6933
      %v6939 = vmul.f32 %v6918, %v6933
      %v6940 = vmul.f32 %v6922, %v6933
      %v6941 = vmul.f32 %v6926, %v6933
      %v6942 = vmul.f32 %v6930, %v6933
      %v6943 = vadd.f32 %v6891, %v6935
      %v6944 = vadd.f32 %v6892, %v6936
      %v6945 = vadd.f32 %v6893, %v6937
      %v6946 = vadd.f32 %v6894, %v6938
      %v6947 = vadd.f32 %v6895, %v6939
      %v6948 = vadd.f32 %v6896, %v6940
      %v6949 = vadd.f32 %v6897, %v6941
      %v6950 = vadd.f32 %v6898, %v6942
      %v6951 = vlaneseq
      %v6952 = vshrl.u32 %v6951, 7
      %v6953 = vsub.s32 7, %v6952
      %v6954 = vrot.slane %v6587, %v6953
      %v6955 = vlaneseq
      %v6956 = vshrl.u32 %v6955, 7
      %v6957 = vsub.s32 7, %v6956
      %v6958 = vrot.slane %v6588, %v6957
      %v6959 = vlaneseq
      %v6960 = vshrl.u32 %v6959, 7
      %v6961 = vsub.s32 7, %v6960
      %v6962 = vrot.slane %v6589, %v6961
      %v6963 = vlaneseq
      %v6964 = vshrl.u32 %v6963, 7
      %v6965 = vsub.s32 7, %v6964
      %v6966 = vrot.slane %v6590, %v6965
      %v6967 = vlaneseq
      %v6968 = vshrl.u32 %v6967, 7
      %v6969 = vsub.s32 7, %v6968
      %v6970 = vrot.slane %v6591, %v6969
      %v6971 = vlaneseq
      %v6972 = vshrl.u32 %v6971, 7
      %v6973 = vsub.s32 7, %v6972
      %v6974 = vrot.slane %v6592, %v6973
      %v6975 = vlaneseq
      %v6976 = vshrl.u32 %v6975, 7
      %v6977 = vsub.s32 7, %v6976
      %v6978 = vrot.slane %v6593, %v6977
      %v6979 = vlaneseq
      %v6980 = vshrl.u32 %v6979, 7
      %v6981 = vsub.s32 7, %v6980
      %v6982 = vrot.slane %v6594, %v6981
      %6984 = vrot.lane.b32.xlu0 %v6594, 126
      %v6985 = vpop.permute.xlu0 %6984
      %v6987 = vmul.f32 %v6954, %v6985
      %v6988 = vmul.f32 %v6958, %v6985
      %v6989 = vmul.f32 %v6962, %v6985
      %v6990 = vmul.f32 %v6966, %v6985
      %v6991 = vmul.f32 %v6970, %v6985
      %v6992 = vmul.f32 %v6974, %v6985
      %v6993 = vmul.f32 %v6978, %v6985
      %v6994 = vmul.f32 %v6982, %v6985
      %v6995 = vadd.f32 %v6943, %v6987
      %v6996 = vadd.f32 %v6944, %v6988
      %v6997 = vadd.f32 %v6945, %v6989
      %v6998 = vadd.f32 %v6946, %v6990
      %v6999 = vadd.f32 %v6947, %v6991
      %v7000 = vadd.f32 %v6948, %v6992
      %v7001 = vadd.f32 %v6949, %v6993
      %v7002 = vadd.f32 %v6950, %v6994
      %p7003 = scmp.eq.s32.totalorder %s18, 0
      // Predicated region
      $region29: #{tpu_custom_call.1} parent=27 // pred_check
        %p7004 = pneg %p7003
      $region30: #{tpu_custom_call.1} parent=27 // pred_check_branch
        %7006 = sbr.rel (%p7004) target = $region32
      $region31: #{tpu_custom_call.1} parent=27 // pred_region
        %vm7007 = vcmask 15360
        %7008 = vst.msk [vmem:[#allocation2] sm:$0xff] %vm7007, %v6995
        %7009 = vst.msk [vmem:[#allocation2 + $0x8] sm:$0xff] %vm7007, %v6996
        %7010 = vst.msk [vmem:[#allocation2 + $0x10] sm:$0xff] %vm7007, %v6997
        %7011 = vst.msk [vmem:[#allocation2 + $0x18] sm:$0xff] %vm7007, %v6998
        %7012 = vst.msk [vmem:[#allocation2 + $0x20] sm:$0xff] %vm7007, %v6999
        %7013 = vst.msk [vmem:[#allocation2 + $0x28] sm:$0xff] %vm7007, %v7000
        %7014 = vst.msk [vmem:[#allocation2 + $0x30] sm:$0xff] %vm7007, %v7001
        %7015 = vst.msk [vmem:[#allocation2 + $0x38] sm:$0xff] %vm7007, %v7002
      $region32: #{tpu_custom_call.1} parent=27 // pred_fallthru
        _
      %p7016 = scmp.gt.s32.totalorder %s18, 0
      // Predicated region
      $region33: #{tpu_custom_call.1} parent=27 // pred_check
        %p7017 = pneg %p7016
      $region34: #{tpu_custom_call.1} parent=27 // pred_check_branch
        %7019 = sbr.rel (%p7017) target = $region36
      $region35: #{tpu_custom_call.1} parent=27 // pred_region
        %v7020 = vld [vmem:[#allocation2] sm:$0xff]
        %v7021 = vld [vmem:[#allocation2 + $0x8] sm:$0xff]
        %v7022 = vld [vmem:[#allocation2 + $0x10] sm:$0xff]
        %v7023 = vld [vmem:[#allocation2 + $0x18] sm:$0xff]
        %v7024 = vld [vmem:[#allocation2 + $0x20] sm:$0xff]
        %v7025 = vld [vmem:[#allocation2 + $0x28] sm:$0xff]
        %v7026 = vld [vmem:[#allocation2 + $0x30] sm:$0xff]
        %v7027 = vld [vmem:[#allocation2 + $0x38] sm:$0xff]
        %v7028 = vlaneseq
        %v7029 = vshrl.u32 %v7028, 7
        %v7030 = vsub.s32 0, %v7029
        %v7031 = vrot.slane %v7020, %v7030
        %v7032 = vlaneseq
        %v7033 = vshrl.u32 %v7032, 7
        %v7034 = vsub.s32 0, %v7033
        %v7035 = vrot.slane %v7021, %v7034
        %v7036 = vlaneseq
        %v7037 = vshrl.u32 %v7036, 7
        %v7038 = vsub.s32 0, %v7037
        %v7039 = vrot.slane %v7022, %v7038
        %v7040 = vlaneseq
        %v7041 = vshrl.u32 %v7040, 7
        %v7042 = vsub.s32 0, %v7041
        %v7043 = vrot.slane %v7023, %v7042
        %v7044 = vlaneseq
        %v7045 = vshrl.u32 %v7044, 7
        %v7046 = vsub.s32 0, %v7045
        %v7047 = vrot.slane %v7024, %v7046
        %v7048 = vlaneseq
        %v7049 = vshrl.u32 %v7048, 7
        %v7050 = vsub.s32 0, %v7049
        %v7051 = vrot.slane %v7025, %v7050
        %v7052 = vlaneseq
        %v7053 = vshrl.u32 %v7052, 7
        %v7054 = vsub.s32 0, %v7053
        %v7055 = vrot.slane %v7026, %v7054
        %v7056 = vlaneseq
        %v7057 = vshrl.u32 %v7056, 7
        %v7058 = vsub.s32 0, %v7057
        %v7059 = vrot.slane %v7027, %v7058
        %v7060 = vmul.f32 %v7031, %v6995
        %v7061 = vmul.f32 %v7035, %v6995
        %v7062 = vmul.f32 %v7039, %v6995
        %v7063 = vmul.f32 %v7043, %v6995
        %v7064 = vmul.f32 %v7047, %v6995
        %v7065 = vmul.f32 %v7051, %v6995
        %v7066 = vmul.f32 %v7055, %v6995
        %v7067 = vmul.f32 %v7059, %v6995
        %v7068 = vlaneseq
        %v7069 = vshrl.u32 %v7068, 7
        %v7070 = vsub.s32 1, %v7069
        %v7071 = vrot.slane %v7020, %v7070
        %v7072 = vlaneseq
        %v7073 = vshrl.u32 %v7072, 7
        %v7074 = vsub.s32 1, %v7073
        %v7075 = vrot.slane %v7021, %v7074
        %v7076 = vlaneseq
        %v7077 = vshrl.u32 %v7076, 7
        %v7078 = vsub.s32 1, %v7077
        %v7079 = vrot.slane %v7022, %v7078
        %v7080 = vlaneseq
        %v7081 = vshrl.u32 %v7080, 7
        %v7082 = vsub.s32 1, %v7081
        %v7083 = vrot.slane %v7023, %v7082
        %v7084 = vlaneseq
        %v7085 = vshrl.u32 %v7084, 7
        %v7086 = vsub.s32 1, %v7085
        %v7087 = vrot.slane %v7024, %v7086
        %v7088 = vlaneseq
        %v7089 = vshrl.u32 %v7088, 7
        %v7090 = vsub.s32 1, %v7089
        %v7091 = vrot.slane %v7025, %v7090
        %v7092 = vlaneseq
        %v7093 = vshrl.u32 %v7092, 7
        %v7094 = vsub.s32 1, %v7093
        %v7095 = vrot.slane %v7026, %v7094
        %v7096 = vlaneseq
        %v7097 = vshrl.u32 %v7096, 7
        %v7098 = vsub.s32 1, %v7097
        %v7099 = vrot.slane %v7027, %v7098
        %v7100 = vmul.f32 %v7071, %v6996
        %v7101 = vmul.f32 %v7075, %v6996
        %v7102 = vmul.f32 %v7079, %v6996
        %v7103 = vmul.f32 %v7083, %v6996
        %v7104 = vmul.f32 %v7087, %v6996
        %v7105 = vmul.f32 %v7091, %v6996
        %v7106 = vmul.f32 %v7095, %v6996
        %v7107 = vmul.f32 %v7099, %v6996
        %v7108 = vadd.f32 %v7060, %v7100
        %v7109 = vadd.f32 %v7061, %v7101
        %v7110 = vadd.f32 %v7062, %v7102
        %v7111 = vadd.f32 %v7063, %v7103
        %v7112 = vadd.f32 %v7064, %v7104
        %v7113 = vadd.f32 %v7065, %v7105
        %v7114 = vadd.f32 %v7066, %v7106
        %v7115 = vadd.f32 %v7067, %v7107
        %v7116 = vlaneseq
        %v7117 = vshrl.u32 %v7116, 7
        %v7118 = vsub.s32 2, %v7117
        %v7119 = vrot.slane %v7020, %v7118
        %v7120 = vlaneseq
        %v7121 = vshrl.u32 %v7120, 7
        %v7122 = vsub.s32 2, %v7121
        %v7123 = vrot.slane %v7021, %v7122
        %v7124 = vlaneseq
        %v7125 = vshrl.u32 %v7124, 7
        %v7126 = vsub.s32 2, %v7125
        %v7127 = vrot.slane %v7022, %v7126
        %v7128 = vlaneseq
        %v7129 = vshrl.u32 %v7128, 7
        %v7130 = vsub.s32 2, %v7129
        %v7131 = vrot.slane %v7023, %v7130
        %v7132 = vlaneseq
        %v7133 = vshrl.u32 %v7132, 7
        %v7134 = vsub.s32 2, %v7133
        %v7135 = vrot.slane %v7024, %v7134
        %v7136 = vlaneseq
        %v7137 = vshrl.u32 %v7136, 7
        %v7138 = vsub.s32 2, %v7137
        %v7139 = vrot.slane %v7025, %v7138
        %v7140 = vlaneseq
        %v7141 = vshrl.u32 %v7140, 7
        %v7142 = vsub.s32 2, %v7141
        %v7143 = vrot.slane %v7026, %v7142
        %v7144 = vlaneseq
        %v7145 = vshrl.u32 %v7144, 7
        %v7146 = vsub.s32 2, %v7145
        %v7147 = vrot.slane %v7027, %v7146
        %v7148 = vmul.f32 %v7119, %v6997
        %v7149 = vmul.f32 %v7123, %v6997
        %v7150 = vmul.f32 %v7127, %v6997
        %v7151 = vmul.f32 %v7131, %v6997
        %v7152 = vmul.f32 %v7135, %v6997
        %v7153 = vmul.f32 %v7139, %v6997
        %v7154 = vmul.f32 %v7143, %v6997
        %v7155 = vmul.f32 %v7147, %v6997
        %v7156 = vadd.f32 %v7108, %v7148
        %v7157 = vadd.f32 %v7109, %v7149
        %v7158 = vadd.f32 %v7110, %v7150
        %v7159 = vadd.f32 %v7111, %v7151
        %v7160 = vadd.f32 %v7112, %v7152
        %v7161 = vadd.f32 %v7113, %v7153
        %v7162 = vadd.f32 %v7114, %v7154
        %v7163 = vadd.f32 %v7115, %v7155
        %v7164 = vlaneseq
        %v7165 = vshrl.u32 %v7164, 7
        %v7166 = vsub.s32 3, %v7165
        %v7167 = vrot.slane %v7020, %v7166
        %v7168 = vlaneseq
        %v7169 = vshrl.u32 %v7168, 7
        %v7170 = vsub.s32 3, %v7169
        %v7171 = vrot.slane %v7021, %v7170
        %v7172 = vlaneseq
        %v7173 = vshrl.u32 %v7172, 7
        %v7174 = vsub.s32 3, %v7173
        %v7175 = vrot.slane %v7022, %v7174
        %v7176 = vlaneseq
        %v7177 = vshrl.u32 %v7176, 7
        %v7178 = vsub.s32 3, %v7177
        %v7179 = vrot.slane %v7023, %v7178
        %v7180 = vlaneseq
        %v7181 = vshrl.u32 %v7180, 7
        %v7182 = vsub.s32 3, %v7181
        %v7183 = vrot.slane %v7024, %v7182
        %v7184 = vlaneseq
        %v7185 = vshrl.u32 %v7184, 7
        %v7186 = vsub.s32 3, %v7185
        %v7187 = vrot.slane %v7025, %v7186
        %v7188 = vlaneseq
        %v7189 = vshrl.u32 %v7188, 7
        %v7190 = vsub.s32 3, %v7189
        %v7191 = vrot.slane %v7026, %v7190
        %v7192 = vlaneseq
        %v7193 = vshrl.u32 %v7192, 7
        %v7194 = vsub.s32 3, %v7193
        %v7195 = vrot.slane %v7027, %v7194
        %v7196 = vmul.f32 %v7167, %v6998
        %v7197 = vmul.f32 %v7171, %v6998
        %v7198 = vmul.f32 %v7175, %v6998
        %v7199 = vmul.f32 %v7179, %v6998
        %v7200 = vmul.f32 %v7183, %v6998
        %v7201 = vmul.f32 %v7187, %v6998
        %v7202 = vmul.f32 %v7191, %v6998
        %v7203 = vmul.f32 %v7195, %v6998
        %v7204 = vadd.f32 %v7156, %v7196
        %v7205 = vadd.f32 %v7157, %v7197
        %v7206 = vadd.f32 %v7158, %v7198
        %v7207 = vadd.f32 %v7159, %v7199
        %v7208 = vadd.f32 %v7160, %v7200
        %v7209 = vadd.f32 %v7161, %v7201
        %v7210 = vadd.f32 %v7162, %v7202
        %v7211 = vadd.f32 %v7163, %v7203
        %v7212 = vlaneseq
        %v7213 = vshrl.u32 %v7212, 7
        %v7214 = vsub.s32 4, %v7213
        %v7215 = vrot.slane %v7020, %v7214
        %v7216 = vlaneseq
        %v7217 = vshrl.u32 %v7216, 7
        %v7218 = vsub.s32 4, %v7217
        %v7219 = vrot.slane %v7021, %v7218
        %v7220 = vlaneseq
        %v7221 = vshrl.u32 %v7220, 7
        %v7222 = vsub.s32 4, %v7221
        %v7223 = vrot.slane %v7022, %v7222
        %v7224 = vlaneseq
        %v7225 = vshrl.u32 %v7224, 7
        %v7226 = vsub.s32 4, %v7225
        %v7227 = vrot.slane %v7023, %v7226
        %v7228 = vlaneseq
        %v7229 = vshrl.u32 %v7228, 7
        %v7230 = vsub.s32 4, %v7229
        %v7231 = vrot.slane %v7024, %v7230
        %v7232 = vlaneseq
        %v7233 = vshrl.u32 %v7232, 7
        %v7234 = vsub.s32 4, %v7233
        %v7235 = vrot.slane %v7025, %v7234
        %v7236 = vlaneseq
        %v7237 = vshrl.u32 %v7236, 7
        %v7238 = vsub.s32 4, %v7237
        %v7239 = vrot.slane %v7026, %v7238
        %v7240 = vlaneseq
        %v7241 = vshrl.u32 %v7240, 7
        %v7242 = vsub.s32 4, %v7241
        %v7243 = vrot.slane %v7027, %v7242
        %v7244 = vmul.f32 %v7215, %v6999
        %v7245 = vmul.f32 %v7219, %v6999
        %v7246 = vmul.f32 %v7223, %v6999
        %v7247 = vmul.f32 %v7227, %v6999
        %v7248 = vmul.f32 %v7231, %v6999
        %v7249 = vmul.f32 %v7235, %v6999
        %v7250 = vmul.f32 %v7239, %v6999
        %v7251 = vmul.f32 %v7243, %v6999
        %v7252 = vadd.f32 %v7204, %v7244
        %v7253 = vadd.f32 %v7205, %v7245
        %v7254 = vadd.f32 %v7206, %v7246
        %v7255 = vadd.f32 %v7207, %v7247
        %v7256 = vadd.f32 %v7208, %v7248
        %v7257 = vadd.f32 %v7209, %v7249
        %v7258 = vadd.f32 %v7210, %v7250
        %v7259 = vadd.f32 %v7211, %v7251
        %v7260 = vlaneseq
        %v7261 = vshrl.u32 %v7260, 7
        %v7262 = vsub.s32 5, %v7261
        %v7263 = vrot.slane %v7020, %v7262
        %v7264 = vlaneseq
        %v7265 = vshrl.u32 %v7264, 7
        %v7266 = vsub.s32 5, %v7265
        %v7267 = vrot.slane %v7021, %v7266
        %v7268 = vlaneseq
        %v7269 = vshrl.u32 %v7268, 7
        %v7270 = vsub.s32 5, %v7269
        %v7271 = vrot.slane %v7022, %v7270
        %v7272 = vlaneseq
        %v7273 = vshrl.u32 %v7272, 7
        %v7274 = vsub.s32 5, %v7273
        %v7275 = vrot.slane %v7023, %v7274
        %v7276 = vlaneseq
        %v7277 = vshrl.u32 %v7276, 7
        %v7278 = vsub.s32 5, %v7277
        %v7279 = vrot.slane %v7024, %v7278
        %v7280 = vlaneseq
        %v7281 = vshrl.u32 %v7280, 7
        %v7282 = vsub.s32 5, %v7281
        %v7283 = vrot.slane %v7025, %v7282
        %v7284 = vlaneseq
        %v7285 = vshrl.u32 %v7284, 7
        %v7286 = vsub.s32 5, %v7285
        %v7287 = vrot.slane %v7026, %v7286
        %v7288 = vlaneseq
        %v7289 = vshrl.u32 %v7288, 7
        %v7290 = vsub.s32 5, %v7289
        %v7291 = vrot.slane %v7027, %v7290
        %v7292 = vmul.f32 %v7263, %v7000
        %v7293 = vmul.f32 %v7267, %v7000
        %v7294 = vmul.f32 %v7271, %v7000
        %v7295 = vmul.f32 %v7275, %v7000
        %v7296 = vmul.f32 %v7279, %v7000
        %v7297 = vmul.f32 %v7283, %v7000
        %v7298 = vmul.f32 %v7287, %v7000
        %v7299 = vmul.f32 %v7291, %v7000
        %v7300 = vadd.f32 %v7252, %v7292
        %v7301 = vadd.f32 %v7253, %v7293
        %v7302 = vadd.f32 %v7254, %v7294
        %v7303 = vadd.f32 %v7255, %v7295
        %v7304 = vadd.f32 %v7256, %v7296
        %v7305 = vadd.f32 %v7257, %v7297
        %v7306 = vadd.f32 %v7258, %v7298
        %v7307 = vadd.f32 %v7259, %v7299
        %v7308 = vlaneseq
        %v7309 = vshrl.u32 %v7308, 7
        %v7310 = vsub.s32 6, %v7309
        %v7311 = vrot.slane %v7020, %v7310
        %v7312 = vlaneseq
        %v7313 = vshrl.u32 %v7312, 7
        %v7314 = vsub.s32 6, %v7313
        %v7315 = vrot.slane %v7021, %v7314
        %v7316 = vlaneseq
        %v7317 = vshrl.u32 %v7316, 7
        %v7318 = vsub.s32 6, %v7317
        %v7319 = vrot.slane %v7022, %v7318
        %v7320 = vlaneseq
        %v7321 = vshrl.u32 %v7320, 7
        %v7322 = vsub.s32 6, %v7321
        %v7323 = vrot.slane %v7023, %v7322
        %v7324 = vlaneseq
        %v7325 = vshrl.u32 %v7324, 7
        %v7326 = vsub.s32 6, %v7325
        %v7327 = vrot.slane %v7024, %v7326
        %v7328 = vlaneseq
        %v7329 = vshrl.u32 %v7328, 7
        %v7330 = vsub.s32 6, %v7329
        %v7331 = vrot.slane %v7025, %v7330
        %v7332 = vlaneseq
        %v7333 = vshrl.u32 %v7332, 7
        %v7334 = vsub.s32 6, %v7333
        %v7335 = vrot.slane %v7026, %v7334
        %v7336 = vlaneseq
        %v7337 = vshrl.u32 %v7336, 7
        %v7338 = vsub.s32 6, %v7337
        %v7339 = vrot.slane %v7027, %v7338
        %v7340 = vmul.f32 %v7311, %v7001
        %v7341 = vmul.f32 %v7315, %v7001
        %v7342 = vmul.f32 %v7319, %v7001
        %v7343 = vmul.f32 %v7323, %v7001
        %v7344 = vmul.f32 %v7327, %v7001
        %v7345 = vmul.f32 %v7331, %v7001
        %v7346 = vmul.f32 %v7335, %v7001
        %v7347 = vmul.f32 %v7339, %v7001
        %v7348 = vadd.f32 %v7300, %v7340
        %v7349 = vadd.f32 %v7301, %v7341
        %v7350 = vadd.f32 %v7302, %v7342
        %v7351 = vadd.f32 %v7303, %v7343
        %v7352 = vadd.f32 %v7304, %v7344
        %v7353 = vadd.f32 %v7305, %v7345
        %v7354 = vadd.f32 %v7306, %v7346
        %v7355 = vadd.f32 %v7307, %v7347
        %v7356 = vlaneseq
        %v7357 = vshrl.u32 %v7356, 7
        %v7358 = vsub.s32 7, %v7357
        %v7359 = vrot.slane %v7020, %v7358
        %v7360 = vlaneseq
        %v7361 = vshrl.u32 %v7360, 7
        %v7362 = vsub.s32 7, %v7361
        %v7363 = vrot.slane %v7021, %v7362
        %v7364 = vlaneseq
        %v7365 = vshrl.u32 %v7364, 7
        %v7366 = vsub.s32 7, %v7365
        %v7367 = vrot.slane %v7022, %v7366
        %v7368 = vlaneseq
        %v7369 = vshrl.u32 %v7368, 7
        %v7370 = vsub.s32 7, %v7369
        %v7371 = vrot.slane %v7023, %v7370
        %v7372 = vlaneseq
        %v7373 = vshrl.u32 %v7372, 7
        %v7374 = vsub.s32 7, %v7373
        %v7375 = vrot.slane %v7024, %v7374
        %v7376 = vlaneseq
        %v7377 = vshrl.u32 %v7376, 7
        %v7378 = vsub.s32 7, %v7377
        %v7379 = vrot.slane %v7025, %v7378
        %v7380 = vlaneseq
        %v7381 = vshrl.u32 %v7380, 7
        %v7382 = vsub.s32 7, %v7381
        %v7383 = vrot.slane %v7026, %v7382
        %v7384 = vlaneseq
        %v7385 = vshrl.u32 %v7384, 7
        %v7386 = vsub.s32 7, %v7385
        %v7387 = vrot.slane %v7027, %v7386
        %v7388 = vmul.f32 %v7359, %v7002
        %v7389 = vmul.f32 %v7363, %v7002
        %v7390 = vmul.f32 %v7367, %v7002
        %v7391 = vmul.f32 %v7371, %v7002
        %v7392 = vmul.f32 %v7375, %v7002
        %v7393 = vmul.f32 %v7379, %v7002
        %v7394 = vmul.f32 %v7383, %v7002
        %v7395 = vmul.f32 %v7387, %v7002
        %v7396 = vadd.f32 %v7348, %v7388
        %v7397 = vadd.f32 %v7349, %v7389
        %v7398 = vadd.f32 %v7350, %v7390
        %v7399 = vadd.f32 %v7351, %v7391
        %v7400 = vadd.f32 %v7352, %v7392
        %v7401 = vadd.f32 %v7353, %v7393
        %v7402 = vadd.f32 %v7354, %v7394
        %v7403 = vadd.f32 %v7355, %v7395
        %vm7404 = vcmask 15360
        %7405 = vst.msk [vmem:[#allocation2] sm:$0xff] %vm7404, %v7396
        %7406 = vst.msk [vmem:[#allocation2 + $0x8] sm:$0xff] %vm7404, %v7397
        %7407 = vst.msk [vmem:[#allocation2 + $0x10] sm:$0xff] %vm7404, %v7398
        %7408 = vst.msk [vmem:[#allocation2 + $0x18] sm:$0xff] %vm7404, %v7399
        %7409 = vst.msk [vmem:[#allocation2 + $0x20] sm:$0xff] %vm7404, %v7400
        %7410 = vst.msk [vmem:[#allocation2 + $0x28] sm:$0xff] %vm7404, %v7401
        %7411 = vst.msk [vmem:[#allocation2 + $0x30] sm:$0xff] %vm7404, %v7402
        %7412 = vst.msk [vmem:[#allocation2 + $0x38] sm:$0xff] %vm7404, %v7403
      $region36: #{tpu_custom_call.1} parent=27 // pred_fallthru
        _
      // Predicated region
      $region37: #{tpu_custom_call.1} parent=27 // pred_check
        %p7413 = pneg %p7003
      $region38: #{tpu_custom_call.1} parent=27 // pred_check_branch
        %7415 = sbr.rel (%p7413) target = $region40
      $region39: #{tpu_custom_call.1} parent=27 // pred_region
        %v7416 = vld [vmem:[#allocation2] sm:$0xff]
        %v7417 = vld [vmem:[#allocation2 + $0x8] sm:$0xff]
        %v7418 = vld [vmem:[#allocation2 + $0x10] sm:$0xff]
        %v7419 = vld [vmem:[#allocation2 + $0x18] sm:$0xff]
        %v7420 = vld [vmem:[#allocation2 + $0x20] sm:$0xff]
        %v7421 = vld [vmem:[#allocation2 + $0x28] sm:$0xff]
        %v7422 = vld [vmem:[#allocation2 + $0x30] sm:$0xff]
        %v7423 = vld [vmem:[#allocation2 + $0x38] sm:$0xff]
        %vm7424 = vcmask 15360
        %7425 = vst.msk [vmem:[%s172] sm:$0xff] %vm7424, %v7416
        %7426 = vst.msk [vmem:[%s172 + $0x8] sm:$0xff] %vm7424, %v7417
        %7427 = vst.msk [vmem:[%s172 + $0x10] sm:$0xff] %vm7424, %v7418
        %7428 = vst.msk [vmem:[%s172 + $0x18] sm:$0xff] %vm7424, %v7419
        %7429 = vst.msk [vmem:[%s172 + $0x20] sm:$0xff] %vm7424, %v7420
        %7430 = vst.msk [vmem:[%s172 + $0x28] sm:$0xff] %vm7424, %v7421
        %7431 = vst.msk [vmem:[%s172 + $0x30] sm:$0xff] %vm7424, %v7422
        %7432 = vst.msk [vmem:[%s172 + $0x38] sm:$0xff] %vm7424, %v7423
      $region40: #{tpu_custom_call.1} parent=27 // pred_fallthru
        _
      %p7433 = scmp.lt.s32.totalorder %s17, 1
      %s7434 = scalar_select %p7433, %s17, 1
      %s7435 = smul.addr %s7434, 8
      %s7436 = smul.addr %s7435, 8
      %s7437 = scalar_lea.vmem %s2, %s7436
      // Predicated region
      $region41: #{tpu_custom_call.1} parent=27 // pred_check
        %p7438 = pneg %p95
      $region42: #{tpu_custom_call.1} parent=27 // pred_check_branch
        %7440 = sbr.rel (%p7438) target = $region44
      $region43: #{tpu_custom_call.1} parent=27 // pred_region
        _
      $region44: #{tpu_custom_call.1} parent=27 // pred_fallthru
        _
    $region28: #{tpu_custom_call.1} parent=5 // pred_fallthru
      _
    %p7441 = scmp.le.s32.totalorder 2, %s8
    // Predicated region
    $region45: #{tpu_custom_call.1} parent=5 // pred_check
      %p7442 = pneg %p7441
    $region46: #{tpu_custom_call.1} parent=5 // pred_check_branch
      %7444 = sbr.rel (%p7442) target = $region48
    $region47: #{tpu_custom_call.1} parent=5 // pred_region
      %s7445 = ssub.s32 %s8, 2
      // Predicated region
      $region49: #{tpu_custom_call.1} parent=47 // pred_check
        %p7446 = pneg %p101
      $region50: #{tpu_custom_call.1} parent=47 // pred_check_branch
        %7448 = sbr.rel (%p7446) target = $region52
      $region51: #{tpu_custom_call.1} parent=47 // pred_region
        %p7449 = scmp.lt.s32.totalorder %s19, 1
        %s7450 = scalar_select %p7449, %s19, 1
        %s7451 = smul.addr %s7450, 8
        %s7452 = smul.addr %s7451, 8
        %s7453 = scalar_lea.vmem %s2, %s7452
      $region52: #{tpu_custom_call.1} parent=47 // pred_fallthru
        _
    $region48: #{tpu_custom_call.1} parent=5 // pred_fallthru
      _
  $region6: #{tpu_custom_call.1} parent=0 // loop_footer
    %s12 = sadd.s32 1, %s8
  $region7: #{tpu_custom_call.1} parent=0 // loop_footer_branch
    %7 = sbr.rel target = $region3
  $region8: #{tpu_custom_call.1} parent=0 // loop_exit
    _

</llo_original>
